<compile_context>
chip_gen: v6e
topology: v6e:2x2x1
jax: 0.10.0
libtpu: 0.0.40
codegen_flags: <defaults>
</compile_context>

<pallas_src>
import jax
import jax.numpy as jnp
from jax.experimental import pallas as pl
from jax.experimental.pallas import tpu as pltpu


def _upsample_kernel(x_ref, d_ref, w_ref, b_ref, o_ref):
    """One (batch, row-tile) step of ConvTranspose2d(k=2, s=2).

    x_ref : (1, Cin, tR, gW)     x_ref[0, ci, r, m*W + j] == x[n, ci, r*g+m, j]
    d_ref : (gW, g4W)            0/1 spread matrix (lane duplicate + di/dj layout)
    w_ref : (Cin, Cout, 1, g4W)  w_ref[ci, co, 0, q] == W[ci, co, di(q), dj(q)]
    b_ref : (Cout, 1, g4W)       bias, pre-broadcast along lanes
    o_ref : (1, Cout, tR, g4W)   o_ref[0, co, r, m*4W + di*2W + 2j + dj]
                                   == out[n, co, 2*(r*g+m)+di, 2j+dj]
    """
    cin = x_ref.shape[1]
    cout = o_ref.shape[1]
    t_r = x_ref.shape[2]

    d = d_ref[...]  # tiny, loop-invariant

    def process(r0, rows):
        # Spread each input plane chunk into the output lane pattern (MXU).
        # HIGHEST precision: D is a 0/1 selection matrix, so the result is the
        # exact f32 input value at every output lane.
        xr = []
        for ci in range(cin):
            xc = x_ref[0, ci, pl.ds(r0, rows), :]
            xr.append(jnp.dot(xc, d,
                              preferred_element_type=jnp.float32,
                              precision=jax.lax.Precision.HIGHEST))
        # Cin-deep VPU broadcast-FMA chain + bias; one full-width store per co.
        for co in range(cout):
            acc = xr[0] * w_ref[0, co]
            for ci in range(1, cin):
                acc = acc + xr[ci] * w_ref[ci, co]
            acc = acc + b_ref[co]
            o_ref[0, co, pl.ds(r0, rows), :] = acc.astype(o_ref.dtype)

    # Process the block in small row chunks so the FMA chain stays in vregs.
    chunk = min(8, t_r)
    n_full = t_r // chunk
    rem = t_r - n_full * chunk

    if n_full <= 8:
        for k in range(n_full):          # static offsets -> free views
            process(k * chunk, chunk)
    else:                                # only hit for very tall fallback tiles
        def body(k, carry):
            process(pl.multiple_of(k * chunk, chunk), chunk)
            return carry
        jax.lax.fori_loop(0, n_full, body, 0)
    if rem:
        process(n_full * chunk, rem)


def _row_group(h, w, target_lanes=512):
    """Smallest divisor g of H with g*4*W >= target_lanes (lane-dense stores);
    falls back to the largest divisor (H) if the image is too small."""
    best = h
    for g in range(1, h + 1):
        if h % g == 0:
            best = g
            if g * 4 * w >= target_lanes:
                break
    return best


def _row_tile(r, n_batch, bytes_per_row, max_block_bytes, sub):
    """Row tile that divides R, respects the sublane multiple, keeps the
    output block within budget, and prefers >=8 total grid steps (v7x)."""
    cap = max(1, max_block_bytes // max(1, bytes_per_row))
    cands = sorted({t for t in range(sub, r + 1, sub) if r % t == 0} | {r})
    fits = [t for t in cands if t <= cap]
    pool = fits if fits else [min(cands)]        # bounded fallback, never huge
    good = [t for t in pool if n_batch * (r // t) >= 8]
    return max(good) if good else max(pool)


def upsample_forward(x_nchw, weight, bias, *, max_out_block_bytes=1 << 20):
    """ConvTranspose2d(kernel_size=2, stride=2) forward.

    x_nchw : (N, C_in, H, W)
    weight : (C_in, C_out, 2, 2)   (PyTorch ConvTranspose2d weight layout)
    bias   : (C_out,)
    returns: (N, C_out, 2H, 2W)
    """
    n, cin, h, w = x_nchw.shape
    cout = weight.shape[1]
    out_dtype = x_nchw.dtype
    itemsize = jnp.dtype(out_dtype).itemsize
    sub = {4: 8, 2: 16, 1: 32}.get(itemsize, 8)   # sublane multiple per dtype

    g = _row_group(h, w)
    r = h // g
    gw, g4w = g * w, 4 * g * w

    # --- free reshape: pack g consecutive image rows into lanes (NCHW order) ---
    xg = x_nchw.reshape(n, cin, r, gw)

    # --- tiny precomputed lane patterns (O(weights), no output-sized passes) ---
    # Output lane q within one grouped row decodes as:
    #   m = q // 4W (packed input row), di = (q % 4W) // 2W, j = (q % 2W)//2, dj = q % 2
    q = jnp.arange(g4w)
    m = q // (4 * w)
    di = (q % (4 * w)) // (2 * w)
    j = (q % (2 * w)) // 2
    dj = q % 2

    # 0/1 spread matrix: input lane (m*W + j) feeds output lane q.
    # TODO(synk): for very wide images (W >~ 512) split D along lanes to bound
    # its VMEM footprint.
    src = m * w + j
    d_mat = (jnp.arange(gw)[:, None] == src[None, :]).astype(jnp.float32)   # (gW, g4W)

    # Weight lane pattern and lane-broadcast bias.
    wpat = weight.astype(jnp.float32)[:, :, di, dj][:, :, None, :]          # (Cin,Cout,1,g4W)
    bpat = jnp.broadcast_to(bias.astype(jnp.float32)[:, None, None],
                            (cout, 1, g4w))                                 # (Cout,1,g4W)

    t_r = _row_tile(r, n, cout * g4w * itemsize, max_out_block_bytes, sub)

    out = pl.pallas_call(
        _upsample_kernel,
        out_shape=jax.ShapeDtypeStruct((n, cout, r, g4w), out_dtype),
        grid_spec=pltpu.PrefetchScalarGridSpec(
            num_scalar_prefetch=0,
            grid=(n, r // t_r),
            in_specs=[
                pl.BlockSpec((1, cin, t_r, gw), lambda b, rt: (b, 0, rt, 0)),
                pl.BlockSpec((gw, g4w), lambda b, rt: (0, 0)),
                pl.BlockSpec((cin, cout, 1, g4w), lambda b, rt: (0, 0, 0, 0)),
                pl.BlockSpec((cout, 1, g4w), lambda b, rt: (0, 0, 0)),
            ],
            out_specs=pl.BlockSpec((1, cout, t_r, g4w),
                                   lambda b, rt: (b, 0, rt, 0)),
        ),
        compiler_params=pltpu.CompilerParams(
            # Independent blocks -> shard across TensorCores (v7x megacore).
            dimension_semantics=("parallel", "parallel"),
            # Explicit, conservative scoped-VMEM budget (safe on v5e/v6e/v7x;
            # blocks are <=~1 MiB each so this leaves ample headroom).
            vmem_limit_bytes=32 * 1024 * 1024,
        ),
    )(xg, d_mat, wpat, bpat)

    # (N, Cout, H/g, g*4W) -> (N, Cout, 2H, 2W): memory order preserved, free.
    return out.reshape(n, cout, 2 * h, 2 * w)


if __name__ == "__main__":
    key = jax.random.PRNGKey(0)
    k_x, k_w, k_b = jax.random.split(key, 3)

    # Small shapes consistent with the module: in_channels=4, out_channels=8.
    N, Cin, Cout, H, W = 2, 4, 8, 16, 16

    x = jax.random.normal(k_x, (N, Cin, H, W), dtype=jnp.float32)
    weight = jax.random.normal(k_w, (Cin, Cout, 2, 2), dtype=jnp.float32) * 0.1
    bias = jax.random.normal(k_b, (Cout,), dtype=jnp.float32) * 0.1

    out = jax.jit(upsample_forward)(x, weight, bias)
    out = jax.block_until_ready(out)

    # Reference: exact f32 ConvTranspose2d(k=2, s=2) semantics (pure broadcast
    # + sum, so it does not depend on XLA dot precision defaults).
    ref = (x[:, :, None, :, None, :, None] *
           weight[None, :, :, None, :, None, :]).sum(axis=1)      # (N,Cout,H,2,W,2)
    ref = ref.reshape(N, Cout, 2 * H, 2 * W) + bias[None, :, None, None]

    assert out.shape == (N, Cout, 2 * H, 2 * W)
    err = float(jnp.max(jnp.abs(out - ref)))
    assert jnp.allclose(out, ref, atol=1e-4, rtol=1e-4), f"max abs err {err}"

    print("KERNEL_OK")
</pallas_src>

<mosaic_0001>
module attributes {stable_mosaic.version = 11 : i64} {
  func.func @_upsample_kernel(%arg0: i32, %arg1: i32, %arg2: memref<1x4x2x128xf32, #tpu.memory_space<vmem>>, %arg3: memref<128x512xf32, #tpu.memory_space<vmem>>, %arg4: memref<4x8x1x512xf32, #tpu.memory_space<vmem>>, %arg5: memref<8x1x512xf32, #tpu.memory_space<vmem>>, %arg6: memref<1x8x2x512xf32, #tpu.memory_space<vmem>>) attributes {dimension_semantics = [#tpu.dimension_semantics<parallel>, #tpu.dimension_semantics<parallel>], iteration_bounds = array<i64: 2, 1>, scalar_prefetch = 0 : i64, scratch_operands = 0 : i64, tpu.core_type = #tpu.core_type<tc>, window_params = [{transform_indices = @transform_0, window_bounds = array<i64: 1, 4, 2, 128>}, {pipeline_mode = #tpu.pipeline_mode<synchronous>, transform_indices = @transform_1, window_bounds = array<i64: 128, 512>}, {pipeline_mode = #tpu.pipeline_mode<synchronous>, transform_indices = @transform_2, window_bounds = array<i64: 4, 8, 1, 512>}, {pipeline_mode = #tpu.pipeline_mode<synchronous>, transform_indices = @transform_3, window_bounds = array<i64: 8, 1, 512>}, {transform_indices = @transform_4, window_bounds = array<i64: 1, 8, 2, 512>}]} {
    %c0 = arith.constant 0 : index
    %c0_0 = arith.constant 0 : index
    %0 = vector.load %arg3[%c0, %c0_0] : memref<128x512xf32, #tpu.memory_space<vmem>>, vector<128x512xf32>
    %c0_1 = arith.constant 0 : index
    %c0_2 = arith.constant 0 : index
    %c0_3 = arith.constant 0 : index
    %c0_4 = arith.constant 0 : index
    %1 = vector.load %arg2[%c0_1, %c0_2, %c0_3, %c0_4] : memref<1x4x2x128xf32, #tpu.memory_space<vmem>>, vector<1x1x2x128xf32>
    %2 = vector.shape_cast %1 : vector<1x1x2x128xf32> to vector<2x128xf32>
    %cst = arith.constant dense<0.000000e+00> : vector<2x512xf32>
    %3 = tpu.matmul %2, %0, %cst {dimension_numbers = #tpu.dot_dimension_numbers<[1], [0], [0], [1], [0, 0, 1, 1], [], []>, precision = #tpu.contract_precision<fp32>} : vector<2x128xf32>, vector<128x512xf32>, vector<2x512xf32> -> vector<2x512xf32>
    %c0_5 = arith.constant 0 : index
    %c1 = arith.constant 1 : index
    %c0_6 = arith.constant 0 : index
    %c0_7 = arith.constant 0 : index
    %4 = vector.load %arg2[%c0_5, %c1, %c0_6, %c0_7] : memref<1x4x2x128xf32, #tpu.memory_space<vmem>>, vector<1x1x2x128xf32>
    %5 = vector.shape_cast %4 : vector<1x1x2x128xf32> to vector<2x128xf32>
    %cst_8 = arith.constant dense<0.000000e+00> : vector<2x512xf32>
    %6 = tpu.matmul %5, %0, %cst_8 {dimension_numbers = #tpu.dot_dimension_numbers<[1], [0], [0], [1], [0, 0, 1, 1], [], []>, precision = #tpu.contract_precision<fp32>} : vector<2x128xf32>, vector<128x512xf32>, vector<2x512xf32> -> vector<2x512xf32>
    %c0_9 = arith.constant 0 : index
    %c2 = arith.constant 2 : index
    %c0_10 = arith.constant 0 : index
    %c0_11 = arith.constant 0 : index
    %7 = vector.load %arg2[%c0_9, %c2, %c0_10, %c0_11] : memref<1x4x2x128xf32, #tpu.memory_space<vmem>>, vector<1x1x2x128xf32>
    %8 = vector.shape_cast %7 : vector<1x1x2x128xf32> to vector<2x128xf32>
    %cst_12 = arith.constant dense<0.000000e+00> : vector<2x512xf32>
    %9 = tpu.matmul %8, %0, %cst_12 {dimension_numbers = #tpu.dot_dimension_numbers<[1], [0], [0], [1], [0, 0, 1, 1], [], []>, precision = #tpu.contract_precision<fp32>} : vector<2x128xf32>, vector<128x512xf32>, vector<2x512xf32> -> vector<2x512xf32>
    %c0_13 = arith.constant 0 : index
    %c3 = arith.constant 3 : index
    %c0_14 = arith.constant 0 : index
    %c0_15 = arith.constant 0 : index
    %10 = vector.load %arg2[%c0_13, %c3, %c0_14, %c0_15] : memref<1x4x2x128xf32, #tpu.memory_space<vmem>>, vector<1x1x2x128xf32>
    %11 = vector.shape_cast %10 : vector<1x1x2x128xf32> to vector<2x128xf32>
    %cst_16 = arith.constant dense<0.000000e+00> : vector<2x512xf32>
    %12 = tpu.matmul %11, %0, %cst_16 {dimension_numbers = #tpu.dot_dimension_numbers<[1], [0], [0], [1], [0, 0, 1, 1], [], []>, precision = #tpu.contract_precision<fp32>} : vector<2x128xf32>, vector<128x512xf32>, vector<2x512xf32> -> vector<2x512xf32>
    %c0_17 = arith.constant 0 : index
    %c0_18 = arith.constant 0 : index
    %c0_19 = arith.constant 0 : index
    %c0_20 = arith.constant 0 : index
    %13 = vector.load %arg4[%c0_17, %c0_18, %c0_19, %c0_20] : memref<4x8x1x512xf32, #tpu.memory_space<vmem>>, vector<1x1x1x512xf32>
    %14 = vector.shape_cast %13 : vector<1x1x1x512xf32> to vector<1x512xf32>
    %15 = vector.broadcast %14 : vector<1x512xf32> to vector<2x512xf32>
    %16 = arith.mulf %3, %15 : vector<2x512xf32>
    %c1_21 = arith.constant 1 : index
    %c0_22 = arith.constant 0 : index
    %c0_23 = arith.constant 0 : index
    %c0_24 = arith.constant 0 : index
    %17 = vector.load %arg4[%c1_21, %c0_22, %c0_23, %c0_24] : memref<4x8x1x512xf32, #tpu.memory_space<vmem>>, vector<1x1x1x512xf32>
    %18 = vector.shape_cast %17 : vector<1x1x1x512xf32> to vector<1x512xf32>
    %19 = vector.broadcast %18 : vector<1x512xf32> to vector<2x512xf32>
    %20 = arith.mulf %6, %19 : vector<2x512xf32>
    %21 = arith.addf %16, %20 : vector<2x512xf32>
    %c2_25 = arith.constant 2 : index
    %c0_26 = arith.constant 0 : index
    %c0_27 = arith.constant 0 : index
    %c0_28 = arith.constant 0 : index
    %22 = vector.load %arg4[%c2_25, %c0_26, %c0_27, %c0_28] : memref<4x8x1x512xf32, #tpu.memory_space<vmem>>, vector<1x1x1x512xf32>
    %23 = vector.shape_cast %22 : vector<1x1x1x512xf32> to vector<1x512xf32>
    %24 = vector.broadcast %23 : vector<1x512xf32> to vector<2x512xf32>
    %25 = arith.mulf %9, %24 : vector<2x512xf32>
    %26 = arith.addf %21, %25 : vector<2x512xf32>
    %c3_29 = arith.constant 3 : index
    %c0_30 = arith.constant 0 : index
    %c0_31 = arith.constant 0 : index
    %c0_32 = arith.constant 0 : index
    %27 = vector.load %arg4[%c3_29, %c0_30, %c0_31, %c0_32] : memref<4x8x1x512xf32, #tpu.memory_space<vmem>>, vector<1x1x1x512xf32>
    %28 = vector.shape_cast %27 : vector<1x1x1x512xf32> to vector<1x512xf32>
    %29 = vector.broadcast %28 : vector<1x512xf32> to vector<2x512xf32>
    %30 = arith.mulf %12, %29 : vector<2x512xf32>
    %31 = arith.addf %26, %30 : vector<2x512xf32>
    %c0_33 = arith.constant 0 : index
    %c0_34 = arith.constant 0 : index
    %c0_35 = arith.constant 0 : index
    %32 = vector.load %arg5[%c0_33, %c0_34, %c0_35] : memref<8x1x512xf32, #tpu.memory_space<vmem>>, vector<1x1x512xf32>
    %33 = vector.shape_cast %32 : vector<1x1x512xf32> to vector<1x512xf32>
    %34 = vector.broadcast %33 : vector<1x512xf32> to vector<2x512xf32>
    %35 = arith.addf %31, %34 : vector<2x512xf32>
    %c0_36 = arith.constant 0 : index
    %c0_37 = arith.constant 0 : index
    %c0_38 = arith.constant 0 : index
    %c0_39 = arith.constant 0 : index
    %36 = vector.load %arg6[%c0_36, %c0_37, %c0_38, %c0_39] : memref<1x8x2x512xf32, #tpu.memory_space<vmem>>, vector<1x1x2x512xf32>
    %37 = vector.shape_cast %36 : vector<1x1x2x512xf32> to vector<2x512xf32>
    %38 = vector.shape_cast %35 : vector<2x512xf32> to vector<1x1x2x512xf32>
    tpu.vector_store %arg6[%c0_36, %c0_37, %c0_38, %c0_39], %38 {strides = array<i32>} : memref<1x8x2x512xf32, #tpu.memory_space<vmem>>, vector<1x1x2x512xf32>,
    %c0_40 = arith.constant 0 : index
    %c1_41 = arith.constant 1 : index
    %c0_42 = arith.constant 0 : index
    %c0_43 = arith.constant 0 : index
    %39 = vector.load %arg4[%c0_40, %c1_41, %c0_42, %c0_43] : memref<4x8x1x512xf32, #tpu.memory_space<vmem>>, vector<1x1x1x512xf32>
    %40 = vector.shape_cast %39 : vector<1x1x1x512xf32> to vector<1x512xf32>
    %41 = vector.broadcast %40 : vector<1x512xf32> to vector<2x512xf32>
    %42 = arith.mulf %3, %41 : vector<2x512xf32>
    %c1_44 = arith.constant 1 : index
    %c1_45 = arith.constant 1 : index
    %c0_46 = arith.constant 0 : index
    %c0_47 = arith.constant 0 : index
    %43 = vector.load %arg4[%c1_44, %c1_45, %c0_46, %c0_47] : memref<4x8x1x512xf32, #tpu.memory_space<vmem>>, vector<1x1x1x512xf32>
    %44 = vector.shape_cast %43 : vector<1x1x1x512xf32> to vector<1x512xf32>
    %45 = vector.broadcast %44 : vector<1x512xf32> to vector<2x512xf32>
    %46 = arith.mulf %6, %45 : vector<2x512xf32>
    %47 = arith.addf %42, %46 : vector<2x512xf32>
    %c2_48 = arith.constant 2 : index
    %c1_49 = arith.constant 1 : index
    %c0_50 = arith.constant 0 : index
    %c0_51 = arith.constant 0 : index
    %48 = vector.load %arg4[%c2_48, %c1_49, %c0_50, %c0_51] : memref<4x8x1x512xf32, #tpu.memory_space<vmem>>, vector<1x1x1x512xf32>
    %49 = vector.shape_cast %48 : vector<1x1x1x512xf32> to vector<1x512xf32>
    %50 = vector.broadcast %49 : vector<1x512xf32> to vector<2x512xf32>
    %51 = arith.mulf %9, %50 : vector<2x512xf32>
    %52 = arith.addf %47, %51 : vector<2x512xf32>
    %c3_52 = arith.constant 3 : index
    %c1_53 = arith.constant 1 : index
    %c0_54 = arith.constant 0 : index
    %c0_55 = arith.constant 0 : index
    %53 = vector.load %arg4[%c3_52, %c1_53, %c0_54, %c0_55] : memref<4x8x1x512xf32, #tpu.memory_space<vmem>>, vector<1x1x1x512xf32>
    %54 = vector.shape_cast %53 : vector<1x1x1x512xf32> to vector<1x512xf32>
    %55 = vector.broadcast %54 : vector<1x512xf32> to vector<2x512xf32>
    %56 = arith.mulf %12, %55 : vector<2x512xf32>
    %57 = arith.addf %52, %56 : vector<2x512xf32>
    %c1_56 = arith.constant 1 : index
    %c0_57 = arith.constant 0 : index
    %c0_58 = arith.constant 0 : index
    %58 = vector.load %arg5[%c1_56, %c0_57, %c0_58] : memref<8x1x512xf32, #tpu.memory_space<vmem>>, vector<1x1x512xf32>
    %59 = vector.shape_cast %58 : vector<1x1x512xf32> to vector<1x512xf32>
    %60 = vector.broadcast %59 : vector<1x512xf32> to vector<2x512xf32>
    %61 = arith.addf %57, %60 : vector<2x512xf32>
    %c0_59 = arith.constant 0 : index
    %c1_60 = arith.constant 1 : index
    %c0_61 = arith.constant 0 : index
    %c0_62 = arith.constant 0 : index
    %62 = vector.load %arg6[%c0_59, %c1_60, %c0_61, %c0_62] : memref<1x8x2x512xf32, #tpu.memory_space<vmem>>, vector<1x1x2x512xf32>
    %63 = vector.shape_cast %62 : vector<1x1x2x512xf32> to vector<2x512xf32>
    %64 = vector.shape_cast %61 : vector<2x512xf32> to vector<1x1x2x512xf32>
    tpu.vector_store %arg6[%c0_59, %c1_60, %c0_61, %c0_62], %64 {strides = array<i32>} : memref<1x8x2x512xf32, #tpu.memory_space<vmem>>, vector<1x1x2x512xf32>,
    %c0_63 = arith.constant 0 : index
    %c2_64 = arith.constant 2 : index
    %c0_65 = arith.constant 0 : index
    %c0_66 = arith.constant 0 : index
    %65 = vector.load %arg4[%c0_63, %c2_64, %c0_65, %c0_66] : memref<4x8x1x512xf32, #tpu.memory_space<vmem>>, vector<1x1x1x512xf32>
    %66 = vector.shape_cast %65 : vector<1x1x1x512xf32> to vector<1x512xf32>
    %67 = vector.broadcast %66 : vector<1x512xf32> to vector<2x512xf32>
    %68 = arith.mulf %3, %67 : vector<2x512xf32>
    %c1_67 = arith.constant 1 : index
    %c2_68 = arith.constant 2 : index
    %c0_69 = arith.constant 0 : index
    %c0_70 = arith.constant 0 : index
    %69 = vector.load %arg4[%c1_67, %c2_68, %c0_69, %c0_70] : memref<4x8x1x512xf32, #tpu.memory_space<vmem>>, vector<1x1x1x512xf32>
    %70 = vector.shape_cast %69 : vector<1x1x1x512xf32> to vector<1x512xf32>
    %71 = vector.broadcast %70 : vector<1x512xf32> to vector<2x512xf32>
    %72 = arith.mulf %6, %71 : vector<2x512xf32>
    %73 = arith.addf %68, %72 : vector<2x512xf32>
    %c2_71 = arith.constant 2 : index
    %c2_72 = arith.constant 2 : index
    %c0_73 = arith.constant 0 : index
    %c0_74 = arith.constant 0 : index
    %74 = vector.load %arg4[%c2_71, %c2_72, %c0_73, %c0_74] : memref<4x8x1x512xf32, #tpu.memory_space<vmem>>, vector<1x1x1x512xf32>
    %75 = vector.shape_cast %74 : vector<1x1x1x512xf32> to vector<1x512xf32>
    %76 = vector.broadcast %75 : vector<1x512xf32> to vector<2x512xf32>
    %77 = arith.mulf %9, %76 : vector<2x512xf32>
    %78 = arith.addf %73, %77 : vector<2x512xf32>
    %c3_75 = arith.constant 3 : index
    %c2_76 = arith.constant 2 : index
    %c0_77 = arith.constant 0 : index
    %c0_78 = arith.constant 0 : index
    %79 = vector.load %arg4[%c3_75, %c2_76, %c0_77, %c0_78] : memref<4x8x1x512xf32, #tpu.memory_space<vmem>>, vector<1x1x1x512xf32>
    %80 = vector.shape_cast %79 : vector<1x1x1x512xf32> to vector<1x512xf32>
    %81 = vector.broadcast %80 : vector<1x512xf32> to vector<2x512xf32>
    %82 = arith.mulf %12, %81 : vector<2x512xf32>
    %83 = arith.addf %78, %82 : vector<2x512xf32>
    %c2_79 = arith.constant 2 : index
    %c0_80 = arith.constant 0 : index
    %c0_81 = arith.constant 0 : index
    %84 = vector.load %arg5[%c2_79, %c0_80, %c0_81] : memref<8x1x512xf32, #tpu.memory_space<vmem>>, vector<1x1x512xf32>
    %85 = vector.shape_cast %84 : vector<1x1x512xf32> to vector<1x512xf32>
    %86 = vector.broadcast %85 : vector<1x512xf32> to vector<2x512xf32>
    %87 = arith.addf %83, %86 : vector<2x512xf32>
    %c0_82 = arith.constant 0 : index
    %c2_83 = arith.constant 2 : index
    %c0_84 = arith.constant 0 : index
    %c0_85 = arith.constant 0 : index
    %88 = vector.load %arg6[%c0_82, %c2_83, %c0_84, %c0_85] : memref<1x8x2x512xf32, #tpu.memory_space<vmem>>, vector<1x1x2x512xf32>
    %89 = vector.shape_cast %88 : vector<1x1x2x512xf32> to vector<2x512xf32>
    %90 = vector.shape_cast %87 : vector<2x512xf32> to vector<1x1x2x512xf32>
    tpu.vector_store %arg6[%c0_82, %c2_83, %c0_84, %c0_85], %90 {strides = array<i32>} : memref<1x8x2x512xf32, #tpu.memory_space<vmem>>, vector<1x1x2x512xf32>,
    %c0_86 = arith.constant 0 : index
    %c3_87 = arith.constant 3 : index
    %c0_88 = arith.constant 0 : index
    %c0_89 = arith.constant 0 : index
    %91 = vector.load %arg4[%c0_86, %c3_87, %c0_88, %c0_89] : memref<4x8x1x512xf32, #tpu.memory_space<vmem>>, vector<1x1x1x512xf32>
    %92 = vector.shape_cast %91 : vector<1x1x1x512xf32> to vector<1x512xf32>
    %93 = vector.broadcast %92 : vector<1x512xf32> to vector<2x512xf32>
    %94 = arith.mulf %3, %93 : vector<2x512xf32>
    %c1_90 = arith.constant 1 : index
    %c3_91 = arith.constant 3 : index
    %c0_92 = arith.constant 0 : index
    %c0_93 = arith.constant 0 : index
    %95 = vector.load %arg4[%c1_90, %c3_91, %c0_92, %c0_93] : memref<4x8x1x512xf32, #tpu.memory_space<vmem>>, vector<1x1x1x512xf32>
    %96 = vector.shape_cast %95 : vector<1x1x1x512xf32> to vector<1x512xf32>
    %97 = vector.broadcast %96 : vector<1x512xf32> to vector<2x512xf32>
    %98 = arith.mulf %6, %97 : vector<2x512xf32>
    %99 = arith.addf %94, %98 : vector<2x512xf32>
    %c2_94 = arith.constant 2 : index
    %c3_95 = arith.constant 3 : index
    %c0_96 = arith.constant 0 : index
    %c0_97 = arith.constant 0 : index
    %100 = vector.load %arg4[%c2_94, %c3_95, %c0_96, %c0_97] : memref<4x8x1x512xf32, #tpu.memory_space<vmem>>, vector<1x1x1x512xf32>
    %101 = vector.shape_cast %100 : vector<1x1x1x512xf32> to vector<1x512xf32>
    %102 = vector.broadcast %101 : vector<1x512xf32> to vector<2x512xf32>
    %103 = arith.mulf %9, %102 : vector<2x512xf32>
    %104 = arith.addf %99, %103 : vector<2x512xf32>
    %c3_98 = arith.constant 3 : index
    %c3_99 = arith.constant 3 : index
    %c0_100 = arith.constant 0 : index
    %c0_101 = arith.constant 0 : index
    %105 = vector.load %arg4[%c3_98, %c3_99, %c0_100, %c0_101] : memref<4x8x1x512xf32, #tpu.memory_space<vmem>>, vector<1x1x1x512xf32>
    %106 = vector.shape_cast %105 : vector<1x1x1x512xf32> to vector<1x512xf32>
    %107 = vector.broadcast %106 : vector<1x512xf32> to vector<2x512xf32>
    %108 = arith.mulf %12, %107 : vector<2x512xf32>
    %109 = arith.addf %104, %108 : vector<2x512xf32>
    %c3_102 = arith.constant 3 : index
    %c0_103 = arith.constant 0 : index
    %c0_104 = arith.constant 0 : index
    %110 = vector.load %arg5[%c3_102, %c0_103, %c0_104] : memref<8x1x512xf32, #tpu.memory_space<vmem>>, vector<1x1x512xf32>
    %111 = vector.shape_cast %110 : vector<1x1x512xf32> to vector<1x512xf32>
    %112 = vector.broadcast %111 : vector<1x512xf32> to vector<2x512xf32>
    %113 = arith.addf %109, %112 : vector<2x512xf32>
    %c0_105 = arith.constant 0 : index
    %c3_106 = arith.constant 3 : index
    %c0_107 = arith.constant 0 : index
    %c0_108 = arith.constant 0 : index
    %114 = vector.load %arg6[%c0_105, %c3_106, %c0_107, %c0_108] : memref<1x8x2x512xf32, #tpu.memory_space<vmem>>, vector<1x1x2x512xf32>
    %115 = vector.shape_cast %114 : vector<1x1x2x512xf32> to vector<2x512xf32>
    %116 = vector.shape_cast %113 : vector<2x512xf32> to vector<1x1x2x512xf32>
    tpu.vector_store %arg6[%c0_105, %c3_106, %c0_107, %c0_108], %116 {strides = array<i32>} : memref<1x8x2x512xf32, #tpu.memory_space<vmem>>, vector<1x1x2x512xf32>,
    %c0_109 = arith.constant 0 : index
    %c4 = arith.constant 4 : index
    %c0_110 = arith.constant 0 : index
    %c0_111 = arith.constant 0 : index
    %117 = vector.load %arg4[%c0_109, %c4, %c0_110, %c0_111] : memref<4x8x1x512xf32, #tpu.memory_space<vmem>>, vector<1x1x1x512xf32>
    %118 = vector.shape_cast %117 : vector<1x1x1x512xf32> to vector<1x512xf32>
    %119 = vector.broadcast %118 : vector<1x512xf32> to vector<2x512xf32>
    %120 = arith.mulf %3, %119 : vector<2x512xf32>
    %c1_112 = arith.constant 1 : index
    %c4_113 = arith.constant 4 : index
    %c0_114 = arith.constant 0 : index
    %c0_115 = arith.constant 0 : index
    %121 = vector.load %arg4[%c1_112, %c4_113, %c0_114, %c0_115] : memref<4x8x1x512xf32, #tpu.memory_space<vmem>>, vector<1x1x1x512xf32>
    %122 = vector.shape_cast %121 : vector<1x1x1x512xf32> to vector<1x512xf32>
    %123 = vector.broadcast %122 : vector<1x512xf32> to vector<2x512xf32>
    %124 = arith.mulf %6, %123 : vector<2x512xf32>
    %125 = arith.addf %120, %124 : vector<2x512xf32>
    %c2_116 = arith.constant 2 : index
    %c4_117 = arith.constant 4 : index
    %c0_118 = arith.constant 0 : index
    %c0_119 = arith.constant 0 : index
    %126 = vector.load %arg4[%c2_116, %c4_117, %c0_118, %c0_119] : memref<4x8x1x512xf32, #tpu.memory_space<vmem>>, vector<1x1x1x512xf32>
    %127 = vector.shape_cast %126 : vector<1x1x1x512xf32> to vector<1x512xf32>
    %128 = vector.broadcast %127 : vector<1x512xf32> to vector<2x512xf32>
    %129 = arith.mulf %9, %128 : vector<2x512xf32>
    %130 = arith.addf %125, %129 : vector<2x512xf32>
    %c3_120 = arith.constant 3 : index
    %c4_121 = arith.constant 4 : index
    %c0_122 = arith.constant 0 : index
    %c0_123 = arith.constant 0 : index
    %131 = vector.load %arg4[%c3_120, %c4_121, %c0_122, %c0_123] : memref<4x8x1x512xf32, #tpu.memory_space<vmem>>, vector<1x1x1x512xf32>
    %132 = vector.shape_cast %131 : vector<1x1x1x512xf32> to vector<1x512xf32>
    %133 = vector.broadcast %132 : vector<1x512xf32> to vector<2x512xf32>
    %134 = arith.mulf %12, %133 : vector<2x512xf32>
    %135 = arith.addf %130, %134 : vector<2x512xf32>
    %c4_124 = arith.constant 4 : index
    %c0_125 = arith.constant 0 : index
    %c0_126 = arith.constant 0 : index
    %136 = vector.load %arg5[%c4_124, %c0_125, %c0_126] : memref<8x1x512xf32, #tpu.memory_space<vmem>>, vector<1x1x512xf32>
    %137 = vector.shape_cast %136 : vector<1x1x512xf32> to vector<1x512xf32>
    %138 = vector.broadcast %137 : vector<1x512xf32> to vector<2x512xf32>
    %139 = arith.addf %135, %138 : vector<2x512xf32>
    %c0_127 = arith.constant 0 : index
    %c4_128 = arith.constant 4 : index
    %c0_129 = arith.constant 0 : index
    %c0_130 = arith.constant 0 : index
    %140 = vector.load %arg6[%c0_127, %c4_128, %c0_129, %c0_130] : memref<1x8x2x512xf32, #tpu.memory_space<vmem>>, vector<1x1x2x512xf32>
    %141 = vector.shape_cast %140 : vector<1x1x2x512xf32> to vector<2x512xf32>
    %142 = vector.shape_cast %139 : vector<2x512xf32> to vector<1x1x2x512xf32>
    tpu.vector_store %arg6[%c0_127, %c4_128, %c0_129, %c0_130], %142 {strides = array<i32>} : memref<1x8x2x512xf32, #tpu.memory_space<vmem>>, vector<1x1x2x512xf32>,
    %c0_131 = arith.constant 0 : index
    %c5 = arith.constant 5 : index
    %c0_132 = arith.constant 0 : index
    %c0_133 = arith.constant 0 : index
    %143 = vector.load %arg4[%c0_131, %c5, %c0_132, %c0_133] : memref<4x8x1x512xf32, #tpu.memory_space<vmem>>, vector<1x1x1x512xf32>
    %144 = vector.shape_cast %143 : vector<1x1x1x512xf32> to vector<1x512xf32>
    %145 = vector.broadcast %144 : vector<1x512xf32> to vector<2x512xf32>
    %146 = arith.mulf %3, %145 : vector<2x512xf32>
    %c1_134 = arith.constant 1 : index
    %c5_135 = arith.constant 5 : index
    %c0_136 = arith.constant 0 : index
    %c0_137 = arith.constant 0 : index
    %147 = vector.load %arg4[%c1_134, %c5_135, %c0_136, %c0_137] : memref<4x8x1x512xf32, #tpu.memory_space<vmem>>, vector<1x1x1x512xf32>
    %148 = vector.shape_cast %147 : vector<1x1x1x512xf32> to vector<1x512xf32>
    %149 = vector.broadcast %148 : vector<1x512xf32> to vector<2x512xf32>
    %150 = arith.mulf %6, %149 : vector<2x512xf32>
    %151 = arith.addf %146, %150 : vector<2x512xf32>
    %c2_138 = arith.constant 2 : index
    %c5_139 = arith.constant 5 : index
    %c0_140 = arith.constant 0 : index
    %c0_141 = arith.constant 0 : index
    %152 = vector.load %arg4[%c2_138, %c5_139, %c0_140, %c0_141] : memref<4x8x1x512xf32, #tpu.memory_space<vmem>>, vector<1x1x1x512xf32>
    %153 = vector.shape_cast %152 : vector<1x1x1x512xf32> to vector<1x512xf32>
    %154 = vector.broadcast %153 : vector<1x512xf32> to vector<2x512xf32>
    %155 = arith.mulf %9, %154 : vector<2x512xf32>
    %156 = arith.addf %151, %155 : vector<2x512xf32>
    %c3_142 = arith.constant 3 : index
    %c5_143 = arith.constant 5 : index
    %c0_144 = arith.constant 0 : index
    %c0_145 = arith.constant 0 : index
    %157 = vector.load %arg4[%c3_142, %c5_143, %c0_144, %c0_145] : memref<4x8x1x512xf32, #tpu.memory_space<vmem>>, vector<1x1x1x512xf32>
    %158 = vector.shape_cast %157 : vector<1x1x1x512xf32> to vector<1x512xf32>
    %159 = vector.broadcast %158 : vector<1x512xf32> to vector<2x512xf32>
    %160 = arith.mulf %12, %159 : vector<2x512xf32>
    %161 = arith.addf %156, %160 : vector<2x512xf32>
    %c5_146 = arith.constant 5 : index
    %c0_147 = arith.constant 0 : index
    %c0_148 = arith.constant 0 : index
    %162 = vector.load %arg5[%c5_146, %c0_147, %c0_148] : memref<8x1x512xf32, #tpu.memory_space<vmem>>, vector<1x1x512xf32>
    %163 = vector.shape_cast %162 : vector<1x1x512xf32> to vector<1x512xf32>
    %164 = vector.broadcast %163 : vector<1x512xf32> to vector<2x512xf32>
    %165 = arith.addf %161, %164 : vector<2x512xf32>
    %c0_149 = arith.constant 0 : index
    %c5_150 = arith.constant 5 : index
    %c0_151 = arith.constant 0 : index
    %c0_152 = arith.constant 0 : index
    %166 = vector.load %arg6[%c0_149, %c5_150, %c0_151, %c0_152] : memref<1x8x2x512xf32, #tpu.memory_space<vmem>>, vector<1x1x2x512xf32>
    %167 = vector.shape_cast %166 : vector<1x1x2x512xf32> to vector<2x512xf32>
    %168 = vector.shape_cast %165 : vector<2x512xf32> to vector<1x1x2x512xf32>
    tpu.vector_store %arg6[%c0_149, %c5_150, %c0_151, %c0_152], %168 {strides = array<i32>} : memref<1x8x2x512xf32, #tpu.memory_space<vmem>>, vector<1x1x2x512xf32>,
    %c0_153 = arith.constant 0 : index
    %c6 = arith.constant 6 : index
    %c0_154 = arith.constant 0 : index
    %c0_155 = arith.constant 0 : index
    %169 = vector.load %arg4[%c0_153, %c6, %c0_154, %c0_155] : memref<4x8x1x512xf32, #tpu.memory_space<vmem>>, vector<1x1x1x512xf32>
    %170 = vector.shape_cast %169 : vector<1x1x1x512xf32> to vector<1x512xf32>
    %171 = vector.broadcast %170 : vector<1x512xf32> to vector<2x512xf32>
    %172 = arith.mulf %3, %171 : vector<2x512xf32>
    %c1_156 = arith.constant 1 : index
    %c6_157 = arith.constant 6 : index
    %c0_158 = arith.constant 0 : index
    %c0_159 = arith.constant 0 : index
    %173 = vector.load %arg4[%c1_156, %c6_157, %c0_158, %c0_159] : memref<4x8x1x512xf32, #tpu.memory_space<vmem>>, vector<1x1x1x512xf32>
    %174 = vector.shape_cast %173 : vector<1x1x1x512xf32> to vector<1x512xf32>
    %175 = vector.broadcast %174 : vector<1x512xf32> to vector<2x512xf32>
    %176 = arith.mulf %6, %175 : vector<2x512xf32>
    %177 = arith.addf %172, %176 : vector<2x512xf32>
    %c2_160 = arith.constant 2 : index
    %c6_161 = arith.constant 6 : index
    %c0_162 = arith.constant 0 : index
    %c0_163 = arith.constant 0 : index
    %178 = vector.load %arg4[%c2_160, %c6_161, %c0_162, %c0_163] : memref<4x8x1x512xf32, #tpu.memory_space<vmem>>, vector<1x1x1x512xf32>
    %179 = vector.shape_cast %178 : vector<1x1x1x512xf32> to vector<1x512xf32>
    %180 = vector.broadcast %179 : vector<1x512xf32> to vector<2x512xf32>
    %181 = arith.mulf %9, %180 : vector<2x512xf32>
    %182 = arith.addf %177, %181 : vector<2x512xf32>
    %c3_164 = arith.constant 3 : index
    %c6_165 = arith.constant 6 : index
    %c0_166 = arith.constant 0 : index
    %c0_167 = arith.constant 0 : index
    %183 = vector.load %arg4[%c3_164, %c6_165, %c0_166, %c0_167] : memref<4x8x1x512xf32, #tpu.memory_space<vmem>>, vector<1x1x1x512xf32>
    %184 = vector.shape_cast %183 : vector<1x1x1x512xf32> to vector<1x512xf32>
    %185 = vector.broadcast %184 : vector<1x512xf32> to vector<2x512xf32>
    %186 = arith.mulf %12, %185 : vector<2x512xf32>
    %187 = arith.addf %182, %186 : vector<2x512xf32>
    %c6_168 = arith.constant 6 : index
    %c0_169 = arith.constant 0 : index
    %c0_170 = arith.constant 0 : index
    %188 = vector.load %arg5[%c6_168, %c0_169, %c0_170] : memref<8x1x512xf32, #tpu.memory_space<vmem>>, vector<1x1x512xf32>
    %189 = vector.shape_cast %188 : vector<1x1x512xf32> to vector<1x512xf32>
    %190 = vector.broadcast %189 : vector<1x512xf32> to vector<2x512xf32>
    %191 = arith.addf %187, %190 : vector<2x512xf32>
    %c0_171 = arith.constant 0 : index
    %c6_172 = arith.constant 6 : index
    %c0_173 = arith.constant 0 : index
    %c0_174 = arith.constant 0 : index
    %192 = vector.load %arg6[%c0_171, %c6_172, %c0_173, %c0_174] : memref<1x8x2x512xf32, #tpu.memory_space<vmem>>, vector<1x1x2x512xf32>
    %193 = vector.shape_cast %192 : vector<1x1x2x512xf32> to vector<2x512xf32>
    %194 = vector.shape_cast %191 : vector<2x512xf32> to vector<1x1x2x512xf32>
    tpu.vector_store %arg6[%c0_171, %c6_172, %c0_173, %c0_174], %194 {strides = array<i32>} : memref<1x8x2x512xf32, #tpu.memory_space<vmem>>, vector<1x1x2x512xf32>,
    %c0_175 = arith.constant 0 : index
    %c7 = arith.constant 7 : index
    %c0_176 = arith.constant 0 : index
    %c0_177 = arith.constant 0 : index
    %195 = vector.load %arg4[%c0_175, %c7, %c0_176, %c0_177] : memref<4x8x1x512xf32, #tpu.memory_space<vmem>>, vector<1x1x1x512xf32>
    %196 = vector.shape_cast %195 : vector<1x1x1x512xf32> to vector<1x512xf32>
    %197 = vector.broadcast %196 : vector<1x512xf32> to vector<2x512xf32>
    %198 = arith.mulf %3, %197 : vector<2x512xf32>
    %c1_178 = arith.constant 1 : index
    %c7_179 = arith.constant 7 : index
    %c0_180 = arith.constant 0 : index
    %c0_181 = arith.constant 0 : index
    %199 = vector.load %arg4[%c1_178, %c7_179, %c0_180, %c0_181] : memref<4x8x1x512xf32, #tpu.memory_space<vmem>>, vector<1x1x1x512xf32>
    %200 = vector.shape_cast %199 : vector<1x1x1x512xf32> to vector<1x512xf32>
    %201 = vector.broadcast %200 : vector<1x512xf32> to vector<2x512xf32>
    %202 = arith.mulf %6, %201 : vector<2x512xf32>
    %203 = arith.addf %198, %202 : vector<2x512xf32>
    %c2_182 = arith.constant 2 : index
    %c7_183 = arith.constant 7 : index
    %c0_184 = arith.constant 0 : index
    %c0_185 = arith.constant 0 : index
    %204 = vector.load %arg4[%c2_182, %c7_183, %c0_184, %c0_185] : memref<4x8x1x512xf32, #tpu.memory_space<vmem>>, vector<1x1x1x512xf32>
    %205 = vector.shape_cast %204 : vector<1x1x1x512xf32> to vector<1x512xf32>
    %206 = vector.broadcast %205 : vector<1x512xf32> to vector<2x512xf32>
    %207 = arith.mulf %9, %206 : vector<2x512xf32>
    %208 = arith.addf %203, %207 : vector<2x512xf32>
    %c3_186 = arith.constant 3 : index
    %c7_187 = arith.constant 7 : index
    %c0_188 = arith.constant 0 : index
    %c0_189 = arith.constant 0 : index
    %209 = vector.load %arg4[%c3_186, %c7_187, %c0_188, %c0_189] : memref<4x8x1x512xf32, #tpu.memory_space<vmem>>, vector<1x1x1x512xf32>
    %210 = vector.shape_cast %209 : vector<1x1x1x512xf32> to vector<1x512xf32>
    %211 = vector.broadcast %210 : vector<1x512xf32> to vector<2x512xf32>
    %212 = arith.mulf %12, %211 : vector<2x512xf32>
    %213 = arith.addf %208, %212 : vector<2x512xf32>
    %c7_190 = arith.constant 7 : index
    %c0_191 = arith.constant 0 : index
    %c0_192 = arith.constant 0 : index
    %214 = vector.load %arg5[%c7_190, %c0_191, %c0_192] : memref<8x1x512xf32, #tpu.memory_space<vmem>>, vector<1x1x512xf32>
    %215 = vector.shape_cast %214 : vector<1x1x512xf32> to vector<1x512xf32>
    %216 = vector.broadcast %215 : vector<1x512xf32> to vector<2x512xf32>
    %217 = arith.addf %213, %216 : vector<2x512xf32>
    %c0_193 = arith.constant 0 : index
    %c7_194 = arith.constant 7 : index
    %c0_195 = arith.constant 0 : index
    %c0_196 = arith.constant 0 : index
    %218 = vector.load %arg6[%c0_193, %c7_194, %c0_195, %c0_196] : memref<1x8x2x512xf32, #tpu.memory_space<vmem>>, vector<1x1x2x512xf32>
    %219 = vector.shape_cast %218 : vector<1x1x2x512xf32> to vector<2x512xf32>
    %220 = vector.shape_cast %217 : vector<2x512xf32> to vector<1x1x2x512xf32>
    tpu.vector_store %arg6[%c0_193, %c7_194, %c0_195, %c0_196], %220 {strides = array<i32>} : memref<1x8x2x512xf32, #tpu.memory_space<vmem>>, vector<1x1x2x512xf32>,
    return
  }
  func.func @transform_0(%arg0: i32, %arg1: i32) -> (i32, i32, i32, i32) {
    %c0_i32 = arith.constant 0 : i32
    %c0_i32_0 = arith.constant 0 : i32
    %c0_i32_1 = arith.constant 0 : i32
    return %arg0, %c0_i32, %arg1, %c0_i32_0 : i32, i32, i32, i32
  }
  func.func @transform_1(%arg0: i32, %arg1: i32) -> (i32, i32) {
    %c0_i32 = arith.constant 0 : i32
    %c0_i32_0 = arith.constant 0 : i32
    %c0_i32_1 = arith.constant 0 : i32
    return %c0_i32, %c0_i32_0 : i32, i32
  }
  func.func @transform_2(%arg0: i32, %arg1: i32) -> (i32, i32, i32, i32) {
    %c0_i32 = arith.constant 0 : i32
    %c0_i32_0 = arith.constant 0 : i32
    %c0_i32_1 = arith.constant 0 : i32
    %c0_i32_2 = arith.constant 0 : i32
    %c0_i32_3 = arith.constant 0 : i32
    return %c0_i32, %c0_i32_0, %c0_i32_1, %c0_i32_2 : i32, i32, i32, i32
  }
  func.func @transform_3(%arg0: i32, %arg1: i32) -> (i32, i32, i32) {
    %c0_i32 = arith.constant 0 : i32
    %c0_i32_0 = arith.constant 0 : i32
    %c0_i32_1 = arith.constant 0 : i32
    %c0_i32_2 = arith.constant 0 : i32
    return %c0_i32, %c0_i32_0, %c0_i32_1 : i32, i32, i32
  }
  func.func @transform_4(%arg0: i32, %arg1: i32) -> (i32, i32, i32, i32) {
    %c0_i32 = arith.constant 0 : i32
    %c0_i32_0 = arith.constant 0 : i32
    %c0_i32_1 = arith.constant 0 : i32
    return %arg0, %c0_i32, %arg1, %c0_i32_0 : i32, i32, i32, i32
  }
}

</mosaic_0001>

<llo_original>
// kernel: upsample_forward.1
$region0: #{upsample_forward.1}
  #allocation0 [shape = 'u32[]', space=smem, size = 0x4, offset = 0x4, fixed_abs, tag = 'smem constant byte address 0x4 - core index']
  #allocation1 [shape = 'u32[144,128]{1,0:T(1,128)}', space=vmem, size = 0x12000, scoped, tag = 'internal scratch']
  %s0 = inlined_call_operand.vmem [shape: f32[2,4,2,128], index: 0, kind: input, shape index: {}]
  %s1 = inlined_call_operand.vmem [shape: f32[128,512], index: 1, kind: input, shape index: {}]
  %s2 = inlined_call_operand.vmem [shape: f32[4,8,1,512], index: 2, kind: input, shape index: {}]
  %s3 = inlined_call_operand.vmem [shape: f32[8,1,512], index: 3, kind: input, shape index: {}]
  %s4 = inlined_call_operand.vmem [shape: f32[2,8,2,512], index: 4, kind: output, shape index: {}]
  %s5 = sld [smem:[#allocation0]]
  $region49: #{upsample_forward.1} parent=0
    _
  %s7 = ssub.s32 1, %s5
  %s8 = scalar_select 0, %s7, %s5
  loop: start=0, step=1, limit=4
  $region2: #{upsample_forward.1} parent=0 // loop_pre_header
    _
  $region3: #{upsample_forward.1} parent=0 // loop_header
    %s10 = sphi 0, %s14
    %p11 = scmp.ge.s32.totalorder %s10, 4
    %s17 = sphi 0, %s29
    %s18 = sphi 0, %s25
    %s19 = sphi 0, %s17
    %s20 = sphi 0, %s18
    %s21 = sphi 0, %s19
    %s22 = sphi 0, %s20
    %s34 = sphi 0, %s36
    %s37 = sphi 0, %s34
    %s38 = sphi 0, %s37
    %s54 = sphi 0, %s38
    %s58 = sphi 0, %s58
    %s60 = sphi 0, %s58
    %s61 = sphi 0, %s60
    %s75 = sphi 0, %s61
    %s79 = sphi 0, %s79
    %s81 = sphi 0, %s79
    %s82 = sphi 0, %s81
    %s96 = sphi 0, %s82
    %s100 = sphi 0, %s100
    %s102 = sphi 0, %s100
    %s103 = sphi 0, %s102
    %s117 = sphi 0, %s103
    %s125 = sphi 0, %s127
    %s128 = sphi 0, %s125
    %s129 = sphi 0, %s128
    %s145 = sphi 0, %s129
  $region4: #{upsample_forward.1} parent=0 // loop_header_branch
    %13 = sbr.rel (%p11) target = $region8
  $region5: #{upsample_forward.1} parent=0 // loop_body
    %s15 = ssub.s32 %s10, 1
    %s16 = ssub.s32 %s10, 2
    %s23 = sadd.s32 1, %s18
    %p24 = scmp.ge.s32.totalorder %s23, 1
    %s25 = scalar_select %p24, 0, %s23
    %s26 = sadd.s32 1, %s17
    %s27 = scalar_select %p24, %s26, %s17
    %p28 = scmp.ge.s32.totalorder %s27, 2
    %s29 = scalar_select %p28, 0, %s27
    %s30 = ssub.s32 %s17, %s29
    %s31 = ssub.s32 %s18, %s25
    %s32 = sor.u32 %s30, %s31
    %p33 = scmp.eq.s32.totalorder %s32, 0
    %s35 = sadd.s32 %s34, 1
    %s36 = scalar_select %p33, %s34, %s35
    %p39 = pneg %p33
    %p40 = scmp.eq.s32.totalorder %s10, 1
    %p41 = por %p39, %p40
    %p42 = scmp.ne.s32.totalorder %s34, %s37
    %p43 = scmp.eq.s32.totalorder %s10, 0
    %p44 = por %p42, %p43
    %p45 = scmp.ne.s32.totalorder %s34, %s37
    %p46 = scmp.eq.s32.totalorder %s15, 1
    %p47 = por %p45, %p46
    %p48 = scmp.ne.s32.totalorder %s37, %s38
    %p49 = scmp.eq.s32.totalorder %s15, 0
    %p50 = por %p48, %p49
    %p51 = scmp.ne.s32.totalorder %s37, %s38
    %p52 = scmp.eq.s32.totalorder %s16, 1
    %p53 = por %p51, %p52
    %p55 = scmp.ne.s32.totalorder %s38, %s54
    %p56 = scmp.eq.s32.totalorder %s16, 0
    %p57 = por %p55, %p56
    %s59 = sadd.s32 %s58, 1
    %p62 = scmp.eq.s32.totalorder %s10, 1
    %p63 = scmp.ne.s32.totalorder %s58, %s60
    %p64 = scmp.eq.s32.totalorder %s10, 0
    %p65 = por %p63, %p64
    %p66 = scmp.ne.s32.totalorder %s58, %s60
    %p67 = scmp.eq.s32.totalorder %s15, 1
    %p68 = por %p66, %p67
    %p69 = scmp.ne.s32.totalorder %s60, %s61
    %p70 = scmp.eq.s32.totalorder %s15, 0
    %p71 = por %p69, %p70
    %p72 = scmp.ne.s32.totalorder %s60, %s61
    %p73 = scmp.eq.s32.totalorder %s16, 1
    %p74 = por %p72, %p73
    %p76 = scmp.ne.s32.totalorder %s61, %s75
    %p77 = scmp.eq.s32.totalorder %s16, 0
    %p78 = por %p76, %p77
    %s80 = sadd.s32 %s79, 1
    %p83 = scmp.eq.s32.totalorder %s10, 1
    %p84 = scmp.ne.s32.totalorder %s79, %s81
    %p85 = scmp.eq.s32.totalorder %s10, 0
    %p86 = por %p84, %p85
    %p87 = scmp.ne.s32.totalorder %s79, %s81
    %p88 = scmp.eq.s32.totalorder %s15, 1
    %p89 = por %p87, %p88
    %p90 = scmp.ne.s32.totalorder %s81, %s82
    %p91 = scmp.eq.s32.totalorder %s15, 0
    %p92 = por %p90, %p91
    %p93 = scmp.ne.s32.totalorder %s81, %s82
    %p94 = scmp.eq.s32.totalorder %s16, 1
    %p95 = por %p93, %p94
    %p97 = scmp.ne.s32.totalorder %s82, %s96
    %p98 = scmp.eq.s32.totalorder %s16, 0
    %p99 = por %p97, %p98
    %s101 = sadd.s32 %s100, 1
    %p104 = scmp.eq.s32.totalorder %s10, 1
    %p105 = scmp.ne.s32.totalorder %s100, %s102
    %p106 = scmp.eq.s32.totalorder %s10, 0
    %p107 = por %p105, %p106
    %p108 = scmp.ne.s32.totalorder %s100, %s102
    %p109 = scmp.eq.s32.totalorder %s15, 1
    %p110 = por %p108, %p109
    %p111 = scmp.ne.s32.totalorder %s102, %s103
    %p112 = scmp.eq.s32.totalorder %s15, 0
    %p113 = por %p111, %p112
    %p114 = scmp.ne.s32.totalorder %s102, %s103
    %p115 = scmp.eq.s32.totalorder %s16, 1
    %p116 = por %p114, %p115
    %p118 = scmp.ne.s32.totalorder %s103, %s117
    %p119 = scmp.eq.s32.totalorder %s16, 0
    %p120 = por %p118, %p119
    %s121 = ssub.s32 %s17, %s29
    %s122 = ssub.s32 %s18, %s25
    %s123 = sor.u32 %s121, %s122
    %p124 = scmp.eq.s32.totalorder %s123, 0
    %s126 = sadd.s32 %s125, 1
    %s127 = scalar_select %p124, %s125, %s126
    %p130 = pneg %p124
    %p131 = scmp.eq.s32.totalorder %s10, 1
    %p132 = por %p130, %p131
    %p133 = scmp.ne.s32.totalorder %s125, %s128
    %p134 = scmp.eq.s32.totalorder %s10, 0
    %p135 = por %p133, %p134
    %p136 = scmp.ne.s32.totalorder %s125, %s128
    %p137 = scmp.eq.s32.totalorder %s15, 1
    %p138 = por %p136, %p137
    %p139 = scmp.ne.s32.totalorder %s128, %s129
    %p140 = scmp.eq.s32.totalorder %s15, 0
    %p141 = por %p139, %p140
    %p142 = scmp.ne.s32.totalorder %s128, %s129
    %p143 = scmp.eq.s32.totalorder %s16, 1
    %p144 = por %p142, %p143
    %p146 = scmp.ne.s32.totalorder %s129, %s145
    %p147 = scmp.eq.s32.totalorder %s16, 0
    %p148 = por %p146, %p147
    %p149 = scmp.le.s32.totalorder 1, %s10
    %p150 = scmp.lt.s32.totalorder %s10, 3
    %p151 = pnand %p149, %p150
    %p152 = pneg %p151
    // Predicated region
    $region9: #{upsample_forward.1} parent=5 // pred_check
      _
    $region10: #{upsample_forward.1} parent=5 // pred_check_branch
      %154 = sbr.rel (%p151) target = $region12
    $region11: #{upsample_forward.1} parent=5 // pred_region
      %s155 = ssub.s32 %s10, 1
      // Predicated region
      $region13: #{upsample_forward.1} parent=11 // pred_check
        %p156 = pneg %p71
      $region14: #{upsample_forward.1} parent=11 // pred_check_branch
        %158 = sbr.rel (%p156) target = $region16
      $region15: #{upsample_forward.1} parent=11 // pred_region
        _
      $region16: #{upsample_forward.1} parent=11 // pred_fallthru
        _
      // Predicated region
      $region17: #{upsample_forward.1} parent=11 // pred_check
        %p159 = pneg %p92
      $region18: #{upsample_forward.1} parent=11 // pred_check_branch
        %161 = sbr.rel (%p159) target = $region20
      $region19: #{upsample_forward.1} parent=11 // pred_region
        _
      $region20: #{upsample_forward.1} parent=11 // pred_fallthru
        _
      // Predicated region
      $region21: #{upsample_forward.1} parent=11 // pred_check
        %p162 = pneg %p113
      $region22: #{upsample_forward.1} parent=11 // pred_check_branch
        %164 = sbr.rel (%p162) target = $region24
      $region23: #{upsample_forward.1} parent=11 // pred_region
        _
      $region24: #{upsample_forward.1} parent=11 // pred_fallthru
        _
    $region12: #{upsample_forward.1} parent=5 // pred_fallthru
      _
    %p165 = scmp.lt.s32.totalorder %s10, 2
    // Predicated region
    $region25: #{upsample_forward.1} parent=5 // pred_check
      %p166 = pneg %p165
    $region26: #{upsample_forward.1} parent=5 // pred_check_branch
      %168 = sbr.rel (%p166) target = $region28
    $region27: #{upsample_forward.1} parent=5 // pred_region
      // Predicated region
      $region29: #{upsample_forward.1} parent=27 // pred_check
        %p169 = pneg %p44
      $region30: #{upsample_forward.1} parent=27 // pred_check_branch
        %171 = sbr.rel (%p169) target = $region32
      $region31: #{upsample_forward.1} parent=27 // pred_region
        %p172 = scmp.lt.s32.totalorder %s17, 1
        %s173 = scalar_select %p172, %s17, 1
        %p174 = scmp.lt.s32.totalorder %s18, 0
        %s175 = scalar_select %p174, %s18, 0
        %s176 = smul.addr %s173, 4
        %s177 = sadd.s32 %s175, %s176
        %s178 = smul.addr %s177, 2
        %s179 = scalar_lea.vmem %s0, %s178
      $region32: #{upsample_forward.1} parent=27 // pred_fallthru
        _
    $region28: #{upsample_forward.1} parent=5 // pred_fallthru
      _
    %p180 = scmp.le.s32.totalorder 1, %s10
    %p181 = scmp.lt.s32.totalorder %s10, 3
    %p182 = pnand %p180, %p181
    %p183 = pneg %p182
    // Predicated region
    $region33: #{upsample_forward.1} parent=5 // pred_check
      _
    $region34: #{upsample_forward.1} parent=5 // pred_check_branch
      %185 = sbr.rel (%p182) target = $region36
    $region35: #{upsample_forward.1} parent=5 // pred_region
      %s186 = ssub.s32 %s10, 1
      %p187 = scmp.lt.s32.totalorder %s19, 1
      %s188 = scalar_select %p187, %s19, 1
      %p189 = scmp.lt.s32.totalorder %s20, 0
      %s190 = scalar_select %p189, %s20, 0
      %s191 = smul.addr %s188, 4
      %s192 = sadd.s32 %s190, %s191
      %s193 = smul.addr %s192, 2
      %s194 = scalar_lea.vmem %s0, %s193
      %p195 = pneg %p50
      %p196 = pneg %p47
      %p197 = pneg %p71
      %p198 = pneg %p68
      %p199 = pneg %p92
      %p200 = pneg %p89
      %p201 = pneg %p113
      %p202 = pneg %p110
      %p203 = pneg %p141
      %p204 = pneg %p138
      %p205 = scmp.lt.s32.totalorder %s19, 1
      %s206 = scalar_select %p205, %s19, 1
      %p207 = scmp.lt.s32.totalorder %s20, 0
      %s208 = scalar_select %p207, %s20, 0
      %s209 = smul.addr %s208, 4
      %s210 = smul.addr %s206, 32
      %s211 = sadd.s32 %s209, %s210
      %s212 = smul.addr %s211, 2
      %s213 = scalar_lea.vmem %s4, %s212
      %p214 = scmp.lt.s32.totalorder %s19, 1
      %s215 = scalar_select %p214, %s19, 1
      %p216 = scmp.lt.s32.totalorder %s20, 0
      %s217 = scalar_select %p216, %s20, 0
      %s218 = smul.addr %s215, 4
      %s219 = sadd.s32 %s217, %s218
      %s220 = smul.addr %s219, 2
      %s221 = scalar_lea.vmem %s0, %s220
      %p222 = scmp.lt.s32.totalorder %s19, 1
      %s223 = scalar_select %p222, %s19, 1
      %p224 = scmp.lt.s32.totalorder %s20, 0
      %s225 = scalar_select %p224, %s20, 0
      %s226 = smul.addr %s225, 4
      %s227 = smul.addr %s223, 32
      %s228 = sadd.s32 %s226, %s227
      %s229 = smul.addr %s228, 2
      %s230 = scalar_lea.vmem %s4, %s229
      %v231 = vld [vmem:[%s1] sm:$0xff]
      %v232 = vld [vmem:[%s1 + $0x8] sm:$0xff]
      %v233 = vld [vmem:[%s1 + $0x10] sm:$0xff]
      %v234 = vld [vmem:[%s1 + $0x18] sm:$0xff]
      %v235 = vld [vmem:[%s1 + $0x20] sm:$0xff]
      %v236 = vld [vmem:[%s1 + $0x28] sm:$0xff]
      %v237 = vld [vmem:[%s1 + $0x30] sm:$0xff]
      %v238 = vld [vmem:[%s1 + $0x38] sm:$0xff]
      %v239 = vld [vmem:[%s1 + $0x40] sm:$0xff]
      %v240 = vld [vmem:[%s1 + $0x48] sm:$0xff]
      %v241 = vld [vmem:[%s1 + $0x50] sm:$0xff]
      %v242 = vld [vmem:[%s1 + $0x58] sm:$0xff]
      %v243 = vld [vmem:[%s1 + $0x60] sm:$0xff]
      %v244 = vld [vmem:[%s1 + $0x68] sm:$0xff]
      %v245 = vld [vmem:[%s1 + $0x70] sm:$0xff]
      %v246 = vld [vmem:[%s1 + $0x78] sm:$0xff]
      %v247 = vld [vmem:[%s1 + $0x80] sm:$0xff]
      %v248 = vld [vmem:[%s1 + $0x88] sm:$0xff]
      %v249 = vld [vmem:[%s1 + $0x90] sm:$0xff]
      %v250 = vld [vmem:[%s1 + $0x98] sm:$0xff]
      %v251 = vld [vmem:[%s1 + $0xa0] sm:$0xff]
      %v252 = vld [vmem:[%s1 + $0xa8] sm:$0xff]
      %v253 = vld [vmem:[%s1 + $0xb0] sm:$0xff]
      %v254 = vld [vmem:[%s1 + $0xb8] sm:$0xff]
      %v255 = vld [vmem:[%s1 + $0xc0] sm:$0xff]
      %v256 = vld [vmem:[%s1 + $0xc8] sm:$0xff]
      %v257 = vld [vmem:[%s1 + $0xd0] sm:$0xff]
      %v258 = vld [vmem:[%s1 + $0xd8] sm:$0xff]
      %v259 = vld [vmem:[%s1 + $0xe0] sm:$0xff]
      %v260 = vld [vmem:[%s1 + $0xe8] sm:$0xff]
      %v261 = vld [vmem:[%s1 + $0xf0] sm:$0xff]
      %v262 = vld [vmem:[%s1 + $0xf8] sm:$0xff]
      %v263 = vld [vmem:[%s1 + $0x100] sm:$0xff]
      %v264 = vld [vmem:[%s1 + $0x108] sm:$0xff]
      %v265 = vld [vmem:[%s1 + $0x110] sm:$0xff]
      %v266 = vld [vmem:[%s1 + $0x118] sm:$0xff]
      %v267 = vld [vmem:[%s1 + $0x120] sm:$0xff]
      %v268 = vld [vmem:[%s1 + $0x128] sm:$0xff]
      %v269 = vld [vmem:[%s1 + $0x130] sm:$0xff]
      %v270 = vld [vmem:[%s1 + $0x138] sm:$0xff]
      %v271 = vld [vmem:[%s1 + $0x140] sm:$0xff]
      %v272 = vld [vmem:[%s1 + $0x148] sm:$0xff]
      %v273 = vld [vmem:[%s1 + $0x150] sm:$0xff]
      %v274 = vld [vmem:[%s1 + $0x158] sm:$0xff]
      %v275 = vld [vmem:[%s1 + $0x160] sm:$0xff]
      %v276 = vld [vmem:[%s1 + $0x168] sm:$0xff]
      %v277 = vld [vmem:[%s1 + $0x170] sm:$0xff]
      %v278 = vld [vmem:[%s1 + $0x178] sm:$0xff]
      %v279 = vld [vmem:[%s1 + $0x180] sm:$0xff]
      %v280 = vld [vmem:[%s1 + $0x188] sm:$0xff]
      %v281 = vld [vmem:[%s1 + $0x190] sm:$0xff]
      %v282 = vld [vmem:[%s1 + $0x198] sm:$0xff]
      %v283 = vld [vmem:[%s1 + $0x1a0] sm:$0xff]
      %v284 = vld [vmem:[%s1 + $0x1a8] sm:$0xff]
      %v285 = vld [vmem:[%s1 + $0x1b0] sm:$0xff]
      %v286 = vld [vmem:[%s1 + $0x1b8] sm:$0xff]
      %v287 = vld [vmem:[%s1 + $0x1c0] sm:$0xff]
      %v288 = vld [vmem:[%s1 + $0x1c8] sm:$0xff]
      %v289 = vld [vmem:[%s1 + $0x1d0] sm:$0xff]
      %v290 = vld [vmem:[%s1 + $0x1d8] sm:$0xff]
      %v291 = vld [vmem:[%s1 + $0x1e0] sm:$0xff]
      %v292 = vld [vmem:[%s1 + $0x1e8] sm:$0xff]
      %v293 = vld [vmem:[%s1 + $0x1f0] sm:$0xff]
      %v294 = vld [vmem:[%s1 + $0x1f8] sm:$0xff]
      %v295 = vld [vmem:[%s221] sm:$0x3]
      %v296 = vand.u32 %v292, 4294901760
      %297 = vmatprep.subr.mxu0 %v296
      %v298 = vand.u32 %v291, 4294901760
      %299 = vmatpush1.msra.mxu0 %v298
      %v300 = vand.u32 %v288, 4294901760
      %301 = vmatprep.subr.mxu0 %v300
      %v302 = vand.u32 %v287, 4294901760
      %303 = vmatpush1.msra.mxu0 %v302
      %v304 = vand.u32 %v284, 4294901760
      %305 = vmatprep.subr.mxu0 %v304
      %v306 = vand.u32 %v283, 4294901760
      %307 = vmatpush1.msra.mxu0 %v306
      %v308 = vand.u32 %v280, 4294901760
      %309 = vmatprep.subr.mxu0 %v308
      %v310 = vand.u32 %v279, 4294901760
      %311 = vmatpush1.msra.mxu0 %v310
      %v312 = vand.u32 %v276, 4294901760
      %313 = vmatprep.subr.mxu0 %v312
      %v314 = vand.u32 %v275, 4294901760
      %315 = vmatpush1.msra.mxu0 %v314
      %v316 = vand.u32 %v272, 4294901760
      %317 = vmatprep.subr.mxu0 %v316
      %v318 = vand.u32 %v271, 4294901760
      %319 = vmatpush1.msra.mxu0 %v318
      %v320 = vand.u32 %v268, 4294901760
      %321 = vmatprep.subr.mxu0 %v320
      %v322 = vand.u32 %v267, 4294901760
      %323 = vmatpush1.msra.mxu0 %v322
      %v324 = vand.u32 %v264, 4294901760
      %325 = vmatprep.subr.mxu0 %v324
      %v326 = vand.u32 %v263, 4294901760
      %327 = vmatpush1.msra.mxu0 %v326
      %v328 = vand.u32 %v260, 4294901760
      %329 = vmatprep.subr.mxu0 %v328
      %v330 = vand.u32 %v259, 4294901760
      %331 = vmatpush1.msra.mxu0 %v330
      %v332 = vand.u32 %v256, 4294901760
      %333 = vmatprep.subr.mxu0 %v332
      %v334 = vand.u32 %v255, 4294901760
      %335 = vmatpush1.msra.mxu0 %v334
      %v336 = vand.u32 %v252, 4294901760
      %337 = vmatprep.subr.mxu0 %v336
      %v338 = vand.u32 %v251, 4294901760
      %339 = vmatpush1.msra.mxu0 %v338
      %v340 = vand.u32 %v248, 4294901760
      %341 = vmatprep.subr.mxu0 %v340
      %v342 = vand.u32 %v247, 4294901760
      %343 = vmatpush1.msra.mxu0 %v342
      %v344 = vand.u32 %v244, 4294901760
      %345 = vmatprep.subr.mxu0 %v344
      %v346 = vand.u32 %v243, 4294901760
      %347 = vmatpush1.msra.mxu0 %v346
      %v348 = vand.u32 %v240, 4294901760
      %349 = vmatprep.subr.mxu0 %v348
      %v350 = vand.u32 %v239, 4294901760
      %351 = vmatpush1.msra.mxu0 %v350
      %v352 = vand.u32 %v236, 4294901760
      %353 = vmatprep.subr.mxu0 %v352
      %v354 = vand.u32 %v235, 4294901760
      %355 = vmatpush1.msra.mxu0 %v354
      %v356 = vand.u32 %v232, 4294901760
      %357 = vmatprep.subr.mxu0 %v356
      %v358 = vand.u32 %v231, 4294901760
      %359 = vmatpush1.msra.mxu0 %v358
      %360 = vmatprep.subr.mxu0 0.0
      %361 = vmatpush2.msra.mxu0 0.0
      %362 = vmatprep.subr.mxu0 0.0
      %363 = vmatpush2.msra.mxu0 0.0
      %364 = vmatprep.subr.mxu0 0.0
      %365 = vmatpush2.msra.mxu0 0.0
      %366 = vmatprep.subr.mxu0 0.0
      %367 = vmatpush2.msra.mxu0 0.0
      %368 = vmatprep.subr.mxu0 0.0
      %369 = vmatpush2.msra.mxu0 0.0
      %370 = vmatprep.subr.mxu0 0.0
      %371 = vmatpush2.msra.mxu0 0.0
      %372 = vmatprep.subr.mxu0 0.0
      %373 = vmatpush2.msra.mxu0 0.0
      %374 = vmatprep.subr.mxu0 0.0
      %375 = vmatpush2.msra.mxu0 0.0
      %376 = vmatprep.subr.mxu0 0.0
      %377 = vmatpush2.msra.mxu0 0.0
      %378 = vmatprep.subr.mxu0 0.0
      %379 = vmatpush2.msra.mxu0 0.0
      %380 = vmatprep.subr.mxu0 0.0
      %381 = vmatpush2.msra.mxu0 0.0
      %382 = vmatprep.subr.mxu0 0.0
      %383 = vmatpush2.msra.mxu0 0.0
      %384 = vmatprep.subr.mxu0 0.0
      %385 = vmatpush2.msra.mxu0 0.0
      %386 = vmatprep.subr.mxu0 0.0
      %387 = vmatpush2.msra.mxu0 0.0
      %388 = vmatprep.subr.mxu0 0.0
      %389 = vmatpush2.msra.mxu0 0.0
      %390 = vmatprep.subr.mxu0 0.0
      %391 = vmatpush2.msra.mxu0 0.0
      %392 = vmatprep.mubr.f32.mxu0 0.0
      %v393 = vand.u32 %v295, 4294901760
      %v394 = vsub.f32 %v295, %v393
      %v395 = vand.u32 %v394, 4294901760
      %v396 = vsub.f32 %v394, %v395
      %v397 = vand.u32 %v396, 4294901760
      %398 = vmatmul.mubr.f32.gmra.mxu0 %v397
      %v399 = vpop.f32.mrf.mxu0
      %v400 = vadd.f32 0.0, %v399
      %v401 = vpop.f32.mrf.mxu0
      %v402 = vadd.f32 0.0, %v401
      %403 = vdwg.mxu0
      %v404 = vand.u32 %v292, 4294901760
      %v405 = vsub.f32 %v292, %v404
      %v406 = vand.u32 %v405, 4294901760
      %v407 = vsub.f32 %v405, %v406
      %v408 = vand.u32 %v407, 4294901760
      %409 = vmatprep.subr.mxu0 %v408
      %v410 = vand.u32 %v291, 4294901760
      %v411 = vsub.f32 %v291, %v410
      %v412 = vand.u32 %v411, 4294901760
      %v413 = vsub.f32 %v411, %v412
      %v414 = vand.u32 %v413, 4294901760
      %415 = vmatpush1.msra.mxu0 %v414
      %v416 = vand.u32 %v288, 4294901760
      %v417 = vsub.f32 %v288, %v416
      %v418 = vand.u32 %v417, 4294901760
      %v419 = vsub.f32 %v417, %v418
      %v420 = vand.u32 %v419, 4294901760
      %421 = vmatprep.subr.mxu0 %v420
      %v422 = vand.u32 %v287, 4294901760
      %v423 = vsub.f32 %v287, %v422
      %v424 = vand.u32 %v423, 4294901760
      %v425 = vsub.f32 %v423, %v424
      %v426 = vand.u32 %v425, 4294901760
      %427 = vmatpush1.msra.mxu0 %v426
      %v428 = vand.u32 %v284, 4294901760
      %v429 = vsub.f32 %v284, %v428
      %v430 = vand.u32 %v429, 4294901760
      %v431 = vsub.f32 %v429, %v430
      %v432 = vand.u32 %v431, 4294901760
      %433 = vmatprep.subr.mxu0 %v432
      %v434 = vand.u32 %v283, 4294901760
      %v435 = vsub.f32 %v283, %v434
      %v436 = vand.u32 %v435, 4294901760
      %v437 = vsub.f32 %v435, %v436
      %v438 = vand.u32 %v437, 4294901760
      %439 = vmatpush1.msra.mxu0 %v438
      %v440 = vand.u32 %v280, 4294901760
      %v441 = vsub.f32 %v280, %v440
      %v442 = vand.u32 %v441, 4294901760
      %v443 = vsub.f32 %v441, %v442
      %v444 = vand.u32 %v443, 4294901760
      %445 = vmatprep.subr.mxu0 %v444
      %v446 = vand.u32 %v279, 4294901760
      %v447 = vsub.f32 %v279, %v446
      %v448 = vand.u32 %v447, 4294901760
      %v449 = vsub.f32 %v447, %v448
      %v450 = vand.u32 %v449, 4294901760
      %451 = vmatpush1.msra.mxu0 %v450
      %v452 = vand.u32 %v276, 4294901760
      %v453 = vsub.f32 %v276, %v452
      %v454 = vand.u32 %v453, 4294901760
      %v455 = vsub.f32 %v453, %v454
      %v456 = vand.u32 %v455, 4294901760
      %457 = vmatprep.subr.mxu0 %v456
      %v458 = vand.u32 %v275, 4294901760
      %v459 = vsub.f32 %v275, %v458
      %v460 = vand.u32 %v459, 4294901760
      %v461 = vsub.f32 %v459, %v460
      %v462 = vand.u32 %v461, 4294901760
      %463 = vmatpush1.msra.mxu0 %v462
      %v464 = vand.u32 %v272, 4294901760
      %v465 = vsub.f32 %v272, %v464
      %v466 = vand.u32 %v465, 4294901760
      %v467 = vsub.f32 %v465, %v466
      %v468 = vand.u32 %v467, 4294901760
      %469 = vmatprep.subr.mxu0 %v468
      %v470 = vand.u32 %v271, 4294901760
      %v471 = vsub.f32 %v271, %v470
      %v472 = vand.u32 %v471, 4294901760
      %v473 = vsub.f32 %v471, %v472
      %v474 = vand.u32 %v473, 4294901760
      %475 = vmatpush1.msra.mxu0 %v474
      %v476 = vand.u32 %v268, 4294901760
      %v477 = vsub.f32 %v268, %v476
      %v478 = vand.u32 %v477, 4294901760
      %v479 = vsub.f32 %v477, %v478
      %v480 = vand.u32 %v479, 4294901760
      %481 = vmatprep.subr.mxu0 %v480
      %v482 = vand.u32 %v267, 4294901760
      %v483 = vsub.f32 %v267, %v482
      %v484 = vand.u32 %v483, 4294901760
      %v485 = vsub.f32 %v483, %v484
      %v486 = vand.u32 %v485, 4294901760
      %487 = vmatpush1.msra.mxu0 %v486
      %v488 = vand.u32 %v264, 4294901760
      %v489 = vsub.f32 %v264, %v488
      %v490 = vand.u32 %v489, 4294901760
      %v491 = vsub.f32 %v489, %v490
      %v492 = vand.u32 %v491, 4294901760
      %493 = vmatprep.subr.mxu0 %v492
      %v494 = vand.u32 %v263, 4294901760
      %v495 = vsub.f32 %v263, %v494
      %v496 = vand.u32 %v495, 4294901760
      %v497 = vsub.f32 %v495, %v496
      %v498 = vand.u32 %v497, 4294901760
      %499 = vmatpush1.msra.mxu0 %v498
      %v500 = vand.u32 %v260, 4294901760
      %v501 = vsub.f32 %v260, %v500
      %v502 = vand.u32 %v501, 4294901760
      %v503 = vsub.f32 %v501, %v502
      %v504 = vand.u32 %v503, 4294901760
      %505 = vmatprep.subr.mxu0 %v504
      %v506 = vand.u32 %v259, 4294901760
      %v507 = vsub.f32 %v259, %v506
      %v508 = vand.u32 %v507, 4294901760
      %v509 = vsub.f32 %v507, %v508
      %v510 = vand.u32 %v509, 4294901760
      %511 = vmatpush1.msra.mxu0 %v510
      %v512 = vand.u32 %v256, 4294901760
      %v513 = vsub.f32 %v256, %v512
      %v514 = vand.u32 %v513, 4294901760
      %v515 = vsub.f32 %v513, %v514
      %v516 = vand.u32 %v515, 4294901760
      %517 = vmatprep.subr.mxu0 %v516
      %v518 = vand.u32 %v255, 4294901760
      %v519 = vsub.f32 %v255, %v518
      %v520 = vand.u32 %v519, 4294901760
      %v521 = vsub.f32 %v519, %v520
      %v522 = vand.u32 %v521, 4294901760
      %523 = vmatpush1.msra.mxu0 %v522
      %v524 = vand.u32 %v252, 4294901760
      %v525 = vsub.f32 %v252, %v524
      %v526 = vand.u32 %v525, 4294901760
      %v527 = vsub.f32 %v525, %v526
      %v528 = vand.u32 %v527, 4294901760
      %529 = vmatprep.subr.mxu0 %v528
      %v530 = vand.u32 %v251, 4294901760
      %v531 = vsub.f32 %v251, %v530
      %v532 = vand.u32 %v531, 4294901760
      %v533 = vsub.f32 %v531, %v532
      %v534 = vand.u32 %v533, 4294901760
      %535 = vmatpush1.msra.mxu0 %v534
      %v536 = vand.u32 %v248, 4294901760
      %v537 = vsub.f32 %v248, %v536
      %v538 = vand.u32 %v537, 4294901760
      %v539 = vsub.f32 %v537, %v538
      %v540 = vand.u32 %v539, 4294901760
      %541 = vmatprep.subr.mxu0 %v540
      %v542 = vand.u32 %v247, 4294901760
      %v543 = vsub.f32 %v247, %v542
      %v544 = vand.u32 %v543, 4294901760
      %v545 = vsub.f32 %v543, %v544
      %v546 = vand.u32 %v545, 4294901760
      %547 = vmatpush1.msra.mxu0 %v546
      %v548 = vand.u32 %v244, 4294901760
      %v549 = vsub.f32 %v244, %v548
      %v550 = vand.u32 %v549, 4294901760
      %v551 = vsub.f32 %v549, %v550
      %v552 = vand.u32 %v551, 4294901760
      %553 = vmatprep.subr.mxu0 %v552
      %v554 = vand.u32 %v243, 4294901760
      %v555 = vsub.f32 %v243, %v554
      %v556 = vand.u32 %v555, 4294901760
      %v557 = vsub.f32 %v555, %v556
      %v558 = vand.u32 %v557, 4294901760
      %559 = vmatpush1.msra.mxu0 %v558
      %v560 = vand.u32 %v240, 4294901760
      %v561 = vsub.f32 %v240, %v560
      %v562 = vand.u32 %v561, 4294901760
      %v563 = vsub.f32 %v561, %v562
      %v564 = vand.u32 %v563, 4294901760
      %565 = vmatprep.subr.mxu0 %v564
      %v566 = vand.u32 %v239, 4294901760
      %v567 = vsub.f32 %v239, %v566
      %v568 = vand.u32 %v567, 4294901760
      %v569 = vsub.f32 %v567, %v568
      %v570 = vand.u32 %v569, 4294901760
      %571 = vmatpush1.msra.mxu0 %v570
      %v572 = vand.u32 %v236, 4294901760
      %v573 = vsub.f32 %v236, %v572
      %v574 = vand.u32 %v573, 4294901760
      %v575 = vsub.f32 %v573, %v574
      %v576 = vand.u32 %v575, 4294901760
      %577 = vmatprep.subr.mxu0 %v576
      %v578 = vand.u32 %v235, 4294901760
      %v579 = vsub.f32 %v235, %v578
      %v580 = vand.u32 %v579, 4294901760
      %v581 = vsub.f32 %v579, %v580
      %v582 = vand.u32 %v581, 4294901760
      %583 = vmatpush1.msra.mxu0 %v582
      %v584 = vand.u32 %v232, 4294901760
      %v585 = vsub.f32 %v232, %v584
      %v586 = vand.u32 %v585, 4294901760
      %v587 = vsub.f32 %v585, %v586
      %v588 = vand.u32 %v587, 4294901760
      %589 = vmatprep.subr.mxu0 %v588
      %v590 = vand.u32 %v231, 4294901760
      %v591 = vsub.f32 %v231, %v590
      %v592 = vand.u32 %v591, 4294901760
      %v593 = vsub.f32 %v591, %v592
      %v594 = vand.u32 %v593, 4294901760
      %595 = vmatpush1.msra.mxu0 %v594
      %596 = vmatprep.subr.mxu0 0.0
      %597 = vmatpush2.msra.mxu0 0.0
      %598 = vmatprep.subr.mxu0 0.0
      %599 = vmatpush2.msra.mxu0 0.0
      %600 = vmatprep.subr.mxu0 0.0
      %601 = vmatpush2.msra.mxu0 0.0
      %602 = vmatprep.subr.mxu0 0.0
      %603 = vmatpush2.msra.mxu0 0.0
      %604 = vmatprep.subr.mxu0 0.0
      %605 = vmatpush2.msra.mxu0 0.0
      %606 = vmatprep.subr.mxu0 0.0
      %607 = vmatpush2.msra.mxu0 0.0
      %608 = vmatprep.subr.mxu0 0.0
      %609 = vmatpush2.msra.mxu0 0.0
      %610 = vmatprep.subr.mxu0 0.0
      %611 = vmatpush2.msra.mxu0 0.0
      %612 = vmatprep.subr.mxu0 0.0
      %613 = vmatpush2.msra.mxu0 0.0
      %614 = vmatprep.subr.mxu0 0.0
      %615 = vmatpush2.msra.mxu0 0.0
      %616 = vmatprep.subr.mxu0 0.0
      %617 = vmatpush2.msra.mxu0 0.0
      %618 = vmatprep.subr.mxu0 0.0
      %619 = vmatpush2.msra.mxu0 0.0
      %620 = vmatprep.subr.mxu0 0.0
      %621 = vmatpush2.msra.mxu0 0.0
      %622 = vmatprep.subr.mxu0 0.0
      %623 = vmatpush2.msra.mxu0 0.0
      %624 = vmatprep.subr.mxu0 0.0
      %625 = vmatpush2.msra.mxu0 0.0
      %626 = vmatprep.subr.mxu0 0.0
      %627 = vmatpush2.msra.mxu0 0.0
      %628 = vmatprep.mubr.f32.mxu0 0.0
      %v629 = vand.u32 %v295, 4294901760
      %630 = vmatmul.mubr.f32.gmra.mxu0 %v629
      %v631 = vpop.f32.mrf.mxu0
      %v632 = vadd.f32 %v400, %v631
      %v633 = vpop.f32.mrf.mxu0
      %v634 = vadd.f32 %v402, %v633
      %635 = vdwg.mxu0
      %v636 = vand.u32 %v292, 4294901760
      %v637 = vsub.f32 %v292, %v636
      %638 = vmatprep.subr.mxu0 %v637
      %v639 = vand.u32 %v291, 4294901760
      %v640 = vsub.f32 %v291, %v639
      %641 = vmatpush1.msra.mxu0 %v640
      %v642 = vand.u32 %v288, 4294901760
      %v643 = vsub.f32 %v288, %v642
      %644 = vmatprep.subr.mxu0 %v643
      %v645 = vand.u32 %v287, 4294901760
      %v646 = vsub.f32 %v287, %v645
      %647 = vmatpush1.msra.mxu0 %v646
      %v648 = vand.u32 %v284, 4294901760
      %v649 = vsub.f32 %v284, %v648
      %650 = vmatprep.subr.mxu0 %v649
      %v651 = vand.u32 %v283, 4294901760
      %v652 = vsub.f32 %v283, %v651
      %653 = vmatpush1.msra.mxu0 %v652
      %v654 = vand.u32 %v280, 4294901760
      %v655 = vsub.f32 %v280, %v654
      %656 = vmatprep.subr.mxu0 %v655
      %v657 = vand.u32 %v279, 4294901760
      %v658 = vsub.f32 %v279, %v657
      %659 = vmatpush1.msra.mxu0 %v658
      %v660 = vand.u32 %v276, 4294901760
      %v661 = vsub.f32 %v276, %v660
      %662 = vmatprep.subr.mxu0 %v661
      %v663 = vand.u32 %v275, 4294901760
      %v664 = vsub.f32 %v275, %v663
      %665 = vmatpush1.msra.mxu0 %v664
      %v666 = vand.u32 %v272, 4294901760
      %v667 = vsub.f32 %v272, %v666
      %668 = vmatprep.subr.mxu0 %v667
      %v669 = vand.u32 %v271, 4294901760
      %v670 = vsub.f32 %v271, %v669
      %671 = vmatpush1.msra.mxu0 %v670
      %v672 = vand.u32 %v268, 4294901760
      %v673 = vsub.f32 %v268, %v672
      %674 = vmatprep.subr.mxu0 %v673
      %v675 = vand.u32 %v267, 4294901760
      %v676 = vsub.f32 %v267, %v675
      %677 = vmatpush1.msra.mxu0 %v676
      %v678 = vand.u32 %v264, 4294901760
      %v679 = vsub.f32 %v264, %v678
      %680 = vmatprep.subr.mxu0 %v679
      %v681 = vand.u32 %v263, 4294901760
      %v682 = vsub.f32 %v263, %v681
      %683 = vmatpush1.msra.mxu0 %v682
      %v684 = vand.u32 %v260, 4294901760
      %v685 = vsub.f32 %v260, %v684
      %686 = vmatprep.subr.mxu0 %v685
      %v687 = vand.u32 %v259, 4294901760
      %v688 = vsub.f32 %v259, %v687
      %689 = vmatpush1.msra.mxu0 %v688
      %v690 = vand.u32 %v256, 4294901760
      %v691 = vsub.f32 %v256, %v690
      %692 = vmatprep.subr.mxu0 %v691
      %v693 = vand.u32 %v255, 4294901760
      %v694 = vsub.f32 %v255, %v693
      %695 = vmatpush1.msra.mxu0 %v694
      %v696 = vand.u32 %v252, 4294901760
      %v697 = vsub.f32 %v252, %v696
      %698 = vmatprep.subr.mxu0 %v697
      %v699 = vand.u32 %v251, 4294901760
      %v700 = vsub.f32 %v251, %v699
      %701 = vmatpush1.msra.mxu0 %v700
      %v702 = vand.u32 %v248, 4294901760
      %v703 = vsub.f32 %v248, %v702
      %704 = vmatprep.subr.mxu0 %v703
      %v705 = vand.u32 %v247, 4294901760
      %v706 = vsub.f32 %v247, %v705
      %707 = vmatpush1.msra.mxu0 %v706
      %v708 = vand.u32 %v244, 4294901760
      %v709 = vsub.f32 %v244, %v708
      %710 = vmatprep.subr.mxu0 %v709
      %v711 = vand.u32 %v243, 4294901760
      %v712 = vsub.f32 %v243, %v711
      %713 = vmatpush1.msra.mxu0 %v712
      %v714 = vand.u32 %v240, 4294901760
      %v715 = vsub.f32 %v240, %v714
      %716 = vmatprep.subr.mxu0 %v715
      %v717 = vand.u32 %v239, 4294901760
      %v718 = vsub.f32 %v239, %v717
      %719 = vmatpush1.msra.mxu0 %v718
      %v720 = vand.u32 %v236, 4294901760
      %v721 = vsub.f32 %v236, %v720
      %722 = vmatprep.subr.mxu0 %v721
      %v723 = vand.u32 %v235, 4294901760
      %v724 = vsub.f32 %v235, %v723
      %725 = vmatpush1.msra.mxu0 %v724
      %v726 = vand.u32 %v232, 4294901760
      %v727 = vsub.f32 %v232, %v726
      %728 = vmatprep.subr.mxu0 %v727
      %v729 = vand.u32 %v231, 4294901760
      %v730 = vsub.f32 %v231, %v729
      %731 = vmatpush1.msra.mxu0 %v730
      %732 = vmatprep.subr.mxu0 0.0
      %733 = vmatpush2.msra.mxu0 0.0
      %734 = vmatprep.subr.mxu0 0.0
      %735 = vmatpush2.msra.mxu0 0.0
      %736 = vmatprep.subr.mxu0 0.0
      %737 = vmatpush2.msra.mxu0 0.0
      %738 = vmatprep.subr.mxu0 0.0
      %739 = vmatpush2.msra.mxu0 0.0
      %740 = vmatprep.subr.mxu0 0.0
      %741 = vmatpush2.msra.mxu0 0.0
      %742 = vmatprep.subr.mxu0 0.0
      %743 = vmatpush2.msra.mxu0 0.0
      %744 = vmatprep.subr.mxu0 0.0
      %745 = vmatpush2.msra.mxu0 0.0
      %746 = vmatprep.subr.mxu0 0.0
      %747 = vmatpush2.msra.mxu0 0.0
      %748 = vmatprep.subr.mxu0 0.0
      %749 = vmatpush2.msra.mxu0 0.0
      %750 = vmatprep.subr.mxu0 0.0
      %751 = vmatpush2.msra.mxu0 0.0
      %752 = vmatprep.subr.mxu0 0.0
      %753 = vmatpush2.msra.mxu0 0.0
      %754 = vmatprep.subr.mxu0 0.0
      %755 = vmatpush2.msra.mxu0 0.0
      %756 = vmatprep.subr.mxu0 0.0
      %757 = vmatpush2.msra.mxu0 0.0
      %758 = vmatprep.subr.mxu0 0.0
      %759 = vmatpush2.msra.mxu0 0.0
      %760 = vmatprep.subr.mxu0 0.0
      %761 = vmatpush2.msra.mxu0 0.0
      %762 = vmatprep.subr.mxu0 0.0
      %763 = vmatpush2.msra.mxu0 0.0
      %764 = vmatprep.mubr.f32.mxu0 0.0
      %v765 = vand.u32 %v295, 4294901760
      %v766 = vsub.f32 %v295, %v765
      %767 = vmatmul.mubr.f32.gmra.mxu0 %v766
      %v768 = vpop.f32.mrf.mxu0
      %v769 = vadd.f32 %v632, %v768
      %v770 = vpop.f32.mrf.mxu0
      %v771 = vadd.f32 %v634, %v770
      %772 = vdwg.mxu0
      %v773 = vand.u32 %v292, 4294901760
      %774 = vmatprep.subr.mxu0 %v773
      %v775 = vand.u32 %v291, 4294901760
      %776 = vmatpush1.msra.mxu0 %v775
      %v777 = vand.u32 %v288, 4294901760
      %778 = vmatprep.subr.mxu0 %v777
      %v779 = vand.u32 %v287, 4294901760
      %780 = vmatpush1.msra.mxu0 %v779
      %v781 = vand.u32 %v284, 4294901760
      %782 = vmatprep.subr.mxu0 %v781
      %v783 = vand.u32 %v283, 4294901760
      %784 = vmatpush1.msra.mxu0 %v783
      %v785 = vand.u32 %v280, 4294901760
      %786 = vmatprep.subr.mxu0 %v785
      %v787 = vand.u32 %v279, 4294901760
      %788 = vmatpush1.msra.mxu0 %v787
      %v789 = vand.u32 %v276, 4294901760
      %790 = vmatprep.subr.mxu0 %v789
      %v791 = vand.u32 %v275, 4294901760
      %792 = vmatpush1.msra.mxu0 %v791
      %v793 = vand.u32 %v272, 4294901760
      %794 = vmatprep.subr.mxu0 %v793
      %v795 = vand.u32 %v271, 4294901760
      %796 = vmatpush1.msra.mxu0 %v795
      %v797 = vand.u32 %v268, 4294901760
      %798 = vmatprep.subr.mxu0 %v797
      %v799 = vand.u32 %v267, 4294901760
      %800 = vmatpush1.msra.mxu0 %v799
      %v801 = vand.u32 %v264, 4294901760
      %802 = vmatprep.subr.mxu0 %v801
      %v803 = vand.u32 %v263, 4294901760
      %804 = vmatpush1.msra.mxu0 %v803
      %v805 = vand.u32 %v260, 4294901760
      %806 = vmatprep.subr.mxu0 %v805
      %v807 = vand.u32 %v259, 4294901760
      %808 = vmatpush1.msra.mxu0 %v807
      %v809 = vand.u32 %v256, 4294901760
      %810 = vmatprep.subr.mxu0 %v809
      %v811 = vand.u32 %v255, 4294901760
      %812 = vmatpush1.msra.mxu0 %v811
      %v813 = vand.u32 %v252, 4294901760
      %814 = vmatprep.subr.mxu0 %v813
      %v815 = vand.u32 %v251, 4294901760
      %816 = vmatpush1.msra.mxu0 %v815
      %v817 = vand.u32 %v248, 4294901760
      %818 = vmatprep.subr.mxu0 %v817
      %v819 = vand.u32 %v247, 4294901760
      %820 = vmatpush1.msra.mxu0 %v819
      %v821 = vand.u32 %v244, 4294901760
      %822 = vmatprep.subr.mxu0 %v821
      %v823 = vand.u32 %v243, 4294901760
      %824 = vmatpush1.msra.mxu0 %v823
      %v825 = vand.u32 %v240, 4294901760
      %826 = vmatprep.subr.mxu0 %v825
      %v827 = vand.u32 %v239, 4294901760
      %828 = vmatpush1.msra.mxu0 %v827
      %v829 = vand.u32 %v236, 4294901760
      %830 = vmatprep.subr.mxu0 %v829
      %v831 = vand.u32 %v235, 4294901760
      %832 = vmatpush1.msra.mxu0 %v831
      %v833 = vand.u32 %v232, 4294901760
      %834 = vmatprep.subr.mxu0 %v833
      %v835 = vand.u32 %v231, 4294901760
      %836 = vmatpush1.msra.mxu0 %v835
      %837 = vmatprep.subr.mxu0 0.0
      %838 = vmatpush2.msra.mxu0 0.0
      %839 = vmatprep.subr.mxu0 0.0
      %840 = vmatpush2.msra.mxu0 0.0
      %841 = vmatprep.subr.mxu0 0.0
      %842 = vmatpush2.msra.mxu0 0.0
      %843 = vmatprep.subr.mxu0 0.0
      %844 = vmatpush2.msra.mxu0 0.0
      %845 = vmatprep.subr.mxu0 0.0
      %846 = vmatpush2.msra.mxu0 0.0
      %847 = vmatprep.subr.mxu0 0.0
      %848 = vmatpush2.msra.mxu0 0.0
      %849 = vmatprep.subr.mxu0 0.0
      %850 = vmatpush2.msra.mxu0 0.0
      %851 = vmatprep.subr.mxu0 0.0
      %852 = vmatpush2.msra.mxu0 0.0
      %853 = vmatprep.subr.mxu0 0.0
      %854 = vmatpush2.msra.mxu0 0.0
      %855 = vmatprep.subr.mxu0 0.0
      %856 = vmatpush2.msra.mxu0 0.0
      %857 = vmatprep.subr.mxu0 0.0
      %858 = vmatpush2.msra.mxu0 0.0
      %859 = vmatprep.subr.mxu0 0.0
      %860 = vmatpush2.msra.mxu0 0.0
      %861 = vmatprep.subr.mxu0 0.0
      %862 = vmatpush2.msra.mxu0 0.0
      %863 = vmatprep.subr.mxu0 0.0
      %864 = vmatpush2.msra.mxu0 0.0
      %865 = vmatprep.subr.mxu0 0.0
      %866 = vmatpush2.msra.mxu0 0.0
      %867 = vmatprep.subr.mxu0 0.0
      %868 = vmatpush2.msra.mxu0 0.0
      %869 = vmatprep.mubr.f32.mxu0 0.0
      %v870 = vand.u32 %v295, 4294901760
      %v871 = vsub.f32 %v295, %v870
      %v872 = vand.u32 %v871, 4294901760
      %873 = vmatmul.mubr.f32.gmra.mxu0 %v872
      %v874 = vpop.f32.mrf.mxu0
      %v875 = vadd.f32 %v769, %v874
      %v876 = vpop.f32.mrf.mxu0
      %v877 = vadd.f32 %v771, %v876
      %878 = vdwg.mxu0
      %v879 = vand.u32 %v292, 4294901760
      %v880 = vsub.f32 %v292, %v879
      %v881 = vand.u32 %v880, 4294901760
      %882 = vmatprep.subr.mxu0 %v881
      %v883 = vand.u32 %v291, 4294901760
      %v884 = vsub.f32 %v291, %v883
      %v885 = vand.u32 %v884, 4294901760
      %886 = vmatpush1.msra.mxu0 %v885
      %v887 = vand.u32 %v288, 4294901760
      %v888 = vsub.f32 %v288, %v887
      %v889 = vand.u32 %v888, 4294901760
      %890 = vmatprep.subr.mxu0 %v889
      %v891 = vand.u32 %v287, 4294901760
      %v892 = vsub.f32 %v287, %v891
      %v893 = vand.u32 %v892, 4294901760
      %894 = vmatpush1.msra.mxu0 %v893
      %v895 = vand.u32 %v284, 4294901760
      %v896 = vsub.f32 %v284, %v895
      %v897 = vand.u32 %v896, 4294901760
      %898 = vmatprep.subr.mxu0 %v897
      %v899 = vand.u32 %v283, 4294901760
      %v900 = vsub.f32 %v283, %v899
      %v901 = vand.u32 %v900, 4294901760
      %902 = vmatpush1.msra.mxu0 %v901
      %v903 = vand.u32 %v280, 4294901760
      %v904 = vsub.f32 %v280, %v903
      %v905 = vand.u32 %v904, 4294901760
      %906 = vmatprep.subr.mxu0 %v905
      %v907 = vand.u32 %v279, 4294901760
      %v908 = vsub.f32 %v279, %v907
      %v909 = vand.u32 %v908, 4294901760
      %910 = vmatpush1.msra.mxu0 %v909
      %v911 = vand.u32 %v276, 4294901760
      %v912 = vsub.f32 %v276, %v911
      %v913 = vand.u32 %v912, 4294901760
      %914 = vmatprep.subr.mxu0 %v913
      %v915 = vand.u32 %v275, 4294901760
      %v916 = vsub.f32 %v275, %v915
      %v917 = vand.u32 %v916, 4294901760
      %918 = vmatpush1.msra.mxu0 %v917
      %v919 = vand.u32 %v272, 4294901760
      %v920 = vsub.f32 %v272, %v919
      %v921 = vand.u32 %v920, 4294901760
      %922 = vmatprep.subr.mxu0 %v921
      %v923 = vand.u32 %v271, 4294901760
      %v924 = vsub.f32 %v271, %v923
      %v925 = vand.u32 %v924, 4294901760
      %926 = vmatpush1.msra.mxu0 %v925
      %v927 = vand.u32 %v268, 4294901760
      %v928 = vsub.f32 %v268, %v927
      %v929 = vand.u32 %v928, 4294901760
      %930 = vmatprep.subr.mxu0 %v929
      %v931 = vand.u32 %v267, 4294901760
      %v932 = vsub.f32 %v267, %v931
      %v933 = vand.u32 %v932, 4294901760
      %934 = vmatpush1.msra.mxu0 %v933
      %v935 = vand.u32 %v264, 4294901760
      %v936 = vsub.f32 %v264, %v935
      %v937 = vand.u32 %v936, 4294901760
      %938 = vmatprep.subr.mxu0 %v937
      %v939 = vand.u32 %v263, 4294901760
      %v940 = vsub.f32 %v263, %v939
      %v941 = vand.u32 %v940, 4294901760
      %942 = vmatpush1.msra.mxu0 %v941
      %v943 = vand.u32 %v260, 4294901760
      %v944 = vsub.f32 %v260, %v943
      %v945 = vand.u32 %v944, 4294901760
      %946 = vmatprep.subr.mxu0 %v945
      %v947 = vand.u32 %v259, 4294901760
      %v948 = vsub.f32 %v259, %v947
      %v949 = vand.u32 %v948, 4294901760
      %950 = vmatpush1.msra.mxu0 %v949
      %v951 = vand.u32 %v256, 4294901760
      %v952 = vsub.f32 %v256, %v951
      %v953 = vand.u32 %v952, 4294901760
      %954 = vmatprep.subr.mxu0 %v953
      %v955 = vand.u32 %v255, 4294901760
      %v956 = vsub.f32 %v255, %v955
      %v957 = vand.u32 %v956, 4294901760
      %958 = vmatpush1.msra.mxu0 %v957
      %v959 = vand.u32 %v252, 4294901760
      %v960 = vsub.f32 %v252, %v959
      %v961 = vand.u32 %v960, 4294901760
      %962 = vmatprep.subr.mxu0 %v961
      %v963 = vand.u32 %v251, 4294901760
      %v964 = vsub.f32 %v251, %v963
      %v965 = vand.u32 %v964, 4294901760
      %966 = vmatpush1.msra.mxu0 %v965
      %v967 = vand.u32 %v248, 4294901760
      %v968 = vsub.f32 %v248, %v967
      %v969 = vand.u32 %v968, 4294901760
      %970 = vmatprep.subr.mxu0 %v969
      %v971 = vand.u32 %v247, 4294901760
      %v972 = vsub.f32 %v247, %v971
      %v973 = vand.u32 %v972, 4294901760
      %974 = vmatpush1.msra.mxu0 %v973
      %v975 = vand.u32 %v244, 4294901760
      %v976 = vsub.f32 %v244, %v975
      %v977 = vand.u32 %v976, 4294901760
      %978 = vmatprep.subr.mxu0 %v977
      %v979 = vand.u32 %v243, 4294901760
      %v980 = vsub.f32 %v243, %v979
      %v981 = vand.u32 %v980, 4294901760
      %982 = vmatpush1.msra.mxu0 %v981
      %v983 = vand.u32 %v240, 4294901760
      %v984 = vsub.f32 %v240, %v983
      %v985 = vand.u32 %v984, 4294901760
      %986 = vmatprep.subr.mxu0 %v985
      %v987 = vand.u32 %v239, 4294901760
      %v988 = vsub.f32 %v239, %v987
      %v989 = vand.u32 %v988, 4294901760
      %990 = vmatpush1.msra.mxu0 %v989
      %v991 = vand.u32 %v236, 4294901760
      %v992 = vsub.f32 %v236, %v991
      %v993 = vand.u32 %v992, 4294901760
      %994 = vmatprep.subr.mxu0 %v993
      %v995 = vand.u32 %v235, 4294901760
      %v996 = vsub.f32 %v235, %v995
      %v997 = vand.u32 %v996, 4294901760
      %998 = vmatpush1.msra.mxu0 %v997
      %v999 = vand.u32 %v232, 4294901760
      %v1000 = vsub.f32 %v232, %v999
      %v1001 = vand.u32 %v1000, 4294901760
      %1002 = vmatprep.subr.mxu0 %v1001
      %v1003 = vand.u32 %v231, 4294901760
      %v1004 = vsub.f32 %v231, %v1003
      %v1005 = vand.u32 %v1004, 4294901760
      %1006 = vmatpush1.msra.mxu0 %v1005
      %1007 = vmatprep.subr.mxu0 0.0
      %1008 = vmatpush2.msra.mxu0 0.0
      %1009 = vmatprep.subr.mxu0 0.0
      %1010 = vmatpush2.msra.mxu0 0.0
      %1011 = vmatprep.subr.mxu0 0.0
      %1012 = vmatpush2.msra.mxu0 0.0
      %1013 = vmatprep.subr.mxu0 0.0
      %1014 = vmatpush2.msra.mxu0 0.0
      %1015 = vmatprep.subr.mxu0 0.0
      %1016 = vmatpush2.msra.mxu0 0.0
      %1017 = vmatprep.subr.mxu0 0.0
      %1018 = vmatpush2.msra.mxu0 0.0
      %1019 = vmatprep.subr.mxu0 0.0
      %1020 = vmatpush2.msra.mxu0 0.0
      %1021 = vmatprep.subr.mxu0 0.0
      %1022 = vmatpush2.msra.mxu0 0.0
      %1023 = vmatprep.subr.mxu0 0.0
      %1024 = vmatpush2.msra.mxu0 0.0
      %1025 = vmatprep.subr.mxu0 0.0
      %1026 = vmatpush2.msra.mxu0 0.0
      %1027 = vmatprep.subr.mxu0 0.0
      %1028 = vmatpush2.msra.mxu0 0.0
      %1029 = vmatprep.subr.mxu0 0.0
      %1030 = vmatpush2.msra.mxu0 0.0
      %1031 = vmatprep.subr.mxu0 0.0
      %1032 = vmatpush2.msra.mxu0 0.0
      %1033 = vmatprep.subr.mxu0 0.0
      %1034 = vmatpush2.msra.mxu0 0.0
      %1035 = vmatprep.subr.mxu0 0.0
      %1036 = vmatpush2.msra.mxu0 0.0
      %1037 = vmatprep.subr.mxu0 0.0
      %1038 = vmatpush2.msra.mxu0 0.0
      %1039 = vmatprep.mubr.f32.mxu0 0.0
      %v1040 = vand.u32 %v295, 4294901760
      %1041 = vmatmul.mubr.f32.gmra.mxu0 %v1040
      %v1042 = vpop.f32.mrf.mxu0
      %v1043 = vadd.f32 %v875, %v1042
      %v1044 = vpop.f32.mrf.mxu0
      %v1045 = vadd.f32 %v877, %v1044
      %1046 = vdwg.mxu0
      %v1047 = vand.u32 %v292, 4294901760
      %1048 = vmatprep.subr.mxu0 %v1047
      %v1049 = vand.u32 %v291, 4294901760
      %1050 = vmatpush1.msra.mxu0 %v1049
      %v1051 = vand.u32 %v288, 4294901760
      %1052 = vmatprep.subr.mxu0 %v1051
      %v1053 = vand.u32 %v287, 4294901760
      %1054 = vmatpush1.msra.mxu0 %v1053
      %v1055 = vand.u32 %v284, 4294901760
      %1056 = vmatprep.subr.mxu0 %v1055
      %v1057 = vand.u32 %v283, 4294901760
      %1058 = vmatpush1.msra.mxu0 %v1057
      %v1059 = vand.u32 %v280, 4294901760
      %1060 = vmatprep.subr.mxu0 %v1059
      %v1061 = vand.u32 %v279, 4294901760
      %1062 = vmatpush1.msra.mxu0 %v1061
      %v1063 = vand.u32 %v276, 4294901760
      %1064 = vmatprep.subr.mxu0 %v1063
      %v1065 = vand.u32 %v275, 4294901760
      %1066 = vmatpush1.msra.mxu0 %v1065
      %v1067 = vand.u32 %v272, 4294901760
      %1068 = vmatprep.subr.mxu0 %v1067
      %v1069 = vand.u32 %v271, 4294901760
      %1070 = vmatpush1.msra.mxu0 %v1069
      %v1071 = vand.u32 %v268, 4294901760
      %1072 = vmatprep.subr.mxu0 %v1071
      %v1073 = vand.u32 %v267, 4294901760
      %1074 = vmatpush1.msra.mxu0 %v1073
      %v1075 = vand.u32 %v264, 4294901760
      %1076 = vmatprep.subr.mxu0 %v1075
      %v1077 = vand.u32 %v263, 4294901760
      %1078 = vmatpush1.msra.mxu0 %v1077
      %v1079 = vand.u32 %v260, 4294901760
      %1080 = vmatprep.subr.mxu0 %v1079
      %v1081 = vand.u32 %v259, 4294901760
      %1082 = vmatpush1.msra.mxu0 %v1081
      %v1083 = vand.u32 %v256, 4294901760
      %1084 = vmatprep.subr.mxu0 %v1083
      %v1085 = vand.u32 %v255, 4294901760
      %1086 = vmatpush1.msra.mxu0 %v1085
      %v1087 = vand.u32 %v252, 4294901760
      %1088 = vmatprep.subr.mxu0 %v1087
      %v1089 = vand.u32 %v251, 4294901760
      %1090 = vmatpush1.msra.mxu0 %v1089
      %v1091 = vand.u32 %v248, 4294901760
      %1092 = vmatprep.subr.mxu0 %v1091
      %v1093 = vand.u32 %v247, 4294901760
      %1094 = vmatpush1.msra.mxu0 %v1093
      %v1095 = vand.u32 %v244, 4294901760
      %1096 = vmatprep.subr.mxu0 %v1095
      %v1097 = vand.u32 %v243, 4294901760
      %1098 = vmatpush1.msra.mxu0 %v1097
      %v1099 = vand.u32 %v240, 4294901760
      %1100 = vmatprep.subr.mxu0 %v1099
      %v1101 = vand.u32 %v239, 4294901760
      %1102 = vmatpush1.msra.mxu0 %v1101
      %v1103 = vand.u32 %v236, 4294901760
      %1104 = vmatprep.subr.mxu0 %v1103
      %v1105 = vand.u32 %v235, 4294901760
      %1106 = vmatpush1.msra.mxu0 %v1105
      %v1107 = vand.u32 %v232, 4294901760
      %1108 = vmatprep.subr.mxu0 %v1107
      %v1109 = vand.u32 %v231, 4294901760
      %1110 = vmatpush1.msra.mxu0 %v1109
      %1111 = vmatprep.subr.mxu0 0.0
      %1112 = vmatpush2.msra.mxu0 0.0
      %1113 = vmatprep.subr.mxu0 0.0
      %1114 = vmatpush2.msra.mxu0 0.0
      %1115 = vmatprep.subr.mxu0 0.0
      %1116 = vmatpush2.msra.mxu0 0.0
      %1117 = vmatprep.subr.mxu0 0.0
      %1118 = vmatpush2.msra.mxu0 0.0
      %1119 = vmatprep.subr.mxu0 0.0
      %1120 = vmatpush2.msra.mxu0 0.0
      %1121 = vmatprep.subr.mxu0 0.0
      %1122 = vmatpush2.msra.mxu0 0.0
      %1123 = vmatprep.subr.mxu0 0.0
      %1124 = vmatpush2.msra.mxu0 0.0
      %1125 = vmatprep.subr.mxu0 0.0
      %1126 = vmatpush2.msra.mxu0 0.0
      %1127 = vmatprep.subr.mxu0 0.0
      %1128 = vmatpush2.msra.mxu0 0.0
      %1129 = vmatprep.subr.mxu0 0.0
      %1130 = vmatpush2.msra.mxu0 0.0
      %1131 = vmatprep.subr.mxu0 0.0
      %1132 = vmatpush2.msra.mxu0 0.0
      %1133 = vmatprep.subr.mxu0 0.0
      %1134 = vmatpush2.msra.mxu0 0.0
      %1135 = vmatprep.subr.mxu0 0.0
      %1136 = vmatpush2.msra.mxu0 0.0
      %1137 = vmatprep.subr.mxu0 0.0
      %1138 = vmatpush2.msra.mxu0 0.0
      %1139 = vmatprep.subr.mxu0 0.0
      %1140 = vmatpush2.msra.mxu0 0.0
      %1141 = vmatprep.subr.mxu0 0.0
      %1142 = vmatpush2.msra.mxu0 0.0
      %1143 = vmatprep.mubr.f32.mxu0 0.0
      %v1144 = vand.u32 %v295, 4294901760
      %1145 = vmatmul.mubr.f32.gmra.mxu0 %v1144
      %v1146 = vpop.f32.mrf.mxu0
      %v1147 = vadd.f32 %v1043, %v1146
      %v1148 = vpop.f32.mrf.mxu0
      %v1149 = vadd.f32 %v1045, %v1148
      %1150 = vdwg.mxu0
      %v1151 = vand.u32 %v294, 4294901760
      %1152 = vmatprep.subr.mxu0 %v1151
      %v1153 = vand.u32 %v293, 4294901760
      %1154 = vmatpush1.msra.mxu0 %v1153
      %v1155 = vand.u32 %v290, 4294901760
      %1156 = vmatprep.subr.mxu0 %v1155
      %v1157 = vand.u32 %v289, 4294901760
      %1158 = vmatpush1.msra.mxu0 %v1157
      %v1159 = vand.u32 %v286, 4294901760
      %1160 = vmatprep.subr.mxu0 %v1159
      %v1161 = vand.u32 %v285, 4294901760
      %1162 = vmatpush1.msra.mxu0 %v1161
      %v1163 = vand.u32 %v282, 4294901760
      %1164 = vmatprep.subr.mxu0 %v1163
      %v1165 = vand.u32 %v281, 4294901760
      %1166 = vmatpush1.msra.mxu0 %v1165
      %v1167 = vand.u32 %v278, 4294901760
      %1168 = vmatprep.subr.mxu0 %v1167
      %v1169 = vand.u32 %v277, 4294901760
      %1170 = vmatpush1.msra.mxu0 %v1169
      %v1171 = vand.u32 %v274, 4294901760
      %1172 = vmatprep.subr.mxu0 %v1171
      %v1173 = vand.u32 %v273, 4294901760
      %1174 = vmatpush1.msra.mxu0 %v1173
      %v1175 = vand.u32 %v270, 4294901760
      %1176 = vmatprep.subr.mxu0 %v1175
      %v1177 = vand.u32 %v269, 4294901760
      %1178 = vmatpush1.msra.mxu0 %v1177
      %v1179 = vand.u32 %v266, 4294901760
      %1180 = vmatprep.subr.mxu0 %v1179
      %v1181 = vand.u32 %v265, 4294901760
      %1182 = vmatpush1.msra.mxu0 %v1181
      %v1183 = vand.u32 %v262, 4294901760
      %1184 = vmatprep.subr.mxu0 %v1183
      %v1185 = vand.u32 %v261, 4294901760
      %1186 = vmatpush1.msra.mxu0 %v1185
      %v1187 = vand.u32 %v258, 4294901760
      %1188 = vmatprep.subr.mxu0 %v1187
      %v1189 = vand.u32 %v257, 4294901760
      %1190 = vmatpush1.msra.mxu0 %v1189
      %v1191 = vand.u32 %v254, 4294901760
      %1192 = vmatprep.subr.mxu0 %v1191
      %v1193 = vand.u32 %v253, 4294901760
      %1194 = vmatpush1.msra.mxu0 %v1193
      %v1195 = vand.u32 %v250, 4294901760
      %1196 = vmatprep.subr.mxu0 %v1195
      %v1197 = vand.u32 %v249, 4294901760
      %1198 = vmatpush1.msra.mxu0 %v1197
      %v1199 = vand.u32 %v246, 4294901760
      %1200 = vmatprep.subr.mxu0 %v1199
      %v1201 = vand.u32 %v245, 4294901760
      %1202 = vmatpush1.msra.mxu0 %v1201
      %v1203 = vand.u32 %v242, 4294901760
      %1204 = vmatprep.subr.mxu0 %v1203
      %v1205 = vand.u32 %v241, 4294901760
      %1206 = vmatpush1.msra.mxu0 %v1205
      %v1207 = vand.u32 %v238, 4294901760
      %1208 = vmatprep.subr.mxu0 %v1207
      %v1209 = vand.u32 %v237, 4294901760
      %1210 = vmatpush1.msra.mxu0 %v1209
      %v1211 = vand.u32 %v234, 4294901760
      %1212 = vmatprep.subr.mxu0 %v1211
      %v1213 = vand.u32 %v233, 4294901760
      %1214 = vmatpush1.msra.mxu0 %v1213
      %1215 = vmatprep.subr.mxu0 0.0
      %1216 = vmatpush2.msra.mxu0 0.0
      %1217 = vmatprep.subr.mxu0 0.0
      %1218 = vmatpush2.msra.mxu0 0.0
      %1219 = vmatprep.subr.mxu0 0.0
      %1220 = vmatpush2.msra.mxu0 0.0
      %1221 = vmatprep.subr.mxu0 0.0
      %1222 = vmatpush2.msra.mxu0 0.0
      %1223 = vmatprep.subr.mxu0 0.0
      %1224 = vmatpush2.msra.mxu0 0.0
      %1225 = vmatprep.subr.mxu0 0.0
      %1226 = vmatpush2.msra.mxu0 0.0
      %1227 = vmatprep.subr.mxu0 0.0
      %1228 = vmatpush2.msra.mxu0 0.0
      %1229 = vmatprep.subr.mxu0 0.0
      %1230 = vmatpush2.msra.mxu0 0.0
      %1231 = vmatprep.subr.mxu0 0.0
      %1232 = vmatpush2.msra.mxu0 0.0
      %1233 = vmatprep.subr.mxu0 0.0
      %1234 = vmatpush2.msra.mxu0 0.0
      %1235 = vmatprep.subr.mxu0 0.0
      %1236 = vmatpush2.msra.mxu0 0.0
      %1237 = vmatprep.subr.mxu0 0.0
      %1238 = vmatpush2.msra.mxu0 0.0
      %1239 = vmatprep.subr.mxu0 0.0
      %1240 = vmatpush2.msra.mxu0 0.0
      %1241 = vmatprep.subr.mxu0 0.0
      %1242 = vmatpush2.msra.mxu0 0.0
      %1243 = vmatprep.subr.mxu0 0.0
      %1244 = vmatpush2.msra.mxu0 0.0
      %1245 = vmatprep.subr.mxu0 0.0
      %1246 = vmatpush2.msra.mxu0 0.0
      %1247 = vmatprep.mubr.f32.mxu0 0.0
      %v1248 = vand.u32 %v295, 4294901760
      %v1249 = vsub.f32 %v295, %v1248
      %v1250 = vand.u32 %v1249, 4294901760
      %v1251 = vsub.f32 %v1249, %v1250
      %v1252 = vand.u32 %v1251, 4294901760
      %1253 = vmatmul.mubr.f32.gmra.mxu0 %v1252
      %v1254 = vpop.f32.mrf.mxu0
      %v1255 = vadd.f32 0.0, %v1254
      %v1256 = vpop.f32.mrf.mxu0
      %v1257 = vadd.f32 0.0, %v1256
      %1258 = vdwg.mxu0
      %v1259 = vand.u32 %v294, 4294901760
      %v1260 = vsub.f32 %v294, %v1259
      %v1261 = vand.u32 %v1260, 4294901760
      %v1262 = vsub.f32 %v1260, %v1261
      %v1263 = vand.u32 %v1262, 4294901760
      %1264 = vmatprep.subr.mxu0 %v1263
      %v1265 = vand.u32 %v293, 4294901760
      %v1266 = vsub.f32 %v293, %v1265
      %v1267 = vand.u32 %v1266, 4294901760
      %v1268 = vsub.f32 %v1266, %v1267
      %v1269 = vand.u32 %v1268, 4294901760
      %1270 = vmatpush1.msra.mxu0 %v1269
      %v1271 = vand.u32 %v290, 4294901760
      %v1272 = vsub.f32 %v290, %v1271
      %v1273 = vand.u32 %v1272, 4294901760
      %v1274 = vsub.f32 %v1272, %v1273
      %v1275 = vand.u32 %v1274, 4294901760
      %1276 = vmatprep.subr.mxu0 %v1275
      %v1277 = vand.u32 %v289, 4294901760
      %v1278 = vsub.f32 %v289, %v1277
      %v1279 = vand.u32 %v1278, 4294901760
      %v1280 = vsub.f32 %v1278, %v1279
      %v1281 = vand.u32 %v1280, 4294901760
      %1282 = vmatpush1.msra.mxu0 %v1281
      %v1283 = vand.u32 %v286, 4294901760
      %v1284 = vsub.f32 %v286, %v1283
      %v1285 = vand.u32 %v1284, 4294901760
      %v1286 = vsub.f32 %v1284, %v1285
      %v1287 = vand.u32 %v1286, 4294901760
      %1288 = vmatprep.subr.mxu0 %v1287
      %v1289 = vand.u32 %v285, 4294901760
      %v1290 = vsub.f32 %v285, %v1289
      %v1291 = vand.u32 %v1290, 4294901760
      %v1292 = vsub.f32 %v1290, %v1291
      %v1293 = vand.u32 %v1292, 4294901760
      %1294 = vmatpush1.msra.mxu0 %v1293
      %v1295 = vand.u32 %v282, 4294901760
      %v1296 = vsub.f32 %v282, %v1295
      %v1297 = vand.u32 %v1296, 4294901760
      %v1298 = vsub.f32 %v1296, %v1297
      %v1299 = vand.u32 %v1298, 4294901760
      %1300 = vmatprep.subr.mxu0 %v1299
      %v1301 = vand.u32 %v281, 4294901760
      %v1302 = vsub.f32 %v281, %v1301
      %v1303 = vand.u32 %v1302, 4294901760
      %v1304 = vsub.f32 %v1302, %v1303
      %v1305 = vand.u32 %v1304, 4294901760
      %1306 = vmatpush1.msra.mxu0 %v1305
      %v1307 = vand.u32 %v278, 4294901760
      %v1308 = vsub.f32 %v278, %v1307
      %v1309 = vand.u32 %v1308, 4294901760
      %v1310 = vsub.f32 %v1308, %v1309
      %v1311 = vand.u32 %v1310, 4294901760
      %1312 = vmatprep.subr.mxu0 %v1311
      %v1313 = vand.u32 %v277, 4294901760
      %v1314 = vsub.f32 %v277, %v1313
      %v1315 = vand.u32 %v1314, 4294901760
      %v1316 = vsub.f32 %v1314, %v1315
      %v1317 = vand.u32 %v1316, 4294901760
      %1318 = vmatpush1.msra.mxu0 %v1317
      %v1319 = vand.u32 %v274, 4294901760
      %v1320 = vsub.f32 %v274, %v1319
      %v1321 = vand.u32 %v1320, 4294901760
      %v1322 = vsub.f32 %v1320, %v1321
      %v1323 = vand.u32 %v1322, 4294901760
      %1324 = vmatprep.subr.mxu0 %v1323
      %v1325 = vand.u32 %v273, 4294901760
      %v1326 = vsub.f32 %v273, %v1325
      %v1327 = vand.u32 %v1326, 4294901760
      %v1328 = vsub.f32 %v1326, %v1327
      %v1329 = vand.u32 %v1328, 4294901760
      %1330 = vmatpush1.msra.mxu0 %v1329
      %v1331 = vand.u32 %v270, 4294901760
      %v1332 = vsub.f32 %v270, %v1331
      %v1333 = vand.u32 %v1332, 4294901760
      %v1334 = vsub.f32 %v1332, %v1333
      %v1335 = vand.u32 %v1334, 4294901760
      %1336 = vmatprep.subr.mxu0 %v1335
      %v1337 = vand.u32 %v269, 4294901760
      %v1338 = vsub.f32 %v269, %v1337
      %v1339 = vand.u32 %v1338, 4294901760
      %v1340 = vsub.f32 %v1338, %v1339
      %v1341 = vand.u32 %v1340, 4294901760
      %1342 = vmatpush1.msra.mxu0 %v1341
      %v1343 = vand.u32 %v266, 4294901760
      %v1344 = vsub.f32 %v266, %v1343
      %v1345 = vand.u32 %v1344, 4294901760
      %v1346 = vsub.f32 %v1344, %v1345
      %v1347 = vand.u32 %v1346, 4294901760
      %1348 = vmatprep.subr.mxu0 %v1347
      %v1349 = vand.u32 %v265, 4294901760
      %v1350 = vsub.f32 %v265, %v1349
      %v1351 = vand.u32 %v1350, 4294901760
      %v1352 = vsub.f32 %v1350, %v1351
      %v1353 = vand.u32 %v1352, 4294901760
      %1354 = vmatpush1.msra.mxu0 %v1353
      %v1355 = vand.u32 %v262, 4294901760
      %v1356 = vsub.f32 %v262, %v1355
      %v1357 = vand.u32 %v1356, 4294901760
      %v1358 = vsub.f32 %v1356, %v1357
      %v1359 = vand.u32 %v1358, 4294901760
      %1360 = vmatprep.subr.mxu0 %v1359
      %v1361 = vand.u32 %v261, 4294901760
      %v1362 = vsub.f32 %v261, %v1361
      %v1363 = vand.u32 %v1362, 4294901760
      %v1364 = vsub.f32 %v1362, %v1363
      %v1365 = vand.u32 %v1364, 4294901760
      %1366 = vmatpush1.msra.mxu0 %v1365
      %v1367 = vand.u32 %v258, 4294901760
      %v1368 = vsub.f32 %v258, %v1367
      %v1369 = vand.u32 %v1368, 4294901760
      %v1370 = vsub.f32 %v1368, %v1369
      %v1371 = vand.u32 %v1370, 4294901760
      %1372 = vmatprep.subr.mxu0 %v1371
      %v1373 = vand.u32 %v257, 4294901760
      %v1374 = vsub.f32 %v257, %v1373
      %v1375 = vand.u32 %v1374, 4294901760
      %v1376 = vsub.f32 %v1374, %v1375
      %v1377 = vand.u32 %v1376, 4294901760
      %1378 = vmatpush1.msra.mxu0 %v1377
      %v1379 = vand.u32 %v254, 4294901760
      %v1380 = vsub.f32 %v254, %v1379
      %v1381 = vand.u32 %v1380, 4294901760
      %v1382 = vsub.f32 %v1380, %v1381
      %v1383 = vand.u32 %v1382, 4294901760
      %1384 = vmatprep.subr.mxu0 %v1383
      %v1385 = vand.u32 %v253, 4294901760
      %v1386 = vsub.f32 %v253, %v1385
      %v1387 = vand.u32 %v1386, 4294901760
      %v1388 = vsub.f32 %v1386, %v1387
      %v1389 = vand.u32 %v1388, 4294901760
      %1390 = vmatpush1.msra.mxu0 %v1389
      %v1391 = vand.u32 %v250, 4294901760
      %v1392 = vsub.f32 %v250, %v1391
      %v1393 = vand.u32 %v1392, 4294901760
      %v1394 = vsub.f32 %v1392, %v1393
      %v1395 = vand.u32 %v1394, 4294901760
      %1396 = vmatprep.subr.mxu0 %v1395
      %v1397 = vand.u32 %v249, 4294901760
      %v1398 = vsub.f32 %v249, %v1397
      %v1399 = vand.u32 %v1398, 4294901760
      %v1400 = vsub.f32 %v1398, %v1399
      %v1401 = vand.u32 %v1400, 4294901760
      %1402 = vmatpush1.msra.mxu0 %v1401
      %v1403 = vand.u32 %v246, 4294901760
      %v1404 = vsub.f32 %v246, %v1403
      %v1405 = vand.u32 %v1404, 4294901760
      %v1406 = vsub.f32 %v1404, %v1405
      %v1407 = vand.u32 %v1406, 4294901760
      %1408 = vmatprep.subr.mxu0 %v1407
      %v1409 = vand.u32 %v245, 4294901760
      %v1410 = vsub.f32 %v245, %v1409
      %v1411 = vand.u32 %v1410, 4294901760
      %v1412 = vsub.f32 %v1410, %v1411
      %v1413 = vand.u32 %v1412, 4294901760
      %1414 = vmatpush1.msra.mxu0 %v1413
      %v1415 = vand.u32 %v242, 4294901760
      %v1416 = vsub.f32 %v242, %v1415
      %v1417 = vand.u32 %v1416, 4294901760
      %v1418 = vsub.f32 %v1416, %v1417
      %v1419 = vand.u32 %v1418, 4294901760
      %1420 = vmatprep.subr.mxu0 %v1419
      %v1421 = vand.u32 %v241, 4294901760
      %v1422 = vsub.f32 %v241, %v1421
      %v1423 = vand.u32 %v1422, 4294901760
      %v1424 = vsub.f32 %v1422, %v1423
      %v1425 = vand.u32 %v1424, 4294901760
      %1426 = vmatpush1.msra.mxu0 %v1425
      %v1427 = vand.u32 %v238, 4294901760
      %v1428 = vsub.f32 %v238, %v1427
      %v1429 = vand.u32 %v1428, 4294901760
      %v1430 = vsub.f32 %v1428, %v1429
      %v1431 = vand.u32 %v1430, 4294901760
      %1432 = vmatprep.subr.mxu0 %v1431
      %v1433 = vand.u32 %v237, 4294901760
      %v1434 = vsub.f32 %v237, %v1433
      %v1435 = vand.u32 %v1434, 4294901760
      %v1436 = vsub.f32 %v1434, %v1435
      %v1437 = vand.u32 %v1436, 4294901760
      %1438 = vmatpush1.msra.mxu0 %v1437
      %v1439 = vand.u32 %v234, 4294901760
      %v1440 = vsub.f32 %v234, %v1439
      %v1441 = vand.u32 %v1440, 4294901760
      %v1442 = vsub.f32 %v1440, %v1441
      %v1443 = vand.u32 %v1442, 4294901760
      %1444 = vmatprep.subr.mxu0 %v1443
      %v1445 = vand.u32 %v233, 4294901760
      %v1446 = vsub.f32 %v233, %v1445
      %v1447 = vand.u32 %v1446, 4294901760
      %v1448 = vsub.f32 %v1446, %v1447
      %v1449 = vand.u32 %v1448, 4294901760
      %1450 = vmatpush1.msra.mxu0 %v1449
      %1451 = vmatprep.subr.mxu0 0.0
      %1452 = vmatpush2.msra.mxu0 0.0
      %1453 = vmatprep.subr.mxu0 0.0
      %1454 = vmatpush2.msra.mxu0 0.0
      %1455 = vmatprep.subr.mxu0 0.0
      %1456 = vmatpush2.msra.mxu0 0.0
      %1457 = vmatprep.subr.mxu0 0.0
      %1458 = vmatpush2.msra.mxu0 0.0
      %1459 = vmatprep.subr.mxu0 0.0
      %1460 = vmatpush2.msra.mxu0 0.0
      %1461 = vmatprep.subr.mxu0 0.0
      %1462 = vmatpush2.msra.mxu0 0.0
      %1463 = vmatprep.subr.mxu0 0.0
      %1464 = vmatpush2.msra.mxu0 0.0
      %1465 = vmatprep.subr.mxu0 0.0
      %1466 = vmatpush2.msra.mxu0 0.0
      %1467 = vmatprep.subr.mxu0 0.0
      %1468 = vmatpush2.msra.mxu0 0.0
      %1469 = vmatprep.subr.mxu0 0.0
      %1470 = vmatpush2.msra.mxu0 0.0
      %1471 = vmatprep.subr.mxu0 0.0
      %1472 = vmatpush2.msra.mxu0 0.0
      %1473 = vmatprep.subr.mxu0 0.0
      %1474 = vmatpush2.msra.mxu0 0.0
      %1475 = vmatprep.subr.mxu0 0.0
      %1476 = vmatpush2.msra.mxu0 0.0
      %1477 = vmatprep.subr.mxu0 0.0
      %1478 = vmatpush2.msra.mxu0 0.0
      %1479 = vmatprep.subr.mxu0 0.0
      %1480 = vmatpush2.msra.mxu0 0.0
      %1481 = vmatprep.subr.mxu0 0.0
      %1482 = vmatpush2.msra.mxu0 0.0
      %1483 = vmatprep.mubr.f32.mxu0 0.0
      %v1484 = vand.u32 %v295, 4294901760
      %1485 = vmatmul.mubr.f32.gmra.mxu0 %v1484
      %v1486 = vpop.f32.mrf.mxu0
      %v1487 = vadd.f32 %v1255, %v1486
      %v1488 = vpop.f32.mrf.mxu0
      %v1489 = vadd.f32 %v1257, %v1488
      %1490 = vdwg.mxu0
      %v1491 = vand.u32 %v294, 4294901760
      %v1492 = vsub.f32 %v294, %v1491
      %1493 = vmatprep.subr.mxu0 %v1492
      %v1494 = vand.u32 %v293, 4294901760
      %v1495 = vsub.f32 %v293, %v1494
      %1496 = vmatpush1.msra.mxu0 %v1495
      %v1497 = vand.u32 %v290, 4294901760
      %v1498 = vsub.f32 %v290, %v1497
      %1499 = vmatprep.subr.mxu0 %v1498
      %v1500 = vand.u32 %v289, 4294901760
      %v1501 = vsub.f32 %v289, %v1500
      %1502 = vmatpush1.msra.mxu0 %v1501
      %v1503 = vand.u32 %v286, 4294901760
      %v1504 = vsub.f32 %v286, %v1503
      %1505 = vmatprep.subr.mxu0 %v1504
      %v1506 = vand.u32 %v285, 4294901760
      %v1507 = vsub.f32 %v285, %v1506
      %1508 = vmatpush1.msra.mxu0 %v1507
      %v1509 = vand.u32 %v282, 4294901760
      %v1510 = vsub.f32 %v282, %v1509
      %1511 = vmatprep.subr.mxu0 %v1510
      %v1512 = vand.u32 %v281, 4294901760
      %v1513 = vsub.f32 %v281, %v1512
      %1514 = vmatpush1.msra.mxu0 %v1513
      %v1515 = vand.u32 %v278, 4294901760
      %v1516 = vsub.f32 %v278, %v1515
      %1517 = vmatprep.subr.mxu0 %v1516
      %v1518 = vand.u32 %v277, 4294901760
      %v1519 = vsub.f32 %v277, %v1518
      %1520 = vmatpush1.msra.mxu0 %v1519
      %v1521 = vand.u32 %v274, 4294901760
      %v1522 = vsub.f32 %v274, %v1521
      %1523 = vmatprep.subr.mxu0 %v1522
      %v1524 = vand.u32 %v273, 4294901760
      %v1525 = vsub.f32 %v273, %v1524
      %1526 = vmatpush1.msra.mxu0 %v1525
      %v1527 = vand.u32 %v270, 4294901760
      %v1528 = vsub.f32 %v270, %v1527
      %1529 = vmatprep.subr.mxu0 %v1528
      %v1530 = vand.u32 %v269, 4294901760
      %v1531 = vsub.f32 %v269, %v1530
      %1532 = vmatpush1.msra.mxu0 %v1531
      %v1533 = vand.u32 %v266, 4294901760
      %v1534 = vsub.f32 %v266, %v1533
      %1535 = vmatprep.subr.mxu0 %v1534
      %v1536 = vand.u32 %v265, 4294901760
      %v1537 = vsub.f32 %v265, %v1536
      %1538 = vmatpush1.msra.mxu0 %v1537
      %v1539 = vand.u32 %v262, 4294901760
      %v1540 = vsub.f32 %v262, %v1539
      %1541 = vmatprep.subr.mxu0 %v1540
      %v1542 = vand.u32 %v261, 4294901760
      %v1543 = vsub.f32 %v261, %v1542
      %1544 = vmatpush1.msra.mxu0 %v1543
      %v1545 = vand.u32 %v258, 4294901760
      %v1546 = vsub.f32 %v258, %v1545
      %1547 = vmatprep.subr.mxu0 %v1546
      %v1548 = vand.u32 %v257, 4294901760
      %v1549 = vsub.f32 %v257, %v1548
      %1550 = vmatpush1.msra.mxu0 %v1549
      %v1551 = vand.u32 %v254, 4294901760
      %v1552 = vsub.f32 %v254, %v1551
      %1553 = vmatprep.subr.mxu0 %v1552
      %v1554 = vand.u32 %v253, 4294901760
      %v1555 = vsub.f32 %v253, %v1554
      %1556 = vmatpush1.msra.mxu0 %v1555
      %v1557 = vand.u32 %v250, 4294901760
      %v1558 = vsub.f32 %v250, %v1557
      %1559 = vmatprep.subr.mxu0 %v1558
      %v1560 = vand.u32 %v249, 4294901760
      %v1561 = vsub.f32 %v249, %v1560
      %1562 = vmatpush1.msra.mxu0 %v1561
      %v1563 = vand.u32 %v246, 4294901760
      %v1564 = vsub.f32 %v246, %v1563
      %1565 = vmatprep.subr.mxu0 %v1564
      %v1566 = vand.u32 %v245, 4294901760
      %v1567 = vsub.f32 %v245, %v1566
      %1568 = vmatpush1.msra.mxu0 %v1567
      %v1569 = vand.u32 %v242, 4294901760
      %v1570 = vsub.f32 %v242, %v1569
      %1571 = vmatprep.subr.mxu0 %v1570
      %v1572 = vand.u32 %v241, 4294901760
      %v1573 = vsub.f32 %v241, %v1572
      %1574 = vmatpush1.msra.mxu0 %v1573
      %v1575 = vand.u32 %v238, 4294901760
      %v1576 = vsub.f32 %v238, %v1575
      %1577 = vmatprep.subr.mxu0 %v1576
      %v1578 = vand.u32 %v237, 4294901760
      %v1579 = vsub.f32 %v237, %v1578
      %1580 = vmatpush1.msra.mxu0 %v1579
      %v1581 = vand.u32 %v234, 4294901760
      %v1582 = vsub.f32 %v234, %v1581
      %1583 = vmatprep.subr.mxu0 %v1582
      %v1584 = vand.u32 %v233, 4294901760
      %v1585 = vsub.f32 %v233, %v1584
      %1586 = vmatpush1.msra.mxu0 %v1585
      %1587 = vmatprep.subr.mxu0 0.0
      %1588 = vmatpush2.msra.mxu0 0.0
      %1589 = vmatprep.subr.mxu0 0.0
      %1590 = vmatpush2.msra.mxu0 0.0
      %1591 = vmatprep.subr.mxu0 0.0
      %1592 = vmatpush2.msra.mxu0 0.0
      %1593 = vmatprep.subr.mxu0 0.0
      %1594 = vmatpush2.msra.mxu0 0.0
      %1595 = vmatprep.subr.mxu0 0.0
      %1596 = vmatpush2.msra.mxu0 0.0
      %1597 = vmatprep.subr.mxu0 0.0
      %1598 = vmatpush2.msra.mxu0 0.0
      %1599 = vmatprep.subr.mxu0 0.0
      %1600 = vmatpush2.msra.mxu0 0.0
      %1601 = vmatprep.subr.mxu0 0.0
      %1602 = vmatpush2.msra.mxu0 0.0
      %1603 = vmatprep.subr.mxu0 0.0
      %1604 = vmatpush2.msra.mxu0 0.0
      %1605 = vmatprep.subr.mxu0 0.0
      %1606 = vmatpush2.msra.mxu0 0.0
      %1607 = vmatprep.subr.mxu0 0.0
      %1608 = vmatpush2.msra.mxu0 0.0
      %1609 = vmatprep.subr.mxu0 0.0
      %1610 = vmatpush2.msra.mxu0 0.0
      %1611 = vmatprep.subr.mxu0 0.0
      %1612 = vmatpush2.msra.mxu0 0.0
      %1613 = vmatprep.subr.mxu0 0.0
      %1614 = vmatpush2.msra.mxu0 0.0
      %1615 = vmatprep.subr.mxu0 0.0
      %1616 = vmatpush2.msra.mxu0 0.0
      %1617 = vmatprep.subr.mxu0 0.0
      %1618 = vmatpush2.msra.mxu0 0.0
      %1619 = vmatprep.mubr.f32.mxu0 0.0
      %v1620 = vand.u32 %v295, 4294901760
      %v1621 = vsub.f32 %v295, %v1620
      %1622 = vmatmul.mubr.f32.gmra.mxu0 %v1621
      %v1623 = vpop.f32.mrf.mxu0
      %v1624 = vadd.f32 %v1487, %v1623
      %v1625 = vpop.f32.mrf.mxu0
      %v1626 = vadd.f32 %v1489, %v1625
      %1627 = vdwg.mxu0
      %v1628 = vand.u32 %v294, 4294901760
      %1629 = vmatprep.subr.mxu0 %v1628
      %v1630 = vand.u32 %v293, 4294901760
      %1631 = vmatpush1.msra.mxu0 %v1630
      %v1632 = vand.u32 %v290, 4294901760
      %1633 = vmatprep.subr.mxu0 %v1632
      %v1634 = vand.u32 %v289, 4294901760
      %1635 = vmatpush1.msra.mxu0 %v1634
      %v1636 = vand.u32 %v286, 4294901760
      %1637 = vmatprep.subr.mxu0 %v1636
      %v1638 = vand.u32 %v285, 4294901760
      %1639 = vmatpush1.msra.mxu0 %v1638
      %v1640 = vand.u32 %v282, 4294901760
      %1641 = vmatprep.subr.mxu0 %v1640
      %v1642 = vand.u32 %v281, 4294901760
      %1643 = vmatpush1.msra.mxu0 %v1642
      %v1644 = vand.u32 %v278, 4294901760
      %1645 = vmatprep.subr.mxu0 %v1644
      %v1646 = vand.u32 %v277, 4294901760
      %1647 = vmatpush1.msra.mxu0 %v1646
      %v1648 = vand.u32 %v274, 4294901760
      %1649 = vmatprep.subr.mxu0 %v1648
      %v1650 = vand.u32 %v273, 4294901760
      %1651 = vmatpush1.msra.mxu0 %v1650
      %v1652 = vand.u32 %v270, 4294901760
      %1653 = vmatprep.subr.mxu0 %v1652
      %v1654 = vand.u32 %v269, 4294901760
      %1655 = vmatpush1.msra.mxu0 %v1654
      %v1656 = vand.u32 %v266, 4294901760
      %1657 = vmatprep.subr.mxu0 %v1656
      %v1658 = vand.u32 %v265, 4294901760
      %1659 = vmatpush1.msra.mxu0 %v1658
      %v1660 = vand.u32 %v262, 4294901760
      %1661 = vmatprep.subr.mxu0 %v1660
      %v1662 = vand.u32 %v261, 4294901760
      %1663 = vmatpush1.msra.mxu0 %v1662
      %v1664 = vand.u32 %v258, 4294901760
      %1665 = vmatprep.subr.mxu0 %v1664
      %v1666 = vand.u32 %v257, 4294901760
      %1667 = vmatpush1.msra.mxu0 %v1666
      %v1668 = vand.u32 %v254, 4294901760
      %1669 = vmatprep.subr.mxu0 %v1668
      %v1670 = vand.u32 %v253, 4294901760
      %1671 = vmatpush1.msra.mxu0 %v1670
      %v1672 = vand.u32 %v250, 4294901760
      %1673 = vmatprep.subr.mxu0 %v1672
      %v1674 = vand.u32 %v249, 4294901760
      %1675 = vmatpush1.msra.mxu0 %v1674
      %v1676 = vand.u32 %v246, 4294901760
      %1677 = vmatprep.subr.mxu0 %v1676
      %v1678 = vand.u32 %v245, 4294901760
      %1679 = vmatpush1.msra.mxu0 %v1678
      %v1680 = vand.u32 %v242, 4294901760
      %1681 = vmatprep.subr.mxu0 %v1680
      %v1682 = vand.u32 %v241, 4294901760
      %1683 = vmatpush1.msra.mxu0 %v1682
      %v1684 = vand.u32 %v238, 4294901760
      %1685 = vmatprep.subr.mxu0 %v1684
      %v1686 = vand.u32 %v237, 4294901760
      %1687 = vmatpush1.msra.mxu0 %v1686
      %v1688 = vand.u32 %v234, 4294901760
      %1689 = vmatprep.subr.mxu0 %v1688
      %v1690 = vand.u32 %v233, 4294901760
      %1691 = vmatpush1.msra.mxu0 %v1690
      %1692 = vmatprep.subr.mxu0 0.0
      %1693 = vmatpush2.msra.mxu0 0.0
      %1694 = vmatprep.subr.mxu0 0.0
      %1695 = vmatpush2.msra.mxu0 0.0
      %1696 = vmatprep.subr.mxu0 0.0
      %1697 = vmatpush2.msra.mxu0 0.0
      %1698 = vmatprep.subr.mxu0 0.0
      %1699 = vmatpush2.msra.mxu0 0.0
      %1700 = vmatprep.subr.mxu0 0.0
      %1701 = vmatpush2.msra.mxu0 0.0
      %1702 = vmatprep.subr.mxu0 0.0
      %1703 = vmatpush2.msra.mxu0 0.0
      %1704 = vmatprep.subr.mxu0 0.0
      %1705 = vmatpush2.msra.mxu0 0.0
      %1706 = vmatprep.subr.mxu0 0.0
      %1707 = vmatpush2.msra.mxu0 0.0
      %1708 = vmatprep.subr.mxu0 0.0
      %1709 = vmatpush2.msra.mxu0 0.0
      %1710 = vmatprep.subr.mxu0 0.0
      %1711 = vmatpush2.msra.mxu0 0.0
      %1712 = vmatprep.subr.mxu0 0.0
      %1713 = vmatpush2.msra.mxu0 0.0
      %1714 = vmatprep.subr.mxu0 0.0
      %1715 = vmatpush2.msra.mxu0 0.0
      %1716 = vmatprep.subr.mxu0 0.0
      %1717 = vmatpush2.msra.mxu0 0.0
      %1718 = vmatprep.subr.mxu0 0.0
      %1719 = vmatpush2.msra.mxu0 0.0
      %1720 = vmatprep.subr.mxu0 0.0
      %1721 = vmatpush2.msra.mxu0 0.0
      %1722 = vmatprep.subr.mxu0 0.0
      %1723 = vmatpush2.msra.mxu0 0.0
      %1724 = vmatprep.mubr.f32.mxu0 0.0
      %v1725 = vand.u32 %v295, 4294901760
      %v1726 = vsub.f32 %v295, %v1725
      %v1727 = vand.u32 %v1726, 4294901760
      %1728 = vmatmul.mubr.f32.gmra.mxu0 %v1727
      %v1729 = vpop.f32.mrf.mxu0
      %v1730 = vadd.f32 %v1624, %v1729
      %v1731 = vpop.f32.mrf.mxu0
      %v1732 = vadd.f32 %v1626, %v1731
      %1733 = vdwg.mxu0
      %v1734 = vand.u32 %v294, 4294901760
      %v1735 = vsub.f32 %v294, %v1734
      %v1736 = vand.u32 %v1735, 4294901760
      %1737 = vmatprep.subr.mxu0 %v1736
      %v1738 = vand.u32 %v293, 4294901760
      %v1739 = vsub.f32 %v293, %v1738
      %v1740 = vand.u32 %v1739, 4294901760
      %1741 = vmatpush1.msra.mxu0 %v1740
      %v1742 = vand.u32 %v290, 4294901760
      %v1743 = vsub.f32 %v290, %v1742
      %v1744 = vand.u32 %v1743, 4294901760
      %1745 = vmatprep.subr.mxu0 %v1744
      %v1746 = vand.u32 %v289, 4294901760
      %v1747 = vsub.f32 %v289, %v1746
      %v1748 = vand.u32 %v1747, 4294901760
      %1749 = vmatpush1.msra.mxu0 %v1748
      %v1750 = vand.u32 %v286, 4294901760
      %v1751 = vsub.f32 %v286, %v1750
      %v1752 = vand.u32 %v1751, 4294901760
      %1753 = vmatprep.subr.mxu0 %v1752
      %v1754 = vand.u32 %v285, 4294901760
      %v1755 = vsub.f32 %v285, %v1754
      %v1756 = vand.u32 %v1755, 4294901760
      %1757 = vmatpush1.msra.mxu0 %v1756
      %v1758 = vand.u32 %v282, 4294901760
      %v1759 = vsub.f32 %v282, %v1758
      %v1760 = vand.u32 %v1759, 4294901760
      %1761 = vmatprep.subr.mxu0 %v1760
      %v1762 = vand.u32 %v281, 4294901760
      %v1763 = vsub.f32 %v281, %v1762
      %v1764 = vand.u32 %v1763, 4294901760
      %1765 = vmatpush1.msra.mxu0 %v1764
      %v1766 = vand.u32 %v278, 4294901760
      %v1767 = vsub.f32 %v278, %v1766
      %v1768 = vand.u32 %v1767, 4294901760
      %1769 = vmatprep.subr.mxu0 %v1768
      %v1770 = vand.u32 %v277, 4294901760
      %v1771 = vsub.f32 %v277, %v1770
      %v1772 = vand.u32 %v1771, 4294901760
      %1773 = vmatpush1.msra.mxu0 %v1772
      %v1774 = vand.u32 %v274, 4294901760
      %v1775 = vsub.f32 %v274, %v1774
      %v1776 = vand.u32 %v1775, 4294901760
      %1777 = vmatprep.subr.mxu0 %v1776
      %v1778 = vand.u32 %v273, 4294901760
      %v1779 = vsub.f32 %v273, %v1778
      %v1780 = vand.u32 %v1779, 4294901760
      %1781 = vmatpush1.msra.mxu0 %v1780
      %v1782 = vand.u32 %v270, 4294901760
      %v1783 = vsub.f32 %v270, %v1782
      %v1784 = vand.u32 %v1783, 4294901760
      %1785 = vmatprep.subr.mxu0 %v1784
      %v1786 = vand.u32 %v269, 4294901760
      %v1787 = vsub.f32 %v269, %v1786
      %v1788 = vand.u32 %v1787, 4294901760
      %1789 = vmatpush1.msra.mxu0 %v1788
      %v1790 = vand.u32 %v266, 4294901760
      %v1791 = vsub.f32 %v266, %v1790
      %v1792 = vand.u32 %v1791, 4294901760
      %1793 = vmatprep.subr.mxu0 %v1792
      %v1794 = vand.u32 %v265, 4294901760
      %v1795 = vsub.f32 %v265, %v1794
      %v1796 = vand.u32 %v1795, 4294901760
      %1797 = vmatpush1.msra.mxu0 %v1796
      %v1798 = vand.u32 %v262, 4294901760
      %v1799 = vsub.f32 %v262, %v1798
      %v1800 = vand.u32 %v1799, 4294901760
      %1801 = vmatprep.subr.mxu0 %v1800
      %v1802 = vand.u32 %v261, 4294901760
      %v1803 = vsub.f32 %v261, %v1802
      %v1804 = vand.u32 %v1803, 4294901760
      %1805 = vmatpush1.msra.mxu0 %v1804
      %v1806 = vand.u32 %v258, 4294901760
      %v1807 = vsub.f32 %v258, %v1806
      %v1808 = vand.u32 %v1807, 4294901760
      %1809 = vmatprep.subr.mxu0 %v1808
      %v1810 = vand.u32 %v257, 4294901760
      %v1811 = vsub.f32 %v257, %v1810
      %v1812 = vand.u32 %v1811, 4294901760
      %1813 = vmatpush1.msra.mxu0 %v1812
      %v1814 = vand.u32 %v254, 4294901760
      %v1815 = vsub.f32 %v254, %v1814
      %v1816 = vand.u32 %v1815, 4294901760
      %1817 = vmatprep.subr.mxu0 %v1816
      %v1818 = vand.u32 %v253, 4294901760
      %v1819 = vsub.f32 %v253, %v1818
      %v1820 = vand.u32 %v1819, 4294901760
      %1821 = vmatpush1.msra.mxu0 %v1820
      %v1822 = vand.u32 %v250, 4294901760
      %v1823 = vsub.f32 %v250, %v1822
      %v1824 = vand.u32 %v1823, 4294901760
      %1825 = vmatprep.subr.mxu0 %v1824
      %v1826 = vand.u32 %v249, 4294901760
      %v1827 = vsub.f32 %v249, %v1826
      %v1828 = vand.u32 %v1827, 4294901760
      %1829 = vmatpush1.msra.mxu0 %v1828
      %v1830 = vand.u32 %v246, 4294901760
      %v1831 = vsub.f32 %v246, %v1830
      %v1832 = vand.u32 %v1831, 4294901760
      %1833 = vmatprep.subr.mxu0 %v1832
      %v1834 = vand.u32 %v245, 4294901760
      %v1835 = vsub.f32 %v245, %v1834
      %v1836 = vand.u32 %v1835, 4294901760
      %1837 = vmatpush1.msra.mxu0 %v1836
      %v1838 = vand.u32 %v242, 4294901760
      %v1839 = vsub.f32 %v242, %v1838
      %v1840 = vand.u32 %v1839, 4294901760
      %1841 = vmatprep.subr.mxu0 %v1840
      %v1842 = vand.u32 %v241, 4294901760
      %v1843 = vsub.f32 %v241, %v1842
      %v1844 = vand.u32 %v1843, 4294901760
      %1845 = vmatpush1.msra.mxu0 %v1844
      %v1846 = vand.u32 %v238, 4294901760
      %v1847 = vsub.f32 %v238, %v1846
      %v1848 = vand.u32 %v1847, 4294901760
      %1849 = vmatprep.subr.mxu0 %v1848
      %v1850 = vand.u32 %v237, 4294901760
      %v1851 = vsub.f32 %v237, %v1850
      %v1852 = vand.u32 %v1851, 4294901760
      %1853 = vmatpush1.msra.mxu0 %v1852
      %v1854 = vand.u32 %v234, 4294901760
      %v1855 = vsub.f32 %v234, %v1854
      %v1856 = vand.u32 %v1855, 4294901760
      %1857 = vmatprep.subr.mxu0 %v1856
      %v1858 = vand.u32 %v233, 4294901760
      %v1859 = vsub.f32 %v233, %v1858
      %v1860 = vand.u32 %v1859, 4294901760
      %1861 = vmatpush1.msra.mxu0 %v1860
      %1862 = vmatprep.subr.mxu0 0.0
      %1863 = vmatpush2.msra.mxu0 0.0
      %1864 = vmatprep.subr.mxu0 0.0
      %1865 = vmatpush2.msra.mxu0 0.0
      %1866 = vmatprep.subr.mxu0 0.0
      %1867 = vmatpush2.msra.mxu0 0.0
      %1868 = vmatprep.subr.mxu0 0.0
      %1869 = vmatpush2.msra.mxu0 0.0
      %1870 = vmatprep.subr.mxu0 0.0
      %1871 = vmatpush2.msra.mxu0 0.0
      %1872 = vmatprep.subr.mxu0 0.0
      %1873 = vmatpush2.msra.mxu0 0.0
      %1874 = vmatprep.subr.mxu0 0.0
      %1875 = vmatpush2.msra.mxu0 0.0
      %1876 = vmatprep.subr.mxu0 0.0
      %1877 = vmatpush2.msra.mxu0 0.0
      %1878 = vmatprep.subr.mxu0 0.0
      %1879 = vmatpush2.msra.mxu0 0.0
      %1880 = vmatprep.subr.mxu0 0.0
      %1881 = vmatpush2.msra.mxu0 0.0
      %1882 = vmatprep.subr.mxu0 0.0
      %1883 = vmatpush2.msra.mxu0 0.0
      %1884 = vmatprep.subr.mxu0 0.0
      %1885 = vmatpush2.msra.mxu0 0.0
      %1886 = vmatprep.subr.mxu0 0.0
      %1887 = vmatpush2.msra.mxu0 0.0
      %1888 = vmatprep.subr.mxu0 0.0
      %1889 = vmatpush2.msra.mxu0 0.0
      %1890 = vmatprep.subr.mxu0 0.0
      %1891 = vmatpush2.msra.mxu0 0.0
      %1892 = vmatprep.subr.mxu0 0.0
      %1893 = vmatpush2.msra.mxu0 0.0
      %1894 = vmatprep.mubr.f32.mxu0 0.0
      %v1895 = vand.u32 %v295, 4294901760
      %1896 = vmatmul.mubr.f32.gmra.mxu0 %v1895
      %v1897 = vpop.f32.mrf.mxu0
      %v1898 = vadd.f32 %v1730, %v1897
      %v1899 = vpop.f32.mrf.mxu0
      %v1900 = vadd.f32 %v1732, %v1899
      %1901 = vdwg.mxu0
      %v1902 = vand.u32 %v294, 4294901760
      %1903 = vmatprep.subr.mxu0 %v1902
      %v1904 = vand.u32 %v293, 4294901760
      %1905 = vmatpush1.msra.mxu0 %v1904
      %v1906 = vand.u32 %v290, 4294901760
      %1907 = vmatprep.subr.mxu0 %v1906
      %v1908 = vand.u32 %v289, 4294901760
      %1909 = vmatpush1.msra.mxu0 %v1908
      %v1910 = vand.u32 %v286, 4294901760
      %1911 = vmatprep.subr.mxu0 %v1910
      %v1912 = vand.u32 %v285, 4294901760
      %1913 = vmatpush1.msra.mxu0 %v1912
      %v1914 = vand.u32 %v282, 4294901760
      %1915 = vmatprep.subr.mxu0 %v1914
      %v1916 = vand.u32 %v281, 4294901760
      %1917 = vmatpush1.msra.mxu0 %v1916
      %v1918 = vand.u32 %v278, 4294901760
      %1919 = vmatprep.subr.mxu0 %v1918
      %v1920 = vand.u32 %v277, 4294901760
      %1921 = vmatpush1.msra.mxu0 %v1920
      %v1922 = vand.u32 %v274, 4294901760
      %1923 = vmatprep.subr.mxu0 %v1922
      %v1924 = vand.u32 %v273, 4294901760
      %1925 = vmatpush1.msra.mxu0 %v1924
      %v1926 = vand.u32 %v270, 4294901760
      %1927 = vmatprep.subr.mxu0 %v1926
      %v1928 = vand.u32 %v269, 4294901760
      %1929 = vmatpush1.msra.mxu0 %v1928
      %v1930 = vand.u32 %v266, 4294901760
      %1931 = vmatprep.subr.mxu0 %v1930
      %v1932 = vand.u32 %v265, 4294901760
      %1933 = vmatpush1.msra.mxu0 %v1932
      %v1934 = vand.u32 %v262, 4294901760
      %1935 = vmatprep.subr.mxu0 %v1934
      %v1936 = vand.u32 %v261, 4294901760
      %1937 = vmatpush1.msra.mxu0 %v1936
      %v1938 = vand.u32 %v258, 4294901760
      %1939 = vmatprep.subr.mxu0 %v1938
      %v1940 = vand.u32 %v257, 4294901760
      %1941 = vmatpush1.msra.mxu0 %v1940
      %v1942 = vand.u32 %v254, 4294901760
      %1943 = vmatprep.subr.mxu0 %v1942
      %v1944 = vand.u32 %v253, 4294901760
      %1945 = vmatpush1.msra.mxu0 %v1944
      %v1946 = vand.u32 %v250, 4294901760
      %1947 = vmatprep.subr.mxu0 %v1946
      %v1948 = vand.u32 %v249, 4294901760
      %1949 = vmatpush1.msra.mxu0 %v1948
      %v1950 = vand.u32 %v246, 4294901760
      %1951 = vmatprep.subr.mxu0 %v1950
      %v1952 = vand.u32 %v245, 4294901760
      %1953 = vmatpush1.msra.mxu0 %v1952
      %v1954 = vand.u32 %v242, 4294901760
      %1955 = vmatprep.subr.mxu0 %v1954
      %v1956 = vand.u32 %v241, 4294901760
      %1957 = vmatpush1.msra.mxu0 %v1956
      %v1958 = vand.u32 %v238, 4294901760
      %1959 = vmatprep.subr.mxu0 %v1958
      %v1960 = vand.u32 %v237, 4294901760
      %1961 = vmatpush1.msra.mxu0 %v1960
      %v1962 = vand.u32 %v234, 4294901760
      %1963 = vmatprep.subr.mxu0 %v1962
      %v1964 = vand.u32 %v233, 4294901760
      %1965 = vmatpush1.msra.mxu0 %v1964
      %1966 = vmatprep.subr.mxu0 0.0
      %1967 = vmatpush2.msra.mxu0 0.0
      %1968 = vmatprep.subr.mxu0 0.0
      %1969 = vmatpush2.msra.mxu0 0.0
      %1970 = vmatprep.subr.mxu0 0.0
      %1971 = vmatpush2.msra.mxu0 0.0
      %1972 = vmatprep.subr.mxu0 0.0
      %1973 = vmatpush2.msra.mxu0 0.0
      %1974 = vmatprep.subr.mxu0 0.0
      %1975 = vmatpush2.msra.mxu0 0.0
      %1976 = vmatprep.subr.mxu0 0.0
      %1977 = vmatpush2.msra.mxu0 0.0
      %1978 = vmatprep.subr.mxu0 0.0
      %1979 = vmatpush2.msra.mxu0 0.0
      %1980 = vmatprep.subr.mxu0 0.0
      %1981 = vmatpush2.msra.mxu0 0.0
      %1982 = vmatprep.subr.mxu0 0.0
      %1983 = vmatpush2.msra.mxu0 0.0
      %1984 = vmatprep.subr.mxu0 0.0
      %1985 = vmatpush2.msra.mxu0 0.0
      %1986 = vmatprep.subr.mxu0 0.0
      %1987 = vmatpush2.msra.mxu0 0.0
      %1988 = vmatprep.subr.mxu0 0.0
      %1989 = vmatpush2.msra.mxu0 0.0
      %1990 = vmatprep.subr.mxu0 0.0
      %1991 = vmatpush2.msra.mxu0 0.0
      %1992 = vmatprep.subr.mxu0 0.0
      %1993 = vmatpush2.msra.mxu0 0.0
      %1994 = vmatprep.subr.mxu0 0.0
      %1995 = vmatpush2.msra.mxu0 0.0
      %1996 = vmatprep.subr.mxu0 0.0
      %1997 = vmatpush2.msra.mxu0 0.0
      %1998 = vmatprep.mubr.f32.mxu0 0.0
      %v1999 = vand.u32 %v295, 4294901760
      %2000 = vmatmul.mubr.f32.gmra.mxu0 %v1999
      %v2001 = vpop.f32.mrf.mxu0
      %v2002 = vadd.f32 %v1898, %v2001
      %v2003 = vpop.f32.mrf.mxu0
      %v2004 = vadd.f32 %v1900, %v2003
      %2005 = vdwg.mxu0
      %s2006 = scalar_lea.vmem %s221, 2
      %v2007 = vld [vmem:[%s2006] sm:$0x3]
      %v2008 = vand.u32 %v292, 4294901760
      %2009 = vmatprep.subr.mxu0 %v2008
      %v2010 = vand.u32 %v291, 4294901760
      %2011 = vmatpush1.msra.mxu0 %v2010
      %v2012 = vand.u32 %v288, 4294901760
      %2013 = vmatprep.subr.mxu0 %v2012
      %v2014 = vand.u32 %v287, 4294901760
      %2015 = vmatpush1.msra.mxu0 %v2014
      %v2016 = vand.u32 %v284, 4294901760
      %2017 = vmatprep.subr.mxu0 %v2016
      %v2018 = vand.u32 %v283, 4294901760
      %2019 = vmatpush1.msra.mxu0 %v2018
      %v2020 = vand.u32 %v280, 4294901760
      %2021 = vmatprep.subr.mxu0 %v2020
      %v2022 = vand.u32 %v279, 4294901760
      %2023 = vmatpush1.msra.mxu0 %v2022
      %v2024 = vand.u32 %v276, 4294901760
      %2025 = vmatprep.subr.mxu0 %v2024
      %v2026 = vand.u32 %v275, 4294901760
      %2027 = vmatpush1.msra.mxu0 %v2026
      %v2028 = vand.u32 %v272, 4294901760
      %2029 = vmatprep.subr.mxu0 %v2028
      %v2030 = vand.u32 %v271, 4294901760
      %2031 = vmatpush1.msra.mxu0 %v2030
      %v2032 = vand.u32 %v268, 4294901760
      %2033 = vmatprep.subr.mxu0 %v2032
      %v2034 = vand.u32 %v267, 4294901760
      %2035 = vmatpush1.msra.mxu0 %v2034
      %v2036 = vand.u32 %v264, 4294901760
      %2037 = vmatprep.subr.mxu0 %v2036
      %v2038 = vand.u32 %v263, 4294901760
      %2039 = vmatpush1.msra.mxu0 %v2038
      %v2040 = vand.u32 %v260, 4294901760
      %2041 = vmatprep.subr.mxu0 %v2040
      %v2042 = vand.u32 %v259, 4294901760
      %2043 = vmatpush1.msra.mxu0 %v2042
      %v2044 = vand.u32 %v256, 4294901760
      %2045 = vmatprep.subr.mxu0 %v2044
      %v2046 = vand.u32 %v255, 4294901760
      %2047 = vmatpush1.msra.mxu0 %v2046
      %v2048 = vand.u32 %v252, 4294901760
      %2049 = vmatprep.subr.mxu0 %v2048
      %v2050 = vand.u32 %v251, 4294901760
      %2051 = vmatpush1.msra.mxu0 %v2050
      %v2052 = vand.u32 %v248, 4294901760
      %2053 = vmatprep.subr.mxu0 %v2052
      %v2054 = vand.u32 %v247, 4294901760
      %2055 = vmatpush1.msra.mxu0 %v2054
      %v2056 = vand.u32 %v244, 4294901760
      %2057 = vmatprep.subr.mxu0 %v2056
      %v2058 = vand.u32 %v243, 4294901760
      %2059 = vmatpush1.msra.mxu0 %v2058
      %v2060 = vand.u32 %v240, 4294901760
      %2061 = vmatprep.subr.mxu0 %v2060
      %v2062 = vand.u32 %v239, 4294901760
      %2063 = vmatpush1.msra.mxu0 %v2062
      %v2064 = vand.u32 %v236, 4294901760
      %2065 = vmatprep.subr.mxu0 %v2064
      %v2066 = vand.u32 %v235, 4294901760
      %2067 = vmatpush1.msra.mxu0 %v2066
      %v2068 = vand.u32 %v232, 4294901760
      %2069 = vmatprep.subr.mxu0 %v2068
      %v2070 = vand.u32 %v231, 4294901760
      %2071 = vmatpush1.msra.mxu0 %v2070
      %2072 = vmatprep.subr.mxu0 0.0
      %2073 = vmatpush2.msra.mxu0 0.0
      %2074 = vmatprep.subr.mxu0 0.0
      %2075 = vmatpush2.msra.mxu0 0.0
      %2076 = vmatprep.subr.mxu0 0.0
      %2077 = vmatpush2.msra.mxu0 0.0
      %2078 = vmatprep.subr.mxu0 0.0
      %2079 = vmatpush2.msra.mxu0 0.0
      %2080 = vmatprep.subr.mxu0 0.0
      %2081 = vmatpush2.msra.mxu0 0.0
      %2082 = vmatprep.subr.mxu0 0.0
      %2083 = vmatpush2.msra.mxu0 0.0
      %2084 = vmatprep.subr.mxu0 0.0
      %2085 = vmatpush2.msra.mxu0 0.0
      %2086 = vmatprep.subr.mxu0 0.0
      %2087 = vmatpush2.msra.mxu0 0.0
      %2088 = vmatprep.subr.mxu0 0.0
      %2089 = vmatpush2.msra.mxu0 0.0
      %2090 = vmatprep.subr.mxu0 0.0
      %2091 = vmatpush2.msra.mxu0 0.0
      %2092 = vmatprep.subr.mxu0 0.0
      %2093 = vmatpush2.msra.mxu0 0.0
      %2094 = vmatprep.subr.mxu0 0.0
      %2095 = vmatpush2.msra.mxu0 0.0
      %2096 = vmatprep.subr.mxu0 0.0
      %2097 = vmatpush2.msra.mxu0 0.0
      %2098 = vmatprep.subr.mxu0 0.0
      %2099 = vmatpush2.msra.mxu0 0.0
      %2100 = vmatprep.subr.mxu0 0.0
      %2101 = vmatpush2.msra.mxu0 0.0
      %2102 = vmatprep.subr.mxu0 0.0
      %2103 = vmatpush2.msra.mxu0 0.0
      %2104 = vmatprep.mubr.f32.mxu0 0.0
      %v2105 = vand.u32 %v2007, 4294901760
      %v2106 = vsub.f32 %v2007, %v2105
      %v2107 = vand.u32 %v2106, 4294901760
      %v2108 = vsub.f32 %v2106, %v2107
      %v2109 = vand.u32 %v2108, 4294901760
      %2110 = vmatmul.mubr.f32.gmra.mxu0 %v2109
      %v2111 = vpop.f32.mrf.mxu0
      %v2112 = vadd.f32 0.0, %v2111
      %v2113 = vpop.f32.mrf.mxu0
      %v2114 = vadd.f32 0.0, %v2113
      %2115 = vdwg.mxu0
      %v2116 = vand.u32 %v292, 4294901760
      %v2117 = vsub.f32 %v292, %v2116
      %v2118 = vand.u32 %v2117, 4294901760
      %v2119 = vsub.f32 %v2117, %v2118
      %v2120 = vand.u32 %v2119, 4294901760
      %2121 = vmatprep.subr.mxu0 %v2120
      %v2122 = vand.u32 %v291, 4294901760
      %v2123 = vsub.f32 %v291, %v2122
      %v2124 = vand.u32 %v2123, 4294901760
      %v2125 = vsub.f32 %v2123, %v2124
      %v2126 = vand.u32 %v2125, 4294901760
      %2127 = vmatpush1.msra.mxu0 %v2126
      %v2128 = vand.u32 %v288, 4294901760
      %v2129 = vsub.f32 %v288, %v2128
      %v2130 = vand.u32 %v2129, 4294901760
      %v2131 = vsub.f32 %v2129, %v2130
      %v2132 = vand.u32 %v2131, 4294901760
      %2133 = vmatprep.subr.mxu0 %v2132
      %v2134 = vand.u32 %v287, 4294901760
      %v2135 = vsub.f32 %v287, %v2134
      %v2136 = vand.u32 %v2135, 4294901760
      %v2137 = vsub.f32 %v2135, %v2136
      %v2138 = vand.u32 %v2137, 4294901760
      %2139 = vmatpush1.msra.mxu0 %v2138
      %v2140 = vand.u32 %v284, 4294901760
      %v2141 = vsub.f32 %v284, %v2140
      %v2142 = vand.u32 %v2141, 4294901760
      %v2143 = vsub.f32 %v2141, %v2142
      %v2144 = vand.u32 %v2143, 4294901760
      %2145 = vmatprep.subr.mxu0 %v2144
      %v2146 = vand.u32 %v283, 4294901760
      %v2147 = vsub.f32 %v283, %v2146
      %v2148 = vand.u32 %v2147, 4294901760
      %v2149 = vsub.f32 %v2147, %v2148
      %v2150 = vand.u32 %v2149, 4294901760
      %2151 = vmatpush1.msra.mxu0 %v2150
      %v2152 = vand.u32 %v280, 4294901760
      %v2153 = vsub.f32 %v280, %v2152
      %v2154 = vand.u32 %v2153, 4294901760
      %v2155 = vsub.f32 %v2153, %v2154
      %v2156 = vand.u32 %v2155, 4294901760
      %2157 = vmatprep.subr.mxu0 %v2156
      %v2158 = vand.u32 %v279, 4294901760
      %v2159 = vsub.f32 %v279, %v2158
      %v2160 = vand.u32 %v2159, 4294901760
      %v2161 = vsub.f32 %v2159, %v2160
      %v2162 = vand.u32 %v2161, 4294901760
      %2163 = vmatpush1.msra.mxu0 %v2162
      %v2164 = vand.u32 %v276, 4294901760
      %v2165 = vsub.f32 %v276, %v2164
      %v2166 = vand.u32 %v2165, 4294901760
      %v2167 = vsub.f32 %v2165, %v2166
      %v2168 = vand.u32 %v2167, 4294901760
      %2169 = vmatprep.subr.mxu0 %v2168
      %v2170 = vand.u32 %v275, 4294901760
      %v2171 = vsub.f32 %v275, %v2170
      %v2172 = vand.u32 %v2171, 4294901760
      %v2173 = vsub.f32 %v2171, %v2172
      %v2174 = vand.u32 %v2173, 4294901760
      %2175 = vmatpush1.msra.mxu0 %v2174
      %v2176 = vand.u32 %v272, 4294901760
      %v2177 = vsub.f32 %v272, %v2176
      %v2178 = vand.u32 %v2177, 4294901760
      %v2179 = vsub.f32 %v2177, %v2178
      %v2180 = vand.u32 %v2179, 4294901760
      %2181 = vmatprep.subr.mxu0 %v2180
      %v2182 = vand.u32 %v271, 4294901760
      %v2183 = vsub.f32 %v271, %v2182
      %v2184 = vand.u32 %v2183, 4294901760
      %v2185 = vsub.f32 %v2183, %v2184
      %v2186 = vand.u32 %v2185, 4294901760
      %2187 = vmatpush1.msra.mxu0 %v2186
      %v2188 = vand.u32 %v268, 4294901760
      %v2189 = vsub.f32 %v268, %v2188
      %v2190 = vand.u32 %v2189, 4294901760
      %v2191 = vsub.f32 %v2189, %v2190
      %v2192 = vand.u32 %v2191, 4294901760
      %2193 = vmatprep.subr.mxu0 %v2192
      %v2194 = vand.u32 %v267, 4294901760
      %v2195 = vsub.f32 %v267, %v2194
      %v2196 = vand.u32 %v2195, 4294901760
      %v2197 = vsub.f32 %v2195, %v2196
      %v2198 = vand.u32 %v2197, 4294901760
      %2199 = vmatpush1.msra.mxu0 %v2198
      %v2200 = vand.u32 %v264, 4294901760
      %v2201 = vsub.f32 %v264, %v2200
      %v2202 = vand.u32 %v2201, 4294901760
      %v2203 = vsub.f32 %v2201, %v2202
      %v2204 = vand.u32 %v2203, 4294901760
      %2205 = vmatprep.subr.mxu0 %v2204
      %v2206 = vand.u32 %v263, 4294901760
      %v2207 = vsub.f32 %v263, %v2206
      %v2208 = vand.u32 %v2207, 4294901760
      %v2209 = vsub.f32 %v2207, %v2208
      %v2210 = vand.u32 %v2209, 4294901760
      %2211 = vmatpush1.msra.mxu0 %v2210
      %v2212 = vand.u32 %v260, 4294901760
      %v2213 = vsub.f32 %v260, %v2212
      %v2214 = vand.u32 %v2213, 4294901760
      %v2215 = vsub.f32 %v2213, %v2214
      %v2216 = vand.u32 %v2215, 4294901760
      %2217 = vmatprep.subr.mxu0 %v2216
      %v2218 = vand.u32 %v259, 4294901760
      %v2219 = vsub.f32 %v259, %v2218
      %v2220 = vand.u32 %v2219, 4294901760
      %v2221 = vsub.f32 %v2219, %v2220
      %v2222 = vand.u32 %v2221, 4294901760
      %2223 = vmatpush1.msra.mxu0 %v2222
      %v2224 = vand.u32 %v256, 4294901760
      %v2225 = vsub.f32 %v256, %v2224
      %v2226 = vand.u32 %v2225, 4294901760
      %v2227 = vsub.f32 %v2225, %v2226
      %v2228 = vand.u32 %v2227, 4294901760
      %2229 = vmatprep.subr.mxu0 %v2228
      %v2230 = vand.u32 %v255, 4294901760
      %v2231 = vsub.f32 %v255, %v2230
      %v2232 = vand.u32 %v2231, 4294901760
      %v2233 = vsub.f32 %v2231, %v2232
      %v2234 = vand.u32 %v2233, 4294901760
      %2235 = vmatpush1.msra.mxu0 %v2234
      %v2236 = vand.u32 %v252, 4294901760
      %v2237 = vsub.f32 %v252, %v2236
      %v2238 = vand.u32 %v2237, 4294901760
      %v2239 = vsub.f32 %v2237, %v2238
      %v2240 = vand.u32 %v2239, 4294901760
      %2241 = vmatprep.subr.mxu0 %v2240
      %v2242 = vand.u32 %v251, 4294901760
      %v2243 = vsub.f32 %v251, %v2242
      %v2244 = vand.u32 %v2243, 4294901760
      %v2245 = vsub.f32 %v2243, %v2244
      %v2246 = vand.u32 %v2245, 4294901760
      %2247 = vmatpush1.msra.mxu0 %v2246
      %v2248 = vand.u32 %v248, 4294901760
      %v2249 = vsub.f32 %v248, %v2248
      %v2250 = vand.u32 %v2249, 4294901760
      %v2251 = vsub.f32 %v2249, %v2250
      %v2252 = vand.u32 %v2251, 4294901760
      %2253 = vmatprep.subr.mxu0 %v2252
      %v2254 = vand.u32 %v247, 4294901760
      %v2255 = vsub.f32 %v247, %v2254
      %v2256 = vand.u32 %v2255, 4294901760
      %v2257 = vsub.f32 %v2255, %v2256
      %v2258 = vand.u32 %v2257, 4294901760
      %2259 = vmatpush1.msra.mxu0 %v2258
      %v2260 = vand.u32 %v244, 4294901760
      %v2261 = vsub.f32 %v244, %v2260
      %v2262 = vand.u32 %v2261, 4294901760
      %v2263 = vsub.f32 %v2261, %v2262
      %v2264 = vand.u32 %v2263, 4294901760
      %2265 = vmatprep.subr.mxu0 %v2264
      %v2266 = vand.u32 %v243, 4294901760
      %v2267 = vsub.f32 %v243, %v2266
      %v2268 = vand.u32 %v2267, 4294901760
      %v2269 = vsub.f32 %v2267, %v2268
      %v2270 = vand.u32 %v2269, 4294901760
      %2271 = vmatpush1.msra.mxu0 %v2270
      %v2272 = vand.u32 %v240, 4294901760
      %v2273 = vsub.f32 %v240, %v2272
      %v2274 = vand.u32 %v2273, 4294901760
      %v2275 = vsub.f32 %v2273, %v2274
      %v2276 = vand.u32 %v2275, 4294901760
      %2277 = vmatprep.subr.mxu0 %v2276
      %v2278 = vand.u32 %v239, 4294901760
      %v2279 = vsub.f32 %v239, %v2278
      %v2280 = vand.u32 %v2279, 4294901760
      %v2281 = vsub.f32 %v2279, %v2280
      %v2282 = vand.u32 %v2281, 4294901760
      %2283 = vmatpush1.msra.mxu0 %v2282
      %v2284 = vand.u32 %v236, 4294901760
      %v2285 = vsub.f32 %v236, %v2284
      %v2286 = vand.u32 %v2285, 4294901760
      %v2287 = vsub.f32 %v2285, %v2286
      %v2288 = vand.u32 %v2287, 4294901760
      %2289 = vmatprep.subr.mxu0 %v2288
      %v2290 = vand.u32 %v235, 4294901760
      %v2291 = vsub.f32 %v235, %v2290
      %v2292 = vand.u32 %v2291, 4294901760
      %v2293 = vsub.f32 %v2291, %v2292
      %v2294 = vand.u32 %v2293, 4294901760
      %2295 = vmatpush1.msra.mxu0 %v2294
      %v2296 = vand.u32 %v232, 4294901760
      %v2297 = vsub.f32 %v232, %v2296
      %v2298 = vand.u32 %v2297, 4294901760
      %v2299 = vsub.f32 %v2297, %v2298
      %v2300 = vand.u32 %v2299, 4294901760
      %2301 = vmatprep.subr.mxu0 %v2300
      %v2302 = vand.u32 %v231, 4294901760
      %v2303 = vsub.f32 %v231, %v2302
      %v2304 = vand.u32 %v2303, 4294901760
      %v2305 = vsub.f32 %v2303, %v2304
      %v2306 = vand.u32 %v2305, 4294901760
      %2307 = vmatpush1.msra.mxu0 %v2306
      %2308 = vmatprep.subr.mxu0 0.0
      %2309 = vmatpush2.msra.mxu0 0.0
      %2310 = vmatprep.subr.mxu0 0.0
      %2311 = vmatpush2.msra.mxu0 0.0
      %2312 = vmatprep.subr.mxu0 0.0
      %2313 = vmatpush2.msra.mxu0 0.0
      %2314 = vmatprep.subr.mxu0 0.0
      %2315 = vmatpush2.msra.mxu0 0.0
      %2316 = vmatprep.subr.mxu0 0.0
      %2317 = vmatpush2.msra.mxu0 0.0
      %2318 = vmatprep.subr.mxu0 0.0
      %2319 = vmatpush2.msra.mxu0 0.0
      %2320 = vmatprep.subr.mxu0 0.0
      %2321 = vmatpush2.msra.mxu0 0.0
      %2322 = vmatprep.subr.mxu0 0.0
      %2323 = vmatpush2.msra.mxu0 0.0
      %2324 = vmatprep.subr.mxu0 0.0
      %2325 = vmatpush2.msra.mxu0 0.0
      %2326 = vmatprep.subr.mxu0 0.0
      %2327 = vmatpush2.msra.mxu0 0.0
      %2328 = vmatprep.subr.mxu0 0.0
      %2329 = vmatpush2.msra.mxu0 0.0
      %2330 = vmatprep.subr.mxu0 0.0
      %2331 = vmatpush2.msra.mxu0 0.0
      %2332 = vmatprep.subr.mxu0 0.0
      %2333 = vmatpush2.msra.mxu0 0.0
      %2334 = vmatprep.subr.mxu0 0.0
      %2335 = vmatpush2.msra.mxu0 0.0
      %2336 = vmatprep.subr.mxu0 0.0
      %2337 = vmatpush2.msra.mxu0 0.0
      %2338 = vmatprep.subr.mxu0 0.0
      %2339 = vmatpush2.msra.mxu0 0.0
      %2340 = vmatprep.mubr.f32.mxu0 0.0
      %v2341 = vand.u32 %v2007, 4294901760
      %2342 = vmatmul.mubr.f32.gmra.mxu0 %v2341
      %v2343 = vpop.f32.mrf.mxu0
      %v2344 = vadd.f32 %v2112, %v2343
      %v2345 = vpop.f32.mrf.mxu0
      %v2346 = vadd.f32 %v2114, %v2345
      %2347 = vdwg.mxu0
      %v2348 = vand.u32 %v292, 4294901760
      %v2349 = vsub.f32 %v292, %v2348
      %2350 = vmatprep.subr.mxu0 %v2349
      %v2351 = vand.u32 %v291, 4294901760
      %v2352 = vsub.f32 %v291, %v2351
      %2353 = vmatpush1.msra.mxu0 %v2352
      %v2354 = vand.u32 %v288, 4294901760
      %v2355 = vsub.f32 %v288, %v2354
      %2356 = vmatprep.subr.mxu0 %v2355
      %v2357 = vand.u32 %v287, 4294901760
      %v2358 = vsub.f32 %v287, %v2357
      %2359 = vmatpush1.msra.mxu0 %v2358
      %v2360 = vand.u32 %v284, 4294901760
      %v2361 = vsub.f32 %v284, %v2360
      %2362 = vmatprep.subr.mxu0 %v2361
      %v2363 = vand.u32 %v283, 4294901760
      %v2364 = vsub.f32 %v283, %v2363
      %2365 = vmatpush1.msra.mxu0 %v2364
      %v2366 = vand.u32 %v280, 4294901760
      %v2367 = vsub.f32 %v280, %v2366
      %2368 = vmatprep.subr.mxu0 %v2367
      %v2369 = vand.u32 %v279, 4294901760
      %v2370 = vsub.f32 %v279, %v2369
      %2371 = vmatpush1.msra.mxu0 %v2370
      %v2372 = vand.u32 %v276, 4294901760
      %v2373 = vsub.f32 %v276, %v2372
      %2374 = vmatprep.subr.mxu0 %v2373
      %v2375 = vand.u32 %v275, 4294901760
      %v2376 = vsub.f32 %v275, %v2375
      %2377 = vmatpush1.msra.mxu0 %v2376
      %v2378 = vand.u32 %v272, 4294901760
      %v2379 = vsub.f32 %v272, %v2378
      %2380 = vmatprep.subr.mxu0 %v2379
      %v2381 = vand.u32 %v271, 4294901760
      %v2382 = vsub.f32 %v271, %v2381
      %2383 = vmatpush1.msra.mxu0 %v2382
      %v2384 = vand.u32 %v268, 4294901760
      %v2385 = vsub.f32 %v268, %v2384
      %2386 = vmatprep.subr.mxu0 %v2385
      %v2387 = vand.u32 %v267, 4294901760
      %v2388 = vsub.f32 %v267, %v2387
      %2389 = vmatpush1.msra.mxu0 %v2388
      %v2390 = vand.u32 %v264, 4294901760
      %v2391 = vsub.f32 %v264, %v2390
      %2392 = vmatprep.subr.mxu0 %v2391
      %v2393 = vand.u32 %v263, 4294901760
      %v2394 = vsub.f32 %v263, %v2393
      %2395 = vmatpush1.msra.mxu0 %v2394
      %v2396 = vand.u32 %v260, 4294901760
      %v2397 = vsub.f32 %v260, %v2396
      %2398 = vmatprep.subr.mxu0 %v2397
      %v2399 = vand.u32 %v259, 4294901760
      %v2400 = vsub.f32 %v259, %v2399
      %2401 = vmatpush1.msra.mxu0 %v2400
      %v2402 = vand.u32 %v256, 4294901760
      %v2403 = vsub.f32 %v256, %v2402
      %2404 = vmatprep.subr.mxu0 %v2403
      %v2405 = vand.u32 %v255, 4294901760
      %v2406 = vsub.f32 %v255, %v2405
      %2407 = vmatpush1.msra.mxu0 %v2406
      %v2408 = vand.u32 %v252, 4294901760
      %v2409 = vsub.f32 %v252, %v2408
      %2410 = vmatprep.subr.mxu0 %v2409
      %v2411 = vand.u32 %v251, 4294901760
      %v2412 = vsub.f32 %v251, %v2411
      %2413 = vmatpush1.msra.mxu0 %v2412
      %v2414 = vand.u32 %v248, 4294901760
      %v2415 = vsub.f32 %v248, %v2414
      %2416 = vmatprep.subr.mxu0 %v2415
      %v2417 = vand.u32 %v247, 4294901760
      %v2418 = vsub.f32 %v247, %v2417
      %2419 = vmatpush1.msra.mxu0 %v2418
      %v2420 = vand.u32 %v244, 4294901760
      %v2421 = vsub.f32 %v244, %v2420
      %2422 = vmatprep.subr.mxu0 %v2421
      %v2423 = vand.u32 %v243, 4294901760
      %v2424 = vsub.f32 %v243, %v2423
      %2425 = vmatpush1.msra.mxu0 %v2424
      %v2426 = vand.u32 %v240, 4294901760
      %v2427 = vsub.f32 %v240, %v2426
      %2428 = vmatprep.subr.mxu0 %v2427
      %v2429 = vand.u32 %v239, 4294901760
      %v2430 = vsub.f32 %v239, %v2429
      %2431 = vmatpush1.msra.mxu0 %v2430
      %v2432 = vand.u32 %v236, 4294901760
      %v2433 = vsub.f32 %v236, %v2432
      %2434 = vmatprep.subr.mxu0 %v2433
      %v2435 = vand.u32 %v235, 4294901760
      %v2436 = vsub.f32 %v235, %v2435
      %2437 = vmatpush1.msra.mxu0 %v2436
      %v2438 = vand.u32 %v232, 4294901760
      %v2439 = vsub.f32 %v232, %v2438
      %2440 = vmatprep.subr.mxu0 %v2439
      %v2441 = vand.u32 %v231, 4294901760
      %v2442 = vsub.f32 %v231, %v2441
      %2443 = vmatpush1.msra.mxu0 %v2442
      %2444 = vmatprep.subr.mxu0 0.0
      %2445 = vmatpush2.msra.mxu0 0.0
      %2446 = vmatprep.subr.mxu0 0.0
      %2447 = vmatpush2.msra.mxu0 0.0
      %2448 = vmatprep.subr.mxu0 0.0
      %2449 = vmatpush2.msra.mxu0 0.0
      %2450 = vmatprep.subr.mxu0 0.0
      %2451 = vmatpush2.msra.mxu0 0.0
      %2452 = vmatprep.subr.mxu0 0.0
      %2453 = vmatpush2.msra.mxu0 0.0
      %2454 = vmatprep.subr.mxu0 0.0
      %2455 = vmatpush2.msra.mxu0 0.0
      %2456 = vmatprep.subr.mxu0 0.0
      %2457 = vmatpush2.msra.mxu0 0.0
      %2458 = vmatprep.subr.mxu0 0.0
      %2459 = vmatpush2.msra.mxu0 0.0
      %2460 = vmatprep.subr.mxu0 0.0
      %2461 = vmatpush2.msra.mxu0 0.0
      %2462 = vmatprep.subr.mxu0 0.0
      %2463 = vmatpush2.msra.mxu0 0.0
      %2464 = vmatprep.subr.mxu0 0.0
      %2465 = vmatpush2.msra.mxu0 0.0
      %2466 = vmatprep.subr.mxu0 0.0
      %2467 = vmatpush2.msra.mxu0 0.0
      %2468 = vmatprep.subr.mxu0 0.0
      %2469 = vmatpush2.msra.mxu0 0.0
      %2470 = vmatprep.subr.mxu0 0.0
      %2471 = vmatpush2.msra.mxu0 0.0
      %2472 = vmatprep.subr.mxu0 0.0
      %2473 = vmatpush2.msra.mxu0 0.0
      %2474 = vmatprep.subr.mxu0 0.0
      %2475 = vmatpush2.msra.mxu0 0.0
      %2476 = vmatprep.mubr.f32.mxu0 0.0
      %v2477 = vand.u32 %v2007, 4294901760
      %v2478 = vsub.f32 %v2007, %v2477
      %2479 = vmatmul.mubr.f32.gmra.mxu0 %v2478
      %v2480 = vpop.f32.mrf.mxu0
      %v2481 = vadd.f32 %v2344, %v2480
      %v2482 = vpop.f32.mrf.mxu0
      %v2483 = vadd.f32 %v2346, %v2482
      %2484 = vdwg.mxu0
      %v2485 = vand.u32 %v292, 4294901760
      %2486 = vmatprep.subr.mxu0 %v2485
      %v2487 = vand.u32 %v291, 4294901760
      %2488 = vmatpush1.msra.mxu0 %v2487
      %v2489 = vand.u32 %v288, 4294901760
      %2490 = vmatprep.subr.mxu0 %v2489
      %v2491 = vand.u32 %v287, 4294901760
      %2492 = vmatpush1.msra.mxu0 %v2491
      %v2493 = vand.u32 %v284, 4294901760
      %2494 = vmatprep.subr.mxu0 %v2493
      %v2495 = vand.u32 %v283, 4294901760
      %2496 = vmatpush1.msra.mxu0 %v2495
      %v2497 = vand.u32 %v280, 4294901760
      %2498 = vmatprep.subr.mxu0 %v2497
      %v2499 = vand.u32 %v279, 4294901760
      %2500 = vmatpush1.msra.mxu0 %v2499
      %v2501 = vand.u32 %v276, 4294901760
      %2502 = vmatprep.subr.mxu0 %v2501
      %v2503 = vand.u32 %v275, 4294901760
      %2504 = vmatpush1.msra.mxu0 %v2503
      %v2505 = vand.u32 %v272, 4294901760
      %2506 = vmatprep.subr.mxu0 %v2505
      %v2507 = vand.u32 %v271, 4294901760
      %2508 = vmatpush1.msra.mxu0 %v2507
      %v2509 = vand.u32 %v268, 4294901760
      %2510 = vmatprep.subr.mxu0 %v2509
      %v2511 = vand.u32 %v267, 4294901760
      %2512 = vmatpush1.msra.mxu0 %v2511
      %v2513 = vand.u32 %v264, 4294901760
      %2514 = vmatprep.subr.mxu0 %v2513
      %v2515 = vand.u32 %v263, 4294901760
      %2516 = vmatpush1.msra.mxu0 %v2515
      %v2517 = vand.u32 %v260, 4294901760
      %2518 = vmatprep.subr.mxu0 %v2517
      %v2519 = vand.u32 %v259, 4294901760
      %2520 = vmatpush1.msra.mxu0 %v2519
      %v2521 = vand.u32 %v256, 4294901760
      %2522 = vmatprep.subr.mxu0 %v2521
      %v2523 = vand.u32 %v255, 4294901760
      %2524 = vmatpush1.msra.mxu0 %v2523
      %v2525 = vand.u32 %v252, 4294901760
      %2526 = vmatprep.subr.mxu0 %v2525
      %v2527 = vand.u32 %v251, 4294901760
      %2528 = vmatpush1.msra.mxu0 %v2527
      %v2529 = vand.u32 %v248, 4294901760
      %2530 = vmatprep.subr.mxu0 %v2529
      %v2531 = vand.u32 %v247, 4294901760
      %2532 = vmatpush1.msra.mxu0 %v2531
      %v2533 = vand.u32 %v244, 4294901760
      %2534 = vmatprep.subr.mxu0 %v2533
      %v2535 = vand.u32 %v243, 4294901760
      %2536 = vmatpush1.msra.mxu0 %v2535
      %v2537 = vand.u32 %v240, 4294901760
      %2538 = vmatprep.subr.mxu0 %v2537
      %v2539 = vand.u32 %v239, 4294901760
      %2540 = vmatpush1.msra.mxu0 %v2539
      %v2541 = vand.u32 %v236, 4294901760
      %2542 = vmatprep.subr.mxu0 %v2541
      %v2543 = vand.u32 %v235, 4294901760
      %2544 = vmatpush1.msra.mxu0 %v2543
      %v2545 = vand.u32 %v232, 4294901760
      %2546 = vmatprep.subr.mxu0 %v2545
      %v2547 = vand.u32 %v231, 4294901760
      %2548 = vmatpush1.msra.mxu0 %v2547
      %2549 = vmatprep.subr.mxu0 0.0
      %2550 = vmatpush2.msra.mxu0 0.0
      %2551 = vmatprep.subr.mxu0 0.0
      %2552 = vmatpush2.msra.mxu0 0.0
      %2553 = vmatprep.subr.mxu0 0.0
      %2554 = vmatpush2.msra.mxu0 0.0
      %2555 = vmatprep.subr.mxu0 0.0
      %2556 = vmatpush2.msra.mxu0 0.0
      %2557 = vmatprep.subr.mxu0 0.0
      %2558 = vmatpush2.msra.mxu0 0.0
      %2559 = vmatprep.subr.mxu0 0.0
      %2560 = vmatpush2.msra.mxu0 0.0
      %2561 = vmatprep.subr.mxu0 0.0
      %2562 = vmatpush2.msra.mxu0 0.0
      %2563 = vmatprep.subr.mxu0 0.0
      %2564 = vmatpush2.msra.mxu0 0.0
      %2565 = vmatprep.subr.mxu0 0.0
      %2566 = vmatpush2.msra.mxu0 0.0
      %2567 = vmatprep.subr.mxu0 0.0
      %2568 = vmatpush2.msra.mxu0 0.0
      %2569 = vmatprep.subr.mxu0 0.0
      %2570 = vmatpush2.msra.mxu0 0.0
      %2571 = vmatprep.subr.mxu0 0.0
      %2572 = vmatpush2.msra.mxu0 0.0
      %2573 = vmatprep.subr.mxu0 0.0
      %2574 = vmatpush2.msra.mxu0 0.0
      %2575 = vmatprep.subr.mxu0 0.0
      %2576 = vmatpush2.msra.mxu0 0.0
      %2577 = vmatprep.subr.mxu0 0.0
      %2578 = vmatpush2.msra.mxu0 0.0
      %2579 = vmatprep.subr.mxu0 0.0
      %2580 = vmatpush2.msra.mxu0 0.0
      %2581 = vmatprep.mubr.f32.mxu0 0.0
      %v2582 = vand.u32 %v2007, 4294901760
      %v2583 = vsub.f32 %v2007, %v2582
      %v2584 = vand.u32 %v2583, 4294901760
      %2585 = vmatmul.mubr.f32.gmra.mxu0 %v2584
      %v2586 = vpop.f32.mrf.mxu0
      %v2587 = vadd.f32 %v2481, %v2586
      %v2588 = vpop.f32.mrf.mxu0
      %v2589 = vadd.f32 %v2483, %v2588
      %2590 = vdwg.mxu0
      %v2591 = vand.u32 %v292, 4294901760
      %v2592 = vsub.f32 %v292, %v2591
      %v2593 = vand.u32 %v2592, 4294901760
      %2594 = vmatprep.subr.mxu0 %v2593
      %v2595 = vand.u32 %v291, 4294901760
      %v2596 = vsub.f32 %v291, %v2595
      %v2597 = vand.u32 %v2596, 4294901760
      %2598 = vmatpush1.msra.mxu0 %v2597
      %v2599 = vand.u32 %v288, 4294901760
      %v2600 = vsub.f32 %v288, %v2599
      %v2601 = vand.u32 %v2600, 4294901760
      %2602 = vmatprep.subr.mxu0 %v2601
      %v2603 = vand.u32 %v287, 4294901760
      %v2604 = vsub.f32 %v287, %v2603
      %v2605 = vand.u32 %v2604, 4294901760
      %2606 = vmatpush1.msra.mxu0 %v2605
      %v2607 = vand.u32 %v284, 4294901760
      %v2608 = vsub.f32 %v284, %v2607
      %v2609 = vand.u32 %v2608, 4294901760
      %2610 = vmatprep.subr.mxu0 %v2609
      %v2611 = vand.u32 %v283, 4294901760
      %v2612 = vsub.f32 %v283, %v2611
      %v2613 = vand.u32 %v2612, 4294901760
      %2614 = vmatpush1.msra.mxu0 %v2613
      %v2615 = vand.u32 %v280, 4294901760
      %v2616 = vsub.f32 %v280, %v2615
      %v2617 = vand.u32 %v2616, 4294901760
      %2618 = vmatprep.subr.mxu0 %v2617
      %v2619 = vand.u32 %v279, 4294901760
      %v2620 = vsub.f32 %v279, %v2619
      %v2621 = vand.u32 %v2620, 4294901760
      %2622 = vmatpush1.msra.mxu0 %v2621
      %v2623 = vand.u32 %v276, 4294901760
      %v2624 = vsub.f32 %v276, %v2623
      %v2625 = vand.u32 %v2624, 4294901760
      %2626 = vmatprep.subr.mxu0 %v2625
      %v2627 = vand.u32 %v275, 4294901760
      %v2628 = vsub.f32 %v275, %v2627
      %v2629 = vand.u32 %v2628, 4294901760
      %2630 = vmatpush1.msra.mxu0 %v2629
      %v2631 = vand.u32 %v272, 4294901760
      %v2632 = vsub.f32 %v272, %v2631
      %v2633 = vand.u32 %v2632, 4294901760
      %2634 = vmatprep.subr.mxu0 %v2633
      %v2635 = vand.u32 %v271, 4294901760
      %v2636 = vsub.f32 %v271, %v2635
      %v2637 = vand.u32 %v2636, 4294901760
      %2638 = vmatpush1.msra.mxu0 %v2637
      %v2639 = vand.u32 %v268, 4294901760
      %v2640 = vsub.f32 %v268, %v2639
      %v2641 = vand.u32 %v2640, 4294901760
      %2642 = vmatprep.subr.mxu0 %v2641
      %v2643 = vand.u32 %v267, 4294901760
      %v2644 = vsub.f32 %v267, %v2643
      %v2645 = vand.u32 %v2644, 4294901760
      %2646 = vmatpush1.msra.mxu0 %v2645
      %v2647 = vand.u32 %v264, 4294901760
      %v2648 = vsub.f32 %v264, %v2647
      %v2649 = vand.u32 %v2648, 4294901760
      %2650 = vmatprep.subr.mxu0 %v2649
      %v2651 = vand.u32 %v263, 4294901760
      %v2652 = vsub.f32 %v263, %v2651
      %v2653 = vand.u32 %v2652, 4294901760
      %2654 = vmatpush1.msra.mxu0 %v2653
      %v2655 = vand.u32 %v260, 4294901760
      %v2656 = vsub.f32 %v260, %v2655
      %v2657 = vand.u32 %v2656, 4294901760
      %2658 = vmatprep.subr.mxu0 %v2657
      %v2659 = vand.u32 %v259, 4294901760
      %v2660 = vsub.f32 %v259, %v2659
      %v2661 = vand.u32 %v2660, 4294901760
      %2662 = vmatpush1.msra.mxu0 %v2661
      %v2663 = vand.u32 %v256, 4294901760
      %v2664 = vsub.f32 %v256, %v2663
      %v2665 = vand.u32 %v2664, 4294901760
      %2666 = vmatprep.subr.mxu0 %v2665
      %v2667 = vand.u32 %v255, 4294901760
      %v2668 = vsub.f32 %v255, %v2667
      %v2669 = vand.u32 %v2668, 4294901760
      %2670 = vmatpush1.msra.mxu0 %v2669
      %v2671 = vand.u32 %v252, 4294901760
      %v2672 = vsub.f32 %v252, %v2671
      %v2673 = vand.u32 %v2672, 4294901760
      %2674 = vmatprep.subr.mxu0 %v2673
      %v2675 = vand.u32 %v251, 4294901760
      %v2676 = vsub.f32 %v251, %v2675
      %v2677 = vand.u32 %v2676, 4294901760
      %2678 = vmatpush1.msra.mxu0 %v2677
      %v2679 = vand.u32 %v248, 4294901760
      %v2680 = vsub.f32 %v248, %v2679
      %v2681 = vand.u32 %v2680, 4294901760
      %2682 = vmatprep.subr.mxu0 %v2681
      %v2683 = vand.u32 %v247, 4294901760
      %v2684 = vsub.f32 %v247, %v2683
      %v2685 = vand.u32 %v2684, 4294901760
      %2686 = vmatpush1.msra.mxu0 %v2685
      %v2687 = vand.u32 %v244, 4294901760
      %v2688 = vsub.f32 %v244, %v2687
      %v2689 = vand.u32 %v2688, 4294901760
      %2690 = vmatprep.subr.mxu0 %v2689
      %v2691 = vand.u32 %v243, 4294901760
      %v2692 = vsub.f32 %v243, %v2691
      %v2693 = vand.u32 %v2692, 4294901760
      %2694 = vmatpush1.msra.mxu0 %v2693
      %v2695 = vand.u32 %v240, 4294901760
      %v2696 = vsub.f32 %v240, %v2695
      %v2697 = vand.u32 %v2696, 4294901760
      %2698 = vmatprep.subr.mxu0 %v2697
      %v2699 = vand.u32 %v239, 4294901760
      %v2700 = vsub.f32 %v239, %v2699
      %v2701 = vand.u32 %v2700, 4294901760
      %2702 = vmatpush1.msra.mxu0 %v2701
      %v2703 = vand.u32 %v236, 4294901760
      %v2704 = vsub.f32 %v236, %v2703
      %v2705 = vand.u32 %v2704, 4294901760
      %2706 = vmatprep.subr.mxu0 %v2705
      %v2707 = vand.u32 %v235, 4294901760
      %v2708 = vsub.f32 %v235, %v2707
      %v2709 = vand.u32 %v2708, 4294901760
      %2710 = vmatpush1.msra.mxu0 %v2709
      %v2711 = vand.u32 %v232, 4294901760
      %v2712 = vsub.f32 %v232, %v2711
      %v2713 = vand.u32 %v2712, 4294901760
      %2714 = vmatprep.subr.mxu0 %v2713
      %v2715 = vand.u32 %v231, 4294901760
      %v2716 = vsub.f32 %v231, %v2715
      %v2717 = vand.u32 %v2716, 4294901760
      %2718 = vmatpush1.msra.mxu0 %v2717
      %2719 = vmatprep.subr.mxu0 0.0
      %2720 = vmatpush2.msra.mxu0 0.0
      %2721 = vmatprep.subr.mxu0 0.0
      %2722 = vmatpush2.msra.mxu0 0.0
      %2723 = vmatprep.subr.mxu0 0.0
      %2724 = vmatpush2.msra.mxu0 0.0
      %2725 = vmatprep.subr.mxu0 0.0
      %2726 = vmatpush2.msra.mxu0 0.0
      %2727 = vmatprep.subr.mxu0 0.0
      %2728 = vmatpush2.msra.mxu0 0.0
      %2729 = vmatprep.subr.mxu0 0.0
      %2730 = vmatpush2.msra.mxu0 0.0
      %2731 = vmatprep.subr.mxu0 0.0
      %2732 = vmatpush2.msra.mxu0 0.0
      %2733 = vmatprep.subr.mxu0 0.0
      %2734 = vmatpush2.msra.mxu0 0.0
      %2735 = vmatprep.subr.mxu0 0.0
      %2736 = vmatpush2.msra.mxu0 0.0
      %2737 = vmatprep.subr.mxu0 0.0
      %2738 = vmatpush2.msra.mxu0 0.0
      %2739 = vmatprep.subr.mxu0 0.0
      %2740 = vmatpush2.msra.mxu0 0.0
      %2741 = vmatprep.subr.mxu0 0.0
      %2742 = vmatpush2.msra.mxu0 0.0
      %2743 = vmatprep.subr.mxu0 0.0
      %2744 = vmatpush2.msra.mxu0 0.0
      %2745 = vmatprep.subr.mxu0 0.0
      %2746 = vmatpush2.msra.mxu0 0.0
      %2747 = vmatprep.subr.mxu0 0.0
      %2748 = vmatpush2.msra.mxu0 0.0
      %2749 = vmatprep.subr.mxu0 0.0
      %2750 = vmatpush2.msra.mxu0 0.0
      %2751 = vmatprep.mubr.f32.mxu0 0.0
      %v2752 = vand.u32 %v2007, 4294901760
      %2753 = vmatmul.mubr.f32.gmra.mxu0 %v2752
      %v2754 = vpop.f32.mrf.mxu0
      %v2755 = vadd.f32 %v2587, %v2754
      %v2756 = vpop.f32.mrf.mxu0
      %v2757 = vadd.f32 %v2589, %v2756
      %2758 = vdwg.mxu0
      %v2759 = vand.u32 %v292, 4294901760
      %2760 = vmatprep.subr.mxu0 %v2759
      %v2761 = vand.u32 %v291, 4294901760
      %2762 = vmatpush1.msra.mxu0 %v2761
      %v2763 = vand.u32 %v288, 4294901760
      %2764 = vmatprep.subr.mxu0 %v2763
      %v2765 = vand.u32 %v287, 4294901760
      %2766 = vmatpush1.msra.mxu0 %v2765
      %v2767 = vand.u32 %v284, 4294901760
      %2768 = vmatprep.subr.mxu0 %v2767
      %v2769 = vand.u32 %v283, 4294901760
      %2770 = vmatpush1.msra.mxu0 %v2769
      %v2771 = vand.u32 %v280, 4294901760
      %2772 = vmatprep.subr.mxu0 %v2771
      %v2773 = vand.u32 %v279, 4294901760
      %2774 = vmatpush1.msra.mxu0 %v2773
      %v2775 = vand.u32 %v276, 4294901760
      %2776 = vmatprep.subr.mxu0 %v2775
      %v2777 = vand.u32 %v275, 4294901760
      %2778 = vmatpush1.msra.mxu0 %v2777
      %v2779 = vand.u32 %v272, 4294901760
      %2780 = vmatprep.subr.mxu0 %v2779
      %v2781 = vand.u32 %v271, 4294901760
      %2782 = vmatpush1.msra.mxu0 %v2781
      %v2783 = vand.u32 %v268, 4294901760
      %2784 = vmatprep.subr.mxu0 %v2783
      %v2785 = vand.u32 %v267, 4294901760
      %2786 = vmatpush1.msra.mxu0 %v2785
      %v2787 = vand.u32 %v264, 4294901760
      %2788 = vmatprep.subr.mxu0 %v2787
      %v2789 = vand.u32 %v263, 4294901760
      %2790 = vmatpush1.msra.mxu0 %v2789
      %v2791 = vand.u32 %v260, 4294901760
      %2792 = vmatprep.subr.mxu0 %v2791
      %v2793 = vand.u32 %v259, 4294901760
      %2794 = vmatpush1.msra.mxu0 %v2793
      %v2795 = vand.u32 %v256, 4294901760
      %2796 = vmatprep.subr.mxu0 %v2795
      %v2797 = vand.u32 %v255, 4294901760
      %2798 = vmatpush1.msra.mxu0 %v2797
      %v2799 = vand.u32 %v252, 4294901760
      %2800 = vmatprep.subr.mxu0 %v2799
      %v2801 = vand.u32 %v251, 4294901760
      %2802 = vmatpush1.msra.mxu0 %v2801
      %v2803 = vand.u32 %v248, 4294901760
      %2804 = vmatprep.subr.mxu0 %v2803
      %v2805 = vand.u32 %v247, 4294901760
      %2806 = vmatpush1.msra.mxu0 %v2805
      %v2807 = vand.u32 %v244, 4294901760
      %2808 = vmatprep.subr.mxu0 %v2807
      %v2809 = vand.u32 %v243, 4294901760
      %2810 = vmatpush1.msra.mxu0 %v2809
      %v2811 = vand.u32 %v240, 4294901760
      %2812 = vmatprep.subr.mxu0 %v2811
      %v2813 = vand.u32 %v239, 4294901760
      %2814 = vmatpush1.msra.mxu0 %v2813
      %v2815 = vand.u32 %v236, 4294901760
      %2816 = vmatprep.subr.mxu0 %v2815
      %v2817 = vand.u32 %v235, 4294901760
      %2818 = vmatpush1.msra.mxu0 %v2817
      %v2819 = vand.u32 %v232, 4294901760
      %2820 = vmatprep.subr.mxu0 %v2819
      %v2821 = vand.u32 %v231, 4294901760
      %2822 = vmatpush1.msra.mxu0 %v2821
      %2823 = vmatprep.subr.mxu0 0.0
      %2824 = vmatpush2.msra.mxu0 0.0
      %2825 = vmatprep.subr.mxu0 0.0
      %2826 = vmatpush2.msra.mxu0 0.0
      %2827 = vmatprep.subr.mxu0 0.0
      %2828 = vmatpush2.msra.mxu0 0.0
      %2829 = vmatprep.subr.mxu0 0.0
      %2830 = vmatpush2.msra.mxu0 0.0
      %2831 = vmatprep.subr.mxu0 0.0
      %2832 = vmatpush2.msra.mxu0 0.0
      %2833 = vmatprep.subr.mxu0 0.0
      %2834 = vmatpush2.msra.mxu0 0.0
      %2835 = vmatprep.subr.mxu0 0.0
      %2836 = vmatpush2.msra.mxu0 0.0
      %2837 = vmatprep.subr.mxu0 0.0
      %2838 = vmatpush2.msra.mxu0 0.0
      %2839 = vmatprep.subr.mxu0 0.0
      %2840 = vmatpush2.msra.mxu0 0.0
      %2841 = vmatprep.subr.mxu0 0.0
      %2842 = vmatpush2.msra.mxu0 0.0
      %2843 = vmatprep.subr.mxu0 0.0
      %2844 = vmatpush2.msra.mxu0 0.0
      %2845 = vmatprep.subr.mxu0 0.0
      %2846 = vmatpush2.msra.mxu0 0.0
      %2847 = vmatprep.subr.mxu0 0.0
      %2848 = vmatpush2.msra.mxu0 0.0
      %2849 = vmatprep.subr.mxu0 0.0
      %2850 = vmatpush2.msra.mxu0 0.0
      %2851 = vmatprep.subr.mxu0 0.0
      %2852 = vmatpush2.msra.mxu0 0.0
      %2853 = vmatprep.subr.mxu0 0.0
      %2854 = vmatpush2.msra.mxu0 0.0
      %2855 = vmatprep.mubr.f32.mxu0 0.0
      %v2856 = vand.u32 %v2007, 4294901760
      %2857 = vmatmul.mubr.f32.gmra.mxu0 %v2856
      %v2858 = vpop.f32.mrf.mxu0
      %v2859 = vadd.f32 %v2755, %v2858
      %v2860 = vpop.f32.mrf.mxu0
      %v2861 = vadd.f32 %v2757, %v2860
      %2862 = vdwg.mxu0
      %v2863 = vand.u32 %v294, 4294901760
      %2864 = vmatprep.subr.mxu0 %v2863
      %v2865 = vand.u32 %v293, 4294901760
      %2866 = vmatpush1.msra.mxu0 %v2865
      %v2867 = vand.u32 %v290, 4294901760
      %2868 = vmatprep.subr.mxu0 %v2867
      %v2869 = vand.u32 %v289, 4294901760
      %2870 = vmatpush1.msra.mxu0 %v2869
      %v2871 = vand.u32 %v286, 4294901760
      %2872 = vmatprep.subr.mxu0 %v2871
      %v2873 = vand.u32 %v285, 4294901760
      %2874 = vmatpush1.msra.mxu0 %v2873
      %v2875 = vand.u32 %v282, 4294901760
      %2876 = vmatprep.subr.mxu0 %v2875
      %v2877 = vand.u32 %v281, 4294901760
      %2878 = vmatpush1.msra.mxu0 %v2877
      %v2879 = vand.u32 %v278, 4294901760
      %2880 = vmatprep.subr.mxu0 %v2879
      %v2881 = vand.u32 %v277, 4294901760
      %2882 = vmatpush1.msra.mxu0 %v2881
      %v2883 = vand.u32 %v274, 4294901760
      %2884 = vmatprep.subr.mxu0 %v2883
      %v2885 = vand.u32 %v273, 4294901760
      %2886 = vmatpush1.msra.mxu0 %v2885
      %v2887 = vand.u32 %v270, 4294901760
      %2888 = vmatprep.subr.mxu0 %v2887
      %v2889 = vand.u32 %v269, 4294901760
      %2890 = vmatpush1.msra.mxu0 %v2889
      %v2891 = vand.u32 %v266, 4294901760
      %2892 = vmatprep.subr.mxu0 %v2891
      %v2893 = vand.u32 %v265, 4294901760
      %2894 = vmatpush1.msra.mxu0 %v2893
      %v2895 = vand.u32 %v262, 4294901760
      %2896 = vmatprep.subr.mxu0 %v2895
      %v2897 = vand.u32 %v261, 4294901760
      %2898 = vmatpush1.msra.mxu0 %v2897
      %v2899 = vand.u32 %v258, 4294901760
      %2900 = vmatprep.subr.mxu0 %v2899
      %v2901 = vand.u32 %v257, 4294901760
      %2902 = vmatpush1.msra.mxu0 %v2901
      %v2903 = vand.u32 %v254, 4294901760
      %2904 = vmatprep.subr.mxu0 %v2903
      %v2905 = vand.u32 %v253, 4294901760
      %2906 = vmatpush1.msra.mxu0 %v2905
      %v2907 = vand.u32 %v250, 4294901760
      %2908 = vmatprep.subr.mxu0 %v2907
      %v2909 = vand.u32 %v249, 4294901760
      %2910 = vmatpush1.msra.mxu0 %v2909
      %v2911 = vand.u32 %v246, 4294901760
      %2912 = vmatprep.subr.mxu0 %v2911
      %v2913 = vand.u32 %v245, 4294901760
      %2914 = vmatpush1.msra.mxu0 %v2913
      %v2915 = vand.u32 %v242, 4294901760
      %2916 = vmatprep.subr.mxu0 %v2915
      %v2917 = vand.u32 %v241, 4294901760
      %2918 = vmatpush1.msra.mxu0 %v2917
      %v2919 = vand.u32 %v238, 4294901760
      %2920 = vmatprep.subr.mxu0 %v2919
      %v2921 = vand.u32 %v237, 4294901760
      %2922 = vmatpush1.msra.mxu0 %v2921
      %v2923 = vand.u32 %v234, 4294901760
      %2924 = vmatprep.subr.mxu0 %v2923
      %v2925 = vand.u32 %v233, 4294901760
      %2926 = vmatpush1.msra.mxu0 %v2925
      %2927 = vmatprep.subr.mxu0 0.0
      %2928 = vmatpush2.msra.mxu0 0.0
      %2929 = vmatprep.subr.mxu0 0.0
      %2930 = vmatpush2.msra.mxu0 0.0
      %2931 = vmatprep.subr.mxu0 0.0
      %2932 = vmatpush2.msra.mxu0 0.0
      %2933 = vmatprep.subr.mxu0 0.0
      %2934 = vmatpush2.msra.mxu0 0.0
      %2935 = vmatprep.subr.mxu0 0.0
      %2936 = vmatpush2.msra.mxu0 0.0
      %2937 = vmatprep.subr.mxu0 0.0
      %2938 = vmatpush2.msra.mxu0 0.0
      %2939 = vmatprep.subr.mxu0 0.0
      %2940 = vmatpush2.msra.mxu0 0.0
      %2941 = vmatprep.subr.mxu0 0.0
      %2942 = vmatpush2.msra.mxu0 0.0
      %2943 = vmatprep.subr.mxu0 0.0
      %2944 = vmatpush2.msra.mxu0 0.0
      %2945 = vmatprep.subr.mxu0 0.0
      %2946 = vmatpush2.msra.mxu0 0.0
      %2947 = vmatprep.subr.mxu0 0.0
      %2948 = vmatpush2.msra.mxu0 0.0
      %2949 = vmatprep.subr.mxu0 0.0
      %2950 = vmatpush2.msra.mxu0 0.0
      %2951 = vmatprep.subr.mxu0 0.0
      %2952 = vmatpush2.msra.mxu0 0.0
      %2953 = vmatprep.subr.mxu0 0.0
      %2954 = vmatpush2.msra.mxu0 0.0
      %2955 = vmatprep.subr.mxu0 0.0
      %2956 = vmatpush2.msra.mxu0 0.0
      %2957 = vmatprep.subr.mxu0 0.0
      %2958 = vmatpush2.msra.mxu0 0.0
      %2959 = vmatprep.mubr.f32.mxu0 0.0
      %v2960 = vand.u32 %v2007, 4294901760
      %v2961 = vsub.f32 %v2007, %v2960
      %v2962 = vand.u32 %v2961, 4294901760
      %v2963 = vsub.f32 %v2961, %v2962
      %v2964 = vand.u32 %v2963, 4294901760
      %2965 = vmatmul.mubr.f32.gmra.mxu0 %v2964
      %v2966 = vpop.f32.mrf.mxu0
      %v2967 = vadd.f32 0.0, %v2966
      %v2968 = vpop.f32.mrf.mxu0
      %v2969 = vadd.f32 0.0, %v2968
      %2970 = vdwg.mxu0
      %v2971 = vand.u32 %v294, 4294901760
      %v2972 = vsub.f32 %v294, %v2971
      %v2973 = vand.u32 %v2972, 4294901760
      %v2974 = vsub.f32 %v2972, %v2973
      %v2975 = vand.u32 %v2974, 4294901760
      %2976 = vmatprep.subr.mxu0 %v2975
      %v2977 = vand.u32 %v293, 4294901760
      %v2978 = vsub.f32 %v293, %v2977
      %v2979 = vand.u32 %v2978, 4294901760
      %v2980 = vsub.f32 %v2978, %v2979
      %v2981 = vand.u32 %v2980, 4294901760
      %2982 = vmatpush1.msra.mxu0 %v2981
      %v2983 = vand.u32 %v290, 4294901760
      %v2984 = vsub.f32 %v290, %v2983
      %v2985 = vand.u32 %v2984, 4294901760
      %v2986 = vsub.f32 %v2984, %v2985
      %v2987 = vand.u32 %v2986, 4294901760
      %2988 = vmatprep.subr.mxu0 %v2987
      %v2989 = vand.u32 %v289, 4294901760
      %v2990 = vsub.f32 %v289, %v2989
      %v2991 = vand.u32 %v2990, 4294901760
      %v2992 = vsub.f32 %v2990, %v2991
      %v2993 = vand.u32 %v2992, 4294901760
      %2994 = vmatpush1.msra.mxu0 %v2993
      %v2995 = vand.u32 %v286, 4294901760
      %v2996 = vsub.f32 %v286, %v2995
      %v2997 = vand.u32 %v2996, 4294901760
      %v2998 = vsub.f32 %v2996, %v2997
      %v2999 = vand.u32 %v2998, 4294901760
      %3000 = vmatprep.subr.mxu0 %v2999
      %v3001 = vand.u32 %v285, 4294901760
      %v3002 = vsub.f32 %v285, %v3001
      %v3003 = vand.u32 %v3002, 4294901760
      %v3004 = vsub.f32 %v3002, %v3003
      %v3005 = vand.u32 %v3004, 4294901760
      %3006 = vmatpush1.msra.mxu0 %v3005
      %v3007 = vand.u32 %v282, 4294901760
      %v3008 = vsub.f32 %v282, %v3007
      %v3009 = vand.u32 %v3008, 4294901760
      %v3010 = vsub.f32 %v3008, %v3009
      %v3011 = vand.u32 %v3010, 4294901760
      %3012 = vmatprep.subr.mxu0 %v3011
      %v3013 = vand.u32 %v281, 4294901760
      %v3014 = vsub.f32 %v281, %v3013
      %v3015 = vand.u32 %v3014, 4294901760
      %v3016 = vsub.f32 %v3014, %v3015
      %v3017 = vand.u32 %v3016, 4294901760
      %3018 = vmatpush1.msra.mxu0 %v3017
      %v3019 = vand.u32 %v278, 4294901760
      %v3020 = vsub.f32 %v278, %v3019
      %v3021 = vand.u32 %v3020, 4294901760
      %v3022 = vsub.f32 %v3020, %v3021
      %v3023 = vand.u32 %v3022, 4294901760
      %3024 = vmatprep.subr.mxu0 %v3023
      %v3025 = vand.u32 %v277, 4294901760
      %v3026 = vsub.f32 %v277, %v3025
      %v3027 = vand.u32 %v3026, 4294901760
      %v3028 = vsub.f32 %v3026, %v3027
      %v3029 = vand.u32 %v3028, 4294901760
      %3030 = vmatpush1.msra.mxu0 %v3029
      %v3031 = vand.u32 %v274, 4294901760
      %v3032 = vsub.f32 %v274, %v3031
      %v3033 = vand.u32 %v3032, 4294901760
      %v3034 = vsub.f32 %v3032, %v3033
      %v3035 = vand.u32 %v3034, 4294901760
      %3036 = vmatprep.subr.mxu0 %v3035
      %v3037 = vand.u32 %v273, 4294901760
      %v3038 = vsub.f32 %v273, %v3037
      %v3039 = vand.u32 %v3038, 4294901760
      %v3040 = vsub.f32 %v3038, %v3039
      %v3041 = vand.u32 %v3040, 4294901760
      %3042 = vmatpush1.msra.mxu0 %v3041
      %v3043 = vand.u32 %v270, 4294901760
      %v3044 = vsub.f32 %v270, %v3043
      %v3045 = vand.u32 %v3044, 4294901760
      %v3046 = vsub.f32 %v3044, %v3045
      %v3047 = vand.u32 %v3046, 4294901760
      %3048 = vmatprep.subr.mxu0 %v3047
      %v3049 = vand.u32 %v269, 4294901760
      %v3050 = vsub.f32 %v269, %v3049
      %v3051 = vand.u32 %v3050, 4294901760
      %v3052 = vsub.f32 %v3050, %v3051
      %v3053 = vand.u32 %v3052, 4294901760
      %3054 = vmatpush1.msra.mxu0 %v3053
      %v3055 = vand.u32 %v266, 4294901760
      %v3056 = vsub.f32 %v266, %v3055
      %v3057 = vand.u32 %v3056, 4294901760
      %v3058 = vsub.f32 %v3056, %v3057
      %v3059 = vand.u32 %v3058, 4294901760
      %3060 = vmatprep.subr.mxu0 %v3059
      %v3061 = vand.u32 %v265, 4294901760
      %v3062 = vsub.f32 %v265, %v3061
      %v3063 = vand.u32 %v3062, 4294901760
      %v3064 = vsub.f32 %v3062, %v3063
      %v3065 = vand.u32 %v3064, 4294901760
      %3066 = vmatpush1.msra.mxu0 %v3065
      %v3067 = vand.u32 %v262, 4294901760
      %v3068 = vsub.f32 %v262, %v3067
      %v3069 = vand.u32 %v3068, 4294901760
      %v3070 = vsub.f32 %v3068, %v3069
      %v3071 = vand.u32 %v3070, 4294901760
      %3072 = vmatprep.subr.mxu0 %v3071
      %v3073 = vand.u32 %v261, 4294901760
      %v3074 = vsub.f32 %v261, %v3073
      %v3075 = vand.u32 %v3074, 4294901760
      %v3076 = vsub.f32 %v3074, %v3075
      %v3077 = vand.u32 %v3076, 4294901760
      %3078 = vmatpush1.msra.mxu0 %v3077
      %v3079 = vand.u32 %v258, 4294901760
      %v3080 = vsub.f32 %v258, %v3079
      %v3081 = vand.u32 %v3080, 4294901760
      %v3082 = vsub.f32 %v3080, %v3081
      %v3083 = vand.u32 %v3082, 4294901760
      %3084 = vmatprep.subr.mxu0 %v3083
      %v3085 = vand.u32 %v257, 4294901760
      %v3086 = vsub.f32 %v257, %v3085
      %v3087 = vand.u32 %v3086, 4294901760
      %v3088 = vsub.f32 %v3086, %v3087
      %v3089 = vand.u32 %v3088, 4294901760
      %3090 = vmatpush1.msra.mxu0 %v3089
      %v3091 = vand.u32 %v254, 4294901760
      %v3092 = vsub.f32 %v254, %v3091
      %v3093 = vand.u32 %v3092, 4294901760
      %v3094 = vsub.f32 %v3092, %v3093
      %v3095 = vand.u32 %v3094, 4294901760
      %3096 = vmatprep.subr.mxu0 %v3095
      %v3097 = vand.u32 %v253, 4294901760
      %v3098 = vsub.f32 %v253, %v3097
      %v3099 = vand.u32 %v3098, 4294901760
      %v3100 = vsub.f32 %v3098, %v3099
      %v3101 = vand.u32 %v3100, 4294901760
      %3102 = vmatpush1.msra.mxu0 %v3101
      %v3103 = vand.u32 %v250, 4294901760
      %v3104 = vsub.f32 %v250, %v3103
      %v3105 = vand.u32 %v3104, 4294901760
      %v3106 = vsub.f32 %v3104, %v3105
      %v3107 = vand.u32 %v3106, 4294901760
      %3108 = vmatprep.subr.mxu0 %v3107
      %v3109 = vand.u32 %v249, 4294901760
      %v3110 = vsub.f32 %v249, %v3109
      %v3111 = vand.u32 %v3110, 4294901760
      %v3112 = vsub.f32 %v3110, %v3111
      %v3113 = vand.u32 %v3112, 4294901760
      %3114 = vmatpush1.msra.mxu0 %v3113
      %v3115 = vand.u32 %v246, 4294901760
      %v3116 = vsub.f32 %v246, %v3115
      %v3117 = vand.u32 %v3116, 4294901760
      %v3118 = vsub.f32 %v3116, %v3117
      %v3119 = vand.u32 %v3118, 4294901760
      %3120 = vmatprep.subr.mxu0 %v3119
      %v3121 = vand.u32 %v245, 4294901760
      %v3122 = vsub.f32 %v245, %v3121
      %v3123 = vand.u32 %v3122, 4294901760
      %v3124 = vsub.f32 %v3122, %v3123
      %v3125 = vand.u32 %v3124, 4294901760
      %3126 = vmatpush1.msra.mxu0 %v3125
      %v3127 = vand.u32 %v242, 4294901760
      %v3128 = vsub.f32 %v242, %v3127
      %v3129 = vand.u32 %v3128, 4294901760
      %v3130 = vsub.f32 %v3128, %v3129
      %v3131 = vand.u32 %v3130, 4294901760
      %3132 = vmatprep.subr.mxu0 %v3131
      %v3133 = vand.u32 %v241, 4294901760
      %v3134 = vsub.f32 %v241, %v3133
      %v3135 = vand.u32 %v3134, 4294901760
      %v3136 = vsub.f32 %v3134, %v3135
      %v3137 = vand.u32 %v3136, 4294901760
      %3138 = vmatpush1.msra.mxu0 %v3137
      %v3139 = vand.u32 %v238, 4294901760
      %v3140 = vsub.f32 %v238, %v3139
      %v3141 = vand.u32 %v3140, 4294901760
      %v3142 = vsub.f32 %v3140, %v3141
      %v3143 = vand.u32 %v3142, 4294901760
      %3144 = vmatprep.subr.mxu0 %v3143
      %v3145 = vand.u32 %v237, 4294901760
      %v3146 = vsub.f32 %v237, %v3145
      %v3147 = vand.u32 %v3146, 4294901760
      %v3148 = vsub.f32 %v3146, %v3147
      %v3149 = vand.u32 %v3148, 4294901760
      %3150 = vmatpush1.msra.mxu0 %v3149
      %v3151 = vand.u32 %v234, 4294901760
      %v3152 = vsub.f32 %v234, %v3151
      %v3153 = vand.u32 %v3152, 4294901760
      %v3154 = vsub.f32 %v3152, %v3153
      %v3155 = vand.u32 %v3154, 4294901760
      %3156 = vmatprep.subr.mxu0 %v3155
      %v3157 = vand.u32 %v233, 4294901760
      %v3158 = vsub.f32 %v233, %v3157
      %v3159 = vand.u32 %v3158, 4294901760
      %v3160 = vsub.f32 %v3158, %v3159
      %v3161 = vand.u32 %v3160, 4294901760
      %3162 = vmatpush1.msra.mxu0 %v3161
      %3163 = vmatprep.subr.mxu0 0.0
      %3164 = vmatpush2.msra.mxu0 0.0
      %3165 = vmatprep.subr.mxu0 0.0
      %3166 = vmatpush2.msra.mxu0 0.0
      %3167 = vmatprep.subr.mxu0 0.0
      %3168 = vmatpush2.msra.mxu0 0.0
      %3169 = vmatprep.subr.mxu0 0.0
      %3170 = vmatpush2.msra.mxu0 0.0
      %3171 = vmatprep.subr.mxu0 0.0
      %3172 = vmatpush2.msra.mxu0 0.0
      %3173 = vmatprep.subr.mxu0 0.0
      %3174 = vmatpush2.msra.mxu0 0.0
      %3175 = vmatprep.subr.mxu0 0.0
      %3176 = vmatpush2.msra.mxu0 0.0
      %3177 = vmatprep.subr.mxu0 0.0
      %3178 = vmatpush2.msra.mxu0 0.0
      %3179 = vmatprep.subr.mxu0 0.0
      %3180 = vmatpush2.msra.mxu0 0.0
      %3181 = vmatprep.subr.mxu0 0.0
      %3182 = vmatpush2.msra.mxu0 0.0
      %3183 = vmatprep.subr.mxu0 0.0
      %3184 = vmatpush2.msra.mxu0 0.0
      %3185 = vmatprep.subr.mxu0 0.0
      %3186 = vmatpush2.msra.mxu0 0.0
      %3187 = vmatprep.subr.mxu0 0.0
      %3188 = vmatpush2.msra.mxu0 0.0
      %3189 = vmatprep.subr.mxu0 0.0
      %3190 = vmatpush2.msra.mxu0 0.0
      %3191 = vmatprep.subr.mxu0 0.0
      %3192 = vmatpush2.msra.mxu0 0.0
      %3193 = vmatprep.subr.mxu0 0.0
      %3194 = vmatpush2.msra.mxu0 0.0
      %3195 = vmatprep.mubr.f32.mxu0 0.0
      %v3196 = vand.u32 %v2007, 4294901760
      %3197 = vmatmul.mubr.f32.gmra.mxu0 %v3196
      %v3198 = vpop.f32.mrf.mxu0
      %v3199 = vadd.f32 %v2967, %v3198
      %v3200 = vpop.f32.mrf.mxu0
      %v3201 = vadd.f32 %v2969, %v3200
      %3202 = vdwg.mxu0
      %v3203 = vand.u32 %v294, 4294901760
      %v3204 = vsub.f32 %v294, %v3203
      %3205 = vmatprep.subr.mxu0 %v3204
      %v3206 = vand.u32 %v293, 4294901760
      %v3207 = vsub.f32 %v293, %v3206
      %3208 = vmatpush1.msra.mxu0 %v3207
      %v3209 = vand.u32 %v290, 4294901760
      %v3210 = vsub.f32 %v290, %v3209
      %3211 = vmatprep.subr.mxu0 %v3210
      %v3212 = vand.u32 %v289, 4294901760
      %v3213 = vsub.f32 %v289, %v3212
      %3214 = vmatpush1.msra.mxu0 %v3213
      %v3215 = vand.u32 %v286, 4294901760
      %v3216 = vsub.f32 %v286, %v3215
      %3217 = vmatprep.subr.mxu0 %v3216
      %v3218 = vand.u32 %v285, 4294901760
      %v3219 = vsub.f32 %v285, %v3218
      %3220 = vmatpush1.msra.mxu0 %v3219
      %v3221 = vand.u32 %v282, 4294901760
      %v3222 = vsub.f32 %v282, %v3221
      %3223 = vmatprep.subr.mxu0 %v3222
      %v3224 = vand.u32 %v281, 4294901760
      %v3225 = vsub.f32 %v281, %v3224
      %3226 = vmatpush1.msra.mxu0 %v3225
      %v3227 = vand.u32 %v278, 4294901760
      %v3228 = vsub.f32 %v278, %v3227
      %3229 = vmatprep.subr.mxu0 %v3228
      %v3230 = vand.u32 %v277, 4294901760
      %v3231 = vsub.f32 %v277, %v3230
      %3232 = vmatpush1.msra.mxu0 %v3231
      %v3233 = vand.u32 %v274, 4294901760
      %v3234 = vsub.f32 %v274, %v3233
      %3235 = vmatprep.subr.mxu0 %v3234
      %v3236 = vand.u32 %v273, 4294901760
      %v3237 = vsub.f32 %v273, %v3236
      %3238 = vmatpush1.msra.mxu0 %v3237
      %v3239 = vand.u32 %v270, 4294901760
      %v3240 = vsub.f32 %v270, %v3239
      %3241 = vmatprep.subr.mxu0 %v3240
      %v3242 = vand.u32 %v269, 4294901760
      %v3243 = vsub.f32 %v269, %v3242
      %3244 = vmatpush1.msra.mxu0 %v3243
      %v3245 = vand.u32 %v266, 4294901760
      %v3246 = vsub.f32 %v266, %v3245
      %3247 = vmatprep.subr.mxu0 %v3246
      %v3248 = vand.u32 %v265, 4294901760
      %v3249 = vsub.f32 %v265, %v3248
      %3250 = vmatpush1.msra.mxu0 %v3249
      %v3251 = vand.u32 %v262, 4294901760
      %v3252 = vsub.f32 %v262, %v3251
      %3253 = vmatprep.subr.mxu0 %v3252
      %v3254 = vand.u32 %v261, 4294901760
      %v3255 = vsub.f32 %v261, %v3254
      %3256 = vmatpush1.msra.mxu0 %v3255
      %v3257 = vand.u32 %v258, 4294901760
      %v3258 = vsub.f32 %v258, %v3257
      %3259 = vmatprep.subr.mxu0 %v3258
      %v3260 = vand.u32 %v257, 4294901760
      %v3261 = vsub.f32 %v257, %v3260
      %3262 = vmatpush1.msra.mxu0 %v3261
      %v3263 = vand.u32 %v254, 4294901760
      %v3264 = vsub.f32 %v254, %v3263
      %3265 = vmatprep.subr.mxu0 %v3264
      %v3266 = vand.u32 %v253, 4294901760
      %v3267 = vsub.f32 %v253, %v3266
      %3268 = vmatpush1.msra.mxu0 %v3267
      %v3269 = vand.u32 %v250, 4294901760
      %v3270 = vsub.f32 %v250, %v3269
      %3271 = vmatprep.subr.mxu0 %v3270
      %v3272 = vand.u32 %v249, 4294901760
      %v3273 = vsub.f32 %v249, %v3272
      %3274 = vmatpush1.msra.mxu0 %v3273
      %v3275 = vand.u32 %v246, 4294901760
      %v3276 = vsub.f32 %v246, %v3275
      %3277 = vmatprep.subr.mxu0 %v3276
      %v3278 = vand.u32 %v245, 4294901760
      %v3279 = vsub.f32 %v245, %v3278
      %3280 = vmatpush1.msra.mxu0 %v3279
      %v3281 = vand.u32 %v242, 4294901760
      %v3282 = vsub.f32 %v242, %v3281
      %3283 = vmatprep.subr.mxu0 %v3282
      %v3284 = vand.u32 %v241, 4294901760
      %v3285 = vsub.f32 %v241, %v3284
      %3286 = vmatpush1.msra.mxu0 %v3285
      %v3287 = vand.u32 %v238, 4294901760
      %v3288 = vsub.f32 %v238, %v3287
      %3289 = vmatprep.subr.mxu0 %v3288
      %v3290 = vand.u32 %v237, 4294901760
      %v3291 = vsub.f32 %v237, %v3290
      %3292 = vmatpush1.msra.mxu0 %v3291
      %v3293 = vand.u32 %v234, 4294901760
      %v3294 = vsub.f32 %v234, %v3293
      %3295 = vmatprep.subr.mxu0 %v3294
      %v3296 = vand.u32 %v233, 4294901760
      %v3297 = vsub.f32 %v233, %v3296
      %3298 = vmatpush1.msra.mxu0 %v3297
      %3299 = vmatprep.subr.mxu0 0.0
      %3300 = vmatpush2.msra.mxu0 0.0
      %3301 = vmatprep.subr.mxu0 0.0
      %3302 = vmatpush2.msra.mxu0 0.0
      %3303 = vmatprep.subr.mxu0 0.0
      %3304 = vmatpush2.msra.mxu0 0.0
      %3305 = vmatprep.subr.mxu0 0.0
      %3306 = vmatpush2.msra.mxu0 0.0
      %3307 = vmatprep.subr.mxu0 0.0
      %3308 = vmatpush2.msra.mxu0 0.0
      %3309 = vmatprep.subr.mxu0 0.0
      %3310 = vmatpush2.msra.mxu0 0.0
      %3311 = vmatprep.subr.mxu0 0.0
      %3312 = vmatpush2.msra.mxu0 0.0
      %3313 = vmatprep.subr.mxu0 0.0
      %3314 = vmatpush2.msra.mxu0 0.0
      %3315 = vmatprep.subr.mxu0 0.0
      %3316 = vmatpush2.msra.mxu0 0.0
      %3317 = vmatprep.subr.mxu0 0.0
      %3318 = vmatpush2.msra.mxu0 0.0
      %3319 = vmatprep.subr.mxu0 0.0
      %3320 = vmatpush2.msra.mxu0 0.0
      %3321 = vmatprep.subr.mxu0 0.0
      %3322 = vmatpush2.msra.mxu0 0.0
      %3323 = vmatprep.subr.mxu0 0.0
      %3324 = vmatpush2.msra.mxu0 0.0
      %3325 = vmatprep.subr.mxu0 0.0
      %3326 = vmatpush2.msra.mxu0 0.0
      %3327 = vmatprep.subr.mxu0 0.0
      %3328 = vmatpush2.msra.mxu0 0.0
      %3329 = vmatprep.subr.mxu0 0.0
      %3330 = vmatpush2.msra.mxu0 0.0
      %3331 = vmatprep.mubr.f32.mxu0 0.0
      %v3332 = vand.u32 %v2007, 4294901760
      %v3333 = vsub.f32 %v2007, %v3332
      %3334 = vmatmul.mubr.f32.gmra.mxu0 %v3333
      %v3335 = vpop.f32.mrf.mxu0
      %v3336 = vadd.f32 %v3199, %v3335
      %v3337 = vpop.f32.mrf.mxu0
      %v3338 = vadd.f32 %v3201, %v3337
      %3339 = vdwg.mxu0
      %v3340 = vand.u32 %v294, 4294901760
      %3341 = vmatprep.subr.mxu0 %v3340
      %v3342 = vand.u32 %v293, 4294901760
      %3343 = vmatpush1.msra.mxu0 %v3342
      %v3344 = vand.u32 %v290, 4294901760
      %3345 = vmatprep.subr.mxu0 %v3344
      %v3346 = vand.u32 %v289, 4294901760
      %3347 = vmatpush1.msra.mxu0 %v3346
      %v3348 = vand.u32 %v286, 4294901760
      %3349 = vmatprep.subr.mxu0 %v3348
      %v3350 = vand.u32 %v285, 4294901760
      %3351 = vmatpush1.msra.mxu0 %v3350
      %v3352 = vand.u32 %v282, 4294901760
      %3353 = vmatprep.subr.mxu0 %v3352
      %v3354 = vand.u32 %v281, 4294901760
      %3355 = vmatpush1.msra.mxu0 %v3354
      %v3356 = vand.u32 %v278, 4294901760
      %3357 = vmatprep.subr.mxu0 %v3356
      %v3358 = vand.u32 %v277, 4294901760
      %3359 = vmatpush1.msra.mxu0 %v3358
      %v3360 = vand.u32 %v274, 4294901760
      %3361 = vmatprep.subr.mxu0 %v3360
      %v3362 = vand.u32 %v273, 4294901760
      %3363 = vmatpush1.msra.mxu0 %v3362
      %v3364 = vand.u32 %v270, 4294901760
      %3365 = vmatprep.subr.mxu0 %v3364
      %v3366 = vand.u32 %v269, 4294901760
      %3367 = vmatpush1.msra.mxu0 %v3366
      %v3368 = vand.u32 %v266, 4294901760
      %3369 = vmatprep.subr.mxu0 %v3368
      %v3370 = vand.u32 %v265, 4294901760
      %3371 = vmatpush1.msra.mxu0 %v3370
      %v3372 = vand.u32 %v262, 4294901760
      %3373 = vmatprep.subr.mxu0 %v3372
      %v3374 = vand.u32 %v261, 4294901760
      %3375 = vmatpush1.msra.mxu0 %v3374
      %v3376 = vand.u32 %v258, 4294901760
      %3377 = vmatprep.subr.mxu0 %v3376
      %v3378 = vand.u32 %v257, 4294901760
      %3379 = vmatpush1.msra.mxu0 %v3378
      %v3380 = vand.u32 %v254, 4294901760
      %3381 = vmatprep.subr.mxu0 %v3380
      %v3382 = vand.u32 %v253, 4294901760
      %3383 = vmatpush1.msra.mxu0 %v3382
      %v3384 = vand.u32 %v250, 4294901760
      %3385 = vmatprep.subr.mxu0 %v3384
      %v3386 = vand.u32 %v249, 4294901760
      %3387 = vmatpush1.msra.mxu0 %v3386
      %v3388 = vand.u32 %v246, 4294901760
      %3389 = vmatprep.subr.mxu0 %v3388
      %v3390 = vand.u32 %v245, 4294901760
      %3391 = vmatpush1.msra.mxu0 %v3390
      %v3392 = vand.u32 %v242, 4294901760
      %3393 = vmatprep.subr.mxu0 %v3392
      %v3394 = vand.u32 %v241, 4294901760
      %3395 = vmatpush1.msra.mxu0 %v3394
      %v3396 = vand.u32 %v238, 4294901760
      %3397 = vmatprep.subr.mxu0 %v3396
      %v3398 = vand.u32 %v237, 4294901760
      %3399 = vmatpush1.msra.mxu0 %v3398
      %v3400 = vand.u32 %v234, 4294901760
      %3401 = vmatprep.subr.mxu0 %v3400
      %v3402 = vand.u32 %v233, 4294901760
      %3403 = vmatpush1.msra.mxu0 %v3402
      %3404 = vmatprep.subr.mxu0 0.0
      %3405 = vmatpush2.msra.mxu0 0.0
      %3406 = vmatprep.subr.mxu0 0.0
      %3407 = vmatpush2.msra.mxu0 0.0
      %3408 = vmatprep.subr.mxu0 0.0
      %3409 = vmatpush2.msra.mxu0 0.0
      %3410 = vmatprep.subr.mxu0 0.0
      %3411 = vmatpush2.msra.mxu0 0.0
      %3412 = vmatprep.subr.mxu0 0.0
      %3413 = vmatpush2.msra.mxu0 0.0
      %3414 = vmatprep.subr.mxu0 0.0
      %3415 = vmatpush2.msra.mxu0 0.0
      %3416 = vmatprep.subr.mxu0 0.0
      %3417 = vmatpush2.msra.mxu0 0.0
      %3418 = vmatprep.subr.mxu0 0.0
      %3419 = vmatpush2.msra.mxu0 0.0
      %3420 = vmatprep.subr.mxu0 0.0
      %3421 = vmatpush2.msra.mxu0 0.0
      %3422 = vmatprep.subr.mxu0 0.0
      %3423 = vmatpush2.msra.mxu0 0.0
      %3424 = vmatprep.subr.mxu0 0.0
      %3425 = vmatpush2.msra.mxu0 0.0
      %3426 = vmatprep.subr.mxu0 0.0
      %3427 = vmatpush2.msra.mxu0 0.0
      %3428 = vmatprep.subr.mxu0 0.0
      %3429 = vmatpush2.msra.mxu0 0.0
      %3430 = vmatprep.subr.mxu0 0.0
      %3431 = vmatpush2.msra.mxu0 0.0
      %3432 = vmatprep.subr.mxu0 0.0
      %3433 = vmatpush2.msra.mxu0 0.0
      %3434 = vmatprep.subr.mxu0 0.0
      %3435 = vmatpush2.msra.mxu0 0.0
      %3436 = vmatprep.mubr.f32.mxu0 0.0
      %v3437 = vand.u32 %v2007, 4294901760
      %v3438 = vsub.f32 %v2007, %v3437
      %v3439 = vand.u32 %v3438, 4294901760
      %3440 = vmatmul.mubr.f32.gmra.mxu0 %v3439
      %v3441 = vpop.f32.mrf.mxu0
      %v3442 = vadd.f32 %v3336, %v3441
      %v3443 = vpop.f32.mrf.mxu0
      %v3444 = vadd.f32 %v3338, %v3443
      %3445 = vdwg.mxu0
      %v3446 = vand.u32 %v294, 4294901760
      %v3447 = vsub.f32 %v294, %v3446
      %v3448 = vand.u32 %v3447, 4294901760
      %3449 = vmatprep.subr.mxu0 %v3448
      %v3450 = vand.u32 %v293, 4294901760
      %v3451 = vsub.f32 %v293, %v3450
      %v3452 = vand.u32 %v3451, 4294901760
      %3453 = vmatpush1.msra.mxu0 %v3452
      %v3454 = vand.u32 %v290, 4294901760
      %v3455 = vsub.f32 %v290, %v3454
      %v3456 = vand.u32 %v3455, 4294901760
      %3457 = vmatprep.subr.mxu0 %v3456
      %v3458 = vand.u32 %v289, 4294901760
      %v3459 = vsub.f32 %v289, %v3458
      %v3460 = vand.u32 %v3459, 4294901760
      %3461 = vmatpush1.msra.mxu0 %v3460
      %v3462 = vand.u32 %v286, 4294901760
      %v3463 = vsub.f32 %v286, %v3462
      %v3464 = vand.u32 %v3463, 4294901760
      %3465 = vmatprep.subr.mxu0 %v3464
      %v3466 = vand.u32 %v285, 4294901760
      %v3467 = vsub.f32 %v285, %v3466
      %v3468 = vand.u32 %v3467, 4294901760
      %3469 = vmatpush1.msra.mxu0 %v3468
      %v3470 = vand.u32 %v282, 4294901760
      %v3471 = vsub.f32 %v282, %v3470
      %v3472 = vand.u32 %v3471, 4294901760
      %3473 = vmatprep.subr.mxu0 %v3472
      %v3474 = vand.u32 %v281, 4294901760
      %v3475 = vsub.f32 %v281, %v3474
      %v3476 = vand.u32 %v3475, 4294901760
      %3477 = vmatpush1.msra.mxu0 %v3476
      %v3478 = vand.u32 %v278, 4294901760
      %v3479 = vsub.f32 %v278, %v3478
      %v3480 = vand.u32 %v3479, 4294901760
      %3481 = vmatprep.subr.mxu0 %v3480
      %v3482 = vand.u32 %v277, 4294901760
      %v3483 = vsub.f32 %v277, %v3482
      %v3484 = vand.u32 %v3483, 4294901760
      %3485 = vmatpush1.msra.mxu0 %v3484
      %v3486 = vand.u32 %v274, 4294901760
      %v3487 = vsub.f32 %v274, %v3486
      %v3488 = vand.u32 %v3487, 4294901760
      %3489 = vmatprep.subr.mxu0 %v3488
      %v3490 = vand.u32 %v273, 4294901760
      %v3491 = vsub.f32 %v273, %v3490
      %v3492 = vand.u32 %v3491, 4294901760
      %3493 = vmatpush1.msra.mxu0 %v3492
      %v3494 = vand.u32 %v270, 4294901760
      %v3495 = vsub.f32 %v270, %v3494
      %v3496 = vand.u32 %v3495, 4294901760
      %3497 = vmatprep.subr.mxu0 %v3496
      %v3498 = vand.u32 %v269, 4294901760
      %v3499 = vsub.f32 %v269, %v3498
      %v3500 = vand.u32 %v3499, 4294901760
      %3501 = vmatpush1.msra.mxu0 %v3500
      %v3502 = vand.u32 %v266, 4294901760
      %v3503 = vsub.f32 %v266, %v3502
      %v3504 = vand.u32 %v3503, 4294901760
      %3505 = vmatprep.subr.mxu0 %v3504
      %v3506 = vand.u32 %v265, 4294901760
      %v3507 = vsub.f32 %v265, %v3506
      %v3508 = vand.u32 %v3507, 4294901760
      %3509 = vmatpush1.msra.mxu0 %v3508
      %v3510 = vand.u32 %v262, 4294901760
      %v3511 = vsub.f32 %v262, %v3510
      %v3512 = vand.u32 %v3511, 4294901760
      %3513 = vmatprep.subr.mxu0 %v3512
      %v3514 = vand.u32 %v261, 4294901760
      %v3515 = vsub.f32 %v261, %v3514
      %v3516 = vand.u32 %v3515, 4294901760
      %3517 = vmatpush1.msra.mxu0 %v3516
      %v3518 = vand.u32 %v258, 4294901760
      %v3519 = vsub.f32 %v258, %v3518
      %v3520 = vand.u32 %v3519, 4294901760
      %3521 = vmatprep.subr.mxu0 %v3520
      %v3522 = vand.u32 %v257, 4294901760
      %v3523 = vsub.f32 %v257, %v3522
      %v3524 = vand.u32 %v3523, 4294901760
      %3525 = vmatpush1.msra.mxu0 %v3524
      %v3526 = vand.u32 %v254, 4294901760
      %v3527 = vsub.f32 %v254, %v3526
      %v3528 = vand.u32 %v3527, 4294901760
      %3529 = vmatprep.subr.mxu0 %v3528
      %v3530 = vand.u32 %v253, 4294901760
      %v3531 = vsub.f32 %v253, %v3530
      %v3532 = vand.u32 %v3531, 4294901760
      %3533 = vmatpush1.msra.mxu0 %v3532
      %v3534 = vand.u32 %v250, 4294901760
      %v3535 = vsub.f32 %v250, %v3534
      %v3536 = vand.u32 %v3535, 4294901760
      %3537 = vmatprep.subr.mxu0 %v3536
      %v3538 = vand.u32 %v249, 4294901760
      %v3539 = vsub.f32 %v249, %v3538
      %v3540 = vand.u32 %v3539, 4294901760
      %3541 = vmatpush1.msra.mxu0 %v3540
      %v3542 = vand.u32 %v246, 4294901760
      %v3543 = vsub.f32 %v246, %v3542
      %v3544 = vand.u32 %v3543, 4294901760
      %3545 = vmatprep.subr.mxu0 %v3544
      %v3546 = vand.u32 %v245, 4294901760
      %v3547 = vsub.f32 %v245, %v3546
      %v3548 = vand.u32 %v3547, 4294901760
      %3549 = vmatpush1.msra.mxu0 %v3548
      %v3550 = vand.u32 %v242, 4294901760
      %v3551 = vsub.f32 %v242, %v3550
      %v3552 = vand.u32 %v3551, 4294901760
      %3553 = vmatprep.subr.mxu0 %v3552
      %v3554 = vand.u32 %v241, 4294901760
      %v3555 = vsub.f32 %v241, %v3554
      %v3556 = vand.u32 %v3555, 4294901760
      %3557 = vmatpush1.msra.mxu0 %v3556
      %v3558 = vand.u32 %v238, 4294901760
      %v3559 = vsub.f32 %v238, %v3558
      %v3560 = vand.u32 %v3559, 4294901760
      %3561 = vmatprep.subr.mxu0 %v3560
      %v3562 = vand.u32 %v237, 4294901760
      %v3563 = vsub.f32 %v237, %v3562
      %v3564 = vand.u32 %v3563, 4294901760
      %3565 = vmatpush1.msra.mxu0 %v3564
      %v3566 = vand.u32 %v234, 4294901760
      %v3567 = vsub.f32 %v234, %v3566
      %v3568 = vand.u32 %v3567, 4294901760
      %3569 = vmatprep.subr.mxu0 %v3568
      %v3570 = vand.u32 %v233, 4294901760
      %v3571 = vsub.f32 %v233, %v3570
      %v3572 = vand.u32 %v3571, 4294901760
      %3573 = vmatpush1.msra.mxu0 %v3572
      %3574 = vmatprep.subr.mxu0 0.0
      %3575 = vmatpush2.msra.mxu0 0.0
      %3576 = vmatprep.subr.mxu0 0.0
      %3577 = vmatpush2.msra.mxu0 0.0
      %3578 = vmatprep.subr.mxu0 0.0
      %3579 = vmatpush2.msra.mxu0 0.0
      %3580 = vmatprep.subr.mxu0 0.0
      %3581 = vmatpush2.msra.mxu0 0.0
      %3582 = vmatprep.subr.mxu0 0.0
      %3583 = vmatpush2.msra.mxu0 0.0
      %3584 = vmatprep.subr.mxu0 0.0
      %3585 = vmatpush2.msra.mxu0 0.0
      %3586 = vmatprep.subr.mxu0 0.0
      %3587 = vmatpush2.msra.mxu0 0.0
      %3588 = vmatprep.subr.mxu0 0.0
      %3589 = vmatpush2.msra.mxu0 0.0
      %3590 = vmatprep.subr.mxu0 0.0
      %3591 = vmatpush2.msra.mxu0 0.0
      %3592 = vmatprep.subr.mxu0 0.0
      %3593 = vmatpush2.msra.mxu0 0.0
      %3594 = vmatprep.subr.mxu0 0.0
      %3595 = vmatpush2.msra.mxu0 0.0
      %3596 = vmatprep.subr.mxu0 0.0
      %3597 = vmatpush2.msra.mxu0 0.0
      %3598 = vmatprep.subr.mxu0 0.0
      %3599 = vmatpush2.msra.mxu0 0.0
      %3600 = vmatprep.subr.mxu0 0.0
      %3601 = vmatpush2.msra.mxu0 0.0
      %3602 = vmatprep.subr.mxu0 0.0
      %3603 = vmatpush2.msra.mxu0 0.0
      %3604 = vmatprep.subr.mxu0 0.0
      %3605 = vmatpush2.msra.mxu0 0.0
      %3606 = vmatprep.mubr.f32.mxu0 0.0
      %v3607 = vand.u32 %v2007, 4294901760
      %3608 = vmatmul.mubr.f32.gmra.mxu0 %v3607
      %v3609 = vpop.f32.mrf.mxu0
      %v3610 = vadd.f32 %v3442, %v3609
      %v3611 = vpop.f32.mrf.mxu0
      %v3612 = vadd.f32 %v3444, %v3611
      %3613 = vdwg.mxu0
      %v3614 = vand.u32 %v294, 4294901760
      %3615 = vmatprep.subr.mxu0 %v3614
      %v3616 = vand.u32 %v293, 4294901760
      %3617 = vmatpush1.msra.mxu0 %v3616
      %v3618 = vand.u32 %v290, 4294901760
      %3619 = vmatprep.subr.mxu0 %v3618
      %v3620 = vand.u32 %v289, 4294901760
      %3621 = vmatpush1.msra.mxu0 %v3620
      %v3622 = vand.u32 %v286, 4294901760
      %3623 = vmatprep.subr.mxu0 %v3622
      %v3624 = vand.u32 %v285, 4294901760
      %3625 = vmatpush1.msra.mxu0 %v3624
      %v3626 = vand.u32 %v282, 4294901760
      %3627 = vmatprep.subr.mxu0 %v3626
      %v3628 = vand.u32 %v281, 4294901760
      %3629 = vmatpush1.msra.mxu0 %v3628
      %v3630 = vand.u32 %v278, 4294901760
      %3631 = vmatprep.subr.mxu0 %v3630
      %v3632 = vand.u32 %v277, 4294901760
      %3633 = vmatpush1.msra.mxu0 %v3632
      %v3634 = vand.u32 %v274, 4294901760
      %3635 = vmatprep.subr.mxu0 %v3634
      %v3636 = vand.u32 %v273, 4294901760
      %3637 = vmatpush1.msra.mxu0 %v3636
      %v3638 = vand.u32 %v270, 4294901760
      %3639 = vmatprep.subr.mxu0 %v3638
      %v3640 = vand.u32 %v269, 4294901760
      %3641 = vmatpush1.msra.mxu0 %v3640
      %v3642 = vand.u32 %v266, 4294901760
      %3643 = vmatprep.subr.mxu0 %v3642
      %v3644 = vand.u32 %v265, 4294901760
      %3645 = vmatpush1.msra.mxu0 %v3644
      %v3646 = vand.u32 %v262, 4294901760
      %3647 = vmatprep.subr.mxu0 %v3646
      %v3648 = vand.u32 %v261, 4294901760
      %3649 = vmatpush1.msra.mxu0 %v3648
      %v3650 = vand.u32 %v258, 4294901760
      %3651 = vmatprep.subr.mxu0 %v3650
      %v3652 = vand.u32 %v257, 4294901760
      %3653 = vmatpush1.msra.mxu0 %v3652
      %v3654 = vand.u32 %v254, 4294901760
      %3655 = vmatprep.subr.mxu0 %v3654
      %v3656 = vand.u32 %v253, 4294901760
      %3657 = vmatpush1.msra.mxu0 %v3656
      %v3658 = vand.u32 %v250, 4294901760
      %3659 = vmatprep.subr.mxu0 %v3658
      %v3660 = vand.u32 %v249, 4294901760
      %3661 = vmatpush1.msra.mxu0 %v3660
      %v3662 = vand.u32 %v246, 4294901760
      %3663 = vmatprep.subr.mxu0 %v3662
      %v3664 = vand.u32 %v245, 4294901760
      %3665 = vmatpush1.msra.mxu0 %v3664
      %v3666 = vand.u32 %v242, 4294901760
      %3667 = vmatprep.subr.mxu0 %v3666
      %v3668 = vand.u32 %v241, 4294901760
      %3669 = vmatpush1.msra.mxu0 %v3668
      %v3670 = vand.u32 %v238, 4294901760
      %3671 = vmatprep.subr.mxu0 %v3670
      %v3672 = vand.u32 %v237, 4294901760
      %3673 = vmatpush1.msra.mxu0 %v3672
      %v3674 = vand.u32 %v234, 4294901760
      %3675 = vmatprep.subr.mxu0 %v3674
      %v3676 = vand.u32 %v233, 4294901760
      %3677 = vmatpush1.msra.mxu0 %v3676
      %3678 = vmatprep.subr.mxu0 0.0
      %3679 = vmatpush2.msra.mxu0 0.0
      %3680 = vmatprep.subr.mxu0 0.0
      %3681 = vmatpush2.msra.mxu0 0.0
      %3682 = vmatprep.subr.mxu0 0.0
      %3683 = vmatpush2.msra.mxu0 0.0
      %3684 = vmatprep.subr.mxu0 0.0
      %3685 = vmatpush2.msra.mxu0 0.0
      %3686 = vmatprep.subr.mxu0 0.0
      %3687 = vmatpush2.msra.mxu0 0.0
      %3688 = vmatprep.subr.mxu0 0.0
      %3689 = vmatpush2.msra.mxu0 0.0
      %3690 = vmatprep.subr.mxu0 0.0
      %3691 = vmatpush2.msra.mxu0 0.0
      %3692 = vmatprep.subr.mxu0 0.0
      %3693 = vmatpush2.msra.mxu0 0.0
      %3694 = vmatprep.subr.mxu0 0.0
      %3695 = vmatpush2.msra.mxu0 0.0
      %3696 = vmatprep.subr.mxu0 0.0
      %3697 = vmatpush2.msra.mxu0 0.0
      %3698 = vmatprep.subr.mxu0 0.0
      %3699 = vmatpush2.msra.mxu0 0.0
      %3700 = vmatprep.subr.mxu0 0.0
      %3701 = vmatpush2.msra.mxu0 0.0
      %3702 = vmatprep.subr.mxu0 0.0
      %3703 = vmatpush2.msra.mxu0 0.0
      %3704 = vmatprep.subr.mxu0 0.0
      %3705 = vmatpush2.msra.mxu0 0.0
      %3706 = vmatprep.subr.mxu0 0.0
      %3707 = vmatpush2.msra.mxu0 0.0
      %3708 = vmatprep.subr.mxu0 0.0
      %3709 = vmatpush2.msra.mxu0 0.0
      %3710 = vmatprep.mubr.f32.mxu0 0.0
      %v3711 = vand.u32 %v2007, 4294901760
      %3712 = vmatmul.mubr.f32.gmra.mxu0 %v3711
      %v3713 = vpop.f32.mrf.mxu0
      %v3714 = vadd.f32 %v3610, %v3713
      %v3715 = vpop.f32.mrf.mxu0
      %v3716 = vadd.f32 %v3612, %v3715
      %3717 = vdwg.mxu0
      %s3718 = scalar_lea.vmem %s221, 4
      %v3719 = vld [vmem:[%s3718] sm:$0x3]
      %v3720 = vand.u32 %v292, 4294901760
      %3721 = vmatprep.subr.mxu0 %v3720
      %v3722 = vand.u32 %v291, 4294901760
      %3723 = vmatpush1.msra.mxu0 %v3722
      %v3724 = vand.u32 %v288, 4294901760
      %3725 = vmatprep.subr.mxu0 %v3724
      %v3726 = vand.u32 %v287, 4294901760
      %3727 = vmatpush1.msra.mxu0 %v3726
      %v3728 = vand.u32 %v284, 4294901760
      %3729 = vmatprep.subr.mxu0 %v3728
      %v3730 = vand.u32 %v283, 4294901760
      %3731 = vmatpush1.msra.mxu0 %v3730
      %v3732 = vand.u32 %v280, 4294901760
      %3733 = vmatprep.subr.mxu0 %v3732
      %v3734 = vand.u32 %v279, 4294901760
      %3735 = vmatpush1.msra.mxu0 %v3734
      %v3736 = vand.u32 %v276, 4294901760
      %3737 = vmatprep.subr.mxu0 %v3736
      %v3738 = vand.u32 %v275, 4294901760
      %3739 = vmatpush1.msra.mxu0 %v3738
      %v3740 = vand.u32 %v272, 4294901760
      %3741 = vmatprep.subr.mxu0 %v3740
      %v3742 = vand.u32 %v271, 4294901760
      %3743 = vmatpush1.msra.mxu0 %v3742
      %v3744 = vand.u32 %v268, 4294901760
      %3745 = vmatprep.subr.mxu0 %v3744
      %v3746 = vand.u32 %v267, 4294901760
      %3747 = vmatpush1.msra.mxu0 %v3746
      %v3748 = vand.u32 %v264, 4294901760
      %3749 = vmatprep.subr.mxu0 %v3748
      %v3750 = vand.u32 %v263, 4294901760
      %3751 = vmatpush1.msra.mxu0 %v3750
      %v3752 = vand.u32 %v260, 4294901760
      %3753 = vmatprep.subr.mxu0 %v3752
      %v3754 = vand.u32 %v259, 4294901760
      %3755 = vmatpush1.msra.mxu0 %v3754
      %v3756 = vand.u32 %v256, 4294901760
      %3757 = vmatprep.subr.mxu0 %v3756
      %v3758 = vand.u32 %v255, 4294901760
      %3759 = vmatpush1.msra.mxu0 %v3758
      %v3760 = vand.u32 %v252, 4294901760
      %3761 = vmatprep.subr.mxu0 %v3760
      %v3762 = vand.u32 %v251, 4294901760
      %3763 = vmatpush1.msra.mxu0 %v3762
      %v3764 = vand.u32 %v248, 4294901760
      %3765 = vmatprep.subr.mxu0 %v3764
      %v3766 = vand.u32 %v247, 4294901760
      %3767 = vmatpush1.msra.mxu0 %v3766
      %v3768 = vand.u32 %v244, 4294901760
      %3769 = vmatprep.subr.mxu0 %v3768
      %v3770 = vand.u32 %v243, 4294901760
      %3771 = vmatpush1.msra.mxu0 %v3770
      %v3772 = vand.u32 %v240, 4294901760
      %3773 = vmatprep.subr.mxu0 %v3772
      %v3774 = vand.u32 %v239, 4294901760
      %3775 = vmatpush1.msra.mxu0 %v3774
      %v3776 = vand.u32 %v236, 4294901760
      %3777 = vmatprep.subr.mxu0 %v3776
      %v3778 = vand.u32 %v235, 4294901760
      %3779 = vmatpush1.msra.mxu0 %v3778
      %v3780 = vand.u32 %v232, 4294901760
      %3781 = vmatprep.subr.mxu0 %v3780
      %v3782 = vand.u32 %v231, 4294901760
      %3783 = vmatpush1.msra.mxu0 %v3782
      %3784 = vmatprep.subr.mxu0 0.0
      %3785 = vmatpush2.msra.mxu0 0.0
      %3786 = vmatprep.subr.mxu0 0.0
      %3787 = vmatpush2.msra.mxu0 0.0
      %3788 = vmatprep.subr.mxu0 0.0
      %3789 = vmatpush2.msra.mxu0 0.0
      %3790 = vmatprep.subr.mxu0 0.0
      %3791 = vmatpush2.msra.mxu0 0.0
      %3792 = vmatprep.subr.mxu0 0.0
      %3793 = vmatpush2.msra.mxu0 0.0
      %3794 = vmatprep.subr.mxu0 0.0
      %3795 = vmatpush2.msra.mxu0 0.0
      %3796 = vmatprep.subr.mxu0 0.0
      %3797 = vmatpush2.msra.mxu0 0.0
      %3798 = vmatprep.subr.mxu0 0.0
      %3799 = vmatpush2.msra.mxu0 0.0
      %3800 = vmatprep.subr.mxu0 0.0
      %3801 = vmatpush2.msra.mxu0 0.0
      %3802 = vmatprep.subr.mxu0 0.0
      %3803 = vmatpush2.msra.mxu0 0.0
      %3804 = vmatprep.subr.mxu0 0.0
      %3805 = vmatpush2.msra.mxu0 0.0
      %3806 = vmatprep.subr.mxu0 0.0
      %3807 = vmatpush2.msra.mxu0 0.0
      %3808 = vmatprep.subr.mxu0 0.0
      %3809 = vmatpush2.msra.mxu0 0.0
      %3810 = vmatprep.subr.mxu0 0.0
      %3811 = vmatpush2.msra.mxu0 0.0
      %3812 = vmatprep.subr.mxu0 0.0
      %3813 = vmatpush2.msra.mxu0 0.0
      %3814 = vmatprep.subr.mxu0 0.0
      %3815 = vmatpush2.msra.mxu0 0.0
      %3816 = vmatprep.mubr.f32.mxu0 0.0
      %v3817 = vand.u32 %v3719, 4294901760
      %v3818 = vsub.f32 %v3719, %v3817
      %v3819 = vand.u32 %v3818, 4294901760
      %v3820 = vsub.f32 %v3818, %v3819
      %v3821 = vand.u32 %v3820, 4294901760
      %3822 = vmatmul.mubr.f32.gmra.mxu0 %v3821
      %v3823 = vpop.f32.mrf.mxu0
      %v3824 = vadd.f32 0.0, %v3823
      %v3825 = vpop.f32.mrf.mxu0
      %v3826 = vadd.f32 0.0, %v3825
      %3827 = vdwg.mxu0
      %v3828 = vand.u32 %v292, 4294901760
      %v3829 = vsub.f32 %v292, %v3828
      %v3830 = vand.u32 %v3829, 4294901760
      %v3831 = vsub.f32 %v3829, %v3830
      %v3832 = vand.u32 %v3831, 4294901760
      %3833 = vmatprep.subr.mxu0 %v3832
      %v3834 = vand.u32 %v291, 4294901760
      %v3835 = vsub.f32 %v291, %v3834
      %v3836 = vand.u32 %v3835, 4294901760
      %v3837 = vsub.f32 %v3835, %v3836
      %v3838 = vand.u32 %v3837, 4294901760
      %3839 = vmatpush1.msra.mxu0 %v3838
      %v3840 = vand.u32 %v288, 4294901760
      %v3841 = vsub.f32 %v288, %v3840
      %v3842 = vand.u32 %v3841, 4294901760
      %v3843 = vsub.f32 %v3841, %v3842
      %v3844 = vand.u32 %v3843, 4294901760
      %3845 = vmatprep.subr.mxu0 %v3844
      %v3846 = vand.u32 %v287, 4294901760
      %v3847 = vsub.f32 %v287, %v3846
      %v3848 = vand.u32 %v3847, 4294901760
      %v3849 = vsub.f32 %v3847, %v3848
      %v3850 = vand.u32 %v3849, 4294901760
      %3851 = vmatpush1.msra.mxu0 %v3850
      %v3852 = vand.u32 %v284, 4294901760
      %v3853 = vsub.f32 %v284, %v3852
      %v3854 = vand.u32 %v3853, 4294901760
      %v3855 = vsub.f32 %v3853, %v3854
      %v3856 = vand.u32 %v3855, 4294901760
      %3857 = vmatprep.subr.mxu0 %v3856
      %v3858 = vand.u32 %v283, 4294901760
      %v3859 = vsub.f32 %v283, %v3858
      %v3860 = vand.u32 %v3859, 4294901760
      %v3861 = vsub.f32 %v3859, %v3860
      %v3862 = vand.u32 %v3861, 4294901760
      %3863 = vmatpush1.msra.mxu0 %v3862
      %v3864 = vand.u32 %v280, 4294901760
      %v3865 = vsub.f32 %v280, %v3864
      %v3866 = vand.u32 %v3865, 4294901760
      %v3867 = vsub.f32 %v3865, %v3866
      %v3868 = vand.u32 %v3867, 4294901760
      %3869 = vmatprep.subr.mxu0 %v3868
      %v3870 = vand.u32 %v279, 4294901760
      %v3871 = vsub.f32 %v279, %v3870
      %v3872 = vand.u32 %v3871, 4294901760
      %v3873 = vsub.f32 %v3871, %v3872
      %v3874 = vand.u32 %v3873, 4294901760
      %3875 = vmatpush1.msra.mxu0 %v3874
      %v3876 = vand.u32 %v276, 4294901760
      %v3877 = vsub.f32 %v276, %v3876
      %v3878 = vand.u32 %v3877, 4294901760
      %v3879 = vsub.f32 %v3877, %v3878
      %v3880 = vand.u32 %v3879, 4294901760
      %3881 = vmatprep.subr.mxu0 %v3880
      %v3882 = vand.u32 %v275, 4294901760
      %v3883 = vsub.f32 %v275, %v3882
      %v3884 = vand.u32 %v3883, 4294901760
      %v3885 = vsub.f32 %v3883, %v3884
      %v3886 = vand.u32 %v3885, 4294901760
      %3887 = vmatpush1.msra.mxu0 %v3886
      %v3888 = vand.u32 %v272, 4294901760
      %v3889 = vsub.f32 %v272, %v3888
      %v3890 = vand.u32 %v3889, 4294901760
      %v3891 = vsub.f32 %v3889, %v3890
      %v3892 = vand.u32 %v3891, 4294901760
      %3893 = vmatprep.subr.mxu0 %v3892
      %v3894 = vand.u32 %v271, 4294901760
      %v3895 = vsub.f32 %v271, %v3894
      %v3896 = vand.u32 %v3895, 4294901760
      %v3897 = vsub.f32 %v3895, %v3896
      %v3898 = vand.u32 %v3897, 4294901760
      %3899 = vmatpush1.msra.mxu0 %v3898
      %v3900 = vand.u32 %v268, 4294901760
      %v3901 = vsub.f32 %v268, %v3900
      %v3902 = vand.u32 %v3901, 4294901760
      %v3903 = vsub.f32 %v3901, %v3902
      %v3904 = vand.u32 %v3903, 4294901760
      %3905 = vmatprep.subr.mxu0 %v3904
      %v3906 = vand.u32 %v267, 4294901760
      %v3907 = vsub.f32 %v267, %v3906
      %v3908 = vand.u32 %v3907, 4294901760
      %v3909 = vsub.f32 %v3907, %v3908
      %v3910 = vand.u32 %v3909, 4294901760
      %3911 = vmatpush1.msra.mxu0 %v3910
      %v3912 = vand.u32 %v264, 4294901760
      %v3913 = vsub.f32 %v264, %v3912
      %v3914 = vand.u32 %v3913, 4294901760
      %v3915 = vsub.f32 %v3913, %v3914
      %v3916 = vand.u32 %v3915, 4294901760
      %3917 = vmatprep.subr.mxu0 %v3916
      %v3918 = vand.u32 %v263, 4294901760
      %v3919 = vsub.f32 %v263, %v3918
      %v3920 = vand.u32 %v3919, 4294901760
      %v3921 = vsub.f32 %v3919, %v3920
      %v3922 = vand.u32 %v3921, 4294901760
      %3923 = vmatpush1.msra.mxu0 %v3922
      %v3924 = vand.u32 %v260, 4294901760
      %v3925 = vsub.f32 %v260, %v3924
      %v3926 = vand.u32 %v3925, 4294901760
      %v3927 = vsub.f32 %v3925, %v3926
      %v3928 = vand.u32 %v3927, 4294901760
      %3929 = vmatprep.subr.mxu0 %v3928
      %v3930 = vand.u32 %v259, 4294901760
      %v3931 = vsub.f32 %v259, %v3930
      %v3932 = vand.u32 %v3931, 4294901760
      %v3933 = vsub.f32 %v3931, %v3932
      %v3934 = vand.u32 %v3933, 4294901760
      %3935 = vmatpush1.msra.mxu0 %v3934
      %v3936 = vand.u32 %v256, 4294901760
      %v3937 = vsub.f32 %v256, %v3936
      %v3938 = vand.u32 %v3937, 4294901760
      %v3939 = vsub.f32 %v3937, %v3938
      %v3940 = vand.u32 %v3939, 4294901760
      %3941 = vmatprep.subr.mxu0 %v3940
      %v3942 = vand.u32 %v255, 4294901760
      %v3943 = vsub.f32 %v255, %v3942
      %v3944 = vand.u32 %v3943, 4294901760
      %v3945 = vsub.f32 %v3943, %v3944
      %v3946 = vand.u32 %v3945, 4294901760
      %3947 = vmatpush1.msra.mxu0 %v3946
      %v3948 = vand.u32 %v252, 4294901760
      %v3949 = vsub.f32 %v252, %v3948
      %v3950 = vand.u32 %v3949, 4294901760
      %v3951 = vsub.f32 %v3949, %v3950
      %v3952 = vand.u32 %v3951, 4294901760
      %3953 = vmatprep.subr.mxu0 %v3952
      %v3954 = vand.u32 %v251, 4294901760
      %v3955 = vsub.f32 %v251, %v3954
      %v3956 = vand.u32 %v3955, 4294901760
      %v3957 = vsub.f32 %v3955, %v3956
      %v3958 = vand.u32 %v3957, 4294901760
      %3959 = vmatpush1.msra.mxu0 %v3958
      %v3960 = vand.u32 %v248, 4294901760
      %v3961 = vsub.f32 %v248, %v3960
      %v3962 = vand.u32 %v3961, 4294901760
      %v3963 = vsub.f32 %v3961, %v3962
      %v3964 = vand.u32 %v3963, 4294901760
      %3965 = vmatprep.subr.mxu0 %v3964
      %v3966 = vand.u32 %v247, 4294901760
      %v3967 = vsub.f32 %v247, %v3966
      %v3968 = vand.u32 %v3967, 4294901760
      %v3969 = vsub.f32 %v3967, %v3968
      %v3970 = vand.u32 %v3969, 4294901760
      %3971 = vmatpush1.msra.mxu0 %v3970
      %v3972 = vand.u32 %v244, 4294901760
      %v3973 = vsub.f32 %v244, %v3972
      %v3974 = vand.u32 %v3973, 4294901760
      %v3975 = vsub.f32 %v3973, %v3974
      %v3976 = vand.u32 %v3975, 4294901760
      %3977 = vmatprep.subr.mxu0 %v3976
      %v3978 = vand.u32 %v243, 4294901760
      %v3979 = vsub.f32 %v243, %v3978
      %v3980 = vand.u32 %v3979, 4294901760
      %v3981 = vsub.f32 %v3979, %v3980
      %v3982 = vand.u32 %v3981, 4294901760
      %3983 = vmatpush1.msra.mxu0 %v3982
      %v3984 = vand.u32 %v240, 4294901760
      %v3985 = vsub.f32 %v240, %v3984
      %v3986 = vand.u32 %v3985, 4294901760
      %v3987 = vsub.f32 %v3985, %v3986
      %v3988 = vand.u32 %v3987, 4294901760
      %3989 = vmatprep.subr.mxu0 %v3988
      %v3990 = vand.u32 %v239, 4294901760
      %v3991 = vsub.f32 %v239, %v3990
      %v3992 = vand.u32 %v3991, 4294901760
      %v3993 = vsub.f32 %v3991, %v3992
      %v3994 = vand.u32 %v3993, 4294901760
      %3995 = vmatpush1.msra.mxu0 %v3994
      %v3996 = vand.u32 %v236, 4294901760
      %v3997 = vsub.f32 %v236, %v3996
      %v3998 = vand.u32 %v3997, 4294901760
      %v3999 = vsub.f32 %v3997, %v3998
      %v4000 = vand.u32 %v3999, 4294901760
      %4001 = vmatprep.subr.mxu0 %v4000
      %v4002 = vand.u32 %v235, 4294901760
      %v4003 = vsub.f32 %v235, %v4002
      %v4004 = vand.u32 %v4003, 4294901760
      %v4005 = vsub.f32 %v4003, %v4004
      %v4006 = vand.u32 %v4005, 4294901760
      %4007 = vmatpush1.msra.mxu0 %v4006
      %v4008 = vand.u32 %v232, 4294901760
      %v4009 = vsub.f32 %v232, %v4008
      %v4010 = vand.u32 %v4009, 4294901760
      %v4011 = vsub.f32 %v4009, %v4010
      %v4012 = vand.u32 %v4011, 4294901760
      %4013 = vmatprep.subr.mxu0 %v4012
      %v4014 = vand.u32 %v231, 4294901760
      %v4015 = vsub.f32 %v231, %v4014
      %v4016 = vand.u32 %v4015, 4294901760
      %v4017 = vsub.f32 %v4015, %v4016
      %v4018 = vand.u32 %v4017, 4294901760
      %4019 = vmatpush1.msra.mxu0 %v4018
      %4020 = vmatprep.subr.mxu0 0.0
      %4021 = vmatpush2.msra.mxu0 0.0
      %4022 = vmatprep.subr.mxu0 0.0
      %4023 = vmatpush2.msra.mxu0 0.0
      %4024 = vmatprep.subr.mxu0 0.0
      %4025 = vmatpush2.msra.mxu0 0.0
      %4026 = vmatprep.subr.mxu0 0.0
      %4027 = vmatpush2.msra.mxu0 0.0
      %4028 = vmatprep.subr.mxu0 0.0
      %4029 = vmatpush2.msra.mxu0 0.0
      %4030 = vmatprep.subr.mxu0 0.0
      %4031 = vmatpush2.msra.mxu0 0.0
      %4032 = vmatprep.subr.mxu0 0.0
      %4033 = vmatpush2.msra.mxu0 0.0
      %4034 = vmatprep.subr.mxu0 0.0
      %4035 = vmatpush2.msra.mxu0 0.0
      %4036 = vmatprep.subr.mxu0 0.0
      %4037 = vmatpush2.msra.mxu0 0.0
      %4038 = vmatprep.subr.mxu0 0.0
      %4039 = vmatpush2.msra.mxu0 0.0
      %4040 = vmatprep.subr.mxu0 0.0
      %4041 = vmatpush2.msra.mxu0 0.0
      %4042 = vmatprep.subr.mxu0 0.0
      %4043 = vmatpush2.msra.mxu0 0.0
      %4044 = vmatprep.subr.mxu0 0.0
      %4045 = vmatpush2.msra.mxu0 0.0
      %4046 = vmatprep.subr.mxu0 0.0
      %4047 = vmatpush2.msra.mxu0 0.0
      %4048 = vmatprep.subr.mxu0 0.0
      %4049 = vmatpush2.msra.mxu0 0.0
      %4050 = vmatprep.subr.mxu0 0.0
      %4051 = vmatpush2.msra.mxu0 0.0
      %4052 = vmatprep.mubr.f32.mxu0 0.0
      %v4053 = vand.u32 %v3719, 4294901760
      %4054 = vmatmul.mubr.f32.gmra.mxu0 %v4053
      %v4055 = vpop.f32.mrf.mxu0
      %v4056 = vadd.f32 %v3824, %v4055
      %v4057 = vpop.f32.mrf.mxu0
      %v4058 = vadd.f32 %v3826, %v4057
      %4059 = vdwg.mxu0
      %v4060 = vand.u32 %v292, 4294901760
      %v4061 = vsub.f32 %v292, %v4060
      %4062 = vmatprep.subr.mxu0 %v4061
      %v4063 = vand.u32 %v291, 4294901760
      %v4064 = vsub.f32 %v291, %v4063
      %4065 = vmatpush1.msra.mxu0 %v4064
      %v4066 = vand.u32 %v288, 4294901760
      %v4067 = vsub.f32 %v288, %v4066
      %4068 = vmatprep.subr.mxu0 %v4067
      %v4069 = vand.u32 %v287, 4294901760
      %v4070 = vsub.f32 %v287, %v4069
      %4071 = vmatpush1.msra.mxu0 %v4070
      %v4072 = vand.u32 %v284, 4294901760
      %v4073 = vsub.f32 %v284, %v4072
      %4074 = vmatprep.subr.mxu0 %v4073
      %v4075 = vand.u32 %v283, 4294901760
      %v4076 = vsub.f32 %v283, %v4075
      %4077 = vmatpush1.msra.mxu0 %v4076
      %v4078 = vand.u32 %v280, 4294901760
      %v4079 = vsub.f32 %v280, %v4078
      %4080 = vmatprep.subr.mxu0 %v4079
      %v4081 = vand.u32 %v279, 4294901760
      %v4082 = vsub.f32 %v279, %v4081
      %4083 = vmatpush1.msra.mxu0 %v4082
      %v4084 = vand.u32 %v276, 4294901760
      %v4085 = vsub.f32 %v276, %v4084
      %4086 = vmatprep.subr.mxu0 %v4085
      %v4087 = vand.u32 %v275, 4294901760
      %v4088 = vsub.f32 %v275, %v4087
      %4089 = vmatpush1.msra.mxu0 %v4088
      %v4090 = vand.u32 %v272, 4294901760
      %v4091 = vsub.f32 %v272, %v4090
      %4092 = vmatprep.subr.mxu0 %v4091
      %v4093 = vand.u32 %v271, 4294901760
      %v4094 = vsub.f32 %v271, %v4093
      %4095 = vmatpush1.msra.mxu0 %v4094
      %v4096 = vand.u32 %v268, 4294901760
      %v4097 = vsub.f32 %v268, %v4096
      %4098 = vmatprep.subr.mxu0 %v4097
      %v4099 = vand.u32 %v267, 4294901760
      %v4100 = vsub.f32 %v267, %v4099
      %4101 = vmatpush1.msra.mxu0 %v4100
      %v4102 = vand.u32 %v264, 4294901760
      %v4103 = vsub.f32 %v264, %v4102
      %4104 = vmatprep.subr.mxu0 %v4103
      %v4105 = vand.u32 %v263, 4294901760
      %v4106 = vsub.f32 %v263, %v4105
      %4107 = vmatpush1.msra.mxu0 %v4106
      %v4108 = vand.u32 %v260, 4294901760
      %v4109 = vsub.f32 %v260, %v4108
      %4110 = vmatprep.subr.mxu0 %v4109
      %v4111 = vand.u32 %v259, 4294901760
      %v4112 = vsub.f32 %v259, %v4111
      %4113 = vmatpush1.msra.mxu0 %v4112
      %v4114 = vand.u32 %v256, 4294901760
      %v4115 = vsub.f32 %v256, %v4114
      %4116 = vmatprep.subr.mxu0 %v4115
      %v4117 = vand.u32 %v255, 4294901760
      %v4118 = vsub.f32 %v255, %v4117
      %4119 = vmatpush1.msra.mxu0 %v4118
      %v4120 = vand.u32 %v252, 4294901760
      %v4121 = vsub.f32 %v252, %v4120
      %4122 = vmatprep.subr.mxu0 %v4121
      %v4123 = vand.u32 %v251, 4294901760
      %v4124 = vsub.f32 %v251, %v4123
      %4125 = vmatpush1.msra.mxu0 %v4124
      %v4126 = vand.u32 %v248, 4294901760
      %v4127 = vsub.f32 %v248, %v4126
      %4128 = vmatprep.subr.mxu0 %v4127
      %v4129 = vand.u32 %v247, 4294901760
      %v4130 = vsub.f32 %v247, %v4129
      %4131 = vmatpush1.msra.mxu0 %v4130
      %v4132 = vand.u32 %v244, 4294901760
      %v4133 = vsub.f32 %v244, %v4132
      %4134 = vmatprep.subr.mxu0 %v4133
      %v4135 = vand.u32 %v243, 4294901760
      %v4136 = vsub.f32 %v243, %v4135
      %4137 = vmatpush1.msra.mxu0 %v4136
      %v4138 = vand.u32 %v240, 4294901760
      %v4139 = vsub.f32 %v240, %v4138
      %4140 = vmatprep.subr.mxu0 %v4139
      %v4141 = vand.u32 %v239, 4294901760
      %v4142 = vsub.f32 %v239, %v4141
      %4143 = vmatpush1.msra.mxu0 %v4142
      %v4144 = vand.u32 %v236, 4294901760
      %v4145 = vsub.f32 %v236, %v4144
      %4146 = vmatprep.subr.mxu0 %v4145
      %v4147 = vand.u32 %v235, 4294901760
      %v4148 = vsub.f32 %v235, %v4147
      %4149 = vmatpush1.msra.mxu0 %v4148
      %v4150 = vand.u32 %v232, 4294901760
      %v4151 = vsub.f32 %v232, %v4150
      %4152 = vmatprep.subr.mxu0 %v4151
      %v4153 = vand.u32 %v231, 4294901760
      %v4154 = vsub.f32 %v231, %v4153
      %4155 = vmatpush1.msra.mxu0 %v4154
      %4156 = vmatprep.subr.mxu0 0.0
      %4157 = vmatpush2.msra.mxu0 0.0
      %4158 = vmatprep.subr.mxu0 0.0
      %4159 = vmatpush2.msra.mxu0 0.0
      %4160 = vmatprep.subr.mxu0 0.0
      %4161 = vmatpush2.msra.mxu0 0.0
      %4162 = vmatprep.subr.mxu0 0.0
      %4163 = vmatpush2.msra.mxu0 0.0
      %4164 = vmatprep.subr.mxu0 0.0
      %4165 = vmatpush2.msra.mxu0 0.0
      %4166 = vmatprep.subr.mxu0 0.0
      %4167 = vmatpush2.msra.mxu0 0.0
      %4168 = vmatprep.subr.mxu0 0.0
      %4169 = vmatpush2.msra.mxu0 0.0
      %4170 = vmatprep.subr.mxu0 0.0
      %4171 = vmatpush2.msra.mxu0 0.0
      %4172 = vmatprep.subr.mxu0 0.0
      %4173 = vmatpush2.msra.mxu0 0.0
      %4174 = vmatprep.subr.mxu0 0.0
      %4175 = vmatpush2.msra.mxu0 0.0
      %4176 = vmatprep.subr.mxu0 0.0
      %4177 = vmatpush2.msra.mxu0 0.0
      %4178 = vmatprep.subr.mxu0 0.0
      %4179 = vmatpush2.msra.mxu0 0.0
      %4180 = vmatprep.subr.mxu0 0.0
      %4181 = vmatpush2.msra.mxu0 0.0
      %4182 = vmatprep.subr.mxu0 0.0
      %4183 = vmatpush2.msra.mxu0 0.0
      %4184 = vmatprep.subr.mxu0 0.0
      %4185 = vmatpush2.msra.mxu0 0.0
      %4186 = vmatprep.subr.mxu0 0.0
      %4187 = vmatpush2.msra.mxu0 0.0
      %4188 = vmatprep.mubr.f32.mxu0 0.0
      %v4189 = vand.u32 %v3719, 4294901760
      %v4190 = vsub.f32 %v3719, %v4189
      %4191 = vmatmul.mubr.f32.gmra.mxu0 %v4190
      %v4192 = vpop.f32.mrf.mxu0
      %v4193 = vadd.f32 %v4056, %v4192
      %v4194 = vpop.f32.mrf.mxu0
      %v4195 = vadd.f32 %v4058, %v4194
      %4196 = vdwg.mxu0
      %v4197 = vand.u32 %v292, 4294901760
      %4198 = vmatprep.subr.mxu0 %v4197
      %v4199 = vand.u32 %v291, 4294901760
      %4200 = vmatpush1.msra.mxu0 %v4199
      %v4201 = vand.u32 %v288, 4294901760
      %4202 = vmatprep.subr.mxu0 %v4201
      %v4203 = vand.u32 %v287, 4294901760
      %4204 = vmatpush1.msra.mxu0 %v4203
      %v4205 = vand.u32 %v284, 4294901760
      %4206 = vmatprep.subr.mxu0 %v4205
      %v4207 = vand.u32 %v283, 4294901760
      %4208 = vmatpush1.msra.mxu0 %v4207
      %v4209 = vand.u32 %v280, 4294901760
      %4210 = vmatprep.subr.mxu0 %v4209
      %v4211 = vand.u32 %v279, 4294901760
      %4212 = vmatpush1.msra.mxu0 %v4211
      %v4213 = vand.u32 %v276, 4294901760
      %4214 = vmatprep.subr.mxu0 %v4213
      %v4215 = vand.u32 %v275, 4294901760
      %4216 = vmatpush1.msra.mxu0 %v4215
      %v4217 = vand.u32 %v272, 4294901760
      %4218 = vmatprep.subr.mxu0 %v4217
      %v4219 = vand.u32 %v271, 4294901760
      %4220 = vmatpush1.msra.mxu0 %v4219
      %v4221 = vand.u32 %v268, 4294901760
      %4222 = vmatprep.subr.mxu0 %v4221
      %v4223 = vand.u32 %v267, 4294901760
      %4224 = vmatpush1.msra.mxu0 %v4223
      %v4225 = vand.u32 %v264, 4294901760
      %4226 = vmatprep.subr.mxu0 %v4225
      %v4227 = vand.u32 %v263, 4294901760
      %4228 = vmatpush1.msra.mxu0 %v4227
      %v4229 = vand.u32 %v260, 4294901760
      %4230 = vmatprep.subr.mxu0 %v4229
      %v4231 = vand.u32 %v259, 4294901760
      %4232 = vmatpush1.msra.mxu0 %v4231
      %v4233 = vand.u32 %v256, 4294901760
      %4234 = vmatprep.subr.mxu0 %v4233
      %v4235 = vand.u32 %v255, 4294901760
      %4236 = vmatpush1.msra.mxu0 %v4235
      %v4237 = vand.u32 %v252, 4294901760
      %4238 = vmatprep.subr.mxu0 %v4237
      %v4239 = vand.u32 %v251, 4294901760
      %4240 = vmatpush1.msra.mxu0 %v4239
      %v4241 = vand.u32 %v248, 4294901760
      %4242 = vmatprep.subr.mxu0 %v4241
      %v4243 = vand.u32 %v247, 4294901760
      %4244 = vmatpush1.msra.mxu0 %v4243
      %v4245 = vand.u32 %v244, 4294901760
      %4246 = vmatprep.subr.mxu0 %v4245
      %v4247 = vand.u32 %v243, 4294901760
      %4248 = vmatpush1.msra.mxu0 %v4247
      %v4249 = vand.u32 %v240, 4294901760
      %4250 = vmatprep.subr.mxu0 %v4249
      %v4251 = vand.u32 %v239, 4294901760
      %4252 = vmatpush1.msra.mxu0 %v4251
      %v4253 = vand.u32 %v236, 4294901760
      %4254 = vmatprep.subr.mxu0 %v4253
      %v4255 = vand.u32 %v235, 4294901760
      %4256 = vmatpush1.msra.mxu0 %v4255
      %v4257 = vand.u32 %v232, 4294901760
      %4258 = vmatprep.subr.mxu0 %v4257
      %v4259 = vand.u32 %v231, 4294901760
      %4260 = vmatpush1.msra.mxu0 %v4259
      %4261 = vmatprep.subr.mxu0 0.0
      %4262 = vmatpush2.msra.mxu0 0.0
      %4263 = vmatprep.subr.mxu0 0.0
      %4264 = vmatpush2.msra.mxu0 0.0
      %4265 = vmatprep.subr.mxu0 0.0
      %4266 = vmatpush2.msra.mxu0 0.0
      %4267 = vmatprep.subr.mxu0 0.0
      %4268 = vmatpush2.msra.mxu0 0.0
      %4269 = vmatprep.subr.mxu0 0.0
      %4270 = vmatpush2.msra.mxu0 0.0
      %4271 = vmatprep.subr.mxu0 0.0
      %4272 = vmatpush2.msra.mxu0 0.0
      %4273 = vmatprep.subr.mxu0 0.0
      %4274 = vmatpush2.msra.mxu0 0.0
      %4275 = vmatprep.subr.mxu0 0.0
      %4276 = vmatpush2.msra.mxu0 0.0
      %4277 = vmatprep.subr.mxu0 0.0
      %4278 = vmatpush2.msra.mxu0 0.0
      %4279 = vmatprep.subr.mxu0 0.0
      %4280 = vmatpush2.msra.mxu0 0.0
      %4281 = vmatprep.subr.mxu0 0.0
      %4282 = vmatpush2.msra.mxu0 0.0
      %4283 = vmatprep.subr.mxu0 0.0
      %4284 = vmatpush2.msra.mxu0 0.0
      %4285 = vmatprep.subr.mxu0 0.0
      %4286 = vmatpush2.msra.mxu0 0.0
      %4287 = vmatprep.subr.mxu0 0.0
      %4288 = vmatpush2.msra.mxu0 0.0
      %4289 = vmatprep.subr.mxu0 0.0
      %4290 = vmatpush2.msra.mxu0 0.0
      %4291 = vmatprep.subr.mxu0 0.0
      %4292 = vmatpush2.msra.mxu0 0.0
      %4293 = vmatprep.mubr.f32.mxu0 0.0
      %v4294 = vand.u32 %v3719, 4294901760
      %v4295 = vsub.f32 %v3719, %v4294
      %v4296 = vand.u32 %v4295, 4294901760
      %4297 = vmatmul.mubr.f32.gmra.mxu0 %v4296
      %v4298 = vpop.f32.mrf.mxu0
      %v4299 = vadd.f32 %v4193, %v4298
      %v4300 = vpop.f32.mrf.mxu0
      %v4301 = vadd.f32 %v4195, %v4300
      %4302 = vdwg.mxu0
      %v4303 = vand.u32 %v292, 4294901760
      %v4304 = vsub.f32 %v292, %v4303
      %v4305 = vand.u32 %v4304, 4294901760
      %4306 = vmatprep.subr.mxu0 %v4305
      %v4307 = vand.u32 %v291, 4294901760
      %v4308 = vsub.f32 %v291, %v4307
      %v4309 = vand.u32 %v4308, 4294901760
      %4310 = vmatpush1.msra.mxu0 %v4309
      %v4311 = vand.u32 %v288, 4294901760
      %v4312 = vsub.f32 %v288, %v4311
      %v4313 = vand.u32 %v4312, 4294901760
      %4314 = vmatprep.subr.mxu0 %v4313
      %v4315 = vand.u32 %v287, 4294901760
      %v4316 = vsub.f32 %v287, %v4315
      %v4317 = vand.u32 %v4316, 4294901760
      %4318 = vmatpush1.msra.mxu0 %v4317
      %v4319 = vand.u32 %v284, 4294901760
      %v4320 = vsub.f32 %v284, %v4319
      %v4321 = vand.u32 %v4320, 4294901760
      %4322 = vmatprep.subr.mxu0 %v4321
      %v4323 = vand.u32 %v283, 4294901760
      %v4324 = vsub.f32 %v283, %v4323
      %v4325 = vand.u32 %v4324, 4294901760
      %4326 = vmatpush1.msra.mxu0 %v4325
      %v4327 = vand.u32 %v280, 4294901760
      %v4328 = vsub.f32 %v280, %v4327
      %v4329 = vand.u32 %v4328, 4294901760
      %4330 = vmatprep.subr.mxu0 %v4329
      %v4331 = vand.u32 %v279, 4294901760
      %v4332 = vsub.f32 %v279, %v4331
      %v4333 = vand.u32 %v4332, 4294901760
      %4334 = vmatpush1.msra.mxu0 %v4333
      %v4335 = vand.u32 %v276, 4294901760
      %v4336 = vsub.f32 %v276, %v4335
      %v4337 = vand.u32 %v4336, 4294901760
      %4338 = vmatprep.subr.mxu0 %v4337
      %v4339 = vand.u32 %v275, 4294901760
      %v4340 = vsub.f32 %v275, %v4339
      %v4341 = vand.u32 %v4340, 4294901760
      %4342 = vmatpush1.msra.mxu0 %v4341
      %v4343 = vand.u32 %v272, 4294901760
      %v4344 = vsub.f32 %v272, %v4343
      %v4345 = vand.u32 %v4344, 4294901760
      %4346 = vmatprep.subr.mxu0 %v4345
      %v4347 = vand.u32 %v271, 4294901760
      %v4348 = vsub.f32 %v271, %v4347
      %v4349 = vand.u32 %v4348, 4294901760
      %4350 = vmatpush1.msra.mxu0 %v4349
      %v4351 = vand.u32 %v268, 4294901760
      %v4352 = vsub.f32 %v268, %v4351
      %v4353 = vand.u32 %v4352, 4294901760
      %4354 = vmatprep.subr.mxu0 %v4353
      %v4355 = vand.u32 %v267, 4294901760
      %v4356 = vsub.f32 %v267, %v4355
      %v4357 = vand.u32 %v4356, 4294901760
      %4358 = vmatpush1.msra.mxu0 %v4357
      %v4359 = vand.u32 %v264, 4294901760
      %v4360 = vsub.f32 %v264, %v4359
      %v4361 = vand.u32 %v4360, 4294901760
      %4362 = vmatprep.subr.mxu0 %v4361
      %v4363 = vand.u32 %v263, 4294901760
      %v4364 = vsub.f32 %v263, %v4363
      %v4365 = vand.u32 %v4364, 4294901760
      %4366 = vmatpush1.msra.mxu0 %v4365
      %v4367 = vand.u32 %v260, 4294901760
      %v4368 = vsub.f32 %v260, %v4367
      %v4369 = vand.u32 %v4368, 4294901760
      %4370 = vmatprep.subr.mxu0 %v4369
      %v4371 = vand.u32 %v259, 4294901760
      %v4372 = vsub.f32 %v259, %v4371
      %v4373 = vand.u32 %v4372, 4294901760
      %4374 = vmatpush1.msra.mxu0 %v4373
      %v4375 = vand.u32 %v256, 4294901760
      %v4376 = vsub.f32 %v256, %v4375
      %v4377 = vand.u32 %v4376, 4294901760
      %4378 = vmatprep.subr.mxu0 %v4377
      %v4379 = vand.u32 %v255, 4294901760
      %v4380 = vsub.f32 %v255, %v4379
      %v4381 = vand.u32 %v4380, 4294901760
      %4382 = vmatpush1.msra.mxu0 %v4381
      %v4383 = vand.u32 %v252, 4294901760
      %v4384 = vsub.f32 %v252, %v4383
      %v4385 = vand.u32 %v4384, 4294901760
      %4386 = vmatprep.subr.mxu0 %v4385
      %v4387 = vand.u32 %v251, 4294901760
      %v4388 = vsub.f32 %v251, %v4387
      %v4389 = vand.u32 %v4388, 4294901760
      %4390 = vmatpush1.msra.mxu0 %v4389
      %v4391 = vand.u32 %v248, 4294901760
      %v4392 = vsub.f32 %v248, %v4391
      %v4393 = vand.u32 %v4392, 4294901760
      %4394 = vmatprep.subr.mxu0 %v4393
      %v4395 = vand.u32 %v247, 4294901760
      %v4396 = vsub.f32 %v247, %v4395
      %v4397 = vand.u32 %v4396, 4294901760
      %4398 = vmatpush1.msra.mxu0 %v4397
      %v4399 = vand.u32 %v244, 4294901760
      %v4400 = vsub.f32 %v244, %v4399
      %v4401 = vand.u32 %v4400, 4294901760
      %4402 = vmatprep.subr.mxu0 %v4401
      %v4403 = vand.u32 %v243, 4294901760
      %v4404 = vsub.f32 %v243, %v4403
      %v4405 = vand.u32 %v4404, 4294901760
      %4406 = vmatpush1.msra.mxu0 %v4405
      %v4407 = vand.u32 %v240, 4294901760
      %v4408 = vsub.f32 %v240, %v4407
      %v4409 = vand.u32 %v4408, 4294901760
      %4410 = vmatprep.subr.mxu0 %v4409
      %v4411 = vand.u32 %v239, 4294901760
      %v4412 = vsub.f32 %v239, %v4411
      %v4413 = vand.u32 %v4412, 4294901760
      %4414 = vmatpush1.msra.mxu0 %v4413
      %v4415 = vand.u32 %v236, 4294901760
      %v4416 = vsub.f32 %v236, %v4415
      %v4417 = vand.u32 %v4416, 4294901760
      %4418 = vmatprep.subr.mxu0 %v4417
      %v4419 = vand.u32 %v235, 4294901760
      %v4420 = vsub.f32 %v235, %v4419
      %v4421 = vand.u32 %v4420, 4294901760
      %4422 = vmatpush1.msra.mxu0 %v4421
      %v4423 = vand.u32 %v232, 4294901760
      %v4424 = vsub.f32 %v232, %v4423
      %v4425 = vand.u32 %v4424, 4294901760
      %4426 = vmatprep.subr.mxu0 %v4425
      %v4427 = vand.u32 %v231, 4294901760
      %v4428 = vsub.f32 %v231, %v4427
      %v4429 = vand.u32 %v4428, 4294901760
      %4430 = vmatpush1.msra.mxu0 %v4429
      %4431 = vmatprep.subr.mxu0 0.0
      %4432 = vmatpush2.msra.mxu0 0.0
      %4433 = vmatprep.subr.mxu0 0.0
      %4434 = vmatpush2.msra.mxu0 0.0
      %4435 = vmatprep.subr.mxu0 0.0
      %4436 = vmatpush2.msra.mxu0 0.0
      %4437 = vmatprep.subr.mxu0 0.0
      %4438 = vmatpush2.msra.mxu0 0.0
      %4439 = vmatprep.subr.mxu0 0.0
      %4440 = vmatpush2.msra.mxu0 0.0
      %4441 = vmatprep.subr.mxu0 0.0
      %4442 = vmatpush2.msra.mxu0 0.0
      %4443 = vmatprep.subr.mxu0 0.0
      %4444 = vmatpush2.msra.mxu0 0.0
      %4445 = vmatprep.subr.mxu0 0.0
      %4446 = vmatpush2.msra.mxu0 0.0
      %4447 = vmatprep.subr.mxu0 0.0
      %4448 = vmatpush2.msra.mxu0 0.0
      %4449 = vmatprep.subr.mxu0 0.0
      %4450 = vmatpush2.msra.mxu0 0.0
      %4451 = vmatprep.subr.mxu0 0.0
      %4452 = vmatpush2.msra.mxu0 0.0
      %4453 = vmatprep.subr.mxu0 0.0
      %4454 = vmatpush2.msra.mxu0 0.0
      %4455 = vmatprep.subr.mxu0 0.0
      %4456 = vmatpush2.msra.mxu0 0.0
      %4457 = vmatprep.subr.mxu0 0.0
      %4458 = vmatpush2.msra.mxu0 0.0
      %4459 = vmatprep.subr.mxu0 0.0
      %4460 = vmatpush2.msra.mxu0 0.0
      %4461 = vmatprep.subr.mxu0 0.0
      %4462 = vmatpush2.msra.mxu0 0.0
      %4463 = vmatprep.mubr.f32.mxu0 0.0
      %v4464 = vand.u32 %v3719, 4294901760
      %4465 = vmatmul.mubr.f32.gmra.mxu0 %v4464
      %v4466 = vpop.f32.mrf.mxu0
      %v4467 = vadd.f32 %v4299, %v4466
      %v4468 = vpop.f32.mrf.mxu0
      %v4469 = vadd.f32 %v4301, %v4468
      %4470 = vdwg.mxu0
      %v4471 = vand.u32 %v292, 4294901760
      %4472 = vmatprep.subr.mxu0 %v4471
      %v4473 = vand.u32 %v291, 4294901760
      %4474 = vmatpush1.msra.mxu0 %v4473
      %v4475 = vand.u32 %v288, 4294901760
      %4476 = vmatprep.subr.mxu0 %v4475
      %v4477 = vand.u32 %v287, 4294901760
      %4478 = vmatpush1.msra.mxu0 %v4477
      %v4479 = vand.u32 %v284, 4294901760
      %4480 = vmatprep.subr.mxu0 %v4479
      %v4481 = vand.u32 %v283, 4294901760
      %4482 = vmatpush1.msra.mxu0 %v4481
      %v4483 = vand.u32 %v280, 4294901760
      %4484 = vmatprep.subr.mxu0 %v4483
      %v4485 = vand.u32 %v279, 4294901760
      %4486 = vmatpush1.msra.mxu0 %v4485
      %v4487 = vand.u32 %v276, 4294901760
      %4488 = vmatprep.subr.mxu0 %v4487
      %v4489 = vand.u32 %v275, 4294901760
      %4490 = vmatpush1.msra.mxu0 %v4489
      %v4491 = vand.u32 %v272, 4294901760
      %4492 = vmatprep.subr.mxu0 %v4491
      %v4493 = vand.u32 %v271, 4294901760
      %4494 = vmatpush1.msra.mxu0 %v4493
      %v4495 = vand.u32 %v268, 4294901760
      %4496 = vmatprep.subr.mxu0 %v4495
      %v4497 = vand.u32 %v267, 4294901760
      %4498 = vmatpush1.msra.mxu0 %v4497
      %v4499 = vand.u32 %v264, 4294901760
      %4500 = vmatprep.subr.mxu0 %v4499
      %v4501 = vand.u32 %v263, 4294901760
      %4502 = vmatpush1.msra.mxu0 %v4501
      %v4503 = vand.u32 %v260, 4294901760
      %4504 = vmatprep.subr.mxu0 %v4503
      %v4505 = vand.u32 %v259, 4294901760
      %4506 = vmatpush1.msra.mxu0 %v4505
      %v4507 = vand.u32 %v256, 4294901760
      %4508 = vmatprep.subr.mxu0 %v4507
      %v4509 = vand.u32 %v255, 4294901760
      %4510 = vmatpush1.msra.mxu0 %v4509
      %v4511 = vand.u32 %v252, 4294901760
      %4512 = vmatprep.subr.mxu0 %v4511
      %v4513 = vand.u32 %v251, 4294901760
      %4514 = vmatpush1.msra.mxu0 %v4513
      %v4515 = vand.u32 %v248, 4294901760
      %4516 = vmatprep.subr.mxu0 %v4515
      %v4517 = vand.u32 %v247, 4294901760
      %4518 = vmatpush1.msra.mxu0 %v4517
      %v4519 = vand.u32 %v244, 4294901760
      %4520 = vmatprep.subr.mxu0 %v4519
      %v4521 = vand.u32 %v243, 4294901760
      %4522 = vmatpush1.msra.mxu0 %v4521
      %v4523 = vand.u32 %v240, 4294901760
      %4524 = vmatprep.subr.mxu0 %v4523
      %v4525 = vand.u32 %v239, 4294901760
      %4526 = vmatpush1.msra.mxu0 %v4525
      %v4527 = vand.u32 %v236, 4294901760
      %4528 = vmatprep.subr.mxu0 %v4527
      %v4529 = vand.u32 %v235, 4294901760
      %4530 = vmatpush1.msra.mxu0 %v4529
      %v4531 = vand.u32 %v232, 4294901760
      %4532 = vmatprep.subr.mxu0 %v4531
      %v4533 = vand.u32 %v231, 4294901760
      %4534 = vmatpush1.msra.mxu0 %v4533
      %4535 = vmatprep.subr.mxu0 0.0
      %4536 = vmatpush2.msra.mxu0 0.0
      %4537 = vmatprep.subr.mxu0 0.0
      %4538 = vmatpush2.msra.mxu0 0.0
      %4539 = vmatprep.subr.mxu0 0.0
      %4540 = vmatpush2.msra.mxu0 0.0
      %4541 = vmatprep.subr.mxu0 0.0
      %4542 = vmatpush2.msra.mxu0 0.0
      %4543 = vmatprep.subr.mxu0 0.0
      %4544 = vmatpush2.msra.mxu0 0.0
      %4545 = vmatprep.subr.mxu0 0.0
      %4546 = vmatpush2.msra.mxu0 0.0
      %4547 = vmatprep.subr.mxu0 0.0
      %4548 = vmatpush2.msra.mxu0 0.0
      %4549 = vmatprep.subr.mxu0 0.0
      %4550 = vmatpush2.msra.mxu0 0.0
      %4551 = vmatprep.subr.mxu0 0.0
      %4552 = vmatpush2.msra.mxu0 0.0
      %4553 = vmatprep.subr.mxu0 0.0
      %4554 = vmatpush2.msra.mxu0 0.0
      %4555 = vmatprep.subr.mxu0 0.0
      %4556 = vmatpush2.msra.mxu0 0.0
      %4557 = vmatprep.subr.mxu0 0.0
      %4558 = vmatpush2.msra.mxu0 0.0
      %4559 = vmatprep.subr.mxu0 0.0
      %4560 = vmatpush2.msra.mxu0 0.0
      %4561 = vmatprep.subr.mxu0 0.0
      %4562 = vmatpush2.msra.mxu0 0.0
      %4563 = vmatprep.subr.mxu0 0.0
      %4564 = vmatpush2.msra.mxu0 0.0
      %4565 = vmatprep.subr.mxu0 0.0
      %4566 = vmatpush2.msra.mxu0 0.0
      %4567 = vmatprep.mubr.f32.mxu0 0.0
      %v4568 = vand.u32 %v3719, 4294901760
      %4569 = vmatmul.mubr.f32.gmra.mxu0 %v4568
      %v4570 = vpop.f32.mrf.mxu0
      %v4571 = vadd.f32 %v4467, %v4570
      %v4572 = vpop.f32.mrf.mxu0
      %v4573 = vadd.f32 %v4469, %v4572
      %4574 = vdwg.mxu0
      %v4575 = vand.u32 %v294, 4294901760
      %4576 = vmatprep.subr.mxu0 %v4575
      %v4577 = vand.u32 %v293, 4294901760
      %4578 = vmatpush1.msra.mxu0 %v4577
      %v4579 = vand.u32 %v290, 4294901760
      %4580 = vmatprep.subr.mxu0 %v4579
      %v4581 = vand.u32 %v289, 4294901760
      %4582 = vmatpush1.msra.mxu0 %v4581
      %v4583 = vand.u32 %v286, 4294901760
      %4584 = vmatprep.subr.mxu0 %v4583
      %v4585 = vand.u32 %v285, 4294901760
      %4586 = vmatpush1.msra.mxu0 %v4585
      %v4587 = vand.u32 %v282, 4294901760
      %4588 = vmatprep.subr.mxu0 %v4587
      %v4589 = vand.u32 %v281, 4294901760
      %4590 = vmatpush1.msra.mxu0 %v4589
      %v4591 = vand.u32 %v278, 4294901760
      %4592 = vmatprep.subr.mxu0 %v4591
      %v4593 = vand.u32 %v277, 4294901760
      %4594 = vmatpush1.msra.mxu0 %v4593
      %v4595 = vand.u32 %v274, 4294901760
      %4596 = vmatprep.subr.mxu0 %v4595
      %v4597 = vand.u32 %v273, 4294901760
      %4598 = vmatpush1.msra.mxu0 %v4597
      %v4599 = vand.u32 %v270, 4294901760
      %4600 = vmatprep.subr.mxu0 %v4599
      %v4601 = vand.u32 %v269, 4294901760
      %4602 = vmatpush1.msra.mxu0 %v4601
      %v4603 = vand.u32 %v266, 4294901760
      %4604 = vmatprep.subr.mxu0 %v4603
      %v4605 = vand.u32 %v265, 4294901760
      %4606 = vmatpush1.msra.mxu0 %v4605
      %v4607 = vand.u32 %v262, 4294901760
      %4608 = vmatprep.subr.mxu0 %v4607
      %v4609 = vand.u32 %v261, 4294901760
      %4610 = vmatpush1.msra.mxu0 %v4609
      %v4611 = vand.u32 %v258, 4294901760
      %4612 = vmatprep.subr.mxu0 %v4611
      %v4613 = vand.u32 %v257, 4294901760
      %4614 = vmatpush1.msra.mxu0 %v4613
      %v4615 = vand.u32 %v254, 4294901760
      %4616 = vmatprep.subr.mxu0 %v4615
      %v4617 = vand.u32 %v253, 4294901760
      %4618 = vmatpush1.msra.mxu0 %v4617
      %v4619 = vand.u32 %v250, 4294901760
      %4620 = vmatprep.subr.mxu0 %v4619
      %v4621 = vand.u32 %v249, 4294901760
      %4622 = vmatpush1.msra.mxu0 %v4621
      %v4623 = vand.u32 %v246, 4294901760
      %4624 = vmatprep.subr.mxu0 %v4623
      %v4625 = vand.u32 %v245, 4294901760
      %4626 = vmatpush1.msra.mxu0 %v4625
      %v4627 = vand.u32 %v242, 4294901760
      %4628 = vmatprep.subr.mxu0 %v4627
      %v4629 = vand.u32 %v241, 4294901760
      %4630 = vmatpush1.msra.mxu0 %v4629
      %v4631 = vand.u32 %v238, 4294901760
      %4632 = vmatprep.subr.mxu0 %v4631
      %v4633 = vand.u32 %v237, 4294901760
      %4634 = vmatpush1.msra.mxu0 %v4633
      %v4635 = vand.u32 %v234, 4294901760
      %4636 = vmatprep.subr.mxu0 %v4635
      %v4637 = vand.u32 %v233, 4294901760
      %4638 = vmatpush1.msra.mxu0 %v4637
      %4639 = vmatprep.subr.mxu0 0.0
      %4640 = vmatpush2.msra.mxu0 0.0
      %4641 = vmatprep.subr.mxu0 0.0
      %4642 = vmatpush2.msra.mxu0 0.0
      %4643 = vmatprep.subr.mxu0 0.0
      %4644 = vmatpush2.msra.mxu0 0.0
      %4645 = vmatprep.subr.mxu0 0.0
      %4646 = vmatpush2.msra.mxu0 0.0
      %4647 = vmatprep.subr.mxu0 0.0
      %4648 = vmatpush2.msra.mxu0 0.0
      %4649 = vmatprep.subr.mxu0 0.0
      %4650 = vmatpush2.msra.mxu0 0.0
      %4651 = vmatprep.subr.mxu0 0.0
      %4652 = vmatpush2.msra.mxu0 0.0
      %4653 = vmatprep.subr.mxu0 0.0
      %4654 = vmatpush2.msra.mxu0 0.0
      %4655 = vmatprep.subr.mxu0 0.0
      %4656 = vmatpush2.msra.mxu0 0.0
      %4657 = vmatprep.subr.mxu0 0.0
      %4658 = vmatpush2.msra.mxu0 0.0
      %4659 = vmatprep.subr.mxu0 0.0
      %4660 = vmatpush2.msra.mxu0 0.0
      %4661 = vmatprep.subr.mxu0 0.0
      %4662 = vmatpush2.msra.mxu0 0.0
      %4663 = vmatprep.subr.mxu0 0.0
      %4664 = vmatpush2.msra.mxu0 0.0
      %4665 = vmatprep.subr.mxu0 0.0
      %4666 = vmatpush2.msra.mxu0 0.0
      %4667 = vmatprep.subr.mxu0 0.0
      %4668 = vmatpush2.msra.mxu0 0.0
      %4669 = vmatprep.subr.mxu0 0.0
      %4670 = vmatpush2.msra.mxu0 0.0
      %4671 = vmatprep.mubr.f32.mxu0 0.0
      %v4672 = vand.u32 %v3719, 4294901760
      %v4673 = vsub.f32 %v3719, %v4672
      %v4674 = vand.u32 %v4673, 4294901760
      %v4675 = vsub.f32 %v4673, %v4674
      %v4676 = vand.u32 %v4675, 4294901760
      %4677 = vmatmul.mubr.f32.gmra.mxu0 %v4676
      %v4678 = vpop.f32.mrf.mxu0
      %v4679 = vadd.f32 0.0, %v4678
      %v4680 = vpop.f32.mrf.mxu0
      %v4681 = vadd.f32 0.0, %v4680
      %4682 = vdwg.mxu0
      %v4683 = vand.u32 %v294, 4294901760
      %v4684 = vsub.f32 %v294, %v4683
      %v4685 = vand.u32 %v4684, 4294901760
      %v4686 = vsub.f32 %v4684, %v4685
      %v4687 = vand.u32 %v4686, 4294901760
      %4688 = vmatprep.subr.mxu0 %v4687
      %v4689 = vand.u32 %v293, 4294901760
      %v4690 = vsub.f32 %v293, %v4689
      %v4691 = vand.u32 %v4690, 4294901760
      %v4692 = vsub.f32 %v4690, %v4691
      %v4693 = vand.u32 %v4692, 4294901760
      %4694 = vmatpush1.msra.mxu0 %v4693
      %v4695 = vand.u32 %v290, 4294901760
      %v4696 = vsub.f32 %v290, %v4695
      %v4697 = vand.u32 %v4696, 4294901760
      %v4698 = vsub.f32 %v4696, %v4697
      %v4699 = vand.u32 %v4698, 4294901760
      %4700 = vmatprep.subr.mxu0 %v4699
      %v4701 = vand.u32 %v289, 4294901760
      %v4702 = vsub.f32 %v289, %v4701
      %v4703 = vand.u32 %v4702, 4294901760
      %v4704 = vsub.f32 %v4702, %v4703
      %v4705 = vand.u32 %v4704, 4294901760
      %4706 = vmatpush1.msra.mxu0 %v4705
      %v4707 = vand.u32 %v286, 4294901760
      %v4708 = vsub.f32 %v286, %v4707
      %v4709 = vand.u32 %v4708, 4294901760
      %v4710 = vsub.f32 %v4708, %v4709
      %v4711 = vand.u32 %v4710, 4294901760
      %4712 = vmatprep.subr.mxu0 %v4711
      %v4713 = vand.u32 %v285, 4294901760
      %v4714 = vsub.f32 %v285, %v4713
      %v4715 = vand.u32 %v4714, 4294901760
      %v4716 = vsub.f32 %v4714, %v4715
      %v4717 = vand.u32 %v4716, 4294901760
      %4718 = vmatpush1.msra.mxu0 %v4717
      %v4719 = vand.u32 %v282, 4294901760
      %v4720 = vsub.f32 %v282, %v4719
      %v4721 = vand.u32 %v4720, 4294901760
      %v4722 = vsub.f32 %v4720, %v4721
      %v4723 = vand.u32 %v4722, 4294901760
      %4724 = vmatprep.subr.mxu0 %v4723
      %v4725 = vand.u32 %v281, 4294901760
      %v4726 = vsub.f32 %v281, %v4725
      %v4727 = vand.u32 %v4726, 4294901760
      %v4728 = vsub.f32 %v4726, %v4727
      %v4729 = vand.u32 %v4728, 4294901760
      %4730 = vmatpush1.msra.mxu0 %v4729
      %v4731 = vand.u32 %v278, 4294901760
      %v4732 = vsub.f32 %v278, %v4731
      %v4733 = vand.u32 %v4732, 4294901760
      %v4734 = vsub.f32 %v4732, %v4733
      %v4735 = vand.u32 %v4734, 4294901760
      %4736 = vmatprep.subr.mxu0 %v4735
      %v4737 = vand.u32 %v277, 4294901760
      %v4738 = vsub.f32 %v277, %v4737
      %v4739 = vand.u32 %v4738, 4294901760
      %v4740 = vsub.f32 %v4738, %v4739
      %v4741 = vand.u32 %v4740, 4294901760
      %4742 = vmatpush1.msra.mxu0 %v4741
      %v4743 = vand.u32 %v274, 4294901760
      %v4744 = vsub.f32 %v274, %v4743
      %v4745 = vand.u32 %v4744, 4294901760
      %v4746 = vsub.f32 %v4744, %v4745
      %v4747 = vand.u32 %v4746, 4294901760
      %4748 = vmatprep.subr.mxu0 %v4747
      %v4749 = vand.u32 %v273, 4294901760
      %v4750 = vsub.f32 %v273, %v4749
      %v4751 = vand.u32 %v4750, 4294901760
      %v4752 = vsub.f32 %v4750, %v4751
      %v4753 = vand.u32 %v4752, 4294901760
      %4754 = vmatpush1.msra.mxu0 %v4753
      %v4755 = vand.u32 %v270, 4294901760
      %v4756 = vsub.f32 %v270, %v4755
      %v4757 = vand.u32 %v4756, 4294901760
      %v4758 = vsub.f32 %v4756, %v4757
      %v4759 = vand.u32 %v4758, 4294901760
      %4760 = vmatprep.subr.mxu0 %v4759
      %v4761 = vand.u32 %v269, 4294901760
      %v4762 = vsub.f32 %v269, %v4761
      %v4763 = vand.u32 %v4762, 4294901760
      %v4764 = vsub.f32 %v4762, %v4763
      %v4765 = vand.u32 %v4764, 4294901760
      %4766 = vmatpush1.msra.mxu0 %v4765
      %v4767 = vand.u32 %v266, 4294901760
      %v4768 = vsub.f32 %v266, %v4767
      %v4769 = vand.u32 %v4768, 4294901760
      %v4770 = vsub.f32 %v4768, %v4769
      %v4771 = vand.u32 %v4770, 4294901760
      %4772 = vmatprep.subr.mxu0 %v4771
      %v4773 = vand.u32 %v265, 4294901760
      %v4774 = vsub.f32 %v265, %v4773
      %v4775 = vand.u32 %v4774, 4294901760
      %v4776 = vsub.f32 %v4774, %v4775
      %v4777 = vand.u32 %v4776, 4294901760
      %4778 = vmatpush1.msra.mxu0 %v4777
      %v4779 = vand.u32 %v262, 4294901760
      %v4780 = vsub.f32 %v262, %v4779
      %v4781 = vand.u32 %v4780, 4294901760
      %v4782 = vsub.f32 %v4780, %v4781
      %v4783 = vand.u32 %v4782, 4294901760
      %4784 = vmatprep.subr.mxu0 %v4783
      %v4785 = vand.u32 %v261, 4294901760
      %v4786 = vsub.f32 %v261, %v4785
      %v4787 = vand.u32 %v4786, 4294901760
      %v4788 = vsub.f32 %v4786, %v4787
      %v4789 = vand.u32 %v4788, 4294901760
      %4790 = vmatpush1.msra.mxu0 %v4789
      %v4791 = vand.u32 %v258, 4294901760
      %v4792 = vsub.f32 %v258, %v4791
      %v4793 = vand.u32 %v4792, 4294901760
      %v4794 = vsub.f32 %v4792, %v4793
      %v4795 = vand.u32 %v4794, 4294901760
      %4796 = vmatprep.subr.mxu0 %v4795
      %v4797 = vand.u32 %v257, 4294901760
      %v4798 = vsub.f32 %v257, %v4797
      %v4799 = vand.u32 %v4798, 4294901760
      %v4800 = vsub.f32 %v4798, %v4799
      %v4801 = vand.u32 %v4800, 4294901760
      %4802 = vmatpush1.msra.mxu0 %v4801
      %v4803 = vand.u32 %v254, 4294901760
      %v4804 = vsub.f32 %v254, %v4803
      %v4805 = vand.u32 %v4804, 4294901760
      %v4806 = vsub.f32 %v4804, %v4805
      %v4807 = vand.u32 %v4806, 4294901760
      %4808 = vmatprep.subr.mxu0 %v4807
      %v4809 = vand.u32 %v253, 4294901760
      %v4810 = vsub.f32 %v253, %v4809
      %v4811 = vand.u32 %v4810, 4294901760
      %v4812 = vsub.f32 %v4810, %v4811
      %v4813 = vand.u32 %v4812, 4294901760
      %4814 = vmatpush1.msra.mxu0 %v4813
      %v4815 = vand.u32 %v250, 4294901760
      %v4816 = vsub.f32 %v250, %v4815
      %v4817 = vand.u32 %v4816, 4294901760
      %v4818 = vsub.f32 %v4816, %v4817
      %v4819 = vand.u32 %v4818, 4294901760
      %4820 = vmatprep.subr.mxu0 %v4819
      %v4821 = vand.u32 %v249, 4294901760
      %v4822 = vsub.f32 %v249, %v4821
      %v4823 = vand.u32 %v4822, 4294901760
      %v4824 = vsub.f32 %v4822, %v4823
      %v4825 = vand.u32 %v4824, 4294901760
      %4826 = vmatpush1.msra.mxu0 %v4825
      %v4827 = vand.u32 %v246, 4294901760
      %v4828 = vsub.f32 %v246, %v4827
      %v4829 = vand.u32 %v4828, 4294901760
      %v4830 = vsub.f32 %v4828, %v4829
      %v4831 = vand.u32 %v4830, 4294901760
      %4832 = vmatprep.subr.mxu0 %v4831
      %v4833 = vand.u32 %v245, 4294901760
      %v4834 = vsub.f32 %v245, %v4833
      %v4835 = vand.u32 %v4834, 4294901760
      %v4836 = vsub.f32 %v4834, %v4835
      %v4837 = vand.u32 %v4836, 4294901760
      %4838 = vmatpush1.msra.mxu0 %v4837
      %v4839 = vand.u32 %v242, 4294901760
      %v4840 = vsub.f32 %v242, %v4839
      %v4841 = vand.u32 %v4840, 4294901760
      %v4842 = vsub.f32 %v4840, %v4841
      %v4843 = vand.u32 %v4842, 4294901760
      %4844 = vmatprep.subr.mxu0 %v4843
      %v4845 = vand.u32 %v241, 4294901760
      %v4846 = vsub.f32 %v241, %v4845
      %v4847 = vand.u32 %v4846, 4294901760
      %v4848 = vsub.f32 %v4846, %v4847
      %v4849 = vand.u32 %v4848, 4294901760
      %4850 = vmatpush1.msra.mxu0 %v4849
      %v4851 = vand.u32 %v238, 4294901760
      %v4852 = vsub.f32 %v238, %v4851
      %v4853 = vand.u32 %v4852, 4294901760
      %v4854 = vsub.f32 %v4852, %v4853
      %v4855 = vand.u32 %v4854, 4294901760
      %4856 = vmatprep.subr.mxu0 %v4855
      %v4857 = vand.u32 %v237, 4294901760
      %v4858 = vsub.f32 %v237, %v4857
      %v4859 = vand.u32 %v4858, 4294901760
      %v4860 = vsub.f32 %v4858, %v4859
      %v4861 = vand.u32 %v4860, 4294901760
      %4862 = vmatpush1.msra.mxu0 %v4861
      %v4863 = vand.u32 %v234, 4294901760
      %v4864 = vsub.f32 %v234, %v4863
      %v4865 = vand.u32 %v4864, 4294901760
      %v4866 = vsub.f32 %v4864, %v4865
      %v4867 = vand.u32 %v4866, 4294901760
      %4868 = vmatprep.subr.mxu0 %v4867
      %v4869 = vand.u32 %v233, 4294901760
      %v4870 = vsub.f32 %v233, %v4869
      %v4871 = vand.u32 %v4870, 4294901760
      %v4872 = vsub.f32 %v4870, %v4871
      %v4873 = vand.u32 %v4872, 4294901760
      %4874 = vmatpush1.msra.mxu0 %v4873
      %4875 = vmatprep.subr.mxu0 0.0
      %4876 = vmatpush2.msra.mxu0 0.0
      %4877 = vmatprep.subr.mxu0 0.0
      %4878 = vmatpush2.msra.mxu0 0.0
      %4879 = vmatprep.subr.mxu0 0.0
      %4880 = vmatpush2.msra.mxu0 0.0
      %4881 = vmatprep.subr.mxu0 0.0
      %4882 = vmatpush2.msra.mxu0 0.0
      %4883 = vmatprep.subr.mxu0 0.0
      %4884 = vmatpush2.msra.mxu0 0.0
      %4885 = vmatprep.subr.mxu0 0.0
      %4886 = vmatpush2.msra.mxu0 0.0
      %4887 = vmatprep.subr.mxu0 0.0
      %4888 = vmatpush2.msra.mxu0 0.0
      %4889 = vmatprep.subr.mxu0 0.0
      %4890 = vmatpush2.msra.mxu0 0.0
      %4891 = vmatprep.subr.mxu0 0.0
      %4892 = vmatpush2.msra.mxu0 0.0
      %4893 = vmatprep.subr.mxu0 0.0
      %4894 = vmatpush2.msra.mxu0 0.0
      %4895 = vmatprep.subr.mxu0 0.0
      %4896 = vmatpush2.msra.mxu0 0.0
      %4897 = vmatprep.subr.mxu0 0.0
      %4898 = vmatpush2.msra.mxu0 0.0
      %4899 = vmatprep.subr.mxu0 0.0
      %4900 = vmatpush2.msra.mxu0 0.0
      %4901 = vmatprep.subr.mxu0 0.0
      %4902 = vmatpush2.msra.mxu0 0.0
      %4903 = vmatprep.subr.mxu0 0.0
      %4904 = vmatpush2.msra.mxu0 0.0
      %4905 = vmatprep.subr.mxu0 0.0
      %4906 = vmatpush2.msra.mxu0 0.0
      %4907 = vmatprep.mubr.f32.mxu0 0.0
      %v4908 = vand.u32 %v3719, 4294901760
      %4909 = vmatmul.mubr.f32.gmra.mxu0 %v4908
      %v4910 = vpop.f32.mrf.mxu0
      %v4911 = vadd.f32 %v4679, %v4910
      %v4912 = vpop.f32.mrf.mxu0
      %v4913 = vadd.f32 %v4681, %v4912
      %4914 = vdwg.mxu0
      %v4915 = vand.u32 %v294, 4294901760
      %v4916 = vsub.f32 %v294, %v4915
      %4917 = vmatprep.subr.mxu0 %v4916
      %v4918 = vand.u32 %v293, 4294901760
      %v4919 = vsub.f32 %v293, %v4918
      %4920 = vmatpush1.msra.mxu0 %v4919
      %v4921 = vand.u32 %v290, 4294901760
      %v4922 = vsub.f32 %v290, %v4921
      %4923 = vmatprep.subr.mxu0 %v4922
      %v4924 = vand.u32 %v289, 4294901760
      %v4925 = vsub.f32 %v289, %v4924
      %4926 = vmatpush1.msra.mxu0 %v4925
      %v4927 = vand.u32 %v286, 4294901760
      %v4928 = vsub.f32 %v286, %v4927
      %4929 = vmatprep.subr.mxu0 %v4928
      %v4930 = vand.u32 %v285, 4294901760
      %v4931 = vsub.f32 %v285, %v4930
      %4932 = vmatpush1.msra.mxu0 %v4931
      %v4933 = vand.u32 %v282, 4294901760
      %v4934 = vsub.f32 %v282, %v4933
      %4935 = vmatprep.subr.mxu0 %v4934
      %v4936 = vand.u32 %v281, 4294901760
      %v4937 = vsub.f32 %v281, %v4936
      %4938 = vmatpush1.msra.mxu0 %v4937
      %v4939 = vand.u32 %v278, 4294901760
      %v4940 = vsub.f32 %v278, %v4939
      %4941 = vmatprep.subr.mxu0 %v4940
      %v4942 = vand.u32 %v277, 4294901760
      %v4943 = vsub.f32 %v277, %v4942
      %4944 = vmatpush1.msra.mxu0 %v4943
      %v4945 = vand.u32 %v274, 4294901760
      %v4946 = vsub.f32 %v274, %v4945
      %4947 = vmatprep.subr.mxu0 %v4946
      %v4948 = vand.u32 %v273, 4294901760
      %v4949 = vsub.f32 %v273, %v4948
      %4950 = vmatpush1.msra.mxu0 %v4949
      %v4951 = vand.u32 %v270, 4294901760
      %v4952 = vsub.f32 %v270, %v4951
      %4953 = vmatprep.subr.mxu0 %v4952
      %v4954 = vand.u32 %v269, 4294901760
      %v4955 = vsub.f32 %v269, %v4954
      %4956 = vmatpush1.msra.mxu0 %v4955
      %v4957 = vand.u32 %v266, 4294901760
      %v4958 = vsub.f32 %v266, %v4957
      %4959 = vmatprep.subr.mxu0 %v4958
      %v4960 = vand.u32 %v265, 4294901760
      %v4961 = vsub.f32 %v265, %v4960
      %4962 = vmatpush1.msra.mxu0 %v4961
      %v4963 = vand.u32 %v262, 4294901760
      %v4964 = vsub.f32 %v262, %v4963
      %4965 = vmatprep.subr.mxu0 %v4964
      %v4966 = vand.u32 %v261, 4294901760
      %v4967 = vsub.f32 %v261, %v4966
      %4968 = vmatpush1.msra.mxu0 %v4967
      %v4969 = vand.u32 %v258, 4294901760
      %v4970 = vsub.f32 %v258, %v4969
      %4971 = vmatprep.subr.mxu0 %v4970
      %v4972 = vand.u32 %v257, 4294901760
      %v4973 = vsub.f32 %v257, %v4972
      %4974 = vmatpush1.msra.mxu0 %v4973
      %v4975 = vand.u32 %v254, 4294901760
      %v4976 = vsub.f32 %v254, %v4975
      %4977 = vmatprep.subr.mxu0 %v4976
      %v4978 = vand.u32 %v253, 4294901760
      %v4979 = vsub.f32 %v253, %v4978
      %4980 = vmatpush1.msra.mxu0 %v4979
      %v4981 = vand.u32 %v250, 4294901760
      %v4982 = vsub.f32 %v250, %v4981
      %4983 = vmatprep.subr.mxu0 %v4982
      %v4984 = vand.u32 %v249, 4294901760
      %v4985 = vsub.f32 %v249, %v4984
      %4986 = vmatpush1.msra.mxu0 %v4985
      %v4987 = vand.u32 %v246, 4294901760
      %v4988 = vsub.f32 %v246, %v4987
      %4989 = vmatprep.subr.mxu0 %v4988
      %v4990 = vand.u32 %v245, 4294901760
      %v4991 = vsub.f32 %v245, %v4990
      %4992 = vmatpush1.msra.mxu0 %v4991
      %v4993 = vand.u32 %v242, 4294901760
      %v4994 = vsub.f32 %v242, %v4993
      %4995 = vmatprep.subr.mxu0 %v4994
      %v4996 = vand.u32 %v241, 4294901760
      %v4997 = vsub.f32 %v241, %v4996
      %4998 = vmatpush1.msra.mxu0 %v4997
      %v4999 = vand.u32 %v238, 4294901760
      %v5000 = vsub.f32 %v238, %v4999
      %5001 = vmatprep.subr.mxu0 %v5000
      %v5002 = vand.u32 %v237, 4294901760
      %v5003 = vsub.f32 %v237, %v5002
      %5004 = vmatpush1.msra.mxu0 %v5003
      %v5005 = vand.u32 %v234, 4294901760
      %v5006 = vsub.f32 %v234, %v5005
      %5007 = vmatprep.subr.mxu0 %v5006
      %v5008 = vand.u32 %v233, 4294901760
      %v5009 = vsub.f32 %v233, %v5008
      %5010 = vmatpush1.msra.mxu0 %v5009
      %5011 = vmatprep.subr.mxu0 0.0
      %5012 = vmatpush2.msra.mxu0 0.0
      %5013 = vmatprep.subr.mxu0 0.0
      %5014 = vmatpush2.msra.mxu0 0.0
      %5015 = vmatprep.subr.mxu0 0.0
      %5016 = vmatpush2.msra.mxu0 0.0
      %5017 = vmatprep.subr.mxu0 0.0
      %5018 = vmatpush2.msra.mxu0 0.0
      %5019 = vmatprep.subr.mxu0 0.0
      %5020 = vmatpush2.msra.mxu0 0.0
      %5021 = vmatprep.subr.mxu0 0.0
      %5022 = vmatpush2.msra.mxu0 0.0
      %5023 = vmatprep.subr.mxu0 0.0
      %5024 = vmatpush2.msra.mxu0 0.0
      %5025 = vmatprep.subr.mxu0 0.0
      %5026 = vmatpush2.msra.mxu0 0.0
      %5027 = vmatprep.subr.mxu0 0.0
      %5028 = vmatpush2.msra.mxu0 0.0
      %5029 = vmatprep.subr.mxu0 0.0
      %5030 = vmatpush2.msra.mxu0 0.0
      %5031 = vmatprep.subr.mxu0 0.0
      %5032 = vmatpush2.msra.mxu0 0.0
      %5033 = vmatprep.subr.mxu0 0.0
      %5034 = vmatpush2.msra.mxu0 0.0
      %5035 = vmatprep.subr.mxu0 0.0
      %5036 = vmatpush2.msra.mxu0 0.0
      %5037 = vmatprep.subr.mxu0 0.0
      %5038 = vmatpush2.msra.mxu0 0.0
      %5039 = vmatprep.subr.mxu0 0.0
      %5040 = vmatpush2.msra.mxu0 0.0
      %5041 = vmatprep.subr.mxu0 0.0
      %5042 = vmatpush2.msra.mxu0 0.0
      %5043 = vmatprep.mubr.f32.mxu0 0.0
      %v5044 = vand.u32 %v3719, 4294901760
      %v5045 = vsub.f32 %v3719, %v5044
      %5046 = vmatmul.mubr.f32.gmra.mxu0 %v5045
      %v5047 = vpop.f32.mrf.mxu0
      %v5048 = vadd.f32 %v4911, %v5047
      %v5049 = vpop.f32.mrf.mxu0
      %v5050 = vadd.f32 %v4913, %v5049
      %5051 = vdwg.mxu0
      %v5052 = vand.u32 %v294, 4294901760
      %5053 = vmatprep.subr.mxu0 %v5052
      %v5054 = vand.u32 %v293, 4294901760
      %5055 = vmatpush1.msra.mxu0 %v5054
      %v5056 = vand.u32 %v290, 4294901760
      %5057 = vmatprep.subr.mxu0 %v5056
      %v5058 = vand.u32 %v289, 4294901760
      %5059 = vmatpush1.msra.mxu0 %v5058
      %v5060 = vand.u32 %v286, 4294901760
      %5061 = vmatprep.subr.mxu0 %v5060
      %v5062 = vand.u32 %v285, 4294901760
      %5063 = vmatpush1.msra.mxu0 %v5062
      %v5064 = vand.u32 %v282, 4294901760
      %5065 = vmatprep.subr.mxu0 %v5064
      %v5066 = vand.u32 %v281, 4294901760
      %5067 = vmatpush1.msra.mxu0 %v5066
      %v5068 = vand.u32 %v278, 4294901760
      %5069 = vmatprep.subr.mxu0 %v5068
      %v5070 = vand.u32 %v277, 4294901760
      %5071 = vmatpush1.msra.mxu0 %v5070
      %v5072 = vand.u32 %v274, 4294901760
      %5073 = vmatprep.subr.mxu0 %v5072
      %v5074 = vand.u32 %v273, 4294901760
      %5075 = vmatpush1.msra.mxu0 %v5074
      %v5076 = vand.u32 %v270, 4294901760
      %5077 = vmatprep.subr.mxu0 %v5076
      %v5078 = vand.u32 %v269, 4294901760
      %5079 = vmatpush1.msra.mxu0 %v5078
      %v5080 = vand.u32 %v266, 4294901760
      %5081 = vmatprep.subr.mxu0 %v5080
      %v5082 = vand.u32 %v265, 4294901760
      %5083 = vmatpush1.msra.mxu0 %v5082
      %v5084 = vand.u32 %v262, 4294901760
      %5085 = vmatprep.subr.mxu0 %v5084
      %v5086 = vand.u32 %v261, 4294901760
      %5087 = vmatpush1.msra.mxu0 %v5086
      %v5088 = vand.u32 %v258, 4294901760
      %5089 = vmatprep.subr.mxu0 %v5088
      %v5090 = vand.u32 %v257, 4294901760
      %5091 = vmatpush1.msra.mxu0 %v5090
      %v5092 = vand.u32 %v254, 4294901760
      %5093 = vmatprep.subr.mxu0 %v5092
      %v5094 = vand.u32 %v253, 4294901760
      %5095 = vmatpush1.msra.mxu0 %v5094
      %v5096 = vand.u32 %v250, 4294901760
      %5097 = vmatprep.subr.mxu0 %v5096
      %v5098 = vand.u32 %v249, 4294901760
      %5099 = vmatpush1.msra.mxu0 %v5098
      %v5100 = vand.u32 %v246, 4294901760
      %5101 = vmatprep.subr.mxu0 %v5100
      %v5102 = vand.u32 %v245, 4294901760
      %5103 = vmatpush1.msra.mxu0 %v5102
      %v5104 = vand.u32 %v242, 4294901760
      %5105 = vmatprep.subr.mxu0 %v5104
      %v5106 = vand.u32 %v241, 4294901760
      %5107 = vmatpush1.msra.mxu0 %v5106
      %v5108 = vand.u32 %v238, 4294901760
      %5109 = vmatprep.subr.mxu0 %v5108
      %v5110 = vand.u32 %v237, 4294901760
      %5111 = vmatpush1.msra.mxu0 %v5110
      %v5112 = vand.u32 %v234, 4294901760
      %5113 = vmatprep.subr.mxu0 %v5112
      %v5114 = vand.u32 %v233, 4294901760
      %5115 = vmatpush1.msra.mxu0 %v5114
      %5116 = vmatprep.subr.mxu0 0.0
      %5117 = vmatpush2.msra.mxu0 0.0
      %5118 = vmatprep.subr.mxu0 0.0
      %5119 = vmatpush2.msra.mxu0 0.0
      %5120 = vmatprep.subr.mxu0 0.0
      %5121 = vmatpush2.msra.mxu0 0.0
      %5122 = vmatprep.subr.mxu0 0.0
      %5123 = vmatpush2.msra.mxu0 0.0
      %5124 = vmatprep.subr.mxu0 0.0
      %5125 = vmatpush2.msra.mxu0 0.0
      %5126 = vmatprep.subr.mxu0 0.0
      %5127 = vmatpush2.msra.mxu0 0.0
      %5128 = vmatprep.subr.mxu0 0.0
      %5129 = vmatpush2.msra.mxu0 0.0
      %5130 = vmatprep.subr.mxu0 0.0
      %5131 = vmatpush2.msra.mxu0 0.0
      %5132 = vmatprep.subr.mxu0 0.0
      %5133 = vmatpush2.msra.mxu0 0.0
      %5134 = vmatprep.subr.mxu0 0.0
      %5135 = vmatpush2.msra.mxu0 0.0
      %5136 = vmatprep.subr.mxu0 0.0
      %5137 = vmatpush2.msra.mxu0 0.0
      %5138 = vmatprep.subr.mxu0 0.0
      %5139 = vmatpush2.msra.mxu0 0.0
      %5140 = vmatprep.subr.mxu0 0.0
      %5141 = vmatpush2.msra.mxu0 0.0
      %5142 = vmatprep.subr.mxu0 0.0
      %5143 = vmatpush2.msra.mxu0 0.0
      %5144 = vmatprep.subr.mxu0 0.0
      %5145 = vmatpush2.msra.mxu0 0.0
      %5146 = vmatprep.subr.mxu0 0.0
      %5147 = vmatpush2.msra.mxu0 0.0
      %5148 = vmatprep.mubr.f32.mxu0 0.0
      %v5149 = vand.u32 %v3719, 4294901760
      %v5150 = vsub.f32 %v3719, %v5149
      %v5151 = vand.u32 %v5150, 4294901760
      %5152 = vmatmul.mubr.f32.gmra.mxu0 %v5151
      %v5153 = vpop.f32.mrf.mxu0
      %v5154 = vadd.f32 %v5048, %v5153
      %v5155 = vpop.f32.mrf.mxu0
      %v5156 = vadd.f32 %v5050, %v5155
      %5157 = vdwg.mxu0
      %v5158 = vand.u32 %v294, 4294901760
      %v5159 = vsub.f32 %v294, %v5158
      %v5160 = vand.u32 %v5159, 4294901760
      %5161 = vmatprep.subr.mxu0 %v5160
      %v5162 = vand.u32 %v293, 4294901760
      %v5163 = vsub.f32 %v293, %v5162
      %v5164 = vand.u32 %v5163, 4294901760
      %5165 = vmatpush1.msra.mxu0 %v5164
      %v5166 = vand.u32 %v290, 4294901760
      %v5167 = vsub.f32 %v290, %v5166
      %v5168 = vand.u32 %v5167, 4294901760
      %5169 = vmatprep.subr.mxu0 %v5168
      %v5170 = vand.u32 %v289, 4294901760
      %v5171 = vsub.f32 %v289, %v5170
      %v5172 = vand.u32 %v5171, 4294901760
      %5173 = vmatpush1.msra.mxu0 %v5172
      %v5174 = vand.u32 %v286, 4294901760
      %v5175 = vsub.f32 %v286, %v5174
      %v5176 = vand.u32 %v5175, 4294901760
      %5177 = vmatprep.subr.mxu0 %v5176
      %v5178 = vand.u32 %v285, 4294901760
      %v5179 = vsub.f32 %v285, %v5178
      %v5180 = vand.u32 %v5179, 4294901760
      %5181 = vmatpush1.msra.mxu0 %v5180
      %v5182 = vand.u32 %v282, 4294901760
      %v5183 = vsub.f32 %v282, %v5182
      %v5184 = vand.u32 %v5183, 4294901760
      %5185 = vmatprep.subr.mxu0 %v5184
      %v5186 = vand.u32 %v281, 4294901760
      %v5187 = vsub.f32 %v281, %v5186
      %v5188 = vand.u32 %v5187, 4294901760
      %5189 = vmatpush1.msra.mxu0 %v5188
      %v5190 = vand.u32 %v278, 4294901760
      %v5191 = vsub.f32 %v278, %v5190
      %v5192 = vand.u32 %v5191, 4294901760
      %5193 = vmatprep.subr.mxu0 %v5192
      %v5194 = vand.u32 %v277, 4294901760
      %v5195 = vsub.f32 %v277, %v5194
      %v5196 = vand.u32 %v5195, 4294901760
      %5197 = vmatpush1.msra.mxu0 %v5196
      %v5198 = vand.u32 %v274, 4294901760
      %v5199 = vsub.f32 %v274, %v5198
      %v5200 = vand.u32 %v5199, 4294901760
      %5201 = vmatprep.subr.mxu0 %v5200
      %v5202 = vand.u32 %v273, 4294901760
      %v5203 = vsub.f32 %v273, %v5202
      %v5204 = vand.u32 %v5203, 4294901760
      %5205 = vmatpush1.msra.mxu0 %v5204
      %v5206 = vand.u32 %v270, 4294901760
      %v5207 = vsub.f32 %v270, %v5206
      %v5208 = vand.u32 %v5207, 4294901760
      %5209 = vmatprep.subr.mxu0 %v5208
      %v5210 = vand.u32 %v269, 4294901760
      %v5211 = vsub.f32 %v269, %v5210
      %v5212 = vand.u32 %v5211, 4294901760
      %5213 = vmatpush1.msra.mxu0 %v5212
      %v5214 = vand.u32 %v266, 4294901760
      %v5215 = vsub.f32 %v266, %v5214
      %v5216 = vand.u32 %v5215, 4294901760
      %5217 = vmatprep.subr.mxu0 %v5216
      %v5218 = vand.u32 %v265, 4294901760
      %v5219 = vsub.f32 %v265, %v5218
      %v5220 = vand.u32 %v5219, 4294901760
      %5221 = vmatpush1.msra.mxu0 %v5220
      %v5222 = vand.u32 %v262, 4294901760
      %v5223 = vsub.f32 %v262, %v5222
      %v5224 = vand.u32 %v5223, 4294901760
      %5225 = vmatprep.subr.mxu0 %v5224
      %v5226 = vand.u32 %v261, 4294901760
      %v5227 = vsub.f32 %v261, %v5226
      %v5228 = vand.u32 %v5227, 4294901760
      %5229 = vmatpush1.msra.mxu0 %v5228
      %v5230 = vand.u32 %v258, 4294901760
      %v5231 = vsub.f32 %v258, %v5230
      %v5232 = vand.u32 %v5231, 4294901760
      %5233 = vmatprep.subr.mxu0 %v5232
      %v5234 = vand.u32 %v257, 4294901760
      %v5235 = vsub.f32 %v257, %v5234
      %v5236 = vand.u32 %v5235, 4294901760
      %5237 = vmatpush1.msra.mxu0 %v5236
      %v5238 = vand.u32 %v254, 4294901760
      %v5239 = vsub.f32 %v254, %v5238
      %v5240 = vand.u32 %v5239, 4294901760
      %5241 = vmatprep.subr.mxu0 %v5240
      %v5242 = vand.u32 %v253, 4294901760
      %v5243 = vsub.f32 %v253, %v5242
      %v5244 = vand.u32 %v5243, 4294901760
      %5245 = vmatpush1.msra.mxu0 %v5244
      %v5246 = vand.u32 %v250, 4294901760
      %v5247 = vsub.f32 %v250, %v5246
      %v5248 = vand.u32 %v5247, 4294901760
      %5249 = vmatprep.subr.mxu0 %v5248
      %v5250 = vand.u32 %v249, 4294901760
      %v5251 = vsub.f32 %v249, %v5250
      %v5252 = vand.u32 %v5251, 4294901760
      %5253 = vmatpush1.msra.mxu0 %v5252
      %v5254 = vand.u32 %v246, 4294901760
      %v5255 = vsub.f32 %v246, %v5254
      %v5256 = vand.u32 %v5255, 4294901760
      %5257 = vmatprep.subr.mxu0 %v5256
      %v5258 = vand.u32 %v245, 4294901760
      %v5259 = vsub.f32 %v245, %v5258
      %v5260 = vand.u32 %v5259, 4294901760
      %5261 = vmatpush1.msra.mxu0 %v5260
      %v5262 = vand.u32 %v242, 4294901760
      %v5263 = vsub.f32 %v242, %v5262
      %v5264 = vand.u32 %v5263, 4294901760
      %5265 = vmatprep.subr.mxu0 %v5264
      %v5266 = vand.u32 %v241, 4294901760
      %v5267 = vsub.f32 %v241, %v5266
      %v5268 = vand.u32 %v5267, 4294901760
      %5269 = vmatpush1.msra.mxu0 %v5268
      %v5270 = vand.u32 %v238, 4294901760
      %v5271 = vsub.f32 %v238, %v5270
      %v5272 = vand.u32 %v5271, 4294901760
      %5273 = vmatprep.subr.mxu0 %v5272
      %v5274 = vand.u32 %v237, 4294901760
      %v5275 = vsub.f32 %v237, %v5274
      %v5276 = vand.u32 %v5275, 4294901760
      %5277 = vmatpush1.msra.mxu0 %v5276
      %v5278 = vand.u32 %v234, 4294901760
      %v5279 = vsub.f32 %v234, %v5278
      %v5280 = vand.u32 %v5279, 4294901760
      %5281 = vmatprep.subr.mxu0 %v5280
      %v5282 = vand.u32 %v233, 4294901760
      %v5283 = vsub.f32 %v233, %v5282
      %v5284 = vand.u32 %v5283, 4294901760
      %5285 = vmatpush1.msra.mxu0 %v5284
      %5286 = vmatprep.subr.mxu0 0.0
      %5287 = vmatpush2.msra.mxu0 0.0
      %5288 = vmatprep.subr.mxu0 0.0
      %5289 = vmatpush2.msra.mxu0 0.0
      %5290 = vmatprep.subr.mxu0 0.0
      %5291 = vmatpush2.msra.mxu0 0.0
      %5292 = vmatprep.subr.mxu0 0.0
      %5293 = vmatpush2.msra.mxu0 0.0
      %5294 = vmatprep.subr.mxu0 0.0
      %5295 = vmatpush2.msra.mxu0 0.0
      %5296 = vmatprep.subr.mxu0 0.0
      %5297 = vmatpush2.msra.mxu0 0.0
      %5298 = vmatprep.subr.mxu0 0.0
      %5299 = vmatpush2.msra.mxu0 0.0
      %5300 = vmatprep.subr.mxu0 0.0
      %5301 = vmatpush2.msra.mxu0 0.0
      %5302 = vmatprep.subr.mxu0 0.0
      %5303 = vmatpush2.msra.mxu0 0.0
      %5304 = vmatprep.subr.mxu0 0.0
      %5305 = vmatpush2.msra.mxu0 0.0
      %5306 = vmatprep.subr.mxu0 0.0
      %5307 = vmatpush2.msra.mxu0 0.0
      %5308 = vmatprep.subr.mxu0 0.0
      %5309 = vmatpush2.msra.mxu0 0.0
      %5310 = vmatprep.subr.mxu0 0.0
      %5311 = vmatpush2.msra.mxu0 0.0
      %5312 = vmatprep.subr.mxu0 0.0
      %5313 = vmatpush2.msra.mxu0 0.0
      %5314 = vmatprep.subr.mxu0 0.0
      %5315 = vmatpush2.msra.mxu0 0.0
      %5316 = vmatprep.subr.mxu0 0.0
      %5317 = vmatpush2.msra.mxu0 0.0
      %5318 = vmatprep.mubr.f32.mxu0 0.0
      %v5319 = vand.u32 %v3719, 4294901760
      %5320 = vmatmul.mubr.f32.gmra.mxu0 %v5319
      %v5321 = vpop.f32.mrf.mxu0
      %v5322 = vadd.f32 %v5154, %v5321
      %v5323 = vpop.f32.mrf.mxu0
      %v5324 = vadd.f32 %v5156, %v5323
      %5325 = vdwg.mxu0
      %v5326 = vand.u32 %v294, 4294901760
      %5327 = vmatprep.subr.mxu0 %v5326
      %v5328 = vand.u32 %v293, 4294901760
      %5329 = vmatpush1.msra.mxu0 %v5328
      %v5330 = vand.u32 %v290, 4294901760
      %5331 = vmatprep.subr.mxu0 %v5330
      %v5332 = vand.u32 %v289, 4294901760
      %5333 = vmatpush1.msra.mxu0 %v5332
      %v5334 = vand.u32 %v286, 4294901760
      %5335 = vmatprep.subr.mxu0 %v5334
      %v5336 = vand.u32 %v285, 4294901760
      %5337 = vmatpush1.msra.mxu0 %v5336
      %v5338 = vand.u32 %v282, 4294901760
      %5339 = vmatprep.subr.mxu0 %v5338
      %v5340 = vand.u32 %v281, 4294901760
      %5341 = vmatpush1.msra.mxu0 %v5340
      %v5342 = vand.u32 %v278, 4294901760
      %5343 = vmatprep.subr.mxu0 %v5342
      %v5344 = vand.u32 %v277, 4294901760
      %5345 = vmatpush1.msra.mxu0 %v5344
      %v5346 = vand.u32 %v274, 4294901760
      %5347 = vmatprep.subr.mxu0 %v5346
      %v5348 = vand.u32 %v273, 4294901760
      %5349 = vmatpush1.msra.mxu0 %v5348
      %v5350 = vand.u32 %v270, 4294901760
      %5351 = vmatprep.subr.mxu0 %v5350
      %v5352 = vand.u32 %v269, 4294901760
      %5353 = vmatpush1.msra.mxu0 %v5352
      %v5354 = vand.u32 %v266, 4294901760
      %5355 = vmatprep.subr.mxu0 %v5354
      %v5356 = vand.u32 %v265, 4294901760
      %5357 = vmatpush1.msra.mxu0 %v5356
      %v5358 = vand.u32 %v262, 4294901760
      %5359 = vmatprep.subr.mxu0 %v5358
      %v5360 = vand.u32 %v261, 4294901760
      %5361 = vmatpush1.msra.mxu0 %v5360
      %v5362 = vand.u32 %v258, 4294901760
      %5363 = vmatprep.subr.mxu0 %v5362
      %v5364 = vand.u32 %v257, 4294901760
      %5365 = vmatpush1.msra.mxu0 %v5364
      %v5366 = vand.u32 %v254, 4294901760
      %5367 = vmatprep.subr.mxu0 %v5366
      %v5368 = vand.u32 %v253, 4294901760
      %5369 = vmatpush1.msra.mxu0 %v5368
      %v5370 = vand.u32 %v250, 4294901760
      %5371 = vmatprep.subr.mxu0 %v5370
      %v5372 = vand.u32 %v249, 4294901760
      %5373 = vmatpush1.msra.mxu0 %v5372
      %v5374 = vand.u32 %v246, 4294901760
      %5375 = vmatprep.subr.mxu0 %v5374
      %v5376 = vand.u32 %v245, 4294901760
      %5377 = vmatpush1.msra.mxu0 %v5376
      %v5378 = vand.u32 %v242, 4294901760
      %5379 = vmatprep.subr.mxu0 %v5378
      %v5380 = vand.u32 %v241, 4294901760
      %5381 = vmatpush1.msra.mxu0 %v5380
      %v5382 = vand.u32 %v238, 4294901760
      %5383 = vmatprep.subr.mxu0 %v5382
      %v5384 = vand.u32 %v237, 4294901760
      %5385 = vmatpush1.msra.mxu0 %v5384
      %v5386 = vand.u32 %v234, 4294901760
      %5387 = vmatprep.subr.mxu0 %v5386
      %v5388 = vand.u32 %v233, 4294901760
      %5389 = vmatpush1.msra.mxu0 %v5388
      %5390 = vmatprep.subr.mxu0 0.0
      %5391 = vmatpush2.msra.mxu0 0.0
      %5392 = vmatprep.subr.mxu0 0.0
      %5393 = vmatpush2.msra.mxu0 0.0
      %5394 = vmatprep.subr.mxu0 0.0
      %5395 = vmatpush2.msra.mxu0 0.0
      %5396 = vmatprep.subr.mxu0 0.0
      %5397 = vmatpush2.msra.mxu0 0.0
      %5398 = vmatprep.subr.mxu0 0.0
      %5399 = vmatpush2.msra.mxu0 0.0
      %5400 = vmatprep.subr.mxu0 0.0
      %5401 = vmatpush2.msra.mxu0 0.0
      %5402 = vmatprep.subr.mxu0 0.0
      %5403 = vmatpush2.msra.mxu0 0.0
      %5404 = vmatprep.subr.mxu0 0.0
      %5405 = vmatpush2.msra.mxu0 0.0
      %5406 = vmatprep.subr.mxu0 0.0
      %5407 = vmatpush2.msra.mxu0 0.0
      %5408 = vmatprep.subr.mxu0 0.0
      %5409 = vmatpush2.msra.mxu0 0.0
      %5410 = vmatprep.subr.mxu0 0.0
      %5411 = vmatpush2.msra.mxu0 0.0
      %5412 = vmatprep.subr.mxu0 0.0
      %5413 = vmatpush2.msra.mxu0 0.0
      %5414 = vmatprep.subr.mxu0 0.0
      %5415 = vmatpush2.msra.mxu0 0.0
      %5416 = vmatprep.subr.mxu0 0.0
      %5417 = vmatpush2.msra.mxu0 0.0
      %5418 = vmatprep.subr.mxu0 0.0
      %5419 = vmatpush2.msra.mxu0 0.0
      %5420 = vmatprep.subr.mxu0 0.0
      %5421 = vmatpush2.msra.mxu0 0.0
      %5422 = vmatprep.mubr.f32.mxu0 0.0
      %v5423 = vand.u32 %v3719, 4294901760
      %5424 = vmatmul.mubr.f32.gmra.mxu0 %v5423
      %v5425 = vpop.f32.mrf.mxu0
      %v5426 = vadd.f32 %v5322, %v5425
      %v5427 = vpop.f32.mrf.mxu0
      %v5428 = vadd.f32 %v5324, %v5427
      %5429 = vdwg.mxu0
      %s5430 = scalar_lea.vmem %s221, 6
      %v5431 = vld [vmem:[%s5430] sm:$0x3]
      %v5432 = vand.u32 %v292, 4294901760
      %5433 = vmatprep.subr.mxu0 %v5432
      %v5434 = vand.u32 %v291, 4294901760
      %5435 = vmatpush1.msra.mxu0 %v5434
      %v5436 = vand.u32 %v288, 4294901760
      %5437 = vmatprep.subr.mxu0 %v5436
      %v5438 = vand.u32 %v287, 4294901760
      %5439 = vmatpush1.msra.mxu0 %v5438
      %v5440 = vand.u32 %v284, 4294901760
      %5441 = vmatprep.subr.mxu0 %v5440
      %v5442 = vand.u32 %v283, 4294901760
      %5443 = vmatpush1.msra.mxu0 %v5442
      %v5444 = vand.u32 %v280, 4294901760
      %5445 = vmatprep.subr.mxu0 %v5444
      %v5446 = vand.u32 %v279, 4294901760
      %5447 = vmatpush1.msra.mxu0 %v5446
      %v5448 = vand.u32 %v276, 4294901760
      %5449 = vmatprep.subr.mxu0 %v5448
      %v5450 = vand.u32 %v275, 4294901760
      %5451 = vmatpush1.msra.mxu0 %v5450
      %v5452 = vand.u32 %v272, 4294901760
      %5453 = vmatprep.subr.mxu0 %v5452
      %v5454 = vand.u32 %v271, 4294901760
      %5455 = vmatpush1.msra.mxu0 %v5454
      %v5456 = vand.u32 %v268, 4294901760
      %5457 = vmatprep.subr.mxu0 %v5456
      %v5458 = vand.u32 %v267, 4294901760
      %5459 = vmatpush1.msra.mxu0 %v5458
      %v5460 = vand.u32 %v264, 4294901760
      %5461 = vmatprep.subr.mxu0 %v5460
      %v5462 = vand.u32 %v263, 4294901760
      %5463 = vmatpush1.msra.mxu0 %v5462
      %v5464 = vand.u32 %v260, 4294901760
      %5465 = vmatprep.subr.mxu0 %v5464
      %v5466 = vand.u32 %v259, 4294901760
      %5467 = vmatpush1.msra.mxu0 %v5466
      %v5468 = vand.u32 %v256, 4294901760
      %5469 = vmatprep.subr.mxu0 %v5468
      %v5470 = vand.u32 %v255, 4294901760
      %5471 = vmatpush1.msra.mxu0 %v5470
      %v5472 = vand.u32 %v252, 4294901760
      %5473 = vmatprep.subr.mxu0 %v5472
      %v5474 = vand.u32 %v251, 4294901760
      %5475 = vmatpush1.msra.mxu0 %v5474
      %v5476 = vand.u32 %v248, 4294901760
      %5477 = vmatprep.subr.mxu0 %v5476
      %v5478 = vand.u32 %v247, 4294901760
      %5479 = vmatpush1.msra.mxu0 %v5478
      %v5480 = vand.u32 %v244, 4294901760
      %5481 = vmatprep.subr.mxu0 %v5480
      %v5482 = vand.u32 %v243, 4294901760
      %5483 = vmatpush1.msra.mxu0 %v5482
      %v5484 = vand.u32 %v240, 4294901760
      %5485 = vmatprep.subr.mxu0 %v5484
      %v5486 = vand.u32 %v239, 4294901760
      %5487 = vmatpush1.msra.mxu0 %v5486
      %v5488 = vand.u32 %v236, 4294901760
      %5489 = vmatprep.subr.mxu0 %v5488
      %v5490 = vand.u32 %v235, 4294901760
      %5491 = vmatpush1.msra.mxu0 %v5490
      %v5492 = vand.u32 %v232, 4294901760
      %5493 = vmatprep.subr.mxu0 %v5492
      %v5494 = vand.u32 %v231, 4294901760
      %5495 = vmatpush1.msra.mxu0 %v5494
      %5496 = vmatprep.subr.mxu0 0.0
      %5497 = vmatpush2.msra.mxu0 0.0
      %5498 = vmatprep.subr.mxu0 0.0
      %5499 = vmatpush2.msra.mxu0 0.0
      %5500 = vmatprep.subr.mxu0 0.0
      %5501 = vmatpush2.msra.mxu0 0.0
      %5502 = vmatprep.subr.mxu0 0.0
      %5503 = vmatpush2.msra.mxu0 0.0
      %5504 = vmatprep.subr.mxu0 0.0
      %5505 = vmatpush2.msra.mxu0 0.0
      %5506 = vmatprep.subr.mxu0 0.0
      %5507 = vmatpush2.msra.mxu0 0.0
      %5508 = vmatprep.subr.mxu0 0.0
      %5509 = vmatpush2.msra.mxu0 0.0
      %5510 = vmatprep.subr.mxu0 0.0
      %5511 = vmatpush2.msra.mxu0 0.0
      %5512 = vmatprep.subr.mxu0 0.0
      %5513 = vmatpush2.msra.mxu0 0.0
      %5514 = vmatprep.subr.mxu0 0.0
      %5515 = vmatpush2.msra.mxu0 0.0
      %5516 = vmatprep.subr.mxu0 0.0
      %5517 = vmatpush2.msra.mxu0 0.0
      %5518 = vmatprep.subr.mxu0 0.0
      %5519 = vmatpush2.msra.mxu0 0.0
      %5520 = vmatprep.subr.mxu0 0.0
      %5521 = vmatpush2.msra.mxu0 0.0
      %5522 = vmatprep.subr.mxu0 0.0
      %5523 = vmatpush2.msra.mxu0 0.0
      %5524 = vmatprep.subr.mxu0 0.0
      %5525 = vmatpush2.msra.mxu0 0.0
      %5526 = vmatprep.subr.mxu0 0.0
      %5527 = vmatpush2.msra.mxu0 0.0
      %5528 = vmatprep.mubr.f32.mxu0 0.0
      %v5529 = vand.u32 %v5431, 4294901760
      %v5530 = vsub.f32 %v5431, %v5529
      %v5531 = vand.u32 %v5530, 4294901760
      %v5532 = vsub.f32 %v5530, %v5531
      %v5533 = vand.u32 %v5532, 4294901760
      %5534 = vmatmul.mubr.f32.gmra.mxu0 %v5533
      %v5535 = vpop.f32.mrf.mxu0
      %v5536 = vadd.f32 0.0, %v5535
      %v5537 = vpop.f32.mrf.mxu0
      %v5538 = vadd.f32 0.0, %v5537
      %5539 = vdwg.mxu0
      %v5540 = vand.u32 %v292, 4294901760
      %v5541 = vsub.f32 %v292, %v5540
      %v5542 = vand.u32 %v5541, 4294901760
      %v5543 = vsub.f32 %v5541, %v5542
      %v5544 = vand.u32 %v5543, 4294901760
      %5545 = vmatprep.subr.mxu0 %v5544
      %v5546 = vand.u32 %v291, 4294901760
      %v5547 = vsub.f32 %v291, %v5546
      %v5548 = vand.u32 %v5547, 4294901760
      %v5549 = vsub.f32 %v5547, %v5548
      %v5550 = vand.u32 %v5549, 4294901760
      %5551 = vmatpush1.msra.mxu0 %v5550
      %v5552 = vand.u32 %v288, 4294901760
      %v5553 = vsub.f32 %v288, %v5552
      %v5554 = vand.u32 %v5553, 4294901760
      %v5555 = vsub.f32 %v5553, %v5554
      %v5556 = vand.u32 %v5555, 4294901760
      %5557 = vmatprep.subr.mxu0 %v5556
      %v5558 = vand.u32 %v287, 4294901760
      %v5559 = vsub.f32 %v287, %v5558
      %v5560 = vand.u32 %v5559, 4294901760
      %v5561 = vsub.f32 %v5559, %v5560
      %v5562 = vand.u32 %v5561, 4294901760
      %5563 = vmatpush1.msra.mxu0 %v5562
      %v5564 = vand.u32 %v284, 4294901760
      %v5565 = vsub.f32 %v284, %v5564
      %v5566 = vand.u32 %v5565, 4294901760
      %v5567 = vsub.f32 %v5565, %v5566
      %v5568 = vand.u32 %v5567, 4294901760
      %5569 = vmatprep.subr.mxu0 %v5568
      %v5570 = vand.u32 %v283, 4294901760
      %v5571 = vsub.f32 %v283, %v5570
      %v5572 = vand.u32 %v5571, 4294901760
      %v5573 = vsub.f32 %v5571, %v5572
      %v5574 = vand.u32 %v5573, 4294901760
      %5575 = vmatpush1.msra.mxu0 %v5574
      %v5576 = vand.u32 %v280, 4294901760
      %v5577 = vsub.f32 %v280, %v5576
      %v5578 = vand.u32 %v5577, 4294901760
      %v5579 = vsub.f32 %v5577, %v5578
      %v5580 = vand.u32 %v5579, 4294901760
      %5581 = vmatprep.subr.mxu0 %v5580
      %v5582 = vand.u32 %v279, 4294901760
      %v5583 = vsub.f32 %v279, %v5582
      %v5584 = vand.u32 %v5583, 4294901760
      %v5585 = vsub.f32 %v5583, %v5584
      %v5586 = vand.u32 %v5585, 4294901760
      %5587 = vmatpush1.msra.mxu0 %v5586
      %v5588 = vand.u32 %v276, 4294901760
      %v5589 = vsub.f32 %v276, %v5588
      %v5590 = vand.u32 %v5589, 4294901760
      %v5591 = vsub.f32 %v5589, %v5590
      %v5592 = vand.u32 %v5591, 4294901760
      %5593 = vmatprep.subr.mxu0 %v5592
      %v5594 = vand.u32 %v275, 4294901760
      %v5595 = vsub.f32 %v275, %v5594
      %v5596 = vand.u32 %v5595, 4294901760
      %v5597 = vsub.f32 %v5595, %v5596
      %v5598 = vand.u32 %v5597, 4294901760
      %5599 = vmatpush1.msra.mxu0 %v5598
      %v5600 = vand.u32 %v272, 4294901760
      %v5601 = vsub.f32 %v272, %v5600
      %v5602 = vand.u32 %v5601, 4294901760
      %v5603 = vsub.f32 %v5601, %v5602
      %v5604 = vand.u32 %v5603, 4294901760
      %5605 = vmatprep.subr.mxu0 %v5604
      %v5606 = vand.u32 %v271, 4294901760
      %v5607 = vsub.f32 %v271, %v5606
      %v5608 = vand.u32 %v5607, 4294901760
      %v5609 = vsub.f32 %v5607, %v5608
      %v5610 = vand.u32 %v5609, 4294901760
      %5611 = vmatpush1.msra.mxu0 %v5610
      %v5612 = vand.u32 %v268, 4294901760
      %v5613 = vsub.f32 %v268, %v5612
      %v5614 = vand.u32 %v5613, 4294901760
      %v5615 = vsub.f32 %v5613, %v5614
      %v5616 = vand.u32 %v5615, 4294901760
      %5617 = vmatprep.subr.mxu0 %v5616
      %v5618 = vand.u32 %v267, 4294901760
      %v5619 = vsub.f32 %v267, %v5618
      %v5620 = vand.u32 %v5619, 4294901760
      %v5621 = vsub.f32 %v5619, %v5620
      %v5622 = vand.u32 %v5621, 4294901760
      %5623 = vmatpush1.msra.mxu0 %v5622
      %v5624 = vand.u32 %v264, 4294901760
      %v5625 = vsub.f32 %v264, %v5624
      %v5626 = vand.u32 %v5625, 4294901760
      %v5627 = vsub.f32 %v5625, %v5626
      %v5628 = vand.u32 %v5627, 4294901760
      %5629 = vmatprep.subr.mxu0 %v5628
      %v5630 = vand.u32 %v263, 4294901760
      %v5631 = vsub.f32 %v263, %v5630
      %v5632 = vand.u32 %v5631, 4294901760
      %v5633 = vsub.f32 %v5631, %v5632
      %v5634 = vand.u32 %v5633, 4294901760
      %5635 = vmatpush1.msra.mxu0 %v5634
      %v5636 = vand.u32 %v260, 4294901760
      %v5637 = vsub.f32 %v260, %v5636
      %v5638 = vand.u32 %v5637, 4294901760
      %v5639 = vsub.f32 %v5637, %v5638
      %v5640 = vand.u32 %v5639, 4294901760
      %5641 = vmatprep.subr.mxu0 %v5640
      %v5642 = vand.u32 %v259, 4294901760
      %v5643 = vsub.f32 %v259, %v5642
      %v5644 = vand.u32 %v5643, 4294901760
      %v5645 = vsub.f32 %v5643, %v5644
      %v5646 = vand.u32 %v5645, 4294901760
      %5647 = vmatpush1.msra.mxu0 %v5646
      %v5648 = vand.u32 %v256, 4294901760
      %v5649 = vsub.f32 %v256, %v5648
      %v5650 = vand.u32 %v5649, 4294901760
      %v5651 = vsub.f32 %v5649, %v5650
      %v5652 = vand.u32 %v5651, 4294901760
      %5653 = vmatprep.subr.mxu0 %v5652
      %v5654 = vand.u32 %v255, 4294901760
      %v5655 = vsub.f32 %v255, %v5654
      %v5656 = vand.u32 %v5655, 4294901760
      %v5657 = vsub.f32 %v5655, %v5656
      %v5658 = vand.u32 %v5657, 4294901760
      %5659 = vmatpush1.msra.mxu0 %v5658
      %v5660 = vand.u32 %v252, 4294901760
      %v5661 = vsub.f32 %v252, %v5660
      %v5662 = vand.u32 %v5661, 4294901760
      %v5663 = vsub.f32 %v5661, %v5662
      %v5664 = vand.u32 %v5663, 4294901760
      %5665 = vmatprep.subr.mxu0 %v5664
      %v5666 = vand.u32 %v251, 4294901760
      %v5667 = vsub.f32 %v251, %v5666
      %v5668 = vand.u32 %v5667, 4294901760
      %v5669 = vsub.f32 %v5667, %v5668
      %v5670 = vand.u32 %v5669, 4294901760
      %5671 = vmatpush1.msra.mxu0 %v5670
      %v5672 = vand.u32 %v248, 4294901760
      %v5673 = vsub.f32 %v248, %v5672
      %v5674 = vand.u32 %v5673, 4294901760
      %v5675 = vsub.f32 %v5673, %v5674
      %v5676 = vand.u32 %v5675, 4294901760
      %5677 = vmatprep.subr.mxu0 %v5676
      %v5678 = vand.u32 %v247, 4294901760
      %v5679 = vsub.f32 %v247, %v5678
      %v5680 = vand.u32 %v5679, 4294901760
      %v5681 = vsub.f32 %v5679, %v5680
      %v5682 = vand.u32 %v5681, 4294901760
      %5683 = vmatpush1.msra.mxu0 %v5682
      %v5684 = vand.u32 %v244, 4294901760
      %v5685 = vsub.f32 %v244, %v5684
      %v5686 = vand.u32 %v5685, 4294901760
      %v5687 = vsub.f32 %v5685, %v5686
      %v5688 = vand.u32 %v5687, 4294901760
      %5689 = vmatprep.subr.mxu0 %v5688
      %v5690 = vand.u32 %v243, 4294901760
      %v5691 = vsub.f32 %v243, %v5690
      %v5692 = vand.u32 %v5691, 4294901760
      %v5693 = vsub.f32 %v5691, %v5692
      %v5694 = vand.u32 %v5693, 4294901760
      %5695 = vmatpush1.msra.mxu0 %v5694
      %v5696 = vand.u32 %v240, 4294901760
      %v5697 = vsub.f32 %v240, %v5696
      %v5698 = vand.u32 %v5697, 4294901760
      %v5699 = vsub.f32 %v5697, %v5698
      %v5700 = vand.u32 %v5699, 4294901760
      %5701 = vmatprep.subr.mxu0 %v5700
      %v5702 = vand.u32 %v239, 4294901760
      %v5703 = vsub.f32 %v239, %v5702
      %v5704 = vand.u32 %v5703, 4294901760
      %v5705 = vsub.f32 %v5703, %v5704
      %v5706 = vand.u32 %v5705, 4294901760
      %5707 = vmatpush1.msra.mxu0 %v5706
      %v5708 = vand.u32 %v236, 4294901760
      %v5709 = vsub.f32 %v236, %v5708
      %v5710 = vand.u32 %v5709, 4294901760
      %v5711 = vsub.f32 %v5709, %v5710
      %v5712 = vand.u32 %v5711, 4294901760
      %5713 = vmatprep.subr.mxu0 %v5712
      %v5714 = vand.u32 %v235, 4294901760
      %v5715 = vsub.f32 %v235, %v5714
      %v5716 = vand.u32 %v5715, 4294901760
      %v5717 = vsub.f32 %v5715, %v5716
      %v5718 = vand.u32 %v5717, 4294901760
      %5719 = vmatpush1.msra.mxu0 %v5718
      %v5720 = vand.u32 %v232, 4294901760
      %v5721 = vsub.f32 %v232, %v5720
      %v5722 = vand.u32 %v5721, 4294901760
      %v5723 = vsub.f32 %v5721, %v5722
      %v5724 = vand.u32 %v5723, 4294901760
      %5725 = vmatprep.subr.mxu0 %v5724
      %v5726 = vand.u32 %v231, 4294901760
      %v5727 = vsub.f32 %v231, %v5726
      %v5728 = vand.u32 %v5727, 4294901760
      %v5729 = vsub.f32 %v5727, %v5728
      %v5730 = vand.u32 %v5729, 4294901760
      %5731 = vmatpush1.msra.mxu0 %v5730
      %5732 = vmatprep.subr.mxu0 0.0
      %5733 = vmatpush2.msra.mxu0 0.0
      %5734 = vmatprep.subr.mxu0 0.0
      %5735 = vmatpush2.msra.mxu0 0.0
      %5736 = vmatprep.subr.mxu0 0.0
      %5737 = vmatpush2.msra.mxu0 0.0
      %5738 = vmatprep.subr.mxu0 0.0
      %5739 = vmatpush2.msra.mxu0 0.0
      %5740 = vmatprep.subr.mxu0 0.0
      %5741 = vmatpush2.msra.mxu0 0.0
      %5742 = vmatprep.subr.mxu0 0.0
      %5743 = vmatpush2.msra.mxu0 0.0
      %5744 = vmatprep.subr.mxu0 0.0
      %5745 = vmatpush2.msra.mxu0 0.0
      %5746 = vmatprep.subr.mxu0 0.0
      %5747 = vmatpush2.msra.mxu0 0.0
      %5748 = vmatprep.subr.mxu0 0.0
      %5749 = vmatpush2.msra.mxu0 0.0
      %5750 = vmatprep.subr.mxu0 0.0
      %5751 = vmatpush2.msra.mxu0 0.0
      %5752 = vmatprep.subr.mxu0 0.0
      %5753 = vmatpush2.msra.mxu0 0.0
      %5754 = vmatprep.subr.mxu0 0.0
      %5755 = vmatpush2.msra.mxu0 0.0
      %5756 = vmatprep.subr.mxu0 0.0
      %5757 = vmatpush2.msra.mxu0 0.0
      %5758 = vmatprep.subr.mxu0 0.0
      %5759 = vmatpush2.msra.mxu0 0.0
      %5760 = vmatprep.subr.mxu0 0.0
      %5761 = vmatpush2.msra.mxu0 0.0
      %5762 = vmatprep.subr.mxu0 0.0
      %5763 = vmatpush2.msra.mxu0 0.0
      %5764 = vmatprep.mubr.f32.mxu0 0.0
      %v5765 = vand.u32 %v5431, 4294901760
      %5766 = vmatmul.mubr.f32.gmra.mxu0 %v5765
      %v5767 = vpop.f32.mrf.mxu0
      %v5768 = vadd.f32 %v5536, %v5767
      %v5769 = vpop.f32.mrf.mxu0
      %v5770 = vadd.f32 %v5538, %v5769
      %5771 = vdwg.mxu0
      %v5772 = vand.u32 %v292, 4294901760
      %v5773 = vsub.f32 %v292, %v5772
      %5774 = vmatprep.subr.mxu0 %v5773
      %v5775 = vand.u32 %v291, 4294901760
      %v5776 = vsub.f32 %v291, %v5775
      %5777 = vmatpush1.msra.mxu0 %v5776
      %v5778 = vand.u32 %v288, 4294901760
      %v5779 = vsub.f32 %v288, %v5778
      %5780 = vmatprep.subr.mxu0 %v5779
      %v5781 = vand.u32 %v287, 4294901760
      %v5782 = vsub.f32 %v287, %v5781
      %5783 = vmatpush1.msra.mxu0 %v5782
      %v5784 = vand.u32 %v284, 4294901760
      %v5785 = vsub.f32 %v284, %v5784
      %5786 = vmatprep.subr.mxu0 %v5785
      %v5787 = vand.u32 %v283, 4294901760
      %v5788 = vsub.f32 %v283, %v5787
      %5789 = vmatpush1.msra.mxu0 %v5788
      %v5790 = vand.u32 %v280, 4294901760
      %v5791 = vsub.f32 %v280, %v5790
      %5792 = vmatprep.subr.mxu0 %v5791
      %v5793 = vand.u32 %v279, 4294901760
      %v5794 = vsub.f32 %v279, %v5793
      %5795 = vmatpush1.msra.mxu0 %v5794
      %v5796 = vand.u32 %v276, 4294901760
      %v5797 = vsub.f32 %v276, %v5796
      %5798 = vmatprep.subr.mxu0 %v5797
      %v5799 = vand.u32 %v275, 4294901760
      %v5800 = vsub.f32 %v275, %v5799
      %5801 = vmatpush1.msra.mxu0 %v5800
      %v5802 = vand.u32 %v272, 4294901760
      %v5803 = vsub.f32 %v272, %v5802
      %5804 = vmatprep.subr.mxu0 %v5803
      %v5805 = vand.u32 %v271, 4294901760
      %v5806 = vsub.f32 %v271, %v5805
      %5807 = vmatpush1.msra.mxu0 %v5806
      %v5808 = vand.u32 %v268, 4294901760
      %v5809 = vsub.f32 %v268, %v5808
      %5810 = vmatprep.subr.mxu0 %v5809
      %v5811 = vand.u32 %v267, 4294901760
      %v5812 = vsub.f32 %v267, %v5811
      %5813 = vmatpush1.msra.mxu0 %v5812
      %v5814 = vand.u32 %v264, 4294901760
      %v5815 = vsub.f32 %v264, %v5814
      %5816 = vmatprep.subr.mxu0 %v5815
      %v5817 = vand.u32 %v263, 4294901760
      %v5818 = vsub.f32 %v263, %v5817
      %5819 = vmatpush1.msra.mxu0 %v5818
      %v5820 = vand.u32 %v260, 4294901760
      %v5821 = vsub.f32 %v260, %v5820
      %5822 = vmatprep.subr.mxu0 %v5821
      %v5823 = vand.u32 %v259, 4294901760
      %v5824 = vsub.f32 %v259, %v5823
      %5825 = vmatpush1.msra.mxu0 %v5824
      %v5826 = vand.u32 %v256, 4294901760
      %v5827 = vsub.f32 %v256, %v5826
      %5828 = vmatprep.subr.mxu0 %v5827
      %v5829 = vand.u32 %v255, 4294901760
      %v5830 = vsub.f32 %v255, %v5829
      %5831 = vmatpush1.msra.mxu0 %v5830
      %v5832 = vand.u32 %v252, 4294901760
      %v5833 = vsub.f32 %v252, %v5832
      %5834 = vmatprep.subr.mxu0 %v5833
      %v5835 = vand.u32 %v251, 4294901760
      %v5836 = vsub.f32 %v251, %v5835
      %5837 = vmatpush1.msra.mxu0 %v5836
      %v5838 = vand.u32 %v248, 4294901760
      %v5839 = vsub.f32 %v248, %v5838
      %5840 = vmatprep.subr.mxu0 %v5839
      %v5841 = vand.u32 %v247, 4294901760
      %v5842 = vsub.f32 %v247, %v5841
      %5843 = vmatpush1.msra.mxu0 %v5842
      %v5844 = vand.u32 %v244, 4294901760
      %v5845 = vsub.f32 %v244, %v5844
      %5846 = vmatprep.subr.mxu0 %v5845
      %v5847 = vand.u32 %v243, 4294901760
      %v5848 = vsub.f32 %v243, %v5847
      %5849 = vmatpush1.msra.mxu0 %v5848
      %v5850 = vand.u32 %v240, 4294901760
      %v5851 = vsub.f32 %v240, %v5850
      %5852 = vmatprep.subr.mxu0 %v5851
      %v5853 = vand.u32 %v239, 4294901760
      %v5854 = vsub.f32 %v239, %v5853
      %5855 = vmatpush1.msra.mxu0 %v5854
      %v5856 = vand.u32 %v236, 4294901760
      %v5857 = vsub.f32 %v236, %v5856
      %5858 = vmatprep.subr.mxu0 %v5857
      %v5859 = vand.u32 %v235, 4294901760
      %v5860 = vsub.f32 %v235, %v5859
      %5861 = vmatpush1.msra.mxu0 %v5860
      %v5862 = vand.u32 %v232, 4294901760
      %v5863 = vsub.f32 %v232, %v5862
      %5864 = vmatprep.subr.mxu0 %v5863
      %v5865 = vand.u32 %v231, 4294901760
      %v5866 = vsub.f32 %v231, %v5865
      %5867 = vmatpush1.msra.mxu0 %v5866
      %5868 = vmatprep.subr.mxu0 0.0
      %5869 = vmatpush2.msra.mxu0 0.0
      %5870 = vmatprep.subr.mxu0 0.0
      %5871 = vmatpush2.msra.mxu0 0.0
      %5872 = vmatprep.subr.mxu0 0.0
      %5873 = vmatpush2.msra.mxu0 0.0
      %5874 = vmatprep.subr.mxu0 0.0
      %5875 = vmatpush2.msra.mxu0 0.0
      %5876 = vmatprep.subr.mxu0 0.0
      %5877 = vmatpush2.msra.mxu0 0.0
      %5878 = vmatprep.subr.mxu0 0.0
      %5879 = vmatpush2.msra.mxu0 0.0
      %5880 = vmatprep.subr.mxu0 0.0
      %5881 = vmatpush2.msra.mxu0 0.0
      %5882 = vmatprep.subr.mxu0 0.0
      %5883 = vmatpush2.msra.mxu0 0.0
      %5884 = vmatprep.subr.mxu0 0.0
      %5885 = vmatpush2.msra.mxu0 0.0
      %5886 = vmatprep.subr.mxu0 0.0
      %5887 = vmatpush2.msra.mxu0 0.0
      %5888 = vmatprep.subr.mxu0 0.0
      %5889 = vmatpush2.msra.mxu0 0.0
      %5890 = vmatprep.subr.mxu0 0.0
      %5891 = vmatpush2.msra.mxu0 0.0
      %5892 = vmatprep.subr.mxu0 0.0
      %5893 = vmatpush2.msra.mxu0 0.0
      %5894 = vmatprep.subr.mxu0 0.0
      %5895 = vmatpush2.msra.mxu0 0.0
      %5896 = vmatprep.subr.mxu0 0.0
      %5897 = vmatpush2.msra.mxu0 0.0
      %5898 = vmatprep.subr.mxu0 0.0
      %5899 = vmatpush2.msra.mxu0 0.0
      %5900 = vmatprep.mubr.f32.mxu0 0.0
      %v5901 = vand.u32 %v5431, 4294901760
      %v5902 = vsub.f32 %v5431, %v5901
      %5903 = vmatmul.mubr.f32.gmra.mxu0 %v5902
      %v5904 = vpop.f32.mrf.mxu0
      %v5905 = vadd.f32 %v5768, %v5904
      %v5906 = vpop.f32.mrf.mxu0
      %v5907 = vadd.f32 %v5770, %v5906
      %5908 = vdwg.mxu0
      %v5909 = vand.u32 %v292, 4294901760
      %5910 = vmatprep.subr.mxu0 %v5909
      %v5911 = vand.u32 %v291, 4294901760
      %5912 = vmatpush1.msra.mxu0 %v5911
      %v5913 = vand.u32 %v288, 4294901760
      %5914 = vmatprep.subr.mxu0 %v5913
      %v5915 = vand.u32 %v287, 4294901760
      %5916 = vmatpush1.msra.mxu0 %v5915
      %v5917 = vand.u32 %v284, 4294901760
      %5918 = vmatprep.subr.mxu0 %v5917
      %v5919 = vand.u32 %v283, 4294901760
      %5920 = vmatpush1.msra.mxu0 %v5919
      %v5921 = vand.u32 %v280, 4294901760
      %5922 = vmatprep.subr.mxu0 %v5921
      %v5923 = vand.u32 %v279, 4294901760
      %5924 = vmatpush1.msra.mxu0 %v5923
      %v5925 = vand.u32 %v276, 4294901760
      %5926 = vmatprep.subr.mxu0 %v5925
      %v5927 = vand.u32 %v275, 4294901760
      %5928 = vmatpush1.msra.mxu0 %v5927
      %v5929 = vand.u32 %v272, 4294901760
      %5930 = vmatprep.subr.mxu0 %v5929
      %v5931 = vand.u32 %v271, 4294901760
      %5932 = vmatpush1.msra.mxu0 %v5931
      %v5933 = vand.u32 %v268, 4294901760
      %5934 = vmatprep.subr.mxu0 %v5933
      %v5935 = vand.u32 %v267, 4294901760
      %5936 = vmatpush1.msra.mxu0 %v5935
      %v5937 = vand.u32 %v264, 4294901760
      %5938 = vmatprep.subr.mxu0 %v5937
      %v5939 = vand.u32 %v263, 4294901760
      %5940 = vmatpush1.msra.mxu0 %v5939
      %v5941 = vand.u32 %v260, 4294901760
      %5942 = vmatprep.subr.mxu0 %v5941
      %v5943 = vand.u32 %v259, 4294901760
      %5944 = vmatpush1.msra.mxu0 %v5943
      %v5945 = vand.u32 %v256, 4294901760
      %5946 = vmatprep.subr.mxu0 %v5945
      %v5947 = vand.u32 %v255, 4294901760
      %5948 = vmatpush1.msra.mxu0 %v5947
      %v5949 = vand.u32 %v252, 4294901760
      %5950 = vmatprep.subr.mxu0 %v5949
      %v5951 = vand.u32 %v251, 4294901760
      %5952 = vmatpush1.msra.mxu0 %v5951
      %v5953 = vand.u32 %v248, 4294901760
      %5954 = vmatprep.subr.mxu0 %v5953
      %v5955 = vand.u32 %v247, 4294901760
      %5956 = vmatpush1.msra.mxu0 %v5955
      %v5957 = vand.u32 %v244, 4294901760
      %5958 = vmatprep.subr.mxu0 %v5957
      %v5959 = vand.u32 %v243, 4294901760
      %5960 = vmatpush1.msra.mxu0 %v5959
      %v5961 = vand.u32 %v240, 4294901760
      %5962 = vmatprep.subr.mxu0 %v5961
      %v5963 = vand.u32 %v239, 4294901760
      %5964 = vmatpush1.msra.mxu0 %v5963
      %v5965 = vand.u32 %v236, 4294901760
      %5966 = vmatprep.subr.mxu0 %v5965
      %v5967 = vand.u32 %v235, 4294901760
      %5968 = vmatpush1.msra.mxu0 %v5967
      %v5969 = vand.u32 %v232, 4294901760
      %5970 = vmatprep.subr.mxu0 %v5969
      %v5971 = vand.u32 %v231, 4294901760
      %5972 = vmatpush1.msra.mxu0 %v5971
      %5973 = vmatprep.subr.mxu0 0.0
      %5974 = vmatpush2.msra.mxu0 0.0
      %5975 = vmatprep.subr.mxu0 0.0
      %5976 = vmatpush2.msra.mxu0 0.0
      %5977 = vmatprep.subr.mxu0 0.0
      %5978 = vmatpush2.msra.mxu0 0.0
      %5979 = vmatprep.subr.mxu0 0.0
      %5980 = vmatpush2.msra.mxu0 0.0
      %5981 = vmatprep.subr.mxu0 0.0
      %5982 = vmatpush2.msra.mxu0 0.0
      %5983 = vmatprep.subr.mxu0 0.0
      %5984 = vmatpush2.msra.mxu0 0.0
      %5985 = vmatprep.subr.mxu0 0.0
      %5986 = vmatpush2.msra.mxu0 0.0
      %5987 = vmatprep.subr.mxu0 0.0
      %5988 = vmatpush2.msra.mxu0 0.0
      %5989 = vmatprep.subr.mxu0 0.0
      %5990 = vmatpush2.msra.mxu0 0.0
      %5991 = vmatprep.subr.mxu0 0.0
      %5992 = vmatpush2.msra.mxu0 0.0
      %5993 = vmatprep.subr.mxu0 0.0
      %5994 = vmatpush2.msra.mxu0 0.0
      %5995 = vmatprep.subr.mxu0 0.0
      %5996 = vmatpush2.msra.mxu0 0.0
      %5997 = vmatprep.subr.mxu0 0.0
      %5998 = vmatpush2.msra.mxu0 0.0
      %5999 = vmatprep.subr.mxu0 0.0
      %6000 = vmatpush2.msra.mxu0 0.0
      %6001 = vmatprep.subr.mxu0 0.0
      %6002 = vmatpush2.msra.mxu0 0.0
      %6003 = vmatprep.subr.mxu0 0.0
      %6004 = vmatpush2.msra.mxu0 0.0
      %6005 = vmatprep.mubr.f32.mxu0 0.0
      %v6006 = vand.u32 %v5431, 4294901760
      %v6007 = vsub.f32 %v5431, %v6006
      %v6008 = vand.u32 %v6007, 4294901760
      %6009 = vmatmul.mubr.f32.gmra.mxu0 %v6008
      %v6010 = vpop.f32.mrf.mxu0
      %v6011 = vadd.f32 %v5905, %v6010
      %v6012 = vpop.f32.mrf.mxu0
      %v6013 = vadd.f32 %v5907, %v6012
      %6014 = vdwg.mxu0
      %v6015 = vand.u32 %v292, 4294901760
      %v6016 = vsub.f32 %v292, %v6015
      %v6017 = vand.u32 %v6016, 4294901760
      %6018 = vmatprep.subr.mxu0 %v6017
      %v6019 = vand.u32 %v291, 4294901760
      %v6020 = vsub.f32 %v291, %v6019
      %v6021 = vand.u32 %v6020, 4294901760
      %6022 = vmatpush1.msra.mxu0 %v6021
      %v6023 = vand.u32 %v288, 4294901760
      %v6024 = vsub.f32 %v288, %v6023
      %v6025 = vand.u32 %v6024, 4294901760
      %6026 = vmatprep.subr.mxu0 %v6025
      %v6027 = vand.u32 %v287, 4294901760
      %v6028 = vsub.f32 %v287, %v6027
      %v6029 = vand.u32 %v6028, 4294901760
      %6030 = vmatpush1.msra.mxu0 %v6029
      %v6031 = vand.u32 %v284, 4294901760
      %v6032 = vsub.f32 %v284, %v6031
      %v6033 = vand.u32 %v6032, 4294901760
      %6034 = vmatprep.subr.mxu0 %v6033
      %v6035 = vand.u32 %v283, 4294901760
      %v6036 = vsub.f32 %v283, %v6035
      %v6037 = vand.u32 %v6036, 4294901760
      %6038 = vmatpush1.msra.mxu0 %v6037
      %v6039 = vand.u32 %v280, 4294901760
      %v6040 = vsub.f32 %v280, %v6039
      %v6041 = vand.u32 %v6040, 4294901760
      %6042 = vmatprep.subr.mxu0 %v6041
      %v6043 = vand.u32 %v279, 4294901760
      %v6044 = vsub.f32 %v279, %v6043
      %v6045 = vand.u32 %v6044, 4294901760
      %6046 = vmatpush1.msra.mxu0 %v6045
      %v6047 = vand.u32 %v276, 4294901760
      %v6048 = vsub.f32 %v276, %v6047
      %v6049 = vand.u32 %v6048, 4294901760
      %6050 = vmatprep.subr.mxu0 %v6049
      %v6051 = vand.u32 %v275, 4294901760
      %v6052 = vsub.f32 %v275, %v6051
      %v6053 = vand.u32 %v6052, 4294901760
      %6054 = vmatpush1.msra.mxu0 %v6053
      %v6055 = vand.u32 %v272, 4294901760
      %v6056 = vsub.f32 %v272, %v6055
      %v6057 = vand.u32 %v6056, 4294901760
      %6058 = vmatprep.subr.mxu0 %v6057
      %v6059 = vand.u32 %v271, 4294901760
      %v6060 = vsub.f32 %v271, %v6059
      %v6061 = vand.u32 %v6060, 4294901760
      %6062 = vmatpush1.msra.mxu0 %v6061
      %v6063 = vand.u32 %v268, 4294901760
      %v6064 = vsub.f32 %v268, %v6063
      %v6065 = vand.u32 %v6064, 4294901760
      %6066 = vmatprep.subr.mxu0 %v6065
      %v6067 = vand.u32 %v267, 4294901760
      %v6068 = vsub.f32 %v267, %v6067
      %v6069 = vand.u32 %v6068, 4294901760
      %6070 = vmatpush1.msra.mxu0 %v6069
      %v6071 = vand.u32 %v264, 4294901760
      %v6072 = vsub.f32 %v264, %v6071
      %v6073 = vand.u32 %v6072, 4294901760
      %6074 = vmatprep.subr.mxu0 %v6073
      %v6075 = vand.u32 %v263, 4294901760
      %v6076 = vsub.f32 %v263, %v6075
      %v6077 = vand.u32 %v6076, 4294901760
      %6078 = vmatpush1.msra.mxu0 %v6077
      %v6079 = vand.u32 %v260, 4294901760
      %v6080 = vsub.f32 %v260, %v6079
      %v6081 = vand.u32 %v6080, 4294901760
      %6082 = vmatprep.subr.mxu0 %v6081
      %v6083 = vand.u32 %v259, 4294901760
      %v6084 = vsub.f32 %v259, %v6083
      %v6085 = vand.u32 %v6084, 4294901760
      %6086 = vmatpush1.msra.mxu0 %v6085
      %v6087 = vand.u32 %v256, 4294901760
      %v6088 = vsub.f32 %v256, %v6087
      %v6089 = vand.u32 %v6088, 4294901760
      %6090 = vmatprep.subr.mxu0 %v6089
      %v6091 = vand.u32 %v255, 4294901760
      %v6092 = vsub.f32 %v255, %v6091
      %v6093 = vand.u32 %v6092, 4294901760
      %6094 = vmatpush1.msra.mxu0 %v6093
      %v6095 = vand.u32 %v252, 4294901760
      %v6096 = vsub.f32 %v252, %v6095
      %v6097 = vand.u32 %v6096, 4294901760
      %6098 = vmatprep.subr.mxu0 %v6097
      %v6099 = vand.u32 %v251, 4294901760
      %v6100 = vsub.f32 %v251, %v6099
      %v6101 = vand.u32 %v6100, 4294901760
      %6102 = vmatpush1.msra.mxu0 %v6101
      %v6103 = vand.u32 %v248, 4294901760
      %v6104 = vsub.f32 %v248, %v6103
      %v6105 = vand.u32 %v6104, 4294901760
      %6106 = vmatprep.subr.mxu0 %v6105
      %v6107 = vand.u32 %v247, 4294901760
      %v6108 = vsub.f32 %v247, %v6107
      %v6109 = vand.u32 %v6108, 4294901760
      %6110 = vmatpush1.msra.mxu0 %v6109
      %v6111 = vand.u32 %v244, 4294901760
      %v6112 = vsub.f32 %v244, %v6111
      %v6113 = vand.u32 %v6112, 4294901760
      %6114 = vmatprep.subr.mxu0 %v6113
      %v6115 = vand.u32 %v243, 4294901760
      %v6116 = vsub.f32 %v243, %v6115
      %v6117 = vand.u32 %v6116, 4294901760
      %6118 = vmatpush1.msra.mxu0 %v6117
      %v6119 = vand.u32 %v240, 4294901760
      %v6120 = vsub.f32 %v240, %v6119
      %v6121 = vand.u32 %v6120, 4294901760
      %6122 = vmatprep.subr.mxu0 %v6121
      %v6123 = vand.u32 %v239, 4294901760
      %v6124 = vsub.f32 %v239, %v6123
      %v6125 = vand.u32 %v6124, 4294901760
      %6126 = vmatpush1.msra.mxu0 %v6125
      %v6127 = vand.u32 %v236, 4294901760
      %v6128 = vsub.f32 %v236, %v6127
      %v6129 = vand.u32 %v6128, 4294901760
      %6130 = vmatprep.subr.mxu0 %v6129
      %v6131 = vand.u32 %v235, 4294901760
      %v6132 = vsub.f32 %v235, %v6131
      %v6133 = vand.u32 %v6132, 4294901760
      %6134 = vmatpush1.msra.mxu0 %v6133
      %v6135 = vand.u32 %v232, 4294901760
      %v6136 = vsub.f32 %v232, %v6135
      %v6137 = vand.u32 %v6136, 4294901760
      %6138 = vmatprep.subr.mxu0 %v6137
      %v6139 = vand.u32 %v231, 4294901760
      %v6140 = vsub.f32 %v231, %v6139
      %v6141 = vand.u32 %v6140, 4294901760
      %6142 = vmatpush1.msra.mxu0 %v6141
      %6143 = vmatprep.subr.mxu0 0.0
      %6144 = vmatpush2.msra.mxu0 0.0
      %6145 = vmatprep.subr.mxu0 0.0
      %6146 = vmatpush2.msra.mxu0 0.0
      %6147 = vmatprep.subr.mxu0 0.0
      %6148 = vmatpush2.msra.mxu0 0.0
      %6149 = vmatprep.subr.mxu0 0.0
      %6150 = vmatpush2.msra.mxu0 0.0
      %6151 = vmatprep.subr.mxu0 0.0
      %6152 = vmatpush2.msra.mxu0 0.0
      %6153 = vmatprep.subr.mxu0 0.0
      %6154 = vmatpush2.msra.mxu0 0.0
      %6155 = vmatprep.subr.mxu0 0.0
      %6156 = vmatpush2.msra.mxu0 0.0
      %6157 = vmatprep.subr.mxu0 0.0
      %6158 = vmatpush2.msra.mxu0 0.0
      %6159 = vmatprep.subr.mxu0 0.0
      %6160 = vmatpush2.msra.mxu0 0.0
      %6161 = vmatprep.subr.mxu0 0.0
      %6162 = vmatpush2.msra.mxu0 0.0
      %6163 = vmatprep.subr.mxu0 0.0
      %6164 = vmatpush2.msra.mxu0 0.0
      %6165 = vmatprep.subr.mxu0 0.0
      %6166 = vmatpush2.msra.mxu0 0.0
      %6167 = vmatprep.subr.mxu0 0.0
      %6168 = vmatpush2.msra.mxu0 0.0
      %6169 = vmatprep.subr.mxu0 0.0
      %6170 = vmatpush2.msra.mxu0 0.0
      %6171 = vmatprep.subr.mxu0 0.0
      %6172 = vmatpush2.msra.mxu0 0.0
      %6173 = vmatprep.subr.mxu0 0.0
      %6174 = vmatpush2.msra.mxu0 0.0
      %6175 = vmatprep.mubr.f32.mxu0 0.0
      %v6176 = vand.u32 %v5431, 4294901760
      %6177 = vmatmul.mubr.f32.gmra.mxu0 %v6176
      %v6178 = vpop.f32.mrf.mxu0
      %v6179 = vadd.f32 %v6011, %v6178
      %v6180 = vpop.f32.mrf.mxu0
      %v6181 = vadd.f32 %v6013, %v6180
      %6182 = vdwg.mxu0
      %v6183 = vand.u32 %v292, 4294901760
      %6184 = vmatprep.subr.mxu0 %v6183
      %v6185 = vand.u32 %v291, 4294901760
      %6186 = vmatpush1.msra.mxu0 %v6185
      %v6187 = vand.u32 %v288, 4294901760
      %6188 = vmatprep.subr.mxu0 %v6187
      %v6189 = vand.u32 %v287, 4294901760
      %6190 = vmatpush1.msra.mxu0 %v6189
      %v6191 = vand.u32 %v284, 4294901760
      %6192 = vmatprep.subr.mxu0 %v6191
      %v6193 = vand.u32 %v283, 4294901760
      %6194 = vmatpush1.msra.mxu0 %v6193
      %v6195 = vand.u32 %v280, 4294901760
      %6196 = vmatprep.subr.mxu0 %v6195
      %v6197 = vand.u32 %v279, 4294901760
      %6198 = vmatpush1.msra.mxu0 %v6197
      %v6199 = vand.u32 %v276, 4294901760
      %6200 = vmatprep.subr.mxu0 %v6199
      %v6201 = vand.u32 %v275, 4294901760
      %6202 = vmatpush1.msra.mxu0 %v6201
      %v6203 = vand.u32 %v272, 4294901760
      %6204 = vmatprep.subr.mxu0 %v6203
      %v6205 = vand.u32 %v271, 4294901760
      %6206 = vmatpush1.msra.mxu0 %v6205
      %v6207 = vand.u32 %v268, 4294901760
      %6208 = vmatprep.subr.mxu0 %v6207
      %v6209 = vand.u32 %v267, 4294901760
      %6210 = vmatpush1.msra.mxu0 %v6209
      %v6211 = vand.u32 %v264, 4294901760
      %6212 = vmatprep.subr.mxu0 %v6211
      %v6213 = vand.u32 %v263, 4294901760
      %6214 = vmatpush1.msra.mxu0 %v6213
      %v6215 = vand.u32 %v260, 4294901760
      %6216 = vmatprep.subr.mxu0 %v6215
      %v6217 = vand.u32 %v259, 4294901760
      %6218 = vmatpush1.msra.mxu0 %v6217
      %v6219 = vand.u32 %v256, 4294901760
      %6220 = vmatprep.subr.mxu0 %v6219
      %v6221 = vand.u32 %v255, 4294901760
      %6222 = vmatpush1.msra.mxu0 %v6221
      %v6223 = vand.u32 %v252, 4294901760
      %6224 = vmatprep.subr.mxu0 %v6223
      %v6225 = vand.u32 %v251, 4294901760
      %6226 = vmatpush1.msra.mxu0 %v6225
      %v6227 = vand.u32 %v248, 4294901760
      %6228 = vmatprep.subr.mxu0 %v6227
      %v6229 = vand.u32 %v247, 4294901760
      %6230 = vmatpush1.msra.mxu0 %v6229
      %v6231 = vand.u32 %v244, 4294901760
      %6232 = vmatprep.subr.mxu0 %v6231
      %v6233 = vand.u32 %v243, 4294901760
      %6234 = vmatpush1.msra.mxu0 %v6233
      %v6235 = vand.u32 %v240, 4294901760
      %6236 = vmatprep.subr.mxu0 %v6235
      %v6237 = vand.u32 %v239, 4294901760
      %6238 = vmatpush1.msra.mxu0 %v6237
      %v6239 = vand.u32 %v236, 4294901760
      %6240 = vmatprep.subr.mxu0 %v6239
      %v6241 = vand.u32 %v235, 4294901760
      %6242 = vmatpush1.msra.mxu0 %v6241
      %v6243 = vand.u32 %v232, 4294901760
      %6244 = vmatprep.subr.mxu0 %v6243
      %v6245 = vand.u32 %v231, 4294901760
      %6246 = vmatpush1.msra.mxu0 %v6245
      %6247 = vmatprep.subr.mxu0 0.0
      %6248 = vmatpush2.msra.mxu0 0.0
      %6249 = vmatprep.subr.mxu0 0.0
      %6250 = vmatpush2.msra.mxu0 0.0
      %6251 = vmatprep.subr.mxu0 0.0
      %6252 = vmatpush2.msra.mxu0 0.0
      %6253 = vmatprep.subr.mxu0 0.0
      %6254 = vmatpush2.msra.mxu0 0.0
      %6255 = vmatprep.subr.mxu0 0.0
      %6256 = vmatpush2.msra.mxu0 0.0
      %6257 = vmatprep.subr.mxu0 0.0
      %6258 = vmatpush2.msra.mxu0 0.0
      %6259 = vmatprep.subr.mxu0 0.0
      %6260 = vmatpush2.msra.mxu0 0.0
      %6261 = vmatprep.subr.mxu0 0.0
      %6262 = vmatpush2.msra.mxu0 0.0
      %6263 = vmatprep.subr.mxu0 0.0
      %6264 = vmatpush2.msra.mxu0 0.0
      %6265 = vmatprep.subr.mxu0 0.0
      %6266 = vmatpush2.msra.mxu0 0.0
      %6267 = vmatprep.subr.mxu0 0.0
      %6268 = vmatpush2.msra.mxu0 0.0
      %6269 = vmatprep.subr.mxu0 0.0
      %6270 = vmatpush2.msra.mxu0 0.0
      %6271 = vmatprep.subr.mxu0 0.0
      %6272 = vmatpush2.msra.mxu0 0.0
      %6273 = vmatprep.subr.mxu0 0.0
      %6274 = vmatpush2.msra.mxu0 0.0
      %6275 = vmatprep.subr.mxu0 0.0
      %6276 = vmatpush2.msra.mxu0 0.0
      %6277 = vmatprep.subr.mxu0 0.0
      %6278 = vmatpush2.msra.mxu0 0.0
      %6279 = vmatprep.mubr.f32.mxu0 0.0
      %v6280 = vand.u32 %v5431, 4294901760
      %6281 = vmatmul.mubr.f32.gmra.mxu0 %v6280
      %v6282 = vpop.f32.mrf.mxu0
      %v6283 = vadd.f32 %v6179, %v6282
      %v6284 = vpop.f32.mrf.mxu0
      %v6285 = vadd.f32 %v6181, %v6284
      %6286 = vdwg.mxu0
      %v6287 = vand.u32 %v294, 4294901760
      %6288 = vmatprep.subr.mxu0 %v6287
      %v6289 = vand.u32 %v293, 4294901760
      %6290 = vmatpush1.msra.mxu0 %v6289
      %v6291 = vand.u32 %v290, 4294901760
      %6292 = vmatprep.subr.mxu0 %v6291
      %v6293 = vand.u32 %v289, 4294901760
      %6294 = vmatpush1.msra.mxu0 %v6293
      %v6295 = vand.u32 %v286, 4294901760
      %6296 = vmatprep.subr.mxu0 %v6295
      %v6297 = vand.u32 %v285, 4294901760
      %6298 = vmatpush1.msra.mxu0 %v6297
      %v6299 = vand.u32 %v282, 4294901760
      %6300 = vmatprep.subr.mxu0 %v6299
      %v6301 = vand.u32 %v281, 4294901760
      %6302 = vmatpush1.msra.mxu0 %v6301
      %v6303 = vand.u32 %v278, 4294901760
      %6304 = vmatprep.subr.mxu0 %v6303
      %v6305 = vand.u32 %v277, 4294901760
      %6306 = vmatpush1.msra.mxu0 %v6305
      %v6307 = vand.u32 %v274, 4294901760
      %6308 = vmatprep.subr.mxu0 %v6307
      %v6309 = vand.u32 %v273, 4294901760
      %6310 = vmatpush1.msra.mxu0 %v6309
      %v6311 = vand.u32 %v270, 4294901760
      %6312 = vmatprep.subr.mxu0 %v6311
      %v6313 = vand.u32 %v269, 4294901760
      %6314 = vmatpush1.msra.mxu0 %v6313
      %v6315 = vand.u32 %v266, 4294901760
      %6316 = vmatprep.subr.mxu0 %v6315
      %v6317 = vand.u32 %v265, 4294901760
      %6318 = vmatpush1.msra.mxu0 %v6317
      %v6319 = vand.u32 %v262, 4294901760
      %6320 = vmatprep.subr.mxu0 %v6319
      %v6321 = vand.u32 %v261, 4294901760
      %6322 = vmatpush1.msra.mxu0 %v6321
      %v6323 = vand.u32 %v258, 4294901760
      %6324 = vmatprep.subr.mxu0 %v6323
      %v6325 = vand.u32 %v257, 4294901760
      %6326 = vmatpush1.msra.mxu0 %v6325
      %v6327 = vand.u32 %v254, 4294901760
      %6328 = vmatprep.subr.mxu0 %v6327
      %v6329 = vand.u32 %v253, 4294901760
      %6330 = vmatpush1.msra.mxu0 %v6329
      %v6331 = vand.u32 %v250, 4294901760
      %6332 = vmatprep.subr.mxu0 %v6331
      %v6333 = vand.u32 %v249, 4294901760
      %6334 = vmatpush1.msra.mxu0 %v6333
      %v6335 = vand.u32 %v246, 4294901760
      %6336 = vmatprep.subr.mxu0 %v6335
      %v6337 = vand.u32 %v245, 4294901760
      %6338 = vmatpush1.msra.mxu0 %v6337
      %v6339 = vand.u32 %v242, 4294901760
      %6340 = vmatprep.subr.mxu0 %v6339
      %v6341 = vand.u32 %v241, 4294901760
      %6342 = vmatpush1.msra.mxu0 %v6341
      %v6343 = vand.u32 %v238, 4294901760
      %6344 = vmatprep.subr.mxu0 %v6343
      %v6345 = vand.u32 %v237, 4294901760
      %6346 = vmatpush1.msra.mxu0 %v6345
      %v6347 = vand.u32 %v234, 4294901760
      %6348 = vmatprep.subr.mxu0 %v6347
      %v6349 = vand.u32 %v233, 4294901760
      %6350 = vmatpush1.msra.mxu0 %v6349
      %6351 = vmatprep.subr.mxu0 0.0
      %6352 = vmatpush2.msra.mxu0 0.0
      %6353 = vmatprep.subr.mxu0 0.0
      %6354 = vmatpush2.msra.mxu0 0.0
      %6355 = vmatprep.subr.mxu0 0.0
      %6356 = vmatpush2.msra.mxu0 0.0
      %6357 = vmatprep.subr.mxu0 0.0
      %6358 = vmatpush2.msra.mxu0 0.0
      %6359 = vmatprep.subr.mxu0 0.0
      %6360 = vmatpush2.msra.mxu0 0.0
      %6361 = vmatprep.subr.mxu0 0.0
      %6362 = vmatpush2.msra.mxu0 0.0
      %6363 = vmatprep.subr.mxu0 0.0
      %6364 = vmatpush2.msra.mxu0 0.0
      %6365 = vmatprep.subr.mxu0 0.0
      %6366 = vmatpush2.msra.mxu0 0.0
      %6367 = vmatprep.subr.mxu0 0.0
      %6368 = vmatpush2.msra.mxu0 0.0
      %6369 = vmatprep.subr.mxu0 0.0
      %6370 = vmatpush2.msra.mxu0 0.0
      %6371 = vmatprep.subr.mxu0 0.0
      %6372 = vmatpush2.msra.mxu0 0.0
      %6373 = vmatprep.subr.mxu0 0.0
      %6374 = vmatpush2.msra.mxu0 0.0
      %6375 = vmatprep.subr.mxu0 0.0
      %6376 = vmatpush2.msra.mxu0 0.0
      %6377 = vmatprep.subr.mxu0 0.0
      %6378 = vmatpush2.msra.mxu0 0.0
      %6379 = vmatprep.subr.mxu0 0.0
      %6380 = vmatpush2.msra.mxu0 0.0
      %6381 = vmatprep.subr.mxu0 0.0
      %6382 = vmatpush2.msra.mxu0 0.0
      %6383 = vmatprep.mubr.f32.mxu0 0.0
      %v6384 = vand.u32 %v5431, 4294901760
      %v6385 = vsub.f32 %v5431, %v6384
      %v6386 = vand.u32 %v6385, 4294901760
      %v6387 = vsub.f32 %v6385, %v6386
      %v6388 = vand.u32 %v6387, 4294901760
      %6389 = vmatmul.mubr.f32.gmra.mxu0 %v6388
      %v6390 = vpop.f32.mrf.mxu0
      %v6391 = vadd.f32 0.0, %v6390
      %v6392 = vpop.f32.mrf.mxu0
      %v6393 = vadd.f32 0.0, %v6392
      %6394 = vdwg.mxu0
      %v6395 = vand.u32 %v294, 4294901760
      %v6396 = vsub.f32 %v294, %v6395
      %v6397 = vand.u32 %v6396, 4294901760
      %v6398 = vsub.f32 %v6396, %v6397
      %v6399 = vand.u32 %v6398, 4294901760
      %6400 = vmatprep.subr.mxu0 %v6399
      %v6401 = vand.u32 %v293, 4294901760
      %v6402 = vsub.f32 %v293, %v6401
      %v6403 = vand.u32 %v6402, 4294901760
      %v6404 = vsub.f32 %v6402, %v6403
      %v6405 = vand.u32 %v6404, 4294901760
      %6406 = vmatpush1.msra.mxu0 %v6405
      %v6407 = vand.u32 %v290, 4294901760
      %v6408 = vsub.f32 %v290, %v6407
      %v6409 = vand.u32 %v6408, 4294901760
      %v6410 = vsub.f32 %v6408, %v6409
      %v6411 = vand.u32 %v6410, 4294901760
      %6412 = vmatprep.subr.mxu0 %v6411
      %v6413 = vand.u32 %v289, 4294901760
      %v6414 = vsub.f32 %v289, %v6413
      %v6415 = vand.u32 %v6414, 4294901760
      %v6416 = vsub.f32 %v6414, %v6415
      %v6417 = vand.u32 %v6416, 4294901760
      %6418 = vmatpush1.msra.mxu0 %v6417
      %v6419 = vand.u32 %v286, 4294901760
      %v6420 = vsub.f32 %v286, %v6419
      %v6421 = vand.u32 %v6420, 4294901760
      %v6422 = vsub.f32 %v6420, %v6421
      %v6423 = vand.u32 %v6422, 4294901760
      %6424 = vmatprep.subr.mxu0 %v6423
      %v6425 = vand.u32 %v285, 4294901760
      %v6426 = vsub.f32 %v285, %v6425
      %v6427 = vand.u32 %v6426, 4294901760
      %v6428 = vsub.f32 %v6426, %v6427
      %v6429 = vand.u32 %v6428, 4294901760
      %6430 = vmatpush1.msra.mxu0 %v6429
      %v6431 = vand.u32 %v282, 4294901760
      %v6432 = vsub.f32 %v282, %v6431
      %v6433 = vand.u32 %v6432, 4294901760
      %v6434 = vsub.f32 %v6432, %v6433
      %v6435 = vand.u32 %v6434, 4294901760
      %6436 = vmatprep.subr.mxu0 %v6435
      %v6437 = vand.u32 %v281, 4294901760
      %v6438 = vsub.f32 %v281, %v6437
      %v6439 = vand.u32 %v6438, 4294901760
      %v6440 = vsub.f32 %v6438, %v6439
      %v6441 = vand.u32 %v6440, 4294901760
      %6442 = vmatpush1.msra.mxu0 %v6441
      %v6443 = vand.u32 %v278, 4294901760
      %v6444 = vsub.f32 %v278, %v6443
      %v6445 = vand.u32 %v6444, 4294901760
      %v6446 = vsub.f32 %v6444, %v6445
      %v6447 = vand.u32 %v6446, 4294901760
      %6448 = vmatprep.subr.mxu0 %v6447
      %v6449 = vand.u32 %v277, 4294901760
      %v6450 = vsub.f32 %v277, %v6449
      %v6451 = vand.u32 %v6450, 4294901760
      %v6452 = vsub.f32 %v6450, %v6451
      %v6453 = vand.u32 %v6452, 4294901760
      %6454 = vmatpush1.msra.mxu0 %v6453
      %v6455 = vand.u32 %v274, 4294901760
      %v6456 = vsub.f32 %v274, %v6455
      %v6457 = vand.u32 %v6456, 4294901760
      %v6458 = vsub.f32 %v6456, %v6457
      %v6459 = vand.u32 %v6458, 4294901760
      %6460 = vmatprep.subr.mxu0 %v6459
      %v6461 = vand.u32 %v273, 4294901760
      %v6462 = vsub.f32 %v273, %v6461
      %v6463 = vand.u32 %v6462, 4294901760
      %v6464 = vsub.f32 %v6462, %v6463
      %v6465 = vand.u32 %v6464, 4294901760
      %6466 = vmatpush1.msra.mxu0 %v6465
      %v6467 = vand.u32 %v270, 4294901760
      %v6468 = vsub.f32 %v270, %v6467
      %v6469 = vand.u32 %v6468, 4294901760
      %v6470 = vsub.f32 %v6468, %v6469
      %v6471 = vand.u32 %v6470, 4294901760
      %6472 = vmatprep.subr.mxu0 %v6471
      %v6473 = vand.u32 %v269, 4294901760
      %v6474 = vsub.f32 %v269, %v6473
      %v6475 = vand.u32 %v6474, 4294901760
      %v6476 = vsub.f32 %v6474, %v6475
      %v6477 = vand.u32 %v6476, 4294901760
      %6478 = vmatpush1.msra.mxu0 %v6477
      %v6479 = vand.u32 %v266, 4294901760
      %v6480 = vsub.f32 %v266, %v6479
      %v6481 = vand.u32 %v6480, 4294901760
      %v6482 = vsub.f32 %v6480, %v6481
      %v6483 = vand.u32 %v6482, 4294901760
      %6484 = vmatprep.subr.mxu0 %v6483
      %v6485 = vand.u32 %v265, 4294901760
      %v6486 = vsub.f32 %v265, %v6485
      %v6487 = vand.u32 %v6486, 4294901760
      %v6488 = vsub.f32 %v6486, %v6487
      %v6489 = vand.u32 %v6488, 4294901760
      %6490 = vmatpush1.msra.mxu0 %v6489
      %v6491 = vand.u32 %v262, 4294901760
      %v6492 = vsub.f32 %v262, %v6491
      %v6493 = vand.u32 %v6492, 4294901760
      %v6494 = vsub.f32 %v6492, %v6493
      %v6495 = vand.u32 %v6494, 4294901760
      %6496 = vmatprep.subr.mxu0 %v6495
      %v6497 = vand.u32 %v261, 4294901760
      %v6498 = vsub.f32 %v261, %v6497
      %v6499 = vand.u32 %v6498, 4294901760
      %v6500 = vsub.f32 %v6498, %v6499
      %v6501 = vand.u32 %v6500, 4294901760
      %6502 = vmatpush1.msra.mxu0 %v6501
      %v6503 = vand.u32 %v258, 4294901760
      %v6504 = vsub.f32 %v258, %v6503
      %v6505 = vand.u32 %v6504, 4294901760
      %v6506 = vsub.f32 %v6504, %v6505
      %v6507 = vand.u32 %v6506, 4294901760
      %6508 = vmatprep.subr.mxu0 %v6507
      %v6509 = vand.u32 %v257, 4294901760
      %v6510 = vsub.f32 %v257, %v6509
      %v6511 = vand.u32 %v6510, 4294901760
      %v6512 = vsub.f32 %v6510, %v6511
      %v6513 = vand.u32 %v6512, 4294901760
      %6514 = vmatpush1.msra.mxu0 %v6513
      %v6515 = vand.u32 %v254, 4294901760
      %v6516 = vsub.f32 %v254, %v6515
      %v6517 = vand.u32 %v6516, 4294901760
      %v6518 = vsub.f32 %v6516, %v6517
      %v6519 = vand.u32 %v6518, 4294901760
      %6520 = vmatprep.subr.mxu0 %v6519
      %v6521 = vand.u32 %v253, 4294901760
      %v6522 = vsub.f32 %v253, %v6521
      %v6523 = vand.u32 %v6522, 4294901760
      %v6524 = vsub.f32 %v6522, %v6523
      %v6525 = vand.u32 %v6524, 4294901760
      %6526 = vmatpush1.msra.mxu0 %v6525
      %v6527 = vand.u32 %v250, 4294901760
      %v6528 = vsub.f32 %v250, %v6527
      %v6529 = vand.u32 %v6528, 4294901760
      %v6530 = vsub.f32 %v6528, %v6529
      %v6531 = vand.u32 %v6530, 4294901760
      %6532 = vmatprep.subr.mxu0 %v6531
      %v6533 = vand.u32 %v249, 4294901760
      %v6534 = vsub.f32 %v249, %v6533
      %v6535 = vand.u32 %v6534, 4294901760
      %v6536 = vsub.f32 %v6534, %v6535
      %v6537 = vand.u32 %v6536, 4294901760
      %6538 = vmatpush1.msra.mxu0 %v6537
      %v6539 = vand.u32 %v246, 4294901760
      %v6540 = vsub.f32 %v246, %v6539
      %v6541 = vand.u32 %v6540, 4294901760
      %v6542 = vsub.f32 %v6540, %v6541
      %v6543 = vand.u32 %v6542, 4294901760
      %6544 = vmatprep.subr.mxu0 %v6543
      %v6545 = vand.u32 %v245, 4294901760
      %v6546 = vsub.f32 %v245, %v6545
      %v6547 = vand.u32 %v6546, 4294901760
      %v6548 = vsub.f32 %v6546, %v6547
      %v6549 = vand.u32 %v6548, 4294901760
      %6550 = vmatpush1.msra.mxu0 %v6549
      %v6551 = vand.u32 %v242, 4294901760
      %v6552 = vsub.f32 %v242, %v6551
      %v6553 = vand.u32 %v6552, 4294901760
      %v6554 = vsub.f32 %v6552, %v6553
      %v6555 = vand.u32 %v6554, 4294901760
      %6556 = vmatprep.subr.mxu0 %v6555
      %v6557 = vand.u32 %v241, 4294901760
      %v6558 = vsub.f32 %v241, %v6557
      %v6559 = vand.u32 %v6558, 4294901760
      %v6560 = vsub.f32 %v6558, %v6559
      %v6561 = vand.u32 %v6560, 4294901760
      %6562 = vmatpush1.msra.mxu0 %v6561
      %v6563 = vand.u32 %v238, 4294901760
      %v6564 = vsub.f32 %v238, %v6563
      %v6565 = vand.u32 %v6564, 4294901760
      %v6566 = vsub.f32 %v6564, %v6565
      %v6567 = vand.u32 %v6566, 4294901760
      %6568 = vmatprep.subr.mxu0 %v6567
      %v6569 = vand.u32 %v237, 4294901760
      %v6570 = vsub.f32 %v237, %v6569
      %v6571 = vand.u32 %v6570, 4294901760
      %v6572 = vsub.f32 %v6570, %v6571
      %v6573 = vand.u32 %v6572, 4294901760
      %6574 = vmatpush1.msra.mxu0 %v6573
      %v6575 = vand.u32 %v234, 4294901760
      %v6576 = vsub.f32 %v234, %v6575
      %v6577 = vand.u32 %v6576, 4294901760
      %v6578 = vsub.f32 %v6576, %v6577
      %v6579 = vand.u32 %v6578, 4294901760
      %6580 = vmatprep.subr.mxu0 %v6579
      %v6581 = vand.u32 %v233, 4294901760
      %v6582 = vsub.f32 %v233, %v6581
      %v6583 = vand.u32 %v6582, 4294901760
      %v6584 = vsub.f32 %v6582, %v6583
      %v6585 = vand.u32 %v6584, 4294901760
      %6586 = vmatpush1.msra.mxu0 %v6585
      %6587 = vmatprep.subr.mxu0 0.0
      %6588 = vmatpush2.msra.mxu0 0.0
      %6589 = vmatprep.subr.mxu0 0.0
      %6590 = vmatpush2.msra.mxu0 0.0
      %6591 = vmatprep.subr.mxu0 0.0
      %6592 = vmatpush2.msra.mxu0 0.0
      %6593 = vmatprep.subr.mxu0 0.0
      %6594 = vmatpush2.msra.mxu0 0.0
      %6595 = vmatprep.subr.mxu0 0.0
      %6596 = vmatpush2.msra.mxu0 0.0
      %6597 = vmatprep.subr.mxu0 0.0
      %6598 = vmatpush2.msra.mxu0 0.0
      %6599 = vmatprep.subr.mxu0 0.0
      %6600 = vmatpush2.msra.mxu0 0.0
      %6601 = vmatprep.subr.mxu0 0.0
      %6602 = vmatpush2.msra.mxu0 0.0
      %6603 = vmatprep.subr.mxu0 0.0
      %6604 = vmatpush2.msra.mxu0 0.0
      %6605 = vmatprep.subr.mxu0 0.0
      %6606 = vmatpush2.msra.mxu0 0.0
      %6607 = vmatprep.subr.mxu0 0.0
      %6608 = vmatpush2.msra.mxu0 0.0
      %6609 = vmatprep.subr.mxu0 0.0
      %6610 = vmatpush2.msra.mxu0 0.0
      %6611 = vmatprep.subr.mxu0 0.0
      %6612 = vmatpush2.msra.mxu0 0.0
      %6613 = vmatprep.subr.mxu0 0.0
      %6614 = vmatpush2.msra.mxu0 0.0
      %6615 = vmatprep.subr.mxu0 0.0
      %6616 = vmatpush2.msra.mxu0 0.0
      %6617 = vmatprep.subr.mxu0 0.0
      %6618 = vmatpush2.msra.mxu0 0.0
      %6619 = vmatprep.mubr.f32.mxu0 0.0
      %v6620 = vand.u32 %v5431, 4294901760
      %6621 = vmatmul.mubr.f32.gmra.mxu0 %v6620
      %v6622 = vpop.f32.mrf.mxu0
      %v6623 = vadd.f32 %v6391, %v6622
      %v6624 = vpop.f32.mrf.mxu0
      %v6625 = vadd.f32 %v6393, %v6624
      %6626 = vdwg.mxu0
      %v6627 = vand.u32 %v294, 4294901760
      %v6628 = vsub.f32 %v294, %v6627
      %6629 = vmatprep.subr.mxu0 %v6628
      %v6630 = vand.u32 %v293, 4294901760
      %v6631 = vsub.f32 %v293, %v6630
      %6632 = vmatpush1.msra.mxu0 %v6631
      %v6633 = vand.u32 %v290, 4294901760
      %v6634 = vsub.f32 %v290, %v6633
      %6635 = vmatprep.subr.mxu0 %v6634
      %v6636 = vand.u32 %v289, 4294901760
      %v6637 = vsub.f32 %v289, %v6636
      %6638 = vmatpush1.msra.mxu0 %v6637
      %v6639 = vand.u32 %v286, 4294901760
      %v6640 = vsub.f32 %v286, %v6639
      %6641 = vmatprep.subr.mxu0 %v6640
      %v6642 = vand.u32 %v285, 4294901760
      %v6643 = vsub.f32 %v285, %v6642
      %6644 = vmatpush1.msra.mxu0 %v6643
      %v6645 = vand.u32 %v282, 4294901760
      %v6646 = vsub.f32 %v282, %v6645
      %6647 = vmatprep.subr.mxu0 %v6646
      %v6648 = vand.u32 %v281, 4294901760
      %v6649 = vsub.f32 %v281, %v6648
      %6650 = vmatpush1.msra.mxu0 %v6649
      %v6651 = vand.u32 %v278, 4294901760
      %v6652 = vsub.f32 %v278, %v6651
      %6653 = vmatprep.subr.mxu0 %v6652
      %v6654 = vand.u32 %v277, 4294901760
      %v6655 = vsub.f32 %v277, %v6654
      %6656 = vmatpush1.msra.mxu0 %v6655
      %v6657 = vand.u32 %v274, 4294901760
      %v6658 = vsub.f32 %v274, %v6657
      %6659 = vmatprep.subr.mxu0 %v6658
      %v6660 = vand.u32 %v273, 4294901760
      %v6661 = vsub.f32 %v273, %v6660
      %6662 = vmatpush1.msra.mxu0 %v6661
      %v6663 = vand.u32 %v270, 4294901760
      %v6664 = vsub.f32 %v270, %v6663
      %6665 = vmatprep.subr.mxu0 %v6664
      %v6666 = vand.u32 %v269, 4294901760
      %v6667 = vsub.f32 %v269, %v6666
      %6668 = vmatpush1.msra.mxu0 %v6667
      %v6669 = vand.u32 %v266, 4294901760
      %v6670 = vsub.f32 %v266, %v6669
      %6671 = vmatprep.subr.mxu0 %v6670
      %v6672 = vand.u32 %v265, 4294901760
      %v6673 = vsub.f32 %v265, %v6672
      %6674 = vmatpush1.msra.mxu0 %v6673
      %v6675 = vand.u32 %v262, 4294901760
      %v6676 = vsub.f32 %v262, %v6675
      %6677 = vmatprep.subr.mxu0 %v6676
      %v6678 = vand.u32 %v261, 4294901760
      %v6679 = vsub.f32 %v261, %v6678
      %6680 = vmatpush1.msra.mxu0 %v6679
      %v6681 = vand.u32 %v258, 4294901760
      %v6682 = vsub.f32 %v258, %v6681
      %6683 = vmatprep.subr.mxu0 %v6682
      %v6684 = vand.u32 %v257, 4294901760
      %v6685 = vsub.f32 %v257, %v6684
      %6686 = vmatpush1.msra.mxu0 %v6685
      %v6687 = vand.u32 %v254, 4294901760
      %v6688 = vsub.f32 %v254, %v6687
      %6689 = vmatprep.subr.mxu0 %v6688
      %v6690 = vand.u32 %v253, 4294901760
      %v6691 = vsub.f32 %v253, %v6690
      %6692 = vmatpush1.msra.mxu0 %v6691
      %v6693 = vand.u32 %v250, 4294901760
      %v6694 = vsub.f32 %v250, %v6693
      %6695 = vmatprep.subr.mxu0 %v6694
      %v6696 = vand.u32 %v249, 4294901760
      %v6697 = vsub.f32 %v249, %v6696
      %6698 = vmatpush1.msra.mxu0 %v6697
      %v6699 = vand.u32 %v246, 4294901760
      %v6700 = vsub.f32 %v246, %v6699
      %6701 = vmatprep.subr.mxu0 %v6700
      %v6702 = vand.u32 %v245, 4294901760
      %v6703 = vsub.f32 %v245, %v6702
      %6704 = vmatpush1.msra.mxu0 %v6703
      %v6705 = vand.u32 %v242, 4294901760
      %v6706 = vsub.f32 %v242, %v6705
      %6707 = vmatprep.subr.mxu0 %v6706
      %v6708 = vand.u32 %v241, 4294901760
      %v6709 = vsub.f32 %v241, %v6708
      %6710 = vmatpush1.msra.mxu0 %v6709
      %v6711 = vand.u32 %v238, 4294901760
      %v6712 = vsub.f32 %v238, %v6711
      %6713 = vmatprep.subr.mxu0 %v6712
      %v6714 = vand.u32 %v237, 4294901760
      %v6715 = vsub.f32 %v237, %v6714
      %6716 = vmatpush1.msra.mxu0 %v6715
      %v6717 = vand.u32 %v234, 4294901760
      %v6718 = vsub.f32 %v234, %v6717
      %6719 = vmatprep.subr.mxu0 %v6718
      %v6720 = vand.u32 %v233, 4294901760
      %v6721 = vsub.f32 %v233, %v6720
      %6722 = vmatpush1.msra.mxu0 %v6721
      %6723 = vmatprep.subr.mxu0 0.0
      %6724 = vmatpush2.msra.mxu0 0.0
      %6725 = vmatprep.subr.mxu0 0.0
      %6726 = vmatpush2.msra.mxu0 0.0
      %6727 = vmatprep.subr.mxu0 0.0
      %6728 = vmatpush2.msra.mxu0 0.0
      %6729 = vmatprep.subr.mxu0 0.0
      %6730 = vmatpush2.msra.mxu0 0.0
      %6731 = vmatprep.subr.mxu0 0.0
      %6732 = vmatpush2.msra.mxu0 0.0
      %6733 = vmatprep.subr.mxu0 0.0
      %6734 = vmatpush2.msra.mxu0 0.0
      %6735 = vmatprep.subr.mxu0 0.0
      %6736 = vmatpush2.msra.mxu0 0.0
      %6737 = vmatprep.subr.mxu0 0.0
      %6738 = vmatpush2.msra.mxu0 0.0
      %6739 = vmatprep.subr.mxu0 0.0
      %6740 = vmatpush2.msra.mxu0 0.0
      %6741 = vmatprep.subr.mxu0 0.0
      %6742 = vmatpush2.msra.mxu0 0.0
      %6743 = vmatprep.subr.mxu0 0.0
      %6744 = vmatpush2.msra.mxu0 0.0
      %6745 = vmatprep.subr.mxu0 0.0
      %6746 = vmatpush2.msra.mxu0 0.0
      %6747 = vmatprep.subr.mxu0 0.0
      %6748 = vmatpush2.msra.mxu0 0.0
      %6749 = vmatprep.subr.mxu0 0.0
      %6750 = vmatpush2.msra.mxu0 0.0
      %6751 = vmatprep.subr.mxu0 0.0
      %6752 = vmatpush2.msra.mxu0 0.0
      %6753 = vmatprep.subr.mxu0 0.0
      %6754 = vmatpush2.msra.mxu0 0.0
      %6755 = vmatprep.mubr.f32.mxu0 0.0
      %v6756 = vand.u32 %v5431, 4294901760
      %v6757 = vsub.f32 %v5431, %v6756
      %6758 = vmatmul.mubr.f32.gmra.mxu0 %v6757
      %v6759 = vpop.f32.mrf.mxu0
      %v6760 = vadd.f32 %v6623, %v6759
      %v6761 = vpop.f32.mrf.mxu0
      %v6762 = vadd.f32 %v6625, %v6761
      %6763 = vdwg.mxu0
      %v6764 = vand.u32 %v294, 4294901760
      %6765 = vmatprep.subr.mxu0 %v6764
      %v6766 = vand.u32 %v293, 4294901760
      %6767 = vmatpush1.msra.mxu0 %v6766
      %v6768 = vand.u32 %v290, 4294901760
      %6769 = vmatprep.subr.mxu0 %v6768
      %v6770 = vand.u32 %v289, 4294901760
      %6771 = vmatpush1.msra.mxu0 %v6770
      %v6772 = vand.u32 %v286, 4294901760
      %6773 = vmatprep.subr.mxu0 %v6772
      %v6774 = vand.u32 %v285, 4294901760
      %6775 = vmatpush1.msra.mxu0 %v6774
      %v6776 = vand.u32 %v282, 4294901760
      %6777 = vmatprep.subr.mxu0 %v6776
      %v6778 = vand.u32 %v281, 4294901760
      %6779 = vmatpush1.msra.mxu0 %v6778
      %v6780 = vand.u32 %v278, 4294901760
      %6781 = vmatprep.subr.mxu0 %v6780
      %v6782 = vand.u32 %v277, 4294901760
      %6783 = vmatpush1.msra.mxu0 %v6782
      %v6784 = vand.u32 %v274, 4294901760
      %6785 = vmatprep.subr.mxu0 %v6784
      %v6786 = vand.u32 %v273, 4294901760
      %6787 = vmatpush1.msra.mxu0 %v6786
      %v6788 = vand.u32 %v270, 4294901760
      %6789 = vmatprep.subr.mxu0 %v6788
      %v6790 = vand.u32 %v269, 4294901760
      %6791 = vmatpush1.msra.mxu0 %v6790
      %v6792 = vand.u32 %v266, 4294901760
      %6793 = vmatprep.subr.mxu0 %v6792
      %v6794 = vand.u32 %v265, 4294901760
      %6795 = vmatpush1.msra.mxu0 %v6794
      %v6796 = vand.u32 %v262, 4294901760
      %6797 = vmatprep.subr.mxu0 %v6796
      %v6798 = vand.u32 %v261, 4294901760
      %6799 = vmatpush1.msra.mxu0 %v6798
      %v6800 = vand.u32 %v258, 4294901760
      %6801 = vmatprep.subr.mxu0 %v6800
      %v6802 = vand.u32 %v257, 4294901760
      %6803 = vmatpush1.msra.mxu0 %v6802
      %v6804 = vand.u32 %v254, 4294901760
      %6805 = vmatprep.subr.mxu0 %v6804
      %v6806 = vand.u32 %v253, 4294901760
      %6807 = vmatpush1.msra.mxu0 %v6806
      %v6808 = vand.u32 %v250, 4294901760
      %6809 = vmatprep.subr.mxu0 %v6808
      %v6810 = vand.u32 %v249, 4294901760
      %6811 = vmatpush1.msra.mxu0 %v6810
      %v6812 = vand.u32 %v246, 4294901760
      %6813 = vmatprep.subr.mxu0 %v6812
      %v6814 = vand.u32 %v245, 4294901760
      %6815 = vmatpush1.msra.mxu0 %v6814
      %v6816 = vand.u32 %v242, 4294901760
      %6817 = vmatprep.subr.mxu0 %v6816
      %v6818 = vand.u32 %v241, 4294901760
      %6819 = vmatpush1.msra.mxu0 %v6818
      %v6820 = vand.u32 %v238, 4294901760
      %6821 = vmatprep.subr.mxu0 %v6820
      %v6822 = vand.u32 %v237, 4294901760
      %6823 = vmatpush1.msra.mxu0 %v6822
      %v6824 = vand.u32 %v234, 4294901760
      %6825 = vmatprep.subr.mxu0 %v6824
      %v6826 = vand.u32 %v233, 4294901760
      %6827 = vmatpush1.msra.mxu0 %v6826
      %6828 = vmatprep.subr.mxu0 0.0
      %6829 = vmatpush2.msra.mxu0 0.0
      %6830 = vmatprep.subr.mxu0 0.0
      %6831 = vmatpush2.msra.mxu0 0.0
      %6832 = vmatprep.subr.mxu0 0.0
      %6833 = vmatpush2.msra.mxu0 0.0
      %6834 = vmatprep.subr.mxu0 0.0
      %6835 = vmatpush2.msra.mxu0 0.0
      %6836 = vmatprep.subr.mxu0 0.0
      %6837 = vmatpush2.msra.mxu0 0.0
      %6838 = vmatprep.subr.mxu0 0.0
      %6839 = vmatpush2.msra.mxu0 0.0
      %6840 = vmatprep.subr.mxu0 0.0
      %6841 = vmatpush2.msra.mxu0 0.0
      %6842 = vmatprep.subr.mxu0 0.0
      %6843 = vmatpush2.msra.mxu0 0.0
      %6844 = vmatprep.subr.mxu0 0.0
      %6845 = vmatpush2.msra.mxu0 0.0
      %6846 = vmatprep.subr.mxu0 0.0
      %6847 = vmatpush2.msra.mxu0 0.0
      %6848 = vmatprep.subr.mxu0 0.0
      %6849 = vmatpush2.msra.mxu0 0.0
      %6850 = vmatprep.subr.mxu0 0.0
      %6851 = vmatpush2.msra.mxu0 0.0
      %6852 = vmatprep.subr.mxu0 0.0
      %6853 = vmatpush2.msra.mxu0 0.0
      %6854 = vmatprep.subr.mxu0 0.0
      %6855 = vmatpush2.msra.mxu0 0.0
      %6856 = vmatprep.subr.mxu0 0.0
      %6857 = vmatpush2.msra.mxu0 0.0
      %6858 = vmatprep.subr.mxu0 0.0
      %6859 = vmatpush2.msra.mxu0 0.0
      %6860 = vmatprep.mubr.f32.mxu0 0.0
      %v6861 = vand.u32 %v5431, 4294901760
      %v6862 = vsub.f32 %v5431, %v6861
      %v6863 = vand.u32 %v6862, 4294901760
      %6864 = vmatmul.mubr.f32.gmra.mxu0 %v6863
      %v6865 = vpop.f32.mrf.mxu0
      %v6866 = vadd.f32 %v6760, %v6865
      %v6867 = vpop.f32.mrf.mxu0
      %v6868 = vadd.f32 %v6762, %v6867
      %6869 = vdwg.mxu0
      %v6870 = vand.u32 %v294, 4294901760
      %v6871 = vsub.f32 %v294, %v6870
      %v6872 = vand.u32 %v6871, 4294901760
      %6873 = vmatprep.subr.mxu0 %v6872
      %v6874 = vand.u32 %v293, 4294901760
      %v6875 = vsub.f32 %v293, %v6874
      %v6876 = vand.u32 %v6875, 4294901760
      %6877 = vmatpush1.msra.mxu0 %v6876
      %v6878 = vand.u32 %v290, 4294901760
      %v6879 = vsub.f32 %v290, %v6878
      %v6880 = vand.u32 %v6879, 4294901760
      %6881 = vmatprep.subr.mxu0 %v6880
      %v6882 = vand.u32 %v289, 4294901760
      %v6883 = vsub.f32 %v289, %v6882
      %v6884 = vand.u32 %v6883, 4294901760
      %6885 = vmatpush1.msra.mxu0 %v6884
      %v6886 = vand.u32 %v286, 4294901760
      %v6887 = vsub.f32 %v286, %v6886
      %v6888 = vand.u32 %v6887, 4294901760
      %6889 = vmatprep.subr.mxu0 %v6888
      %v6890 = vand.u32 %v285, 4294901760
      %v6891 = vsub.f32 %v285, %v6890
      %v6892 = vand.u32 %v6891, 4294901760
      %6893 = vmatpush1.msra.mxu0 %v6892
      %v6894 = vand.u32 %v282, 4294901760
      %v6895 = vsub.f32 %v282, %v6894
      %v6896 = vand.u32 %v6895, 4294901760
      %6897 = vmatprep.subr.mxu0 %v6896
      %v6898 = vand.u32 %v281, 4294901760
      %v6899 = vsub.f32 %v281, %v6898
      %v6900 = vand.u32 %v6899, 4294901760
      %6901 = vmatpush1.msra.mxu0 %v6900
      %v6902 = vand.u32 %v278, 4294901760
      %v6903 = vsub.f32 %v278, %v6902
      %v6904 = vand.u32 %v6903, 4294901760
      %6905 = vmatprep.subr.mxu0 %v6904
      %v6906 = vand.u32 %v277, 4294901760
      %v6907 = vsub.f32 %v277, %v6906
      %v6908 = vand.u32 %v6907, 4294901760
      %6909 = vmatpush1.msra.mxu0 %v6908
      %v6910 = vand.u32 %v274, 4294901760
      %v6911 = vsub.f32 %v274, %v6910
      %v6912 = vand.u32 %v6911, 4294901760
      %6913 = vmatprep.subr.mxu0 %v6912
      %v6914 = vand.u32 %v273, 4294901760
      %v6915 = vsub.f32 %v273, %v6914
      %v6916 = vand.u32 %v6915, 4294901760
      %6917 = vmatpush1.msra.mxu0 %v6916
      %v6918 = vand.u32 %v270, 4294901760
      %v6919 = vsub.f32 %v270, %v6918
      %v6920 = vand.u32 %v6919, 4294901760
      %6921 = vmatprep.subr.mxu0 %v6920
      %v6922 = vand.u32 %v269, 4294901760
      %v6923 = vsub.f32 %v269, %v6922
      %v6924 = vand.u32 %v6923, 4294901760
      %6925 = vmatpush1.msra.mxu0 %v6924
      %v6926 = vand.u32 %v266, 4294901760
      %v6927 = vsub.f32 %v266, %v6926
      %v6928 = vand.u32 %v6927, 4294901760
      %6929 = vmatprep.subr.mxu0 %v6928
      %v6930 = vand.u32 %v265, 4294901760
      %v6931 = vsub.f32 %v265, %v6930
      %v6932 = vand.u32 %v6931, 4294901760
      %6933 = vmatpush1.msra.mxu0 %v6932
      %v6934 = vand.u32 %v262, 4294901760
      %v6935 = vsub.f32 %v262, %v6934
      %v6936 = vand.u32 %v6935, 4294901760
      %6937 = vmatprep.subr.mxu0 %v6936
      %v6938 = vand.u32 %v261, 4294901760
      %v6939 = vsub.f32 %v261, %v6938
      %v6940 = vand.u32 %v6939, 4294901760
      %6941 = vmatpush1.msra.mxu0 %v6940
      %v6942 = vand.u32 %v258, 4294901760
      %v6943 = vsub.f32 %v258, %v6942
      %v6944 = vand.u32 %v6943, 4294901760
      %6945 = vmatprep.subr.mxu0 %v6944
      %v6946 = vand.u32 %v257, 4294901760
      %v6947 = vsub.f32 %v257, %v6946
      %v6948 = vand.u32 %v6947, 4294901760
      %6949 = vmatpush1.msra.mxu0 %v6948
      %v6950 = vand.u32 %v254, 4294901760
      %v6951 = vsub.f32 %v254, %v6950
      %v6952 = vand.u32 %v6951, 4294901760
      %6953 = vmatprep.subr.mxu0 %v6952
      %v6954 = vand.u32 %v253, 4294901760
      %v6955 = vsub.f32 %v253, %v6954
      %v6956 = vand.u32 %v6955, 4294901760
      %6957 = vmatpush1.msra.mxu0 %v6956
      %v6958 = vand.u32 %v250, 4294901760
      %v6959 = vsub.f32 %v250, %v6958
      %v6960 = vand.u32 %v6959, 4294901760
      %6961 = vmatprep.subr.mxu0 %v6960
      %v6962 = vand.u32 %v249, 4294901760
      %v6963 = vsub.f32 %v249, %v6962
      %v6964 = vand.u32 %v6963, 4294901760
      %6965 = vmatpush1.msra.mxu0 %v6964
      %v6966 = vand.u32 %v246, 4294901760
      %v6967 = vsub.f32 %v246, %v6966
      %v6968 = vand.u32 %v6967, 4294901760
      %6969 = vmatprep.subr.mxu0 %v6968
      %v6970 = vand.u32 %v245, 4294901760
      %v6971 = vsub.f32 %v245, %v6970
      %v6972 = vand.u32 %v6971, 4294901760
      %6973 = vmatpush1.msra.mxu0 %v6972
      %v6974 = vand.u32 %v242, 4294901760
      %v6975 = vsub.f32 %v242, %v6974
      %v6976 = vand.u32 %v6975, 4294901760
      %6977 = vmatprep.subr.mxu0 %v6976
      %v6978 = vand.u32 %v241, 4294901760
      %v6979 = vsub.f32 %v241, %v6978
      %v6980 = vand.u32 %v6979, 4294901760
      %6981 = vmatpush1.msra.mxu0 %v6980
      %v6982 = vand.u32 %v238, 4294901760
      %v6983 = vsub.f32 %v238, %v6982
      %v6984 = vand.u32 %v6983, 4294901760
      %6985 = vmatprep.subr.mxu0 %v6984
      %v6986 = vand.u32 %v237, 4294901760
      %v6987 = vsub.f32 %v237, %v6986
      %v6988 = vand.u32 %v6987, 4294901760
      %6989 = vmatpush1.msra.mxu0 %v6988
      %v6990 = vand.u32 %v234, 4294901760
      %v6991 = vsub.f32 %v234, %v6990
      %v6992 = vand.u32 %v6991, 4294901760
      %6993 = vmatprep.subr.mxu0 %v6992
      %v6994 = vand.u32 %v233, 4294901760
      %v6995 = vsub.f32 %v233, %v6994
      %v6996 = vand.u32 %v6995, 4294901760
      %6997 = vmatpush1.msra.mxu0 %v6996
      %6998 = vmatprep.subr.mxu0 0.0
      %6999 = vmatpush2.msra.mxu0 0.0
      %7000 = vmatprep.subr.mxu0 0.0
      %7001 = vmatpush2.msra.mxu0 0.0
      %7002 = vmatprep.subr.mxu0 0.0
      %7003 = vmatpush2.msra.mxu0 0.0
      %7004 = vmatprep.subr.mxu0 0.0
      %7005 = vmatpush2.msra.mxu0 0.0
      %7006 = vmatprep.subr.mxu0 0.0
      %7007 = vmatpush2.msra.mxu0 0.0
      %7008 = vmatprep.subr.mxu0 0.0
      %7009 = vmatpush2.msra.mxu0 0.0
      %7010 = vmatprep.subr.mxu0 0.0
      %7011 = vmatpush2.msra.mxu0 0.0
      %7012 = vmatprep.subr.mxu0 0.0
      %7013 = vmatpush2.msra.mxu0 0.0
      %7014 = vmatprep.subr.mxu0 0.0
      %7015 = vmatpush2.msra.mxu0 0.0
      %7016 = vmatprep.subr.mxu0 0.0
      %7017 = vmatpush2.msra.mxu0 0.0
      %7018 = vmatprep.subr.mxu0 0.0
      %7019 = vmatpush2.msra.mxu0 0.0
      %7020 = vmatprep.subr.mxu0 0.0
      %7021 = vmatpush2.msra.mxu0 0.0
      %7022 = vmatprep.subr.mxu0 0.0
      %7023 = vmatpush2.msra.mxu0 0.0
      %7024 = vmatprep.subr.mxu0 0.0
      %7025 = vmatpush2.msra.mxu0 0.0
      %7026 = vmatprep.subr.mxu0 0.0
      %7027 = vmatpush2.msra.mxu0 0.0
      %7028 = vmatprep.subr.mxu0 0.0
      %7029 = vmatpush2.msra.mxu0 0.0
      %7030 = vmatprep.mubr.f32.mxu0 0.0
      %v7031 = vand.u32 %v5431, 4294901760
      %7032 = vmatmul.mubr.f32.gmra.mxu0 %v7031
      %v7033 = vpop.f32.mrf.mxu0
      %v7034 = vadd.f32 %v6866, %v7033
      %v7035 = vpop.f32.mrf.mxu0
      %v7036 = vadd.f32 %v6868, %v7035
      %7037 = vdwg.mxu0
      %v7038 = vand.u32 %v294, 4294901760
      %7039 = vmatprep.subr.mxu0 %v7038
      %v7040 = vand.u32 %v293, 4294901760
      %7041 = vmatpush1.msra.mxu0 %v7040
      %v7042 = vand.u32 %v290, 4294901760
      %7043 = vmatprep.subr.mxu0 %v7042
      %v7044 = vand.u32 %v289, 4294901760
      %7045 = vmatpush1.msra.mxu0 %v7044
      %v7046 = vand.u32 %v286, 4294901760
      %7047 = vmatprep.subr.mxu0 %v7046
      %v7048 = vand.u32 %v285, 4294901760
      %7049 = vmatpush1.msra.mxu0 %v7048
      %v7050 = vand.u32 %v282, 4294901760
      %7051 = vmatprep.subr.mxu0 %v7050
      %v7052 = vand.u32 %v281, 4294901760
      %7053 = vmatpush1.msra.mxu0 %v7052
      %v7054 = vand.u32 %v278, 4294901760
      %7055 = vmatprep.subr.mxu0 %v7054
      %v7056 = vand.u32 %v277, 4294901760
      %7057 = vmatpush1.msra.mxu0 %v7056
      %v7058 = vand.u32 %v274, 4294901760
      %7059 = vmatprep.subr.mxu0 %v7058
      %v7060 = vand.u32 %v273, 4294901760
      %7061 = vmatpush1.msra.mxu0 %v7060
      %v7062 = vand.u32 %v270, 4294901760
      %7063 = vmatprep.subr.mxu0 %v7062
      %v7064 = vand.u32 %v269, 4294901760
      %7065 = vmatpush1.msra.mxu0 %v7064
      %v7066 = vand.u32 %v266, 4294901760
      %7067 = vmatprep.subr.mxu0 %v7066
      %v7068 = vand.u32 %v265, 4294901760
      %7069 = vmatpush1.msra.mxu0 %v7068
      %v7070 = vand.u32 %v262, 4294901760
      %7071 = vmatprep.subr.mxu0 %v7070
      %v7072 = vand.u32 %v261, 4294901760
      %7073 = vmatpush1.msra.mxu0 %v7072
      %v7074 = vand.u32 %v258, 4294901760
      %7075 = vmatprep.subr.mxu0 %v7074
      %v7076 = vand.u32 %v257, 4294901760
      %7077 = vmatpush1.msra.mxu0 %v7076
      %v7078 = vand.u32 %v254, 4294901760
      %7079 = vmatprep.subr.mxu0 %v7078
      %v7080 = vand.u32 %v253, 4294901760
      %7081 = vmatpush1.msra.mxu0 %v7080
      %v7082 = vand.u32 %v250, 4294901760
      %7083 = vmatprep.subr.mxu0 %v7082
      %v7084 = vand.u32 %v249, 4294901760
      %7085 = vmatpush1.msra.mxu0 %v7084
      %v7086 = vand.u32 %v246, 4294901760
      %7087 = vmatprep.subr.mxu0 %v7086
      %v7088 = vand.u32 %v245, 4294901760
      %7089 = vmatpush1.msra.mxu0 %v7088
      %v7090 = vand.u32 %v242, 4294901760
      %7091 = vmatprep.subr.mxu0 %v7090
      %v7092 = vand.u32 %v241, 4294901760
      %7093 = vmatpush1.msra.mxu0 %v7092
      %v7094 = vand.u32 %v238, 4294901760
      %7095 = vmatprep.subr.mxu0 %v7094
      %v7096 = vand.u32 %v237, 4294901760
      %7097 = vmatpush1.msra.mxu0 %v7096
      %v7098 = vand.u32 %v234, 4294901760
      %7099 = vmatprep.subr.mxu0 %v7098
      %v7100 = vand.u32 %v233, 4294901760
      %7101 = vmatpush1.msra.mxu0 %v7100
      %7102 = vmatprep.subr.mxu0 0.0
      %7103 = vmatpush2.msra.mxu0 0.0
      %7104 = vmatprep.subr.mxu0 0.0
      %7105 = vmatpush2.msra.mxu0 0.0
      %7106 = vmatprep.subr.mxu0 0.0
      %7107 = vmatpush2.msra.mxu0 0.0
      %7108 = vmatprep.subr.mxu0 0.0
      %7109 = vmatpush2.msra.mxu0 0.0
      %7110 = vmatprep.subr.mxu0 0.0
      %7111 = vmatpush2.msra.mxu0 0.0
      %7112 = vmatprep.subr.mxu0 0.0
      %7113 = vmatpush2.msra.mxu0 0.0
      %7114 = vmatprep.subr.mxu0 0.0
      %7115 = vmatpush2.msra.mxu0 0.0
      %7116 = vmatprep.subr.mxu0 0.0
      %7117 = vmatpush2.msra.mxu0 0.0
      %7118 = vmatprep.subr.mxu0 0.0
      %7119 = vmatpush2.msra.mxu0 0.0
      %7120 = vmatprep.subr.mxu0 0.0
      %7121 = vmatpush2.msra.mxu0 0.0
      %7122 = vmatprep.subr.mxu0 0.0
      %7123 = vmatpush2.msra.mxu0 0.0
      %7124 = vmatprep.subr.mxu0 0.0
      %7125 = vmatpush2.msra.mxu0 0.0
      %7126 = vmatprep.subr.mxu0 0.0
      %7127 = vmatpush2.msra.mxu0 0.0
      %7128 = vmatprep.subr.mxu0 0.0
      %7129 = vmatpush2.msra.mxu0 0.0
      %7130 = vmatprep.subr.mxu0 0.0
      %7131 = vmatpush2.msra.mxu0 0.0
      %7132 = vmatprep.subr.mxu0 0.0
      %7133 = vmatpush2.msra.mxu0 0.0
      %7134 = vmatprep.mubr.f32.mxu0 0.0
      %v7135 = vand.u32 %v5431, 4294901760
      %7136 = vmatmul.mubr.f32.gmra.mxu0 %v7135
      %v7137 = vpop.f32.mrf.mxu0
      %v7138 = vadd.f32 %v7034, %v7137
      %v7139 = vpop.f32.mrf.mxu0
      %v7140 = vadd.f32 %v7036, %v7139
      %7141 = vdwg.mxu0
      %v7142 = vld [vmem:[%s2] sm:$0xf]
      %v7144 = vlaneseq
      %v7145 = vshrl.u32 %v7144, 7
      %v7146 = vsub.s32 0, %v7145
      %v7147 = vrot.slane %v7142, %v7146
      %v7148 = vlaneseq
      %v7149 = vshrl.u32 %v7148, 7
      %v7150 = vsub.s32 1, %v7149
      %v7151 = vrot.slane %v7142, %v7150
      %v7152 = vlaneseq
      %v7153 = vshrl.u32 %v7152, 7
      %v7154 = vsub.s32 2, %v7153
      %v7155 = vrot.slane %v7142, %v7154
      %v7156 = vlaneseq
      %v7157 = vshrl.u32 %v7156, 7
      %v7158 = vsub.s32 3, %v7157
      %v7159 = vrot.slane %v7142, %v7158
      %v7164 = vmul.f32 %v1147, %v7147
      %v7165 = vmul.f32 %v1149, %v7151
      %v7166 = vmul.f32 %v2002, %v7155
      %v7167 = vmul.f32 %v2004, %v7159
      %s7168 = scalar_lea.vmem %s2, 32
      %v7169 = vld [vmem:[%s7168] sm:$0xf]
      %v7171 = vlaneseq
      %v7172 = vshrl.u32 %v7171, 7
      %v7173 = vsub.s32 0, %v7172
      %v7174 = vrot.slane %v7169, %v7173
      %v7175 = vlaneseq
      %v7176 = vshrl.u32 %v7175, 7
      %v7177 = vsub.s32 1, %v7176
      %v7178 = vrot.slane %v7169, %v7177
      %v7179 = vlaneseq
      %v7180 = vshrl.u32 %v7179, 7
      %v7181 = vsub.s32 2, %v7180
      %v7182 = vrot.slane %v7169, %v7181
      %v7183 = vlaneseq
      %v7184 = vshrl.u32 %v7183, 7
      %v7185 = vsub.s32 3, %v7184
      %v7186 = vrot.slane %v7169, %v7185
      %v7191 = vmul.f32 %v2859, %v7174
      %v7192 = vmul.f32 %v2861, %v7178
      %v7193 = vmul.f32 %v3714, %v7182
      %v7194 = vmul.f32 %v3716, %v7186
      %v7195 = vadd.f32 %v7164, %v7191
      %v7196 = vadd.f32 %v7165, %v7192
      %v7197 = vadd.f32 %v7166, %v7193
      %v7198 = vadd.f32 %v7167, %v7194
      %s7199 = scalar_lea.vmem %s2, 64
      %v7200 = vld [vmem:[%s7199] sm:$0xf]
      %v7202 = vlaneseq
      %v7203 = vshrl.u32 %v7202, 7
      %v7204 = vsub.s32 0, %v7203
      %v7205 = vrot.slane %v7200, %v7204
      %v7206 = vlaneseq
      %v7207 = vshrl.u32 %v7206, 7
      %v7208 = vsub.s32 1, %v7207
      %v7209 = vrot.slane %v7200, %v7208
      %v7210 = vlaneseq
      %v7211 = vshrl.u32 %v7210, 7
      %v7212 = vsub.s32 2, %v7211
      %v7213 = vrot.slane %v7200, %v7212
      %v7214 = vlaneseq
      %v7215 = vshrl.u32 %v7214, 7
      %v7216 = vsub.s32 3, %v7215
      %v7217 = vrot.slane %v7200, %v7216
      %v7222 = vmul.f32 %v4571, %v7205
      %v7223 = vmul.f32 %v4573, %v7209
      %v7224 = vmul.f32 %v5426, %v7213
      %v7225 = vmul.f32 %v5428, %v7217
      %v7226 = vadd.f32 %v7195, %v7222
      %v7227 = vadd.f32 %v7196, %v7223
      %v7228 = vadd.f32 %v7197, %v7224
      %v7229 = vadd.f32 %v7198, %v7225
      %s7230 = scalar_lea.vmem %s2, 96
      %v7231 = vld [vmem:[%s7230] sm:$0xf]
      %v7233 = vlaneseq
      %v7234 = vshrl.u32 %v7233, 7
      %v7235 = vsub.s32 0, %v7234
      %v7236 = vrot.slane %v7231, %v7235
      %v7237 = vlaneseq
      %v7238 = vshrl.u32 %v7237, 7
      %v7239 = vsub.s32 1, %v7238
      %v7240 = vrot.slane %v7231, %v7239
      %v7241 = vlaneseq
      %v7242 = vshrl.u32 %v7241, 7
      %v7243 = vsub.s32 2, %v7242
      %v7244 = vrot.slane %v7231, %v7243
      %v7245 = vlaneseq
      %v7246 = vshrl.u32 %v7245, 7
      %v7247 = vsub.s32 3, %v7246
      %v7248 = vrot.slane %v7231, %v7247
      %v7253 = vmul.f32 %v6283, %v7236
      %v7254 = vmul.f32 %v6285, %v7240
      %v7255 = vmul.f32 %v7138, %v7244
      %v7256 = vmul.f32 %v7140, %v7248
      %v7257 = vadd.f32 %v7226, %v7253
      %v7258 = vadd.f32 %v7227, %v7254
      %v7259 = vadd.f32 %v7228, %v7255
      %v7260 = vadd.f32 %v7229, %v7256
      %v7261 = vld [vmem:[%s3] sm:$0xf]
      %v7263 = vlaneseq
      %v7264 = vshrl.u32 %v7263, 7
      %v7265 = vsub.s32 0, %v7264
      %v7266 = vrot.slane %v7261, %v7265
      %v7267 = vlaneseq
      %v7268 = vshrl.u32 %v7267, 7
      %v7269 = vsub.s32 1, %v7268
      %v7270 = vrot.slane %v7261, %v7269
      %v7271 = vlaneseq
      %v7272 = vshrl.u32 %v7271, 7
      %v7273 = vsub.s32 2, %v7272
      %v7274 = vrot.slane %v7261, %v7273
      %v7275 = vlaneseq
      %v7276 = vshrl.u32 %v7275, 7
      %v7277 = vsub.s32 3, %v7276
      %v7278 = vrot.slane %v7261, %v7277
      %v7283 = vadd.f32 %v7257, %v7266
      %v7284 = vadd.f32 %v7258, %v7270
      %v7285 = vadd.f32 %v7259, %v7274
      %v7286 = vadd.f32 %v7260, %v7278
      %v7291 = vcombine.low %v7283, %v7284
      %v7292 = vcombine.low %v7285, %v7286
      %v7294 = vunpack.c.l.s4 1983009808
      %v7295 = vunpack.c.0.s8 %v7294
      %v7296 = vlaneseq
      %v7297 = vshrl.u32 %v7296, 7
      %v7298 = vsub.s32 %v7295, %v7297
      %v7299 = vrot.slane %v7291, %v7298
      %v7301 = vunpack.c.l.s4 1983009808
      %v7302 = vunpack.c.0.s8 %v7301
      %v7303 = vlaneseq
      %v7304 = vshrl.u32 %v7303, 7
      %v7305 = vsub.s32 %v7302, %v7304
      %v7306 = vrot.slane %v7292, %v7305
      %v7307 = vcombine.low %v7299, %v7306
      %7309 = vst [vmem:[%s230] sm:$0xff] %v7307
      %s7310 = scalar_lea.vmem %s2, 4
      %v7311 = vld [vmem:[%s7310] sm:$0xf]
      %v7313 = vlaneseq
      %v7314 = vshrl.u32 %v7313, 7
      %v7315 = vsub.s32 0, %v7314
      %v7316 = vrot.slane %v7311, %v7315
      %v7317 = vlaneseq
      %v7318 = vshrl.u32 %v7317, 7
      %v7319 = vsub.s32 1, %v7318
      %v7320 = vrot.slane %v7311, %v7319
      %v7321 = vlaneseq
      %v7322 = vshrl.u32 %v7321, 7
      %v7323 = vsub.s32 2, %v7322
      %v7324 = vrot.slane %v7311, %v7323
      %v7325 = vlaneseq
      %v7326 = vshrl.u32 %v7325, 7
      %v7327 = vsub.s32 3, %v7326
      %v7328 = vrot.slane %v7311, %v7327
      %v7333 = vmul.f32 %v1147, %v7316
      %v7334 = vmul.f32 %v1149, %v7320
      %v7335 = vmul.f32 %v2002, %v7324
      %v7336 = vmul.f32 %v2004, %v7328
      %s7337 = scalar_lea.vmem %s2, 36
      %v7338 = vld [vmem:[%s7337] sm:$0xf]
      %v7340 = vlaneseq
      %v7341 = vshrl.u32 %v7340, 7
      %v7342 = vsub.s32 0, %v7341
      %v7343 = vrot.slane %v7338, %v7342
      %v7344 = vlaneseq
      %v7345 = vshrl.u32 %v7344, 7
      %v7346 = vsub.s32 1, %v7345
      %v7347 = vrot.slane %v7338, %v7346
      %v7348 = vlaneseq
      %v7349 = vshrl.u32 %v7348, 7
      %v7350 = vsub.s32 2, %v7349
      %v7351 = vrot.slane %v7338, %v7350
      %v7352 = vlaneseq
      %v7353 = vshrl.u32 %v7352, 7
      %v7354 = vsub.s32 3, %v7353
      %v7355 = vrot.slane %v7338, %v7354
      %v7360 = vmul.f32 %v2859, %v7343
      %v7361 = vmul.f32 %v2861, %v7347
      %v7362 = vmul.f32 %v3714, %v7351
      %v7363 = vmul.f32 %v3716, %v7355
      %v7364 = vadd.f32 %v7333, %v7360
      %v7365 = vadd.f32 %v7334, %v7361
      %v7366 = vadd.f32 %v7335, %v7362
      %v7367 = vadd.f32 %v7336, %v7363
      %s7368 = scalar_lea.vmem %s2, 68
      %v7369 = vld [vmem:[%s7368] sm:$0xf]
      %v7371 = vlaneseq
      %v7372 = vshrl.u32 %v7371, 7
      %v7373 = vsub.s32 0, %v7372
      %v7374 = vrot.slane %v7369, %v7373
      %v7375 = vlaneseq
      %v7376 = vshrl.u32 %v7375, 7
      %v7377 = vsub.s32 1, %v7376
      %v7378 = vrot.slane %v7369, %v7377
      %v7379 = vlaneseq
      %v7380 = vshrl.u32 %v7379, 7
      %v7381 = vsub.s32 2, %v7380
      %v7382 = vrot.slane %v7369, %v7381
      %v7383 = vlaneseq
      %v7384 = vshrl.u32 %v7383, 7
      %v7385 = vsub.s32 3, %v7384
      %v7386 = vrot.slane %v7369, %v7385
      %v7391 = vmul.f32 %v4571, %v7374
      %v7392 = vmul.f32 %v4573, %v7378
      %v7393 = vmul.f32 %v5426, %v7382
      %v7394 = vmul.f32 %v5428, %v7386
      %v7395 = vadd.f32 %v7364, %v7391
      %v7396 = vadd.f32 %v7365, %v7392
      %v7397 = vadd.f32 %v7366, %v7393
      %v7398 = vadd.f32 %v7367, %v7394
      %s7399 = scalar_lea.vmem %s2, 100
      %v7400 = vld [vmem:[%s7399] sm:$0xf]
      %v7402 = vlaneseq
      %v7403 = vshrl.u32 %v7402, 7
      %v7404 = vsub.s32 0, %v7403
      %v7405 = vrot.slane %v7400, %v7404
      %v7406 = vlaneseq
      %v7407 = vshrl.u32 %v7406, 7
      %v7408 = vsub.s32 1, %v7407
      %v7409 = vrot.slane %v7400, %v7408
      %v7410 = vlaneseq
      %v7411 = vshrl.u32 %v7410, 7
      %v7412 = vsub.s32 2, %v7411
      %v7413 = vrot.slane %v7400, %v7412
      %v7414 = vlaneseq
      %v7415 = vshrl.u32 %v7414, 7
      %v7416 = vsub.s32 3, %v7415
      %v7417 = vrot.slane %v7400, %v7416
      %v7422 = vmul.f32 %v6283, %v7405
      %v7423 = vmul.f32 %v6285, %v7409
      %v7424 = vmul.f32 %v7138, %v7413
      %v7425 = vmul.f32 %v7140, %v7417
      %v7426 = vadd.f32 %v7395, %v7422
      %v7427 = vadd.f32 %v7396, %v7423
      %v7428 = vadd.f32 %v7397, %v7424
      %v7429 = vadd.f32 %v7398, %v7425
      %s7430 = scalar_lea.vmem %s3, 4
      %v7431 = vld [vmem:[%s7430] sm:$0xf]
      %v7433 = vlaneseq
      %v7434 = vshrl.u32 %v7433, 7
      %v7435 = vsub.s32 0, %v7434
      %v7436 = vrot.slane %v7431, %v7435
      %v7437 = vlaneseq
      %v7438 = vshrl.u32 %v7437, 7
      %v7439 = vsub.s32 1, %v7438
      %v7440 = vrot.slane %v7431, %v7439
      %v7441 = vlaneseq
      %v7442 = vshrl.u32 %v7441, 7
      %v7443 = vsub.s32 2, %v7442
      %v7444 = vrot.slane %v7431, %v7443
      %v7445 = vlaneseq
      %v7446 = vshrl.u32 %v7445, 7
      %v7447 = vsub.s32 3, %v7446
      %v7448 = vrot.slane %v7431, %v7447
      %v7453 = vadd.f32 %v7426, %v7436
      %v7454 = vadd.f32 %v7427, %v7440
      %v7455 = vadd.f32 %v7428, %v7444
      %v7456 = vadd.f32 %v7429, %v7448
      %v7461 = vcombine.low %v7453, %v7454
      %v7462 = vcombine.low %v7455, %v7456
      %v7464 = vunpack.c.l.s4 1983009808
      %v7465 = vunpack.c.0.s8 %v7464
      %v7466 = vlaneseq
      %v7467 = vshrl.u32 %v7466, 7
      %v7468 = vsub.s32 %v7465, %v7467
      %v7469 = vrot.slane %v7461, %v7468
      %v7471 = vunpack.c.l.s4 1983009808
      %v7472 = vunpack.c.0.s8 %v7471
      %v7473 = vlaneseq
      %v7474 = vshrl.u32 %v7473, 7
      %v7475 = vsub.s32 %v7472, %v7474
      %v7476 = vrot.slane %v7462, %v7475
      %v7477 = vcombine.low %v7469, %v7476
      %s7479 = scalar_lea.vmem %s230, 8
      %7480 = vst [vmem:[%s7479] sm:$0xff] %v7477
      %s7481 = scalar_lea.vmem %s2, 8
      %v7482 = vld [vmem:[%s7481] sm:$0xf]
      %v7484 = vlaneseq
      %v7485 = vshrl.u32 %v7484, 7
      %v7486 = vsub.s32 0, %v7485
      %v7487 = vrot.slane %v7482, %v7486
      %v7488 = vlaneseq
      %v7489 = vshrl.u32 %v7488, 7
      %v7490 = vsub.s32 1, %v7489
      %v7491 = vrot.slane %v7482, %v7490
      %v7492 = vlaneseq
      %v7493 = vshrl.u32 %v7492, 7
      %v7494 = vsub.s32 2, %v7493
      %v7495 = vrot.slane %v7482, %v7494
      %v7496 = vlaneseq
      %v7497 = vshrl.u32 %v7496, 7
      %v7498 = vsub.s32 3, %v7497
      %v7499 = vrot.slane %v7482, %v7498
      %v7504 = vmul.f32 %v1147, %v7487
      %v7505 = vmul.f32 %v1149, %v7491
      %v7506 = vmul.f32 %v2002, %v7495
      %v7507 = vmul.f32 %v2004, %v7499
      %s7508 = scalar_lea.vmem %s2, 40
      %v7509 = vld [vmem:[%s7508] sm:$0xf]
      %v7511 = vlaneseq
      %v7512 = vshrl.u32 %v7511, 7
      %v7513 = vsub.s32 0, %v7512
      %v7514 = vrot.slane %v7509, %v7513
      %v7515 = vlaneseq
      %v7516 = vshrl.u32 %v7515, 7
      %v7517 = vsub.s32 1, %v7516
      %v7518 = vrot.slane %v7509, %v7517
      %v7519 = vlaneseq
      %v7520 = vshrl.u32 %v7519, 7
      %v7521 = vsub.s32 2, %v7520
      %v7522 = vrot.slane %v7509, %v7521
      %v7523 = vlaneseq
      %v7524 = vshrl.u32 %v7523, 7
      %v7525 = vsub.s32 3, %v7524
      %v7526 = vrot.slane %v7509, %v7525
      %v7531 = vmul.f32 %v2859, %v7514
      %v7532 = vmul.f32 %v2861, %v7518
      %v7533 = vmul.f32 %v3714, %v7522
      %v7534 = vmul.f32 %v3716, %v7526
      %v7535 = vadd.f32 %v7504, %v7531
      %v7536 = vadd.f32 %v7505, %v7532
      %v7537 = vadd.f32 %v7506, %v7533
      %v7538 = vadd.f32 %v7507, %v7534
      %s7539 = scalar_lea.vmem %s2, 72
      %v7540 = vld [vmem:[%s7539] sm:$0xf]
      %v7542 = vlaneseq
      %v7543 = vshrl.u32 %v7542, 7
      %v7544 = vsub.s32 0, %v7543
      %v7545 = vrot.slane %v7540, %v7544
      %v7546 = vlaneseq
      %v7547 = vshrl.u32 %v7546, 7
      %v7548 = vsub.s32 1, %v7547
      %v7549 = vrot.slane %v7540, %v7548
      %v7550 = vlaneseq
      %v7551 = vshrl.u32 %v7550, 7
      %v7552 = vsub.s32 2, %v7551
      %v7553 = vrot.slane %v7540, %v7552
      %v7554 = vlaneseq
      %v7555 = vshrl.u32 %v7554, 7
      %v7556 = vsub.s32 3, %v7555
      %v7557 = vrot.slane %v7540, %v7556
      %v7562 = vmul.f32 %v4571, %v7545
      %v7563 = vmul.f32 %v4573, %v7549
      %v7564 = vmul.f32 %v5426, %v7553
      %v7565 = vmul.f32 %v5428, %v7557
      %v7566 = vadd.f32 %v7535, %v7562
      %v7567 = vadd.f32 %v7536, %v7563
      %v7568 = vadd.f32 %v7537, %v7564
      %v7569 = vadd.f32 %v7538, %v7565
      %s7570 = scalar_lea.vmem %s2, 104
      %v7571 = vld [vmem:[%s7570] sm:$0xf]
      %v7573 = vlaneseq
      %v7574 = vshrl.u32 %v7573, 7
      %v7575 = vsub.s32 0, %v7574
      %v7576 = vrot.slane %v7571, %v7575
      %v7577 = vlaneseq
      %v7578 = vshrl.u32 %v7577, 7
      %v7579 = vsub.s32 1, %v7578
      %v7580 = vrot.slane %v7571, %v7579
      %v7581 = vlaneseq
      %v7582 = vshrl.u32 %v7581, 7
      %v7583 = vsub.s32 2, %v7582
      %v7584 = vrot.slane %v7571, %v7583
      %v7585 = vlaneseq
      %v7586 = vshrl.u32 %v7585, 7
      %v7587 = vsub.s32 3, %v7586
      %v7588 = vrot.slane %v7571, %v7587
      %v7593 = vmul.f32 %v6283, %v7576
      %v7594 = vmul.f32 %v6285, %v7580
      %v7595 = vmul.f32 %v7138, %v7584
      %v7596 = vmul.f32 %v7140, %v7588
      %v7597 = vadd.f32 %v7566, %v7593
      %v7598 = vadd.f32 %v7567, %v7594
      %v7599 = vadd.f32 %v7568, %v7595
      %v7600 = vadd.f32 %v7569, %v7596
      %s7601 = scalar_lea.vmem %s3, 8
      %v7602 = vld [vmem:[%s7601] sm:$0xf]
      %v7604 = vlaneseq
      %v7605 = vshrl.u32 %v7604, 7
      %v7606 = vsub.s32 0, %v7605
      %v7607 = vrot.slane %v7602, %v7606
      %v7608 = vlaneseq
      %v7609 = vshrl.u32 %v7608, 7
      %v7610 = vsub.s32 1, %v7609
      %v7611 = vrot.slane %v7602, %v7610
      %v7612 = vlaneseq
      %v7613 = vshrl.u32 %v7612, 7
      %v7614 = vsub.s32 2, %v7613
      %v7615 = vrot.slane %v7602, %v7614
      %v7616 = vlaneseq
      %v7617 = vshrl.u32 %v7616, 7
      %v7618 = vsub.s32 3, %v7617
      %v7619 = vrot.slane %v7602, %v7618
      %v7624 = vadd.f32 %v7597, %v7607
      %v7625 = vadd.f32 %v7598, %v7611
      %v7626 = vadd.f32 %v7599, %v7615
      %v7627 = vadd.f32 %v7600, %v7619
      %v7632 = vcombine.low %v7624, %v7625
      %v7633 = vcombine.low %v7626, %v7627
      %v7635 = vunpack.c.l.s4 1983009808
      %v7636 = vunpack.c.0.s8 %v7635
      %v7637 = vlaneseq
      %v7638 = vshrl.u32 %v7637, 7
      %v7639 = vsub.s32 %v7636, %v7638
      %v7640 = vrot.slane %v7632, %v7639
      %v7642 = vunpack.c.l.s4 1983009808
      %v7643 = vunpack.c.0.s8 %v7642
      %v7644 = vlaneseq
      %v7645 = vshrl.u32 %v7644, 7
      %v7646 = vsub.s32 %v7643, %v7645
      %v7647 = vrot.slane %v7633, %v7646
      %v7648 = vcombine.low %v7640, %v7647
      %s7650 = scalar_lea.vmem %s230, 16
      %7651 = vst [vmem:[%s7650] sm:$0xff] %v7648
      %s7652 = scalar_lea.vmem %s2, 12
      %v7653 = vld [vmem:[%s7652] sm:$0xf]
      %v7655 = vlaneseq
      %v7656 = vshrl.u32 %v7655, 7
      %v7657 = vsub.s32 0, %v7656
      %v7658 = vrot.slane %v7653, %v7657
      %v7659 = vlaneseq
      %v7660 = vshrl.u32 %v7659, 7
      %v7661 = vsub.s32 1, %v7660
      %v7662 = vrot.slane %v7653, %v7661
      %v7663 = vlaneseq
      %v7664 = vshrl.u32 %v7663, 7
      %v7665 = vsub.s32 2, %v7664
      %v7666 = vrot.slane %v7653, %v7665
      %v7667 = vlaneseq
      %v7668 = vshrl.u32 %v7667, 7
      %v7669 = vsub.s32 3, %v7668
      %v7670 = vrot.slane %v7653, %v7669
      %v7675 = vmul.f32 %v1147, %v7658
      %v7676 = vmul.f32 %v1149, %v7662
      %v7677 = vmul.f32 %v2002, %v7666
      %v7678 = vmul.f32 %v2004, %v7670
      %s7679 = scalar_lea.vmem %s2, 44
      %v7680 = vld [vmem:[%s7679] sm:$0xf]
      %v7682 = vlaneseq
      %v7683 = vshrl.u32 %v7682, 7
      %v7684 = vsub.s32 0, %v7683
      %v7685 = vrot.slane %v7680, %v7684
      %v7686 = vlaneseq
      %v7687 = vshrl.u32 %v7686, 7
      %v7688 = vsub.s32 1, %v7687
      %v7689 = vrot.slane %v7680, %v7688
      %v7690 = vlaneseq
      %v7691 = vshrl.u32 %v7690, 7
      %v7692 = vsub.s32 2, %v7691
      %v7693 = vrot.slane %v7680, %v7692
      %v7694 = vlaneseq
      %v7695 = vshrl.u32 %v7694, 7
      %v7696 = vsub.s32 3, %v7695
      %v7697 = vrot.slane %v7680, %v7696
      %v7702 = vmul.f32 %v2859, %v7685
      %v7703 = vmul.f32 %v2861, %v7689
      %v7704 = vmul.f32 %v3714, %v7693
      %v7705 = vmul.f32 %v3716, %v7697
      %v7706 = vadd.f32 %v7675, %v7702
      %v7707 = vadd.f32 %v7676, %v7703
      %v7708 = vadd.f32 %v7677, %v7704
      %v7709 = vadd.f32 %v7678, %v7705
      %s7710 = scalar_lea.vmem %s2, 76
      %v7711 = vld [vmem:[%s7710] sm:$0xf]
      %v7713 = vlaneseq
      %v7714 = vshrl.u32 %v7713, 7
      %v7715 = vsub.s32 0, %v7714
      %v7716 = vrot.slane %v7711, %v7715
      %v7717 = vlaneseq
      %v7718 = vshrl.u32 %v7717, 7
      %v7719 = vsub.s32 1, %v7718
      %v7720 = vrot.slane %v7711, %v7719
      %v7721 = vlaneseq
      %v7722 = vshrl.u32 %v7721, 7
      %v7723 = vsub.s32 2, %v7722
      %v7724 = vrot.slane %v7711, %v7723
      %v7725 = vlaneseq
      %v7726 = vshrl.u32 %v7725, 7
      %v7727 = vsub.s32 3, %v7726
      %v7728 = vrot.slane %v7711, %v7727
      %v7733 = vmul.f32 %v4571, %v7716
      %v7734 = vmul.f32 %v4573, %v7720
      %v7735 = vmul.f32 %v5426, %v7724
      %v7736 = vmul.f32 %v5428, %v7728
      %v7737 = vadd.f32 %v7706, %v7733
      %v7738 = vadd.f32 %v7707, %v7734
      %v7739 = vadd.f32 %v7708, %v7735
      %v7740 = vadd.f32 %v7709, %v7736
      %s7741 = scalar_lea.vmem %s2, 108
      %v7742 = vld [vmem:[%s7741] sm:$0xf]
      %v7744 = vlaneseq
      %v7745 = vshrl.u32 %v7744, 7
      %v7746 = vsub.s32 0, %v7745
      %v7747 = vrot.slane %v7742, %v7746
      %v7748 = vlaneseq
      %v7749 = vshrl.u32 %v7748, 7
      %v7750 = vsub.s32 1, %v7749
      %v7751 = vrot.slane %v7742, %v7750
      %v7752 = vlaneseq
      %v7753 = vshrl.u32 %v7752, 7
      %v7754 = vsub.s32 2, %v7753
      %v7755 = vrot.slane %v7742, %v7754
      %v7756 = vlaneseq
      %v7757 = vshrl.u32 %v7756, 7
      %v7758 = vsub.s32 3, %v7757
      %v7759 = vrot.slane %v7742, %v7758
      %v7764 = vmul.f32 %v6283, %v7747
      %v7765 = vmul.f32 %v6285, %v7751
      %v7766 = vmul.f32 %v7138, %v7755
      %v7767 = vmul.f32 %v7140, %v7759
      %v7768 = vadd.f32 %v7737, %v7764
      %v7769 = vadd.f32 %v7738, %v7765
      %v7770 = vadd.f32 %v7739, %v7766
      %v7771 = vadd.f32 %v7740, %v7767
      %s7772 = scalar_lea.vmem %s3, 12
      %v7773 = vld [vmem:[%s7772] sm:$0xf]
      %v7775 = vlaneseq
      %v7776 = vshrl.u32 %v7775, 7
      %v7777 = vsub.s32 0, %v7776
      %v7778 = vrot.slane %v7773, %v7777
      %v7779 = vlaneseq
      %v7780 = vshrl.u32 %v7779, 7
      %v7781 = vsub.s32 1, %v7780
      %v7782 = vrot.slane %v7773, %v7781
      %v7783 = vlaneseq
      %v7784 = vshrl.u32 %v7783, 7
      %v7785 = vsub.s32 2, %v7784
      %v7786 = vrot.slane %v7773, %v7785
      %v7787 = vlaneseq
      %v7788 = vshrl.u32 %v7787, 7
      %v7789 = vsub.s32 3, %v7788
      %v7790 = vrot.slane %v7773, %v7789
      %v7795 = vadd.f32 %v7768, %v7778
      %v7796 = vadd.f32 %v7769, %v7782
      %v7797 = vadd.f32 %v7770, %v7786
      %v7798 = vadd.f32 %v7771, %v7790
      %v7803 = vcombine.low %v7795, %v7796
      %v7804 = vcombine.low %v7797, %v7798
      %v7806 = vunpack.c.l.s4 1983009808
      %v7807 = vunpack.c.0.s8 %v7806
      %v7808 = vlaneseq
      %v7809 = vshrl.u32 %v7808, 7
      %v7810 = vsub.s32 %v7807, %v7809
      %v7811 = vrot.slane %v7803, %v7810
      %v7813 = vunpack.c.l.s4 1983009808
      %v7814 = vunpack.c.0.s8 %v7813
      %v7815 = vlaneseq
      %v7816 = vshrl.u32 %v7815, 7
      %v7817 = vsub.s32 %v7814, %v7816
      %v7818 = vrot.slane %v7804, %v7817
      %v7819 = vcombine.low %v7811, %v7818
      %s7821 = scalar_lea.vmem %s230, 24
      %7822 = vst [vmem:[%s7821] sm:$0xff] %v7819
      %s7823 = scalar_lea.vmem %s2, 16
      %v7824 = vld [vmem:[%s7823] sm:$0xf]
      %v7826 = vlaneseq
      %v7827 = vshrl.u32 %v7826, 7
      %v7828 = vsub.s32 0, %v7827
      %v7829 = vrot.slane %v7824, %v7828
      %v7830 = vlaneseq
      %v7831 = vshrl.u32 %v7830, 7
      %v7832 = vsub.s32 1, %v7831
      %v7833 = vrot.slane %v7824, %v7832
      %v7834 = vlaneseq
      %v7835 = vshrl.u32 %v7834, 7
      %v7836 = vsub.s32 2, %v7835
      %v7837 = vrot.slane %v7824, %v7836
      %v7838 = vlaneseq
      %v7839 = vshrl.u32 %v7838, 7
      %v7840 = vsub.s32 3, %v7839
      %v7841 = vrot.slane %v7824, %v7840
      %v7846 = vmul.f32 %v1147, %v7829
      %v7847 = vmul.f32 %v1149, %v7833
      %v7848 = vmul.f32 %v2002, %v7837
      %v7849 = vmul.f32 %v2004, %v7841
      %s7850 = scalar_lea.vmem %s2, 48
      %v7851 = vld [vmem:[%s7850] sm:$0xf]
      %v7853 = vlaneseq
      %v7854 = vshrl.u32 %v7853, 7
      %v7855 = vsub.s32 0, %v7854
      %v7856 = vrot.slane %v7851, %v7855
      %v7857 = vlaneseq
      %v7858 = vshrl.u32 %v7857, 7
      %v7859 = vsub.s32 1, %v7858
      %v7860 = vrot.slane %v7851, %v7859
      %v7861 = vlaneseq
      %v7862 = vshrl.u32 %v7861, 7
      %v7863 = vsub.s32 2, %v7862
      %v7864 = vrot.slane %v7851, %v7863
      %v7865 = vlaneseq
      %v7866 = vshrl.u32 %v7865, 7
      %v7867 = vsub.s32 3, %v7866
      %v7868 = vrot.slane %v7851, %v7867
      %v7873 = vmul.f32 %v2859, %v7856
      %v7874 = vmul.f32 %v2861, %v7860
      %v7875 = vmul.f32 %v3714, %v7864
      %v7876 = vmul.f32 %v3716, %v7868
      %v7877 = vadd.f32 %v7846, %v7873
      %v7878 = vadd.f32 %v7847, %v7874
      %v7879 = vadd.f32 %v7848, %v7875
      %v7880 = vadd.f32 %v7849, %v7876
      %s7881 = scalar_lea.vmem %s2, 80
      %v7882 = vld [vmem:[%s7881] sm:$0xf]
      %v7884 = vlaneseq
      %v7885 = vshrl.u32 %v7884, 7
      %v7886 = vsub.s32 0, %v7885
      %v7887 = vrot.slane %v7882, %v7886
      %v7888 = vlaneseq
      %v7889 = vshrl.u32 %v7888, 7
      %v7890 = vsub.s32 1, %v7889
      %v7891 = vrot.slane %v7882, %v7890
      %v7892 = vlaneseq
      %v7893 = vshrl.u32 %v7892, 7
      %v7894 = vsub.s32 2, %v7893
      %v7895 = vrot.slane %v7882, %v7894
      %v7896 = vlaneseq
      %v7897 = vshrl.u32 %v7896, 7
      %v7898 = vsub.s32 3, %v7897
      %v7899 = vrot.slane %v7882, %v7898
      %v7904 = vmul.f32 %v4571, %v7887
      %v7905 = vmul.f32 %v4573, %v7891
      %v7906 = vmul.f32 %v5426, %v7895
      %v7907 = vmul.f32 %v5428, %v7899
      %v7908 = vadd.f32 %v7877, %v7904
      %v7909 = vadd.f32 %v7878, %v7905
      %v7910 = vadd.f32 %v7879, %v7906
      %v7911 = vadd.f32 %v7880, %v7907
      %s7912 = scalar_lea.vmem %s2, 112
      %v7913 = vld [vmem:[%s7912] sm:$0xf]
      %v7915 = vlaneseq
      %v7916 = vshrl.u32 %v7915, 7
      %v7917 = vsub.s32 0, %v7916
      %v7918 = vrot.slane %v7913, %v7917
      %v7919 = vlaneseq
      %v7920 = vshrl.u32 %v7919, 7
      %v7921 = vsub.s32 1, %v7920
      %v7922 = vrot.slane %v7913, %v7921
      %v7923 = vlaneseq
      %v7924 = vshrl.u32 %v7923, 7
      %v7925 = vsub.s32 2, %v7924
      %v7926 = vrot.slane %v7913, %v7925
      %v7927 = vlaneseq
      %v7928 = vshrl.u32 %v7927, 7
      %v7929 = vsub.s32 3, %v7928
      %v7930 = vrot.slane %v7913, %v7929
      %v7935 = vmul.f32 %v6283, %v7918
      %v7936 = vmul.f32 %v6285, %v7922
      %v7937 = vmul.f32 %v7138, %v7926
      %v7938 = vmul.f32 %v7140, %v7930
      %v7939 = vadd.f32 %v7908, %v7935
      %v7940 = vadd.f32 %v7909, %v7936
      %v7941 = vadd.f32 %v7910, %v7937
      %v7942 = vadd.f32 %v7911, %v7938
      %s7943 = scalar_lea.vmem %s3, 16
      %v7944 = vld [vmem:[%s7943] sm:$0xf]
      %v7946 = vlaneseq
      %v7947 = vshrl.u32 %v7946, 7
      %v7948 = vsub.s32 0, %v7947
      %v7949 = vrot.slane %v7944, %v7948
      %v7950 = vlaneseq
      %v7951 = vshrl.u32 %v7950, 7
      %v7952 = vsub.s32 1, %v7951
      %v7953 = vrot.slane %v7944, %v7952
      %v7954 = vlaneseq
      %v7955 = vshrl.u32 %v7954, 7
      %v7956 = vsub.s32 2, %v7955
      %v7957 = vrot.slane %v7944, %v7956
      %v7958 = vlaneseq
      %v7959 = vshrl.u32 %v7958, 7
      %v7960 = vsub.s32 3, %v7959
      %v7961 = vrot.slane %v7944, %v7960
      %v7966 = vadd.f32 %v7939, %v7949
      %v7967 = vadd.f32 %v7940, %v7953
      %v7968 = vadd.f32 %v7941, %v7957
      %v7969 = vadd.f32 %v7942, %v7961
      %v7974 = vcombine.low %v7966, %v7967
      %v7975 = vcombine.low %v7968, %v7969
      %v7977 = vunpack.c.l.s4 1983009808
      %v7978 = vunpack.c.0.s8 %v7977
      %v7979 = vlaneseq
      %v7980 = vshrl.u32 %v7979, 7
      %v7981 = vsub.s32 %v7978, %v7980
      %v7982 = vrot.slane %v7974, %v7981
      %v7984 = vunpack.c.l.s4 1983009808
      %v7985 = vunpack.c.0.s8 %v7984
      %v7986 = vlaneseq
      %v7987 = vshrl.u32 %v7986, 7
      %v7988 = vsub.s32 %v7985, %v7987
      %v7989 = vrot.slane %v7975, %v7988
      %v7990 = vcombine.low %v7982, %v7989
      %s7992 = scalar_lea.vmem %s230, 32
      %7993 = vst [vmem:[%s7992] sm:$0xff] %v7990
      %s7994 = scalar_lea.vmem %s2, 20
      %v7995 = vld [vmem:[%s7994] sm:$0xf]
      %v7997 = vlaneseq
      %v7998 = vshrl.u32 %v7997, 7
      %v7999 = vsub.s32 0, %v7998
      %v8000 = vrot.slane %v7995, %v7999
      %v8001 = vlaneseq
      %v8002 = vshrl.u32 %v8001, 7
      %v8003 = vsub.s32 1, %v8002
      %v8004 = vrot.slane %v7995, %v8003
      %v8005 = vlaneseq
      %v8006 = vshrl.u32 %v8005, 7
      %v8007 = vsub.s32 2, %v8006
      %v8008 = vrot.slane %v7995, %v8007
      %v8009 = vlaneseq
      %v8010 = vshrl.u32 %v8009, 7
      %v8011 = vsub.s32 3, %v8010
      %v8012 = vrot.slane %v7995, %v8011
      %v8017 = vmul.f32 %v1147, %v8000
      %v8018 = vmul.f32 %v1149, %v8004
      %v8019 = vmul.f32 %v2002, %v8008
      %v8020 = vmul.f32 %v2004, %v8012
      %s8021 = scalar_lea.vmem %s2, 52
      %v8022 = vld [vmem:[%s8021] sm:$0xf]
      %v8024 = vlaneseq
      %v8025 = vshrl.u32 %v8024, 7
      %v8026 = vsub.s32 0, %v8025
      %v8027 = vrot.slane %v8022, %v8026
      %v8028 = vlaneseq
      %v8029 = vshrl.u32 %v8028, 7
      %v8030 = vsub.s32 1, %v8029
      %v8031 = vrot.slane %v8022, %v8030
      %v8032 = vlaneseq
      %v8033 = vshrl.u32 %v8032, 7
      %v8034 = vsub.s32 2, %v8033
      %v8035 = vrot.slane %v8022, %v8034
      %v8036 = vlaneseq
      %v8037 = vshrl.u32 %v8036, 7
      %v8038 = vsub.s32 3, %v8037
      %v8039 = vrot.slane %v8022, %v8038
      %v8044 = vmul.f32 %v2859, %v8027
      %v8045 = vmul.f32 %v2861, %v8031
      %v8046 = vmul.f32 %v3714, %v8035
      %v8047 = vmul.f32 %v3716, %v8039
      %v8048 = vadd.f32 %v8017, %v8044
      %v8049 = vadd.f32 %v8018, %v8045
      %v8050 = vadd.f32 %v8019, %v8046
      %v8051 = vadd.f32 %v8020, %v8047
      %s8052 = scalar_lea.vmem %s2, 84
      %v8053 = vld [vmem:[%s8052] sm:$0xf]
      %v8055 = vlaneseq
      %v8056 = vshrl.u32 %v8055, 7
      %v8057 = vsub.s32 0, %v8056
      %v8058 = vrot.slane %v8053, %v8057
      %v8059 = vlaneseq
      %v8060 = vshrl.u32 %v8059, 7
      %v8061 = vsub.s32 1, %v8060
      %v8062 = vrot.slane %v8053, %v8061
      %v8063 = vlaneseq
      %v8064 = vshrl.u32 %v8063, 7
      %v8065 = vsub.s32 2, %v8064
      %v8066 = vrot.slane %v8053, %v8065
      %v8067 = vlaneseq
      %v8068 = vshrl.u32 %v8067, 7
      %v8069 = vsub.s32 3, %v8068
      %v8070 = vrot.slane %v8053, %v8069
      %v8075 = vmul.f32 %v4571, %v8058
      %v8076 = vmul.f32 %v4573, %v8062
      %v8077 = vmul.f32 %v5426, %v8066
      %v8078 = vmul.f32 %v5428, %v8070
      %v8079 = vadd.f32 %v8048, %v8075
      %v8080 = vadd.f32 %v8049, %v8076
      %v8081 = vadd.f32 %v8050, %v8077
      %v8082 = vadd.f32 %v8051, %v8078
      %s8083 = scalar_lea.vmem %s2, 116
      %v8084 = vld [vmem:[%s8083] sm:$0xf]
      %v8086 = vlaneseq
      %v8087 = vshrl.u32 %v8086, 7
      %v8088 = vsub.s32 0, %v8087
      %v8089 = vrot.slane %v8084, %v8088
      %v8090 = vlaneseq
      %v8091 = vshrl.u32 %v8090, 7
      %v8092 = vsub.s32 1, %v8091
      %v8093 = vrot.slane %v8084, %v8092
      %v8094 = vlaneseq
      %v8095 = vshrl.u32 %v8094, 7
      %v8096 = vsub.s32 2, %v8095
      %v8097 = vrot.slane %v8084, %v8096
      %v8098 = vlaneseq
      %v8099 = vshrl.u32 %v8098, 7
      %v8100 = vsub.s32 3, %v8099
      %v8101 = vrot.slane %v8084, %v8100
      %v8106 = vmul.f32 %v6283, %v8089
      %v8107 = vmul.f32 %v6285, %v8093
      %v8108 = vmul.f32 %v7138, %v8097
      %v8109 = vmul.f32 %v7140, %v8101
      %v8110 = vadd.f32 %v8079, %v8106
      %v8111 = vadd.f32 %v8080, %v8107
      %v8112 = vadd.f32 %v8081, %v8108
      %v8113 = vadd.f32 %v8082, %v8109
      %s8114 = scalar_lea.vmem %s3, 20
      %v8115 = vld [vmem:[%s8114] sm:$0xf]
      %v8117 = vlaneseq
      %v8118 = vshrl.u32 %v8117, 7
      %v8119 = vsub.s32 0, %v8118
      %v8120 = vrot.slane %v8115, %v8119
      %v8121 = vlaneseq
      %v8122 = vshrl.u32 %v8121, 7
      %v8123 = vsub.s32 1, %v8122
      %v8124 = vrot.slane %v8115, %v8123
      %v8125 = vlaneseq
      %v8126 = vshrl.u32 %v8125, 7
      %v8127 = vsub.s32 2, %v8126
      %v8128 = vrot.slane %v8115, %v8127
      %v8129 = vlaneseq
      %v8130 = vshrl.u32 %v8129, 7
      %v8131 = vsub.s32 3, %v8130
      %v8132 = vrot.slane %v8115, %v8131
      %v8137 = vadd.f32 %v8110, %v8120
      %v8138 = vadd.f32 %v8111, %v8124
      %v8139 = vadd.f32 %v8112, %v8128
      %v8140 = vadd.f32 %v8113, %v8132
      %v8145 = vcombine.low %v8137, %v8138
      %v8146 = vcombine.low %v8139, %v8140
      %v8148 = vunpack.c.l.s4 1983009808
      %v8149 = vunpack.c.0.s8 %v8148
      %v8150 = vlaneseq
      %v8151 = vshrl.u32 %v8150, 7
      %v8152 = vsub.s32 %v8149, %v8151
      %v8153 = vrot.slane %v8145, %v8152
      %v8155 = vunpack.c.l.s4 1983009808
      %v8156 = vunpack.c.0.s8 %v8155
      %v8157 = vlaneseq
      %v8158 = vshrl.u32 %v8157, 7
      %v8159 = vsub.s32 %v8156, %v8158
      %v8160 = vrot.slane %v8146, %v8159
      %v8161 = vcombine.low %v8153, %v8160
      %s8163 = scalar_lea.vmem %s230, 40
      %8164 = vst [vmem:[%s8163] sm:$0xff] %v8161
      %s8165 = scalar_lea.vmem %s2, 24
      %v8166 = vld [vmem:[%s8165] sm:$0xf]
      %v8168 = vlaneseq
      %v8169 = vshrl.u32 %v8168, 7
      %v8170 = vsub.s32 0, %v8169
      %v8171 = vrot.slane %v8166, %v8170
      %v8172 = vlaneseq
      %v8173 = vshrl.u32 %v8172, 7
      %v8174 = vsub.s32 1, %v8173
      %v8175 = vrot.slane %v8166, %v8174
      %v8176 = vlaneseq
      %v8177 = vshrl.u32 %v8176, 7
      %v8178 = vsub.s32 2, %v8177
      %v8179 = vrot.slane %v8166, %v8178
      %v8180 = vlaneseq
      %v8181 = vshrl.u32 %v8180, 7
      %v8182 = vsub.s32 3, %v8181
      %v8183 = vrot.slane %v8166, %v8182
      %v8188 = vmul.f32 %v1147, %v8171
      %v8189 = vmul.f32 %v1149, %v8175
      %v8190 = vmul.f32 %v2002, %v8179
      %v8191 = vmul.f32 %v2004, %v8183
      %s8192 = scalar_lea.vmem %s2, 56
      %v8193 = vld [vmem:[%s8192] sm:$0xf]
      %v8195 = vlaneseq
      %v8196 = vshrl.u32 %v8195, 7
      %v8197 = vsub.s32 0, %v8196
      %v8198 = vrot.slane %v8193, %v8197
      %v8199 = vlaneseq
      %v8200 = vshrl.u32 %v8199, 7
      %v8201 = vsub.s32 1, %v8200
      %v8202 = vrot.slane %v8193, %v8201
      %v8203 = vlaneseq
      %v8204 = vshrl.u32 %v8203, 7
      %v8205 = vsub.s32 2, %v8204
      %v8206 = vrot.slane %v8193, %v8205
      %v8207 = vlaneseq
      %v8208 = vshrl.u32 %v8207, 7
      %v8209 = vsub.s32 3, %v8208
      %v8210 = vrot.slane %v8193, %v8209
      %v8215 = vmul.f32 %v2859, %v8198
      %v8216 = vmul.f32 %v2861, %v8202
      %v8217 = vmul.f32 %v3714, %v8206
      %v8218 = vmul.f32 %v3716, %v8210
      %v8219 = vadd.f32 %v8188, %v8215
      %v8220 = vadd.f32 %v8189, %v8216
      %v8221 = vadd.f32 %v8190, %v8217
      %v8222 = vadd.f32 %v8191, %v8218
      %s8223 = scalar_lea.vmem %s2, 88
      %v8224 = vld [vmem:[%s8223] sm:$0xf]
      %v8226 = vlaneseq
      %v8227 = vshrl.u32 %v8226, 7
      %v8228 = vsub.s32 0, %v8227
      %v8229 = vrot.slane %v8224, %v8228
      %v8230 = vlaneseq
      %v8231 = vshrl.u32 %v8230, 7
      %v8232 = vsub.s32 1, %v8231
      %v8233 = vrot.slane %v8224, %v8232
      %v8234 = vlaneseq
      %v8235 = vshrl.u32 %v8234, 7
      %v8236 = vsub.s32 2, %v8235
      %v8237 = vrot.slane %v8224, %v8236
      %v8238 = vlaneseq
      %v8239 = vshrl.u32 %v8238, 7
      %v8240 = vsub.s32 3, %v8239
      %v8241 = vrot.slane %v8224, %v8240
      %v8246 = vmul.f32 %v4571, %v8229
      %v8247 = vmul.f32 %v4573, %v8233
      %v8248 = vmul.f32 %v5426, %v8237
      %v8249 = vmul.f32 %v5428, %v8241
      %v8250 = vadd.f32 %v8219, %v8246
      %v8251 = vadd.f32 %v8220, %v8247
      %v8252 = vadd.f32 %v8221, %v8248
      %v8253 = vadd.f32 %v8222, %v8249
      %s8254 = scalar_lea.vmem %s2, 120
      %v8255 = vld [vmem:[%s8254] sm:$0xf]
      %v8257 = vlaneseq
      %v8258 = vshrl.u32 %v8257, 7
      %v8259 = vsub.s32 0, %v8258
      %v8260 = vrot.slane %v8255, %v8259
      %v8261 = vlaneseq
      %v8262 = vshrl.u32 %v8261, 7
      %v8263 = vsub.s32 1, %v8262
      %v8264 = vrot.slane %v8255, %v8263
      %v8265 = vlaneseq
      %v8266 = vshrl.u32 %v8265, 7
      %v8267 = vsub.s32 2, %v8266
      %v8268 = vrot.slane %v8255, %v8267
      %v8269 = vlaneseq
      %v8270 = vshrl.u32 %v8269, 7
      %v8271 = vsub.s32 3, %v8270
      %v8272 = vrot.slane %v8255, %v8271
      %v8277 = vmul.f32 %v6283, %v8260
      %v8278 = vmul.f32 %v6285, %v8264
      %v8279 = vmul.f32 %v7138, %v8268
      %v8280 = vmul.f32 %v7140, %v8272
      %v8281 = vadd.f32 %v8250, %v8277
      %v8282 = vadd.f32 %v8251, %v8278
      %v8283 = vadd.f32 %v8252, %v8279
      %v8284 = vadd.f32 %v8253, %v8280
      %s8285 = scalar_lea.vmem %s3, 24
      %v8286 = vld [vmem:[%s8285] sm:$0xf]
      %v8288 = vlaneseq
      %v8289 = vshrl.u32 %v8288, 7
      %v8290 = vsub.s32 0, %v8289
      %v8291 = vrot.slane %v8286, %v8290
      %v8292 = vlaneseq
      %v8293 = vshrl.u32 %v8292, 7
      %v8294 = vsub.s32 1, %v8293
      %v8295 = vrot.slane %v8286, %v8294
      %v8296 = vlaneseq
      %v8297 = vshrl.u32 %v8296, 7
      %v8298 = vsub.s32 2, %v8297
      %v8299 = vrot.slane %v8286, %v8298
      %v8300 = vlaneseq
      %v8301 = vshrl.u32 %v8300, 7
      %v8302 = vsub.s32 3, %v8301
      %v8303 = vrot.slane %v8286, %v8302
      %v8308 = vadd.f32 %v8281, %v8291
      %v8309 = vadd.f32 %v8282, %v8295
      %v8310 = vadd.f32 %v8283, %v8299
      %v8311 = vadd.f32 %v8284, %v8303
      %v8316 = vcombine.low %v8308, %v8309
      %v8317 = vcombine.low %v8310, %v8311
      %v8319 = vunpack.c.l.s4 1983009808
      %v8320 = vunpack.c.0.s8 %v8319
      %v8321 = vlaneseq
      %v8322 = vshrl.u32 %v8321, 7
      %v8323 = vsub.s32 %v8320, %v8322
      %v8324 = vrot.slane %v8316, %v8323
      %v8326 = vunpack.c.l.s4 1983009808
      %v8327 = vunpack.c.0.s8 %v8326
      %v8328 = vlaneseq
      %v8329 = vshrl.u32 %v8328, 7
      %v8330 = vsub.s32 %v8327, %v8329
      %v8331 = vrot.slane %v8317, %v8330
      %v8332 = vcombine.low %v8324, %v8331
      %s8334 = scalar_lea.vmem %s230, 48
      %8335 = vst [vmem:[%s8334] sm:$0xff] %v8332
      %s8336 = scalar_lea.vmem %s2, 28
      %v8337 = vld [vmem:[%s8336] sm:$0xf]
      %v8339 = vlaneseq
      %v8340 = vshrl.u32 %v8339, 7
      %v8341 = vsub.s32 0, %v8340
      %v8342 = vrot.slane %v8337, %v8341
      %v8343 = vlaneseq
      %v8344 = vshrl.u32 %v8343, 7
      %v8345 = vsub.s32 1, %v8344
      %v8346 = vrot.slane %v8337, %v8345
      %v8347 = vlaneseq
      %v8348 = vshrl.u32 %v8347, 7
      %v8349 = vsub.s32 2, %v8348
      %v8350 = vrot.slane %v8337, %v8349
      %v8351 = vlaneseq
      %v8352 = vshrl.u32 %v8351, 7
      %v8353 = vsub.s32 3, %v8352
      %v8354 = vrot.slane %v8337, %v8353
      %v8359 = vmul.f32 %v1147, %v8342
      %v8360 = vmul.f32 %v1149, %v8346
      %v8361 = vmul.f32 %v2002, %v8350
      %v8362 = vmul.f32 %v2004, %v8354
      %s8363 = scalar_lea.vmem %s2, 60
      %v8364 = vld [vmem:[%s8363] sm:$0xf]
      %v8366 = vlaneseq
      %v8367 = vshrl.u32 %v8366, 7
      %v8368 = vsub.s32 0, %v8367
      %v8369 = vrot.slane %v8364, %v8368
      %v8370 = vlaneseq
      %v8371 = vshrl.u32 %v8370, 7
      %v8372 = vsub.s32 1, %v8371
      %v8373 = vrot.slane %v8364, %v8372
      %v8374 = vlaneseq
      %v8375 = vshrl.u32 %v8374, 7
      %v8376 = vsub.s32 2, %v8375
      %v8377 = vrot.slane %v8364, %v8376
      %v8378 = vlaneseq
      %v8379 = vshrl.u32 %v8378, 7
      %v8380 = vsub.s32 3, %v8379
      %v8381 = vrot.slane %v8364, %v8380
      %v8386 = vmul.f32 %v2859, %v8369
      %v8387 = vmul.f32 %v2861, %v8373
      %v8388 = vmul.f32 %v3714, %v8377
      %v8389 = vmul.f32 %v3716, %v8381
      %v8390 = vadd.f32 %v8359, %v8386
      %v8391 = vadd.f32 %v8360, %v8387
      %v8392 = vadd.f32 %v8361, %v8388
      %v8393 = vadd.f32 %v8362, %v8389
      %s8394 = scalar_lea.vmem %s2, 92
      %v8395 = vld [vmem:[%s8394] sm:$0xf]
      %v8397 = vlaneseq
      %v8398 = vshrl.u32 %v8397, 7
      %v8399 = vsub.s32 0, %v8398
      %v8400 = vrot.slane %v8395, %v8399
      %v8401 = vlaneseq
      %v8402 = vshrl.u32 %v8401, 7
      %v8403 = vsub.s32 1, %v8402
      %v8404 = vrot.slane %v8395, %v8403
      %v8405 = vlaneseq
      %v8406 = vshrl.u32 %v8405, 7
      %v8407 = vsub.s32 2, %v8406
      %v8408 = vrot.slane %v8395, %v8407
      %v8409 = vlaneseq
      %v8410 = vshrl.u32 %v8409, 7
      %v8411 = vsub.s32 3, %v8410
      %v8412 = vrot.slane %v8395, %v8411
      %v8417 = vmul.f32 %v4571, %v8400
      %v8418 = vmul.f32 %v4573, %v8404
      %v8419 = vmul.f32 %v5426, %v8408
      %v8420 = vmul.f32 %v5428, %v8412
      %v8421 = vadd.f32 %v8390, %v8417
      %v8422 = vadd.f32 %v8391, %v8418
      %v8423 = vadd.f32 %v8392, %v8419
      %v8424 = vadd.f32 %v8393, %v8420
      %s8425 = scalar_lea.vmem %s2, 124
      %v8426 = vld [vmem:[%s8425] sm:$0xf]
      %v8428 = vlaneseq
      %v8429 = vshrl.u32 %v8428, 7
      %v8430 = vsub.s32 0, %v8429
      %v8431 = vrot.slane %v8426, %v8430
      %v8432 = vlaneseq
      %v8433 = vshrl.u32 %v8432, 7
      %v8434 = vsub.s32 1, %v8433
      %v8435 = vrot.slane %v8426, %v8434
      %v8436 = vlaneseq
      %v8437 = vshrl.u32 %v8436, 7
      %v8438 = vsub.s32 2, %v8437
      %v8439 = vrot.slane %v8426, %v8438
      %v8440 = vlaneseq
      %v8441 = vshrl.u32 %v8440, 7
      %v8442 = vsub.s32 3, %v8441
      %v8443 = vrot.slane %v8426, %v8442
      %v8448 = vmul.f32 %v6283, %v8431
      %v8449 = vmul.f32 %v6285, %v8435
      %v8450 = vmul.f32 %v7138, %v8439
      %v8451 = vmul.f32 %v7140, %v8443
      %v8452 = vadd.f32 %v8421, %v8448
      %v8453 = vadd.f32 %v8422, %v8449
      %v8454 = vadd.f32 %v8423, %v8450
      %v8455 = vadd.f32 %v8424, %v8451
      %s8456 = scalar_lea.vmem %s3, 28
      %v8457 = vld [vmem:[%s8456] sm:$0xf]
      %v8459 = vlaneseq
      %v8460 = vshrl.u32 %v8459, 7
      %v8461 = vsub.s32 0, %v8460
      %v8462 = vrot.slane %v8457, %v8461
      %v8463 = vlaneseq
      %v8464 = vshrl.u32 %v8463, 7
      %v8465 = vsub.s32 1, %v8464
      %v8466 = vrot.slane %v8457, %v8465
      %v8467 = vlaneseq
      %v8468 = vshrl.u32 %v8467, 7
      %v8469 = vsub.s32 2, %v8468
      %v8470 = vrot.slane %v8457, %v8469
      %v8471 = vlaneseq
      %v8472 = vshrl.u32 %v8471, 7
      %v8473 = vsub.s32 3, %v8472
      %v8474 = vrot.slane %v8457, %v8473
      %v8479 = vadd.f32 %v8452, %v8462
      %v8480 = vadd.f32 %v8453, %v8466
      %v8481 = vadd.f32 %v8454, %v8470
      %v8482 = vadd.f32 %v8455, %v8474
      %v8487 = vcombine.low %v8479, %v8480
      %v8488 = vcombine.low %v8481, %v8482
      %v8490 = vunpack.c.l.s4 1983009808
      %v8491 = vunpack.c.0.s8 %v8490
      %v8492 = vlaneseq
      %v8493 = vshrl.u32 %v8492, 7
      %v8494 = vsub.s32 %v8491, %v8493
      %v8495 = vrot.slane %v8487, %v8494
      %v8497 = vunpack.c.l.s4 1983009808
      %v8498 = vunpack.c.0.s8 %v8497
      %v8499 = vlaneseq
      %v8500 = vshrl.u32 %v8499, 7
      %v8501 = vsub.s32 %v8498, %v8500
      %v8502 = vrot.slane %v8488, %v8501
      %v8503 = vcombine.low %v8495, %v8502
      %s8505 = scalar_lea.vmem %s230, 56
      %8506 = vst [vmem:[%s8505] sm:$0xff] %v8503
      %p8507 = scmp.lt.s32.totalorder %s19, 1
      %s8508 = scalar_select %p8507, %s19, 1
      %p8509 = scmp.lt.s32.totalorder %s20, 0
      %s8510 = scalar_select %p8509, %s20, 0
      %s8511 = smul.addr %s8510, 4
      %s8512 = smul.addr %s8508, 32
      %s8513 = sadd.s32 %s8511, %s8512
      %s8514 = smul.addr %s8513, 2
      %s8515 = scalar_lea.vmem %s4, %s8514
      // Predicated region
      $region37: #{upsample_forward.1} parent=35 // pred_check
        %p8516 = pneg %p138
      $region38: #{upsample_forward.1} parent=35 // pred_check_branch
        %8518 = sbr.rel (%p8516) target = $region40
      $region39: #{upsample_forward.1} parent=35 // pred_region
        _
      $region40: #{upsample_forward.1} parent=35 // pred_fallthru
        _
    $region36: #{upsample_forward.1} parent=5 // pred_fallthru
      _
    %p8519 = scmp.le.s32.totalorder 2, %s10
    // Predicated region
    $region41: #{upsample_forward.1} parent=5 // pred_check
      %p8520 = pneg %p8519
    $region42: #{upsample_forward.1} parent=5 // pred_check_branch
      %8522 = sbr.rel (%p8520) target = $region44
    $region43: #{upsample_forward.1} parent=5 // pred_region
      %s8523 = ssub.s32 %s10, 2
      // Predicated region
      $region45: #{upsample_forward.1} parent=43 // pred_check
        %p8524 = pneg %p144
      $region46: #{upsample_forward.1} parent=43 // pred_check_branch
        %8526 = sbr.rel (%p8524) target = $region48
      $region47: #{upsample_forward.1} parent=43 // pred_region
        %p8527 = scmp.lt.s32.totalorder %s21, 1
        %s8528 = scalar_select %p8527, %s21, 1
        %p8529 = scmp.lt.s32.totalorder %s22, 0
        %s8530 = scalar_select %p8529, %s22, 0
        %s8531 = smul.addr %s8530, 4
        %s8532 = smul.addr %s8528, 32
        %s8533 = sadd.s32 %s8531, %s8532
        %s8534 = smul.addr %s8533, 2
        %s8535 = scalar_lea.vmem %s4, %s8534
      $region48: #{upsample_forward.1} parent=43 // pred_fallthru
        _
    $region44: #{upsample_forward.1} parent=5 // pred_fallthru
      _
  $region6: #{upsample_forward.1} parent=0 // loop_footer
    %s14 = sadd.s32 1, %s10
  $region7: #{upsample_forward.1} parent=0 // loop_footer_branch
    %9 = sbr.rel target = $region3
  $region8: #{upsample_forward.1} parent=0 // loop_exit
    _

</llo_original>
